<compile_context>
chip_gen: v6e
topology: v6e:2x2x1
jax: 0.10.0
libtpu: 0.0.40
codegen_flags: <defaults>
</compile_context>

<pallas_src>
import jax
import jax.numpy as jnp
from jax.experimental import pallas as pl
from jax.experimental.pallas import tpu as pltpu


def _vmem():
    # Whole-array block resident in VMEM (all operands here are tiny).
    return pl.BlockSpec(memory_space=pltpu.MemorySpace.VMEM)


# ----------------------------------------------------------------------------
# Fused Environment.forward kernel
# ----------------------------------------------------------------------------
def environment_kernel(x_ref, menc_ref, mmat_ref, cm3_ref, am3_ref, gt_ref,
                       wenc_ref, benc_ref, whh_ref, bhn_ref,
                       mwih_ref, mwhh_ref, mb_ref, mbhn_ref,
                       attw_ref, mlpw_ref, dirsel_ref,
                       loss_ref,
                       gx_enc, oc, oa, gxm, om):
    f32 = jnp.float32
    B = gt_ref.shape[0]
    H = mbhn_ref.shape[1] // 2
    H2, H3, H4 = 2 * H, 3 * H, 4 * H
    H6, H8, H12 = 6 * H, 8 * H, 12 * H
    Tmax = menc_ref.shape[0]
    Tc = cm3_ref.shape[2]
    Ta = am3_ref.shape[1]

    # ---- 1) hoisted input projection: both encoders, both directions --------
    # x_enc rows (time-major) are [ctx(t)|ctx(Tc-1-t)|act(t)|act(Ta-1-t)], so a
    # single matmul yields the step-ALIGNED, gate-major [r|z|n]x[c_f c_b a_f a_b]
    # projection (b_ih and the r/z part of b_hh already folded in).
    gx2d = jnp.dot(x_ref[...], wenc_ref[...],
                   preferred_element_type=f32) + benc_ref[...]      # (Tmax*B,12H)
    for t in range(Tmax):
        gx_enc[t] = gx2d[t * B:(t + 1) * B, :]

    # ---- 2) merged 4-chain recurrence (c_enc fwd/bwd + a_enc fwd/bwd) -------
    whh = whh_ref[...]                                  # (4H, 12H) block-diag
    bhn = jnp.broadcast_to(bhn_ref[...], (B, H4))       # hoisted broadcast
    h = jnp.zeros((B, H4), f32)                         # [c_f | c_b | a_f | a_b]
    for i in range(Tmax):                               # static, fully unrolled
        gh = jnp.dot(h, whh, preferred_element_type=f32)            # (B, 12H)
        gx = gx_enc[i]                                              # (B, 12H)
        m = menc_ref[i]                                             # (B, 4H)
        r = jax.nn.sigmoid(gx[:, 0:H4] + gh[:, 0:H4])
        z = jax.nn.sigmoid(gx[:, H4:H8] + gh[:, H4:H8])
        n = jnp.tanh(gx[:, H8:H12] + r * (gh[:, H8:H12] + bhn))
        h = m * ((1.0 - z) * n + z * h) + (1.0 - m) * h
        out = m * h                                     # zero at padded steps
        if i < Tc:
            oc[i, :, 0:H] = out[:, 0:H]                 # ctx fwd, time i
            oc[Tc - 1 - i, :, H:H2] = out[:, H:H2]      # ctx bwd, time Tc-1-i
        if i < Ta:
            oa[i, :, 0:H] = out[:, H2:H3]               # act fwd, time i
            oa[Ta - 1 - i, :, H:H2] = out[:, H3:H4]     # act bwd, time Ta-1-i

    # ---- 3) bilinear attention (q W k^T, key-masked softmax) ----------------
    enc_c = pltpu.einshape("tbh->bth", oc[...])                     # (B,Tc,2H)
    enc_a = pltpu.einshape("tbh->bth", oa[...])                     # (B,Ta,2H)
    qw = jnp.dot(enc_a.reshape(B * Ta, H2), attw_ref[...],
                 preferred_element_type=f32).reshape(B, Ta, H2)
    sc = jnp.einsum('bqd,bkd->bqk', qw, enc_c, preferred_element_type=f32)
    sc = jnp.where(cm3_ref[...] > 0.0, sc, -1e30)       # single masking pass
    e = jnp.exp(sc - jnp.max(sc, axis=-1, keepdims=True))
    p = e * pl.reciprocal(jnp.sum(e, axis=-1, keepdims=True), approx=True)
    att = jnp.einsum('bqk,bkd->bqd', p, enc_c, preferred_element_type=f32)
    # feature = [attended context ; encoded action] * action_mask
    feature = jnp.concatenate([att, enc_a], axis=-1) * am3_ref[...]  # (B,Ta,4H)

    # ---- 4) match BiGRU: hoisted projection + per-step lane-select align ----
    feat_tm = pltpu.einshape("bth->tbh", feature)                    # (Ta,B,4H)
    gxm2d = jnp.dot(feat_tm.reshape(Ta * B, H4), mwih_ref[...],
                    preferred_element_type=f32) + mb_ref[...]        # (Ta*B,6H)
    for t in range(Ta):
        gxm[t] = gxm2d[t * B:(t + 1) * B, :]

    dirsel = dirsel_ref[...] > 0.0                       # (1,6H) fwd-lane mask
    mwhh = mwhh_ref[...]                                 # (2H, 6H) block-diag
    mbhn = jnp.broadcast_to(mbhn_ref[...], (B, H2))
    hm = jnp.zeros((B, H2), f32)                         # [m_f | m_b]
    for i in range(Ta):
        gh = jnp.dot(hm, mwhh, preferred_element_type=f32)           # (B, 6H)
        gx = jnp.where(dirsel, gxm[i], gxm[Ta - 1 - i])              # aligned
        m = mmat_ref[i]                                              # (B, 2H)
        r = jax.nn.sigmoid(gx[:, 0:H2] + gh[:, 0:H2])
        z = jax.nn.sigmoid(gx[:, H2:H4] + gh[:, H2:H4])
        n = jnp.tanh(gx[:, H4:H6] + r * (gh[:, H4:H6] + mbhn))
        hm = m * ((1.0 - z) * n + z * hm) + (1.0 - m) * hm
        out = m * hm
        om[i, :, 0:H] = out[:, 0:H]
        om[Ta - 1 - i, :, H:H2] = out[:, H:H2]

    # ---- 5) MLP head (VPU dot), masked mean pooling, BCE + 0.01 * entropy ---
    fe = om[...]                                                     # (Ta,B,2H)
    logits = jnp.sum(fe * mlpw_ref[...], axis=-1, keepdims=True)     # (Ta,B,1)
    mask_t = mmat_ref[:, :, 0:1]                                     # (Ta,B,1)
    r_t = jax.nn.sigmoid(logits) * mask_t
    msum = jnp.sum(mask_t, axis=0)                                   # (B,1)
    rr = jnp.sum(r_t, axis=0) / msum                                 # exact divide

    gt = gt_ref[...]                                                 # (B,1)
    log_r = jnp.maximum(jnp.log(rr), -100.0)            # torch BCE log clamp
    log_1mr = jnp.maximum(jnp.log(1.0 - rr), -100.0)
    bce = -(gt * log_r + (1.0 - gt) * log_1mr)
    ent = -(rr * log_r + (1.0 - rr) * log_1mr)
    loss_ref[...] = (jnp.sum(bce, axis=0, keepdims=True)
                     + 0.01 * jnp.sum(ent, axis=0, keepdims=True)) * (1.0 / B)


# ----------------------------------------------------------------------------
# Wrapper: parameter / layout folding + single pallas_call
# ----------------------------------------------------------------------------
def _fold_bias(b_ih, b_hh, H):
    # fold b_hh of r/z into the input-side bias; keep b_hh_n separate
    return b_ih + jnp.concatenate(
        [b_hh[:, :2 * H], jnp.zeros((1, H), jnp.float32)], axis=1)


def _place4(w, slot, H):
    """Map a per-direction [r|z|n] (R,3H) block into the merged gate-major
    (R,12H) layout [r: c_f c_b a_f a_b | z: ... | n: ...] at chain `slot`."""
    z = jnp.zeros((w.shape[0], H), jnp.float32)
    blocks = []
    for g in range(3):
        cols = [z, z, z, z]
        cols[slot] = w[:, g * H:(g + 1) * H]
        blocks.extend(cols)
    return jnp.concatenate(blocks, axis=1)


def _fuse_encoders(pc, pa, H):
    """Fuse c_enc + a_enc (both directions) into single merged operands."""
    w_enc = jnp.concatenate([
        _place4(pc["w_ih_f_t"], 0, H), _place4(pc["w_ih_b_t"], 1, H),
        _place4(pa["w_ih_f_t"], 2, H), _place4(pa["w_ih_b_t"], 3, H)], axis=0)
    b_enc = (_place4(_fold_bias(pc["b_ih_f"], pc["b_hh_f"], H), 0, H)
             + _place4(_fold_bias(pc["b_ih_b"], pc["b_hh_b"], H), 1, H)
             + _place4(_fold_bias(pa["b_ih_f"], pa["b_hh_f"], H), 2, H)
             + _place4(_fold_bias(pa["b_ih_b"], pa["b_hh_b"], H), 3, H))
    whh_enc = jnp.concatenate([
        _place4(pc["w_hh_f_t"], 0, H), _place4(pc["w_hh_b_t"], 1, H),
        _place4(pa["w_hh_f_t"], 2, H), _place4(pa["w_hh_b_t"], 3, H)], axis=0)
    bhn_enc = jnp.concatenate([pc["b_hh_f"][:, 2 * H:], pc["b_hh_b"][:, 2 * H:],
                               pa["b_hh_f"][:, 2 * H:], pa["b_hh_b"][:, 2 * H:]],
                              axis=1)
    return w_enc, b_enc, whh_enc, bhn_enc


def _fuse_bigru(p, H):
    """Fuse one PyTorch-layout BiGRU into gate-major [r_f r_b|z_f z_b|n_f n_b]."""
    def gm(wf, wb):
        return jnp.concatenate([wf[:, 0:H], wb[:, 0:H],
                                wf[:, H:2 * H], wb[:, H:2 * H],
                                wf[:, 2 * H:3 * H], wb[:, 2 * H:3 * H]], axis=1)
    w_ih = gm(p["w_ih_f_t"], p["w_ih_b_t"])                          # (Din, 6H)
    zf = jnp.zeros_like(p["w_hh_f_t"])
    zb = jnp.zeros_like(p["w_hh_b_t"])
    w_hh = jnp.concatenate([gm(p["w_hh_f_t"], zb),
                            gm(zf, p["w_hh_b_t"])], axis=0)          # (2H, 6H)
    b = gm(_fold_bias(p["b_ih_f"], p["b_hh_f"], H),
           _fold_bias(p["b_ih_b"], p["b_hh_b"], H))                  # (1, 6H)
    b_hn = jnp.concatenate([p["b_hh_f"][:, 2 * H:], p["b_hh_b"][:, 2 * H:]],
                           axis=1)                                   # (1, 2H)
    return w_ih, w_hh, b, b_hn


def environment_forward(params, context, action, context_mask, action_mask, y):
    f32 = jnp.float32
    context = context.astype(f32)
    action = action.astype(f32)
    B, Tc, Dc = context.shape
    _, Ta, Da = action.shape
    H = params["mlp_w_t"].shape[0] // 2
    Tmax = max(Tc, Ta)

    cm = context_mask.astype(f32)                  # (B, Tc)
    am = action_mask.astype(f32)                   # (B, Ta)

    # --- time-major inputs, forward + time-reversed, zero-padded to Tmax -----
    def tm_pad(x, T):
        xt = jnp.transpose(x, (1, 0, 2))           # (T, B, D)
        xr = xt[::-1]
        pad = [(0, Tmax - T), (0, 0), (0, 0)]
        return jnp.pad(xt, pad), jnp.pad(xr, pad)
    ctx_f, ctx_r = tm_pad(context, Tc)
    act_f, act_r = tm_pad(action, Ta)
    x_enc = jnp.concatenate([ctx_f, ctx_r, act_f, act_r], axis=-1)
    x_enc = x_enc.reshape(Tmax * B, 2 * Dc + 2 * Da)

    # --- time-major, per-chain broadcast masks --------------------------------
    def mask_tm_pad(msk, T):
        mt = msk.T                                 # (T, B)
        mr = mt[::-1]
        pad = [(0, Tmax - T), (0, 0)]
        return jnp.pad(mt, pad), jnp.pad(mr, pad)
    cmf, cmr = mask_tm_pad(cm, Tc)
    amf, amr = mask_tm_pad(am, Ta)
    bc = lambda m: jnp.broadcast_to(m[:, :, None], (Tmax, B, H))
    m_enc = jnp.concatenate([bc(cmf), bc(cmr), bc(amf), bc(amr)], axis=-1)

    amt = am.T
    bca = lambda m: jnp.broadcast_to(m[:, :, None], (Ta, B, H))
    m_match = jnp.concatenate([bca(amt), bca(amt[::-1])], axis=-1)   # (Ta,B,2H)

    cm3 = cm[:, None, :]                           # (B, 1, Tc) attn key mask
    am3 = am[:, :, None]                           # (B, Ta, 1) feature mask
    gt = jnp.full((B, 1), 1.0 if y == 1 else 0.0, f32)

    # --- fused parameters ------------------------------------------------------
    w_enc, b_enc, whh_enc, bhn_enc = _fuse_encoders(params["c_enc"],
                                                    params["a_enc"], H)
    m_wih, m_whh, m_b, m_bhn = _fuse_bigru(params["match_gru"], H)
    dirsel = jnp.concatenate(
        [jnp.ones((1, H), f32), jnp.zeros((1, H), f32)] * 3, axis=1)  # (1, 6H)
    mlp_w = params["mlp_w_t"].T.reshape(1, 1, 2 * H)

    scratch = [
        pltpu.VMEM((Tmax, B, 12 * H), f32),   # gx_enc: hoisted encoder proj
        pltpu.VMEM((Tc, B, 2 * H), f32),      # oc: context enc output [f|b]
        pltpu.VMEM((Ta, B, 2 * H), f32),      # oa: action enc output  [f|b]
        pltpu.VMEM((Ta, B, 6 * H), f32),      # gxm: hoisted match proj
        pltpu.VMEM((Ta, B, 2 * H), f32),      # om: match gru output   [f|b]
    ]

    loss = pl.pallas_call(
        environment_kernel,
        out_shape=jax.ShapeDtypeStruct((1, 1), f32),
        in_specs=[_vmem()] * 17,
        out_specs=_vmem(),
        scratch_shapes=scratch,
    )(x_enc, m_enc, m_match, cm3, am3, gt,
      w_enc, b_enc, whh_enc, bhn_enc,
      m_wih, m_whh, m_b, m_bhn,
      params["attn_w"], mlp_w, dirsel)
    return loss[0, 0]


# ----------------------------------------------------------------------------
# Deterministic parameter initialization (PyTorch-default-style uniform)
# ----------------------------------------------------------------------------
def _uniform(key, shape, scale):
    return jax.random.uniform(key, shape, jnp.float32, -scale, scale)


def init_bigru_params(key, in_dim, hidden):
    ks = jax.random.split(key, 8)
    s = 1.0 / (hidden ** 0.5)
    return dict(
        w_ih_f_t=_uniform(ks[0], (in_dim, 3 * hidden), s),
        w_hh_f_t=_uniform(ks[1], (hidden, 3 * hidden), s),
        b_ih_f=_uniform(ks[2], (1, 3 * hidden), s),
        b_hh_f=_uniform(ks[3], (1, 3 * hidden), s),
        w_ih_b_t=_uniform(ks[4], (in_dim, 3 * hidden), s),
        w_hh_b_t=_uniform(ks[5], (hidden, 3 * hidden), s),
        b_ih_b=_uniform(ks[6], (1, 3 * hidden), s),
        b_hh_b=_uniform(ks[7], (1, 3 * hidden), s),
    )


def init_params(key, context_size, action_size, hidden):
    k1, k2, k3, k4, k5 = jax.random.split(key, 5)
    s2h = 1.0 / ((2 * hidden) ** 0.5)
    return dict(
        c_enc=init_bigru_params(k1, context_size, hidden),
        a_enc=init_bigru_params(k2, action_size, hidden),
        match_gru=init_bigru_params(k3, 4 * hidden, hidden),
        attn_w=_uniform(k4, (2 * hidden, 2 * hidden), s2h),
        mlp_w_t=_uniform(k5, (2 * hidden, 1), s2h),
    )


if __name__ == "__main__":
    B, Tc, Ta = 2, 10, 8
    context_size, action_size, hidden = 16, 12, 32

    key = jax.random.PRNGKey(0)
    kc, ka, kp = jax.random.split(key, 3)
    context = jax.random.normal(kc, (B, Tc, context_size), jnp.float32)
    action = jax.random.normal(ka, (B, Ta, action_size), jnp.float32)

    c_len = jnp.array([10, 7], jnp.int32)
    a_len = jnp.array([8, 5], jnp.int32)
    context_mask = (jnp.arange(Tc)[None, :] < c_len[:, None]).astype(jnp.float32)
    action_mask = (jnp.arange(Ta)[None, :] < a_len[:, None]).astype(jnp.float32)

    params = init_params(kp, context_size, action_size, hidden)

    loss = environment_forward(params, context, action, context_mask,
                               action_mask, y=1)
    loss = jax.block_until_ready(loss)
    assert bool(jnp.isfinite(loss))
    print("KERNEL_OK")
</pallas_src>

<mosaic_0001>
module attributes {stable_mosaic.version = 11 : i64} {
  func.func @environment_kernel(%arg0: memref<20x56xf32, #tpu.memory_space<vmem>>, %arg1: memref<10x2x128xf32, #tpu.memory_space<vmem>>, %arg2: memref<8x2x64xf32, #tpu.memory_space<vmem>>, %arg3: memref<2x1x10xf32, #tpu.memory_space<vmem>>, %arg4: memref<2x8x1xf32, #tpu.memory_space<vmem>>, %arg5: memref<2x1xf32, #tpu.memory_space<vmem>>, %arg6: memref<56x384xf32, #tpu.memory_space<vmem>>, %arg7: memref<1x384xf32, #tpu.memory_space<vmem>>, %arg8: memref<128x384xf32, #tpu.memory_space<vmem>>, %arg9: memref<1x128xf32, #tpu.memory_space<vmem>>, %arg10: memref<128x192xf32, #tpu.memory_space<vmem>>, %arg11: memref<64x192xf32, #tpu.memory_space<vmem>>, %arg12: memref<1x192xf32, #tpu.memory_space<vmem>>, %arg13: memref<1x64xf32, #tpu.memory_space<vmem>>, %arg14: memref<64x64xf32, #tpu.memory_space<vmem>>, %arg15: memref<1x1x64xf32, #tpu.memory_space<vmem>>, %arg16: memref<1x192xf32, #tpu.memory_space<vmem>>, %arg17: memref<1x1xf32, #tpu.memory_space<vmem>>, %arg18: memref<10x2x384xf32, #tpu.memory_space<vmem>>, %arg19: memref<10x2x64xf32, #tpu.memory_space<vmem>>, %arg20: memref<8x2x64xf32, #tpu.memory_space<vmem>>, %arg21: memref<8x2x192xf32, #tpu.memory_space<vmem>>, %arg22: memref<8x2x64xf32, #tpu.memory_space<vmem>>) attributes {dimension_semantics = [], scalar_prefetch = 0 : i64, scratch_operands = 5 : i64, tpu.core_type = #tpu.core_type<tc>} {
    %c0 = arith.constant 0 : index
    %c0_0 = arith.constant 0 : index
    %0 = vector.load %arg0[%c0, %c0_0] : memref<20x56xf32, #tpu.memory_space<vmem>>, vector<20x56xf32>
    %c0_1 = arith.constant 0 : index
    %c0_2 = arith.constant 0 : index
    %1 = vector.load %arg6[%c0_1, %c0_2] : memref<56x384xf32, #tpu.memory_space<vmem>>, vector<56x384xf32>
    %cst = arith.constant dense<0.000000e+00> : vector<20x384xf32>
    %2 = tpu.matmul %0, %1, %cst {dimension_numbers = #tpu.dot_dimension_numbers<[1], [0], [0], [1], [0, 0, 1, 1], [], []>} : vector<20x56xf32>, vector<56x384xf32>, vector<20x384xf32> -> vector<20x384xf32>
    %c0_3 = arith.constant 0 : index
    %c0_4 = arith.constant 0 : index
    %3 = vector.load %arg7[%c0_3, %c0_4] : memref<1x384xf32, #tpu.memory_space<vmem>>, vector<1x384xf32>
    %4 = vector.broadcast %3 : vector<1x384xf32> to vector<20x384xf32>
    %5 = arith.addf %2, %4 : vector<20x384xf32>
    %6 = vector.extract_strided_slice %5 {offsets = [0, 0], sizes = [2, 384], strides = [1, 1]} : vector<20x384xf32> to vector<2x384xf32>
    %c0_5 = arith.constant 0 : index
    %c0_6 = arith.constant 0 : index
    %c0_7 = arith.constant 0 : index
    %7 = vector.load %arg18[%c0_5, %c0_6, %c0_7] : memref<10x2x384xf32, #tpu.memory_space<vmem>>, vector<1x2x384xf32>
    %8 = vector.shape_cast %7 : vector<1x2x384xf32> to vector<2x384xf32>
    %9 = vector.shape_cast %6 : vector<2x384xf32> to vector<1x2x384xf32>
    tpu.vector_store %arg18[%c0_5, %c0_6, %c0_7], %9 {strides = array<i32>} : memref<10x2x384xf32, #tpu.memory_space<vmem>>, vector<1x2x384xf32>,
    %10 = vector.extract_strided_slice %5 {offsets = [2, 0], sizes = [2, 384], strides = [1, 1]} : vector<20x384xf32> to vector<2x384xf32>
    %c1 = arith.constant 1 : index
    %c0_8 = arith.constant 0 : index
    %c0_9 = arith.constant 0 : index
    %11 = vector.load %arg18[%c1, %c0_8, %c0_9] : memref<10x2x384xf32, #tpu.memory_space<vmem>>, vector<1x2x384xf32>
    %12 = vector.shape_cast %11 : vector<1x2x384xf32> to vector<2x384xf32>
    %13 = vector.shape_cast %10 : vector<2x384xf32> to vector<1x2x384xf32>
    tpu.vector_store %arg18[%c1, %c0_8, %c0_9], %13 {strides = array<i32>} : memref<10x2x384xf32, #tpu.memory_space<vmem>>, vector<1x2x384xf32>,
    %14 = vector.extract_strided_slice %5 {offsets = [4, 0], sizes = [2, 384], strides = [1, 1]} : vector<20x384xf32> to vector<2x384xf32>
    %c2 = arith.constant 2 : index
    %c0_10 = arith.constant 0 : index
    %c0_11 = arith.constant 0 : index
    %15 = vector.load %arg18[%c2, %c0_10, %c0_11] : memref<10x2x384xf32, #tpu.memory_space<vmem>>, vector<1x2x384xf32>
    %16 = vector.shape_cast %15 : vector<1x2x384xf32> to vector<2x384xf32>
    %17 = vector.shape_cast %14 : vector<2x384xf32> to vector<1x2x384xf32>
    tpu.vector_store %arg18[%c2, %c0_10, %c0_11], %17 {strides = array<i32>} : memref<10x2x384xf32, #tpu.memory_space<vmem>>, vector<1x2x384xf32>,
    %18 = vector.extract_strided_slice %5 {offsets = [6, 0], sizes = [2, 384], strides = [1, 1]} : vector<20x384xf32> to vector<2x384xf32>
    %c3 = arith.constant 3 : index
    %c0_12 = arith.constant 0 : index
    %c0_13 = arith.constant 0 : index
    %19 = vector.load %arg18[%c3, %c0_12, %c0_13] : memref<10x2x384xf32, #tpu.memory_space<vmem>>, vector<1x2x384xf32>
    %20 = vector.shape_cast %19 : vector<1x2x384xf32> to vector<2x384xf32>
    %21 = vector.shape_cast %18 : vector<2x384xf32> to vector<1x2x384xf32>
    tpu.vector_store %arg18[%c3, %c0_12, %c0_13], %21 {strides = array<i32>} : memref<10x2x384xf32, #tpu.memory_space<vmem>>, vector<1x2x384xf32>,
    %22 = vector.extract_strided_slice %5 {offsets = [8, 0], sizes = [2, 384], strides = [1, 1]} : vector<20x384xf32> to vector<2x384xf32>
    %c4 = arith.constant 4 : index
    %c0_14 = arith.constant 0 : index
    %c0_15 = arith.constant 0 : index
    %23 = vector.load %arg18[%c4, %c0_14, %c0_15] : memref<10x2x384xf32, #tpu.memory_space<vmem>>, vector<1x2x384xf32>
    %24 = vector.shape_cast %23 : vector<1x2x384xf32> to vector<2x384xf32>
    %25 = vector.shape_cast %22 : vector<2x384xf32> to vector<1x2x384xf32>
    tpu.vector_store %arg18[%c4, %c0_14, %c0_15], %25 {strides = array<i32>} : memref<10x2x384xf32, #tpu.memory_space<vmem>>, vector<1x2x384xf32>,
    %26 = vector.extract_strided_slice %5 {offsets = [10, 0], sizes = [2, 384], strides = [1, 1]} : vector<20x384xf32> to vector<2x384xf32>
    %c5 = arith.constant 5 : index
    %c0_16 = arith.constant 0 : index
    %c0_17 = arith.constant 0 : index
    %27 = vector.load %arg18[%c5, %c0_16, %c0_17] : memref<10x2x384xf32, #tpu.memory_space<vmem>>, vector<1x2x384xf32>
    %28 = vector.shape_cast %27 : vector<1x2x384xf32> to vector<2x384xf32>
    %29 = vector.shape_cast %26 : vector<2x384xf32> to vector<1x2x384xf32>
    tpu.vector_store %arg18[%c5, %c0_16, %c0_17], %29 {strides = array<i32>} : memref<10x2x384xf32, #tpu.memory_space<vmem>>, vector<1x2x384xf32>,
    %30 = vector.extract_strided_slice %5 {offsets = [12, 0], sizes = [2, 384], strides = [1, 1]} : vector<20x384xf32> to vector<2x384xf32>
    %c6 = arith.constant 6 : index
    %c0_18 = arith.constant 0 : index
    %c0_19 = arith.constant 0 : index
    %31 = vector.load %arg18[%c6, %c0_18, %c0_19] : memref<10x2x384xf32, #tpu.memory_space<vmem>>, vector<1x2x384xf32>
    %32 = vector.shape_cast %31 : vector<1x2x384xf32> to vector<2x384xf32>
    %33 = vector.shape_cast %30 : vector<2x384xf32> to vector<1x2x384xf32>
    tpu.vector_store %arg18[%c6, %c0_18, %c0_19], %33 {strides = array<i32>} : memref<10x2x384xf32, #tpu.memory_space<vmem>>, vector<1x2x384xf32>,
    %34 = vector.extract_strided_slice %5 {offsets = [14, 0], sizes = [2, 384], strides = [1, 1]} : vector<20x384xf32> to vector<2x384xf32>
    %c7 = arith.constant 7 : index
    %c0_20 = arith.constant 0 : index
    %c0_21 = arith.constant 0 : index
    %35 = vector.load %arg18[%c7, %c0_20, %c0_21] : memref<10x2x384xf32, #tpu.memory_space<vmem>>, vector<1x2x384xf32>
    %36 = vector.shape_cast %35 : vector<1x2x384xf32> to vector<2x384xf32>
    %37 = vector.shape_cast %34 : vector<2x384xf32> to vector<1x2x384xf32>
    tpu.vector_store %arg18[%c7, %c0_20, %c0_21], %37 {strides = array<i32>} : memref<10x2x384xf32, #tpu.memory_space<vmem>>, vector<1x2x384xf32>,
    %38 = vector.extract_strided_slice %5 {offsets = [16, 0], sizes = [2, 384], strides = [1, 1]} : vector<20x384xf32> to vector<2x384xf32>
    %c8 = arith.constant 8 : index
    %c0_22 = arith.constant 0 : index
    %c0_23 = arith.constant 0 : index
    %39 = vector.load %arg18[%c8, %c0_22, %c0_23] : memref<10x2x384xf32, #tpu.memory_space<vmem>>, vector<1x2x384xf32>
    %40 = vector.shape_cast %39 : vector<1x2x384xf32> to vector<2x384xf32>
    %41 = vector.shape_cast %38 : vector<2x384xf32> to vector<1x2x384xf32>
    tpu.vector_store %arg18[%c8, %c0_22, %c0_23], %41 {strides = array<i32>} : memref<10x2x384xf32, #tpu.memory_space<vmem>>, vector<1x2x384xf32>,
    %42 = vector.extract_strided_slice %5 {offsets = [18, 0], sizes = [2, 384], strides = [1, 1]} : vector<20x384xf32> to vector<2x384xf32>
    %c9 = arith.constant 9 : index
    %c0_24 = arith.constant 0 : index
    %c0_25 = arith.constant 0 : index
    %43 = vector.load %arg18[%c9, %c0_24, %c0_25] : memref<10x2x384xf32, #tpu.memory_space<vmem>>, vector<1x2x384xf32>
    %44 = vector.shape_cast %43 : vector<1x2x384xf32> to vector<2x384xf32>
    %45 = vector.shape_cast %42 : vector<2x384xf32> to vector<1x2x384xf32>
    tpu.vector_store %arg18[%c9, %c0_24, %c0_25], %45 {strides = array<i32>} : memref<10x2x384xf32, #tpu.memory_space<vmem>>, vector<1x2x384xf32>,
    %c0_26 = arith.constant 0 : index
    %c0_27 = arith.constant 0 : index
    %46 = vector.load %arg8[%c0_26, %c0_27] : memref<128x384xf32, #tpu.memory_space<vmem>>, vector<128x384xf32>
    %c0_28 = arith.constant 0 : index
    %c0_29 = arith.constant 0 : index
    %47 = vector.load %arg9[%c0_28, %c0_29] : memref<1x128xf32, #tpu.memory_space<vmem>>, vector<1x128xf32>
    %48 = vector.shape_cast %47 : vector<1x128xf32> to vector<1x128xf32>
    %49 = vector.broadcast %48 : vector<1x128xf32> to vector<2x128xf32>
    %cst_30 = arith.constant 0.000000e+00 : f32
    %50 = vector.broadcast %cst_30 : f32 to vector<2x128xf32>
    %cst_31 = arith.constant dense<0.000000e+00> : vector<2x384xf32>
    %51 = tpu.matmul %50, %46, %cst_31 {dimension_numbers = #tpu.dot_dimension_numbers<[1], [0], [0], [1], [0, 0, 1, 1], [], []>} : vector<2x128xf32>, vector<128x384xf32>, vector<2x384xf32> -> vector<2x384xf32>
    %c0_32 = arith.constant 0 : index
    %c0_33 = arith.constant 0 : index
    %c0_34 = arith.constant 0 : index
    %52 = vector.load %arg18[%c0_32, %c0_33, %c0_34] : memref<10x2x384xf32, #tpu.memory_space<vmem>>, vector<1x2x384xf32>
    %53 = vector.shape_cast %52 : vector<1x2x384xf32> to vector<2x384xf32>
    %c0_35 = arith.constant 0 : index
    %c0_36 = arith.constant 0 : index
    %c0_37 = arith.constant 0 : index
    %54 = vector.load %arg1[%c0_35, %c0_36, %c0_37] : memref<10x2x128xf32, #tpu.memory_space<vmem>>, vector<1x2x128xf32>
    %55 = vector.shape_cast %54 : vector<1x2x128xf32> to vector<2x128xf32>
    %56 = vector.extract_strided_slice %53 {offsets = [0, 0], sizes = [2, 128], strides = [1, 1]} : vector<2x384xf32> to vector<2x128xf32>
    %57 = vector.extract_strided_slice %51 {offsets = [0, 0], sizes = [2, 128], strides = [1, 1]} : vector<2x384xf32> to vector<2x128xf32>
    %58 = arith.addf %56, %57 : vector<2x128xf32>
    %59 = arith.negf %58 : vector<2x128xf32>
    %60 = math.exp %59 : vector<2x128xf32>
    %cst_38 = arith.constant 1.000000e+00 : f32
    %61 = vector.broadcast %cst_38 : f32 to vector<2x128xf32>
    %62 = arith.addf %61, %60 : vector<2x128xf32>
    %63 = arith.divf %61, %62 : vector<2x128xf32>
    %64 = vector.extract_strided_slice %53 {offsets = [0, 128], sizes = [2, 128], strides = [1, 1]} : vector<2x384xf32> to vector<2x128xf32>
    %65 = vector.extract_strided_slice %51 {offsets = [0, 128], sizes = [2, 128], strides = [1, 1]} : vector<2x384xf32> to vector<2x128xf32>
    %66 = arith.addf %64, %65 : vector<2x128xf32>
    %67 = arith.negf %66 : vector<2x128xf32>
    %68 = math.exp %67 : vector<2x128xf32>
    %cst_39 = arith.constant 1.000000e+00 : f32
    %69 = vector.broadcast %cst_39 : f32 to vector<2x128xf32>
    %70 = arith.addf %69, %68 : vector<2x128xf32>
    %71 = arith.divf %69, %70 : vector<2x128xf32>
    %72 = vector.extract_strided_slice %53 {offsets = [0, 256], sizes = [2, 128], strides = [1, 1]} : vector<2x384xf32> to vector<2x128xf32>
    %73 = vector.extract_strided_slice %51 {offsets = [0, 256], sizes = [2, 128], strides = [1, 1]} : vector<2x384xf32> to vector<2x128xf32>
    %74 = arith.addf %73, %49 : vector<2x128xf32>
    %75 = arith.mulf %63, %74 : vector<2x128xf32>
    %76 = arith.addf %72, %75 : vector<2x128xf32>
    %77 = math.tanh %76 : vector<2x128xf32>
    %cst_40 = arith.constant 1.000000e+00 : f32
    %78 = vector.broadcast %cst_40 : f32 to vector<2x128xf32>
    %79 = arith.subf %78, %71 : vector<2x128xf32>
    %80 = arith.mulf %79, %77 : vector<2x128xf32>
    %81 = arith.mulf %71, %50 : vector<2x128xf32>
    %82 = arith.addf %80, %81 : vector<2x128xf32>
    %83 = arith.mulf %55, %82 : vector<2x128xf32>
    %cst_41 = arith.constant 1.000000e+00 : f32
    %84 = vector.broadcast %cst_41 : f32 to vector<2x128xf32>
    %85 = arith.subf %84, %55 : vector<2x128xf32>
    %86 = arith.mulf %85, %50 : vector<2x128xf32>
    %87 = arith.addf %83, %86 : vector<2x128xf32>
    %88 = arith.mulf %55, %87 : vector<2x128xf32>
    %89 = vector.extract_strided_slice %88 {offsets = [0, 0], sizes = [2, 32], strides = [1, 1]} : vector<2x128xf32> to vector<2x32xf32>
    %c0_42 = arith.constant 0 : index
    %c0_43 = arith.constant 0 : index
    %c0_44 = arith.constant 0 : index
    %90 = vector.load %arg19[%c0_42, %c0_43, %c0_44] : memref<10x2x64xf32, #tpu.memory_space<vmem>>, vector<1x2x32xf32>
    %91 = vector.shape_cast %90 : vector<1x2x32xf32> to vector<2x32xf32>
    %92 = vector.shape_cast %89 : vector<2x32xf32> to vector<1x2x32xf32>
    tpu.vector_store %arg19[%c0_42, %c0_43, %c0_44], %92 {strides = array<i32>} : memref<10x2x64xf32, #tpu.memory_space<vmem>>, vector<1x2x32xf32>,
    %93 = vector.extract_strided_slice %88 {offsets = [0, 32], sizes = [2, 32], strides = [1, 1]} : vector<2x128xf32> to vector<2x32xf32>
    %c9_45 = arith.constant 9 : index
    %c0_46 = arith.constant 0 : index
    %c32 = arith.constant 32 : index
    %94 = vector.load %arg19[%c9_45, %c0_46, %c32] : memref<10x2x64xf32, #tpu.memory_space<vmem>>, vector<1x2x32xf32>
    %95 = vector.shape_cast %94 : vector<1x2x32xf32> to vector<2x32xf32>
    %96 = vector.shape_cast %93 : vector<2x32xf32> to vector<1x2x32xf32>
    tpu.vector_store %arg19[%c9_45, %c0_46, %c32], %96 {strides = array<i32>} : memref<10x2x64xf32, #tpu.memory_space<vmem>>, vector<1x2x32xf32>,
    %97 = vector.extract_strided_slice %88 {offsets = [0, 64], sizes = [2, 32], strides = [1, 1]} : vector<2x128xf32> to vector<2x32xf32>
    %c0_47 = arith.constant 0 : index
    %c0_48 = arith.constant 0 : index
    %c0_49 = arith.constant 0 : index
    %98 = vector.load %arg20[%c0_47, %c0_48, %c0_49] : memref<8x2x64xf32, #tpu.memory_space<vmem>>, vector<1x2x32xf32>
    %99 = vector.shape_cast %98 : vector<1x2x32xf32> to vector<2x32xf32>
    %100 = vector.shape_cast %97 : vector<2x32xf32> to vector<1x2x32xf32>
    tpu.vector_store %arg20[%c0_47, %c0_48, %c0_49], %100 {strides = array<i32>} : memref<8x2x64xf32, #tpu.memory_space<vmem>>, vector<1x2x32xf32>,
    %101 = vector.extract_strided_slice %88 {offsets = [0, 96], sizes = [2, 32], strides = [1, 1]} : vector<2x128xf32> to vector<2x32xf32>
    %c7_50 = arith.constant 7 : index
    %c0_51 = arith.constant 0 : index
    %c32_52 = arith.constant 32 : index
    %102 = vector.load %arg20[%c7_50, %c0_51, %c32_52] : memref<8x2x64xf32, #tpu.memory_space<vmem>>, vector<1x2x32xf32>
    %103 = vector.shape_cast %102 : vector<1x2x32xf32> to vector<2x32xf32>
    %104 = vector.shape_cast %101 : vector<2x32xf32> to vector<1x2x32xf32>
    tpu.vector_store %arg20[%c7_50, %c0_51, %c32_52], %104 {strides = array<i32>} : memref<8x2x64xf32, #tpu.memory_space<vmem>>, vector<1x2x32xf32>,
    %cst_53 = arith.constant dense<0.000000e+00> : vector<2x384xf32>
    %105 = tpu.matmul %87, %46, %cst_53 {dimension_numbers = #tpu.dot_dimension_numbers<[1], [0], [0], [1], [0, 0, 1, 1], [], []>} : vector<2x128xf32>, vector<128x384xf32>, vector<2x384xf32> -> vector<2x384xf32>
    %c1_54 = arith.constant 1 : index
    %c0_55 = arith.constant 0 : index
    %c0_56 = arith.constant 0 : index
    %106 = vector.load %arg18[%c1_54, %c0_55, %c0_56] : memref<10x2x384xf32, #tpu.memory_space<vmem>>, vector<1x2x384xf32>
    %107 = vector.shape_cast %106 : vector<1x2x384xf32> to vector<2x384xf32>
    %c1_57 = arith.constant 1 : index
    %c0_58 = arith.constant 0 : index
    %c0_59 = arith.constant 0 : index
    %108 = vector.load %arg1[%c1_57, %c0_58, %c0_59] : memref<10x2x128xf32, #tpu.memory_space<vmem>>, vector<1x2x128xf32>
    %109 = vector.shape_cast %108 : vector<1x2x128xf32> to vector<2x128xf32>
    %110 = vector.extract_strided_slice %107 {offsets = [0, 0], sizes = [2, 128], strides = [1, 1]} : vector<2x384xf32> to vector<2x128xf32>
    %111 = vector.extract_strided_slice %105 {offsets = [0, 0], sizes = [2, 128], strides = [1, 1]} : vector<2x384xf32> to vector<2x128xf32>
    %112 = arith.addf %110, %111 : vector<2x128xf32>
    %113 = arith.negf %112 : vector<2x128xf32>
    %114 = math.exp %113 : vector<2x128xf32>
    %cst_60 = arith.constant 1.000000e+00 : f32
    %115 = vector.broadcast %cst_60 : f32 to vector<2x128xf32>
    %116 = arith.addf %115, %114 : vector<2x128xf32>
    %117 = arith.divf %115, %116 : vector<2x128xf32>
    %118 = vector.extract_strided_slice %107 {offsets = [0, 128], sizes = [2, 128], strides = [1, 1]} : vector<2x384xf32> to vector<2x128xf32>
    %119 = vector.extract_strided_slice %105 {offsets = [0, 128], sizes = [2, 128], strides = [1, 1]} : vector<2x384xf32> to vector<2x128xf32>
    %120 = arith.addf %118, %119 : vector<2x128xf32>
    %121 = arith.negf %120 : vector<2x128xf32>
    %122 = math.exp %121 : vector<2x128xf32>
    %cst_61 = arith.constant 1.000000e+00 : f32
    %123 = vector.broadcast %cst_61 : f32 to vector<2x128xf32>
    %124 = arith.addf %123, %122 : vector<2x128xf32>
    %125 = arith.divf %123, %124 : vector<2x128xf32>
    %126 = vector.extract_strided_slice %107 {offsets = [0, 256], sizes = [2, 128], strides = [1, 1]} : vector<2x384xf32> to vector<2x128xf32>
    %127 = vector.extract_strided_slice %105 {offsets = [0, 256], sizes = [2, 128], strides = [1, 1]} : vector<2x384xf32> to vector<2x128xf32>
    %128 = arith.addf %127, %49 : vector<2x128xf32>
    %129 = arith.mulf %117, %128 : vector<2x128xf32>
    %130 = arith.addf %126, %129 : vector<2x128xf32>
    %131 = math.tanh %130 : vector<2x128xf32>
    %cst_62 = arith.constant 1.000000e+00 : f32
    %132 = vector.broadcast %cst_62 : f32 to vector<2x128xf32>
    %133 = arith.subf %132, %125 : vector<2x128xf32>
    %134 = arith.mulf %133, %131 : vector<2x128xf32>
    %135 = arith.mulf %125, %87 : vector<2x128xf32>
    %136 = arith.addf %134, %135 : vector<2x128xf32>
    %137 = arith.mulf %109, %136 : vector<2x128xf32>
    %cst_63 = arith.constant 1.000000e+00 : f32
    %138 = vector.broadcast %cst_63 : f32 to vector<2x128xf32>
    %139 = arith.subf %138, %109 : vector<2x128xf32>
    %140 = arith.mulf %139, %87 : vector<2x128xf32>
    %141 = arith.addf %137, %140 : vector<2x128xf32>
    %142 = arith.mulf %109, %141 : vector<2x128xf32>
    %143 = vector.extract_strided_slice %142 {offsets = [0, 0], sizes = [2, 32], strides = [1, 1]} : vector<2x128xf32> to vector<2x32xf32>
    %c1_64 = arith.constant 1 : index
    %c0_65 = arith.constant 0 : index
    %c0_66 = arith.constant 0 : index
    %144 = vector.load %arg19[%c1_64, %c0_65, %c0_66] : memref<10x2x64xf32, #tpu.memory_space<vmem>>, vector<1x2x32xf32>
    %145 = vector.shape_cast %144 : vector<1x2x32xf32> to vector<2x32xf32>
    %146 = vector.shape_cast %143 : vector<2x32xf32> to vector<1x2x32xf32>
    tpu.vector_store %arg19[%c1_64, %c0_65, %c0_66], %146 {strides = array<i32>} : memref<10x2x64xf32, #tpu.memory_space<vmem>>, vector<1x2x32xf32>,
    %147 = vector.extract_strided_slice %142 {offsets = [0, 32], sizes = [2, 32], strides = [1, 1]} : vector<2x128xf32> to vector<2x32xf32>
    %c8_67 = arith.constant 8 : index
    %c0_68 = arith.constant 0 : index
    %c32_69 = arith.constant 32 : index
    %148 = vector.load %arg19[%c8_67, %c0_68, %c32_69] : memref<10x2x64xf32, #tpu.memory_space<vmem>>, vector<1x2x32xf32>
    %149 = vector.shape_cast %148 : vector<1x2x32xf32> to vector<2x32xf32>
    %150 = vector.shape_cast %147 : vector<2x32xf32> to vector<1x2x32xf32>
    tpu.vector_store %arg19[%c8_67, %c0_68, %c32_69], %150 {strides = array<i32>} : memref<10x2x64xf32, #tpu.memory_space<vmem>>, vector<1x2x32xf32>,
    %151 = vector.extract_strided_slice %142 {offsets = [0, 64], sizes = [2, 32], strides = [1, 1]} : vector<2x128xf32> to vector<2x32xf32>
    %c1_70 = arith.constant 1 : index
    %c0_71 = arith.constant 0 : index
    %c0_72 = arith.constant 0 : index
    %152 = vector.load %arg20[%c1_70, %c0_71, %c0_72] : memref<8x2x64xf32, #tpu.memory_space<vmem>>, vector<1x2x32xf32>
    %153 = vector.shape_cast %152 : vector<1x2x32xf32> to vector<2x32xf32>
    %154 = vector.shape_cast %151 : vector<2x32xf32> to vector<1x2x32xf32>
    tpu.vector_store %arg20[%c1_70, %c0_71, %c0_72], %154 {strides = array<i32>} : memref<8x2x64xf32, #tpu.memory_space<vmem>>, vector<1x2x32xf32>,
    %155 = vector.extract_strided_slice %142 {offsets = [0, 96], sizes = [2, 32], strides = [1, 1]} : vector<2x128xf32> to vector<2x32xf32>
    %c6_73 = arith.constant 6 : index
    %c0_74 = arith.constant 0 : index
    %c32_75 = arith.constant 32 : index
    %156 = vector.load %arg20[%c6_73, %c0_74, %c32_75] : memref<8x2x64xf32, #tpu.memory_space<vmem>>, vector<1x2x32xf32>
    %157 = vector.shape_cast %156 : vector<1x2x32xf32> to vector<2x32xf32>
    %158 = vector.shape_cast %155 : vector<2x32xf32> to vector<1x2x32xf32>
    tpu.vector_store %arg20[%c6_73, %c0_74, %c32_75], %158 {strides = array<i32>} : memref<8x2x64xf32, #tpu.memory_space<vmem>>, vector<1x2x32xf32>,
    %cst_76 = arith.constant dense<0.000000e+00> : vector<2x384xf32>
    %159 = tpu.matmul %141, %46, %cst_76 {dimension_numbers = #tpu.dot_dimension_numbers<[1], [0], [0], [1], [0, 0, 1, 1], [], []>} : vector<2x128xf32>, vector<128x384xf32>, vector<2x384xf32> -> vector<2x384xf32>
    %c2_77 = arith.constant 2 : index
    %c0_78 = arith.constant 0 : index
    %c0_79 = arith.constant 0 : index
    %160 = vector.load %arg18[%c2_77, %c0_78, %c0_79] : memref<10x2x384xf32, #tpu.memory_space<vmem>>, vector<1x2x384xf32>
    %161 = vector.shape_cast %160 : vector<1x2x384xf32> to vector<2x384xf32>
    %c2_80 = arith.constant 2 : index
    %c0_81 = arith.constant 0 : index
    %c0_82 = arith.constant 0 : index
    %162 = vector.load %arg1[%c2_80, %c0_81, %c0_82] : memref<10x2x128xf32, #tpu.memory_space<vmem>>, vector<1x2x128xf32>
    %163 = vector.shape_cast %162 : vector<1x2x128xf32> to vector<2x128xf32>
    %164 = vector.extract_strided_slice %161 {offsets = [0, 0], sizes = [2, 128], strides = [1, 1]} : vector<2x384xf32> to vector<2x128xf32>
    %165 = vector.extract_strided_slice %159 {offsets = [0, 0], sizes = [2, 128], strides = [1, 1]} : vector<2x384xf32> to vector<2x128xf32>
    %166 = arith.addf %164, %165 : vector<2x128xf32>
    %167 = arith.negf %166 : vector<2x128xf32>
    %168 = math.exp %167 : vector<2x128xf32>
    %cst_83 = arith.constant 1.000000e+00 : f32
    %169 = vector.broadcast %cst_83 : f32 to vector<2x128xf32>
    %170 = arith.addf %169, %168 : vector<2x128xf32>
    %171 = arith.divf %169, %170 : vector<2x128xf32>
    %172 = vector.extract_strided_slice %161 {offsets = [0, 128], sizes = [2, 128], strides = [1, 1]} : vector<2x384xf32> to vector<2x128xf32>
    %173 = vector.extract_strided_slice %159 {offsets = [0, 128], sizes = [2, 128], strides = [1, 1]} : vector<2x384xf32> to vector<2x128xf32>
    %174 = arith.addf %172, %173 : vector<2x128xf32>
    %175 = arith.negf %174 : vector<2x128xf32>
    %176 = math.exp %175 : vector<2x128xf32>
    %cst_84 = arith.constant 1.000000e+00 : f32
    %177 = vector.broadcast %cst_84 : f32 to vector<2x128xf32>
    %178 = arith.addf %177, %176 : vector<2x128xf32>
    %179 = arith.divf %177, %178 : vector<2x128xf32>
    %180 = vector.extract_strided_slice %161 {offsets = [0, 256], sizes = [2, 128], strides = [1, 1]} : vector<2x384xf32> to vector<2x128xf32>
    %181 = vector.extract_strided_slice %159 {offsets = [0, 256], sizes = [2, 128], strides = [1, 1]} : vector<2x384xf32> to vector<2x128xf32>
    %182 = arith.addf %181, %49 : vector<2x128xf32>
    %183 = arith.mulf %171, %182 : vector<2x128xf32>
    %184 = arith.addf %180, %183 : vector<2x128xf32>
    %185 = math.tanh %184 : vector<2x128xf32>
    %cst_85 = arith.constant 1.000000e+00 : f32
    %186 = vector.broadcast %cst_85 : f32 to vector<2x128xf32>
    %187 = arith.subf %186, %179 : vector<2x128xf32>
    %188 = arith.mulf %187, %185 : vector<2x128xf32>
    %189 = arith.mulf %179, %141 : vector<2x128xf32>
    %190 = arith.addf %188, %189 : vector<2x128xf32>
    %191 = arith.mulf %163, %190 : vector<2x128xf32>
    %cst_86 = arith.constant 1.000000e+00 : f32
    %192 = vector.broadcast %cst_86 : f32 to vector<2x128xf32>
    %193 = arith.subf %192, %163 : vector<2x128xf32>
    %194 = arith.mulf %193, %141 : vector<2x128xf32>
    %195 = arith.addf %191, %194 : vector<2x128xf32>
    %196 = arith.mulf %163, %195 : vector<2x128xf32>
    %197 = vector.extract_strided_slice %196 {offsets = [0, 0], sizes = [2, 32], strides = [1, 1]} : vector<2x128xf32> to vector<2x32xf32>
    %c2_87 = arith.constant 2 : index
    %c0_88 = arith.constant 0 : index
    %c0_89 = arith.constant 0 : index
    %198 = vector.load %arg19[%c2_87, %c0_88, %c0_89] : memref<10x2x64xf32, #tpu.memory_space<vmem>>, vector<1x2x32xf32>
    %199 = vector.shape_cast %198 : vector<1x2x32xf32> to vector<2x32xf32>
    %200 = vector.shape_cast %197 : vector<2x32xf32> to vector<1x2x32xf32>
    tpu.vector_store %arg19[%c2_87, %c0_88, %c0_89], %200 {strides = array<i32>} : memref<10x2x64xf32, #tpu.memory_space<vmem>>, vector<1x2x32xf32>,
    %201 = vector.extract_strided_slice %196 {offsets = [0, 32], sizes = [2, 32], strides = [1, 1]} : vector<2x128xf32> to vector<2x32xf32>
    %c7_90 = arith.constant 7 : index
    %c0_91 = arith.constant 0 : index
    %c32_92 = arith.constant 32 : index
    %202 = vector.load %arg19[%c7_90, %c0_91, %c32_92] : memref<10x2x64xf32, #tpu.memory_space<vmem>>, vector<1x2x32xf32>
    %203 = vector.shape_cast %202 : vector<1x2x32xf32> to vector<2x32xf32>
    %204 = vector.shape_cast %201 : vector<2x32xf32> to vector<1x2x32xf32>
    tpu.vector_store %arg19[%c7_90, %c0_91, %c32_92], %204 {strides = array<i32>} : memref<10x2x64xf32, #tpu.memory_space<vmem>>, vector<1x2x32xf32>,
    %205 = vector.extract_strided_slice %196 {offsets = [0, 64], sizes = [2, 32], strides = [1, 1]} : vector<2x128xf32> to vector<2x32xf32>
    %c2_93 = arith.constant 2 : index
    %c0_94 = arith.constant 0 : index
    %c0_95 = arith.constant 0 : index
    %206 = vector.load %arg20[%c2_93, %c0_94, %c0_95] : memref<8x2x64xf32, #tpu.memory_space<vmem>>, vector<1x2x32xf32>
    %207 = vector.shape_cast %206 : vector<1x2x32xf32> to vector<2x32xf32>
    %208 = vector.shape_cast %205 : vector<2x32xf32> to vector<1x2x32xf32>
    tpu.vector_store %arg20[%c2_93, %c0_94, %c0_95], %208 {strides = array<i32>} : memref<8x2x64xf32, #tpu.memory_space<vmem>>, vector<1x2x32xf32>,
    %209 = vector.extract_strided_slice %196 {offsets = [0, 96], sizes = [2, 32], strides = [1, 1]} : vector<2x128xf32> to vector<2x32xf32>
    %c5_96 = arith.constant 5 : index
    %c0_97 = arith.constant 0 : index
    %c32_98 = arith.constant 32 : index
    %210 = vector.load %arg20[%c5_96, %c0_97, %c32_98] : memref<8x2x64xf32, #tpu.memory_space<vmem>>, vector<1x2x32xf32>
    %211 = vector.shape_cast %210 : vector<1x2x32xf32> to vector<2x32xf32>
    %212 = vector.shape_cast %209 : vector<2x32xf32> to vector<1x2x32xf32>
    tpu.vector_store %arg20[%c5_96, %c0_97, %c32_98], %212 {strides = array<i32>} : memref<8x2x64xf32, #tpu.memory_space<vmem>>, vector<1x2x32xf32>,
    %cst_99 = arith.constant dense<0.000000e+00> : vector<2x384xf32>
    %213 = tpu.matmul %195, %46, %cst_99 {dimension_numbers = #tpu.dot_dimension_numbers<[1], [0], [0], [1], [0, 0, 1, 1], [], []>} : vector<2x128xf32>, vector<128x384xf32>, vector<2x384xf32> -> vector<2x384xf32>
    %c3_100 = arith.constant 3 : index
    %c0_101 = arith.constant 0 : index
    %c0_102 = arith.constant 0 : index
    %214 = vector.load %arg18[%c3_100, %c0_101, %c0_102] : memref<10x2x384xf32, #tpu.memory_space<vmem>>, vector<1x2x384xf32>
    %215 = vector.shape_cast %214 : vector<1x2x384xf32> to vector<2x384xf32>
    %c3_103 = arith.constant 3 : index
    %c0_104 = arith.constant 0 : index
    %c0_105 = arith.constant 0 : index
    %216 = vector.load %arg1[%c3_103, %c0_104, %c0_105] : memref<10x2x128xf32, #tpu.memory_space<vmem>>, vector<1x2x128xf32>
    %217 = vector.shape_cast %216 : vector<1x2x128xf32> to vector<2x128xf32>
    %218 = vector.extract_strided_slice %215 {offsets = [0, 0], sizes = [2, 128], strides = [1, 1]} : vector<2x384xf32> to vector<2x128xf32>
    %219 = vector.extract_strided_slice %213 {offsets = [0, 0], sizes = [2, 128], strides = [1, 1]} : vector<2x384xf32> to vector<2x128xf32>
    %220 = arith.addf %218, %219 : vector<2x128xf32>
    %221 = arith.negf %220 : vector<2x128xf32>
    %222 = math.exp %221 : vector<2x128xf32>
    %cst_106 = arith.constant 1.000000e+00 : f32
    %223 = vector.broadcast %cst_106 : f32 to vector<2x128xf32>
    %224 = arith.addf %223, %222 : vector<2x128xf32>
    %225 = arith.divf %223, %224 : vector<2x128xf32>
    %226 = vector.extract_strided_slice %215 {offsets = [0, 128], sizes = [2, 128], strides = [1, 1]} : vector<2x384xf32> to vector<2x128xf32>
    %227 = vector.extract_strided_slice %213 {offsets = [0, 128], sizes = [2, 128], strides = [1, 1]} : vector<2x384xf32> to vector<2x128xf32>
    %228 = arith.addf %226, %227 : vector<2x128xf32>
    %229 = arith.negf %228 : vector<2x128xf32>
    %230 = math.exp %229 : vector<2x128xf32>
    %cst_107 = arith.constant 1.000000e+00 : f32
    %231 = vector.broadcast %cst_107 : f32 to vector<2x128xf32>
    %232 = arith.addf %231, %230 : vector<2x128xf32>
    %233 = arith.divf %231, %232 : vector<2x128xf32>
    %234 = vector.extract_strided_slice %215 {offsets = [0, 256], sizes = [2, 128], strides = [1, 1]} : vector<2x384xf32> to vector<2x128xf32>
    %235 = vector.extract_strided_slice %213 {offsets = [0, 256], sizes = [2, 128], strides = [1, 1]} : vector<2x384xf32> to vector<2x128xf32>
    %236 = arith.addf %235, %49 : vector<2x128xf32>
    %237 = arith.mulf %225, %236 : vector<2x128xf32>
    %238 = arith.addf %234, %237 : vector<2x128xf32>
    %239 = math.tanh %238 : vector<2x128xf32>
    %cst_108 = arith.constant 1.000000e+00 : f32
    %240 = vector.broadcast %cst_108 : f32 to vector<2x128xf32>
    %241 = arith.subf %240, %233 : vector<2x128xf32>
    %242 = arith.mulf %241, %239 : vector<2x128xf32>
    %243 = arith.mulf %233, %195 : vector<2x128xf32>
    %244 = arith.addf %242, %243 : vector<2x128xf32>
    %245 = arith.mulf %217, %244 : vector<2x128xf32>
    %cst_109 = arith.constant 1.000000e+00 : f32
    %246 = vector.broadcast %cst_109 : f32 to vector<2x128xf32>
    %247 = arith.subf %246, %217 : vector<2x128xf32>
    %248 = arith.mulf %247, %195 : vector<2x128xf32>
    %249 = arith.addf %245, %248 : vector<2x128xf32>
    %250 = arith.mulf %217, %249 : vector<2x128xf32>
    %251 = vector.extract_strided_slice %250 {offsets = [0, 0], sizes = [2, 32], strides = [1, 1]} : vector<2x128xf32> to vector<2x32xf32>
    %c3_110 = arith.constant 3 : index
    %c0_111 = arith.constant 0 : index
    %c0_112 = arith.constant 0 : index
    %252 = vector.load %arg19[%c3_110, %c0_111, %c0_112] : memref<10x2x64xf32, #tpu.memory_space<vmem>>, vector<1x2x32xf32>
    %253 = vector.shape_cast %252 : vector<1x2x32xf32> to vector<2x32xf32>
    %254 = vector.shape_cast %251 : vector<2x32xf32> to vector<1x2x32xf32>
    tpu.vector_store %arg19[%c3_110, %c0_111, %c0_112], %254 {strides = array<i32>} : memref<10x2x64xf32, #tpu.memory_space<vmem>>, vector<1x2x32xf32>,
    %255 = vector.extract_strided_slice %250 {offsets = [0, 32], sizes = [2, 32], strides = [1, 1]} : vector<2x128xf32> to vector<2x32xf32>
    %c6_113 = arith.constant 6 : index
    %c0_114 = arith.constant 0 : index
    %c32_115 = arith.constant 32 : index
    %256 = vector.load %arg19[%c6_113, %c0_114, %c32_115] : memref<10x2x64xf32, #tpu.memory_space<vmem>>, vector<1x2x32xf32>
    %257 = vector.shape_cast %256 : vector<1x2x32xf32> to vector<2x32xf32>
    %258 = vector.shape_cast %255 : vector<2x32xf32> to vector<1x2x32xf32>
    tpu.vector_store %arg19[%c6_113, %c0_114, %c32_115], %258 {strides = array<i32>} : memref<10x2x64xf32, #tpu.memory_space<vmem>>, vector<1x2x32xf32>,
    %259 = vector.extract_strided_slice %250 {offsets = [0, 64], sizes = [2, 32], strides = [1, 1]} : vector<2x128xf32> to vector<2x32xf32>
    %c3_116 = arith.constant 3 : index
    %c0_117 = arith.constant 0 : index
    %c0_118 = arith.constant 0 : index
    %260 = vector.load %arg20[%c3_116, %c0_117, %c0_118] : memref<8x2x64xf32, #tpu.memory_space<vmem>>, vector<1x2x32xf32>
    %261 = vector.shape_cast %260 : vector<1x2x32xf32> to vector<2x32xf32>
    %262 = vector.shape_cast %259 : vector<2x32xf32> to vector<1x2x32xf32>
    tpu.vector_store %arg20[%c3_116, %c0_117, %c0_118], %262 {strides = array<i32>} : memref<8x2x64xf32, #tpu.memory_space<vmem>>, vector<1x2x32xf32>,
    %263 = vector.extract_strided_slice %250 {offsets = [0, 96], sizes = [2, 32], strides = [1, 1]} : vector<2x128xf32> to vector<2x32xf32>
    %c4_119 = arith.constant 4 : index
    %c0_120 = arith.constant 0 : index
    %c32_121 = arith.constant 32 : index
    %264 = vector.load %arg20[%c4_119, %c0_120, %c32_121] : memref<8x2x64xf32, #tpu.memory_space<vmem>>, vector<1x2x32xf32>
    %265 = vector.shape_cast %264 : vector<1x2x32xf32> to vector<2x32xf32>
    %266 = vector.shape_cast %263 : vector<2x32xf32> to vector<1x2x32xf32>
    tpu.vector_store %arg20[%c4_119, %c0_120, %c32_121], %266 {strides = array<i32>} : memref<8x2x64xf32, #tpu.memory_space<vmem>>, vector<1x2x32xf32>,
    %cst_122 = arith.constant dense<0.000000e+00> : vector<2x384xf32>
    %267 = tpu.matmul %249, %46, %cst_122 {dimension_numbers = #tpu.dot_dimension_numbers<[1], [0], [0], [1], [0, 0, 1, 1], [], []>} : vector<2x128xf32>, vector<128x384xf32>, vector<2x384xf32> -> vector<2x384xf32>
    %c4_123 = arith.constant 4 : index
    %c0_124 = arith.constant 0 : index
    %c0_125 = arith.constant 0 : index
    %268 = vector.load %arg18[%c4_123, %c0_124, %c0_125] : memref<10x2x384xf32, #tpu.memory_space<vmem>>, vector<1x2x384xf32>
    %269 = vector.shape_cast %268 : vector<1x2x384xf32> to vector<2x384xf32>
    %c4_126 = arith.constant 4 : index
    %c0_127 = arith.constant 0 : index
    %c0_128 = arith.constant 0 : index
    %270 = vector.load %arg1[%c4_126, %c0_127, %c0_128] : memref<10x2x128xf32, #tpu.memory_space<vmem>>, vector<1x2x128xf32>
    %271 = vector.shape_cast %270 : vector<1x2x128xf32> to vector<2x128xf32>
    %272 = vector.extract_strided_slice %269 {offsets = [0, 0], sizes = [2, 128], strides = [1, 1]} : vector<2x384xf32> to vector<2x128xf32>
    %273 = vector.extract_strided_slice %267 {offsets = [0, 0], sizes = [2, 128], strides = [1, 1]} : vector<2x384xf32> to vector<2x128xf32>
    %274 = arith.addf %272, %273 : vector<2x128xf32>
    %275 = arith.negf %274 : vector<2x128xf32>
    %276 = math.exp %275 : vector<2x128xf32>
    %cst_129 = arith.constant 1.000000e+00 : f32
    %277 = vector.broadcast %cst_129 : f32 to vector<2x128xf32>
    %278 = arith.addf %277, %276 : vector<2x128xf32>
    %279 = arith.divf %277, %278 : vector<2x128xf32>
    %280 = vector.extract_strided_slice %269 {offsets = [0, 128], sizes = [2, 128], strides = [1, 1]} : vector<2x384xf32> to vector<2x128xf32>
    %281 = vector.extract_strided_slice %267 {offsets = [0, 128], sizes = [2, 128], strides = [1, 1]} : vector<2x384xf32> to vector<2x128xf32>
    %282 = arith.addf %280, %281 : vector<2x128xf32>
    %283 = arith.negf %282 : vector<2x128xf32>
    %284 = math.exp %283 : vector<2x128xf32>
    %cst_130 = arith.constant 1.000000e+00 : f32
    %285 = vector.broadcast %cst_130 : f32 to vector<2x128xf32>
    %286 = arith.addf %285, %284 : vector<2x128xf32>
    %287 = arith.divf %285, %286 : vector<2x128xf32>
    %288 = vector.extract_strided_slice %269 {offsets = [0, 256], sizes = [2, 128], strides = [1, 1]} : vector<2x384xf32> to vector<2x128xf32>
    %289 = vector.extract_strided_slice %267 {offsets = [0, 256], sizes = [2, 128], strides = [1, 1]} : vector<2x384xf32> to vector<2x128xf32>
    %290 = arith.addf %289, %49 : vector<2x128xf32>
    %291 = arith.mulf %279, %290 : vector<2x128xf32>
    %292 = arith.addf %288, %291 : vector<2x128xf32>
    %293 = math.tanh %292 : vector<2x128xf32>
    %cst_131 = arith.constant 1.000000e+00 : f32
    %294 = vector.broadcast %cst_131 : f32 to vector<2x128xf32>
    %295 = arith.subf %294, %287 : vector<2x128xf32>
    %296 = arith.mulf %295, %293 : vector<2x128xf32>
    %297 = arith.mulf %287, %249 : vector<2x128xf32>
    %298 = arith.addf %296, %297 : vector<2x128xf32>
    %299 = arith.mulf %271, %298 : vector<2x128xf32>
    %cst_132 = arith.constant 1.000000e+00 : f32
    %300 = vector.broadcast %cst_132 : f32 to vector<2x128xf32>
    %301 = arith.subf %300, %271 : vector<2x128xf32>
    %302 = arith.mulf %301, %249 : vector<2x128xf32>
    %303 = arith.addf %299, %302 : vector<2x128xf32>
    %304 = arith.mulf %271, %303 : vector<2x128xf32>
    %305 = vector.extract_strided_slice %304 {offsets = [0, 0], sizes = [2, 32], strides = [1, 1]} : vector<2x128xf32> to vector<2x32xf32>
    %c4_133 = arith.constant 4 : index
    %c0_134 = arith.constant 0 : index
    %c0_135 = arith.constant 0 : index
    %306 = vector.load %arg19[%c4_133, %c0_134, %c0_135] : memref<10x2x64xf32, #tpu.memory_space<vmem>>, vector<1x2x32xf32>
    %307 = vector.shape_cast %306 : vector<1x2x32xf32> to vector<2x32xf32>
    %308 = vector.shape_cast %305 : vector<2x32xf32> to vector<1x2x32xf32>
    tpu.vector_store %arg19[%c4_133, %c0_134, %c0_135], %308 {strides = array<i32>} : memref<10x2x64xf32, #tpu.memory_space<vmem>>, vector<1x2x32xf32>,
    %309 = vector.extract_strided_slice %304 {offsets = [0, 32], sizes = [2, 32], strides = [1, 1]} : vector<2x128xf32> to vector<2x32xf32>
    %c5_136 = arith.constant 5 : index
    %c0_137 = arith.constant 0 : index
    %c32_138 = arith.constant 32 : index
    %310 = vector.load %arg19[%c5_136, %c0_137, %c32_138] : memref<10x2x64xf32, #tpu.memory_space<vmem>>, vector<1x2x32xf32>
    %311 = vector.shape_cast %310 : vector<1x2x32xf32> to vector<2x32xf32>
    %312 = vector.shape_cast %309 : vector<2x32xf32> to vector<1x2x32xf32>
    tpu.vector_store %arg19[%c5_136, %c0_137, %c32_138], %312 {strides = array<i32>} : memref<10x2x64xf32, #tpu.memory_space<vmem>>, vector<1x2x32xf32>,
    %313 = vector.extract_strided_slice %304 {offsets = [0, 64], sizes = [2, 32], strides = [1, 1]} : vector<2x128xf32> to vector<2x32xf32>
    %c4_139 = arith.constant 4 : index
    %c0_140 = arith.constant 0 : index
    %c0_141 = arith.constant 0 : index
    %314 = vector.load %arg20[%c4_139, %c0_140, %c0_141] : memref<8x2x64xf32, #tpu.memory_space<vmem>>, vector<1x2x32xf32>
    %315 = vector.shape_cast %314 : vector<1x2x32xf32> to vector<2x32xf32>
    %316 = vector.shape_cast %313 : vector<2x32xf32> to vector<1x2x32xf32>
    tpu.vector_store %arg20[%c4_139, %c0_140, %c0_141], %316 {strides = array<i32>} : memref<8x2x64xf32, #tpu.memory_space<vmem>>, vector<1x2x32xf32>,
    %317 = vector.extract_strided_slice %304 {offsets = [0, 96], sizes = [2, 32], strides = [1, 1]} : vector<2x128xf32> to vector<2x32xf32>
    %c3_142 = arith.constant 3 : index
    %c0_143 = arith.constant 0 : index
    %c32_144 = arith.constant 32 : index
    %318 = vector.load %arg20[%c3_142, %c0_143, %c32_144] : memref<8x2x64xf32, #tpu.memory_space<vmem>>, vector<1x2x32xf32>
    %319 = vector.shape_cast %318 : vector<1x2x32xf32> to vector<2x32xf32>
    %320 = vector.shape_cast %317 : vector<2x32xf32> to vector<1x2x32xf32>
    tpu.vector_store %arg20[%c3_142, %c0_143, %c32_144], %320 {strides = array<i32>} : memref<8x2x64xf32, #tpu.memory_space<vmem>>, vector<1x2x32xf32>,
    %cst_145 = arith.constant dense<0.000000e+00> : vector<2x384xf32>
    %321 = tpu.matmul %303, %46, %cst_145 {dimension_numbers = #tpu.dot_dimension_numbers<[1], [0], [0], [1], [0, 0, 1, 1], [], []>} : vector<2x128xf32>, vector<128x384xf32>, vector<2x384xf32> -> vector<2x384xf32>
    %c5_146 = arith.constant 5 : index
    %c0_147 = arith.constant 0 : index
    %c0_148 = arith.constant 0 : index
    %322 = vector.load %arg18[%c5_146, %c0_147, %c0_148] : memref<10x2x384xf32, #tpu.memory_space<vmem>>, vector<1x2x384xf32>
    %323 = vector.shape_cast %322 : vector<1x2x384xf32> to vector<2x384xf32>
    %c5_149 = arith.constant 5 : index
    %c0_150 = arith.constant 0 : index
    %c0_151 = arith.constant 0 : index
    %324 = vector.load %arg1[%c5_149, %c0_150, %c0_151] : memref<10x2x128xf32, #tpu.memory_space<vmem>>, vector<1x2x128xf32>
    %325 = vector.shape_cast %324 : vector<1x2x128xf32> to vector<2x128xf32>
    %326 = vector.extract_strided_slice %323 {offsets = [0, 0], sizes = [2, 128], strides = [1, 1]} : vector<2x384xf32> to vector<2x128xf32>
    %327 = vector.extract_strided_slice %321 {offsets = [0, 0], sizes = [2, 128], strides = [1, 1]} : vector<2x384xf32> to vector<2x128xf32>
    %328 = arith.addf %326, %327 : vector<2x128xf32>
    %329 = arith.negf %328 : vector<2x128xf32>
    %330 = math.exp %329 : vector<2x128xf32>
    %cst_152 = arith.constant 1.000000e+00 : f32
    %331 = vector.broadcast %cst_152 : f32 to vector<2x128xf32>
    %332 = arith.addf %331, %330 : vector<2x128xf32>
    %333 = arith.divf %331, %332 : vector<2x128xf32>
    %334 = vector.extract_strided_slice %323 {offsets = [0, 128], sizes = [2, 128], strides = [1, 1]} : vector<2x384xf32> to vector<2x128xf32>
    %335 = vector.extract_strided_slice %321 {offsets = [0, 128], sizes = [2, 128], strides = [1, 1]} : vector<2x384xf32> to vector<2x128xf32>
    %336 = arith.addf %334, %335 : vector<2x128xf32>
    %337 = arith.negf %336 : vector<2x128xf32>
    %338 = math.exp %337 : vector<2x128xf32>
    %cst_153 = arith.constant 1.000000e+00 : f32
    %339 = vector.broadcast %cst_153 : f32 to vector<2x128xf32>
    %340 = arith.addf %339, %338 : vector<2x128xf32>
    %341 = arith.divf %339, %340 : vector<2x128xf32>
    %342 = vector.extract_strided_slice %323 {offsets = [0, 256], sizes = [2, 128], strides = [1, 1]} : vector<2x384xf32> to vector<2x128xf32>
    %343 = vector.extract_strided_slice %321 {offsets = [0, 256], sizes = [2, 128], strides = [1, 1]} : vector<2x384xf32> to vector<2x128xf32>
    %344 = arith.addf %343, %49 : vector<2x128xf32>
    %345 = arith.mulf %333, %344 : vector<2x128xf32>
    %346 = arith.addf %342, %345 : vector<2x128xf32>
    %347 = math.tanh %346 : vector<2x128xf32>
    %cst_154 = arith.constant 1.000000e+00 : f32
    %348 = vector.broadcast %cst_154 : f32 to vector<2x128xf32>
    %349 = arith.subf %348, %341 : vector<2x128xf32>
    %350 = arith.mulf %349, %347 : vector<2x128xf32>
    %351 = arith.mulf %341, %303 : vector<2x128xf32>
    %352 = arith.addf %350, %351 : vector<2x128xf32>
    %353 = arith.mulf %325, %352 : vector<2x128xf32>
    %cst_155 = arith.constant 1.000000e+00 : f32
    %354 = vector.broadcast %cst_155 : f32 to vector<2x128xf32>
    %355 = arith.subf %354, %325 : vector<2x128xf32>
    %356 = arith.mulf %355, %303 : vector<2x128xf32>
    %357 = arith.addf %353, %356 : vector<2x128xf32>
    %358 = arith.mulf %325, %357 : vector<2x128xf32>
    %359 = vector.extract_strided_slice %358 {offsets = [0, 0], sizes = [2, 32], strides = [1, 1]} : vector<2x128xf32> to vector<2x32xf32>
    %c5_156 = arith.constant 5 : index
    %c0_157 = arith.constant 0 : index
    %c0_158 = arith.constant 0 : index
    %360 = vector.load %arg19[%c5_156, %c0_157, %c0_158] : memref<10x2x64xf32, #tpu.memory_space<vmem>>, vector<1x2x32xf32>
    %361 = vector.shape_cast %360 : vector<1x2x32xf32> to vector<2x32xf32>
    %362 = vector.shape_cast %359 : vector<2x32xf32> to vector<1x2x32xf32>
    tpu.vector_store %arg19[%c5_156, %c0_157, %c0_158], %362 {strides = array<i32>} : memref<10x2x64xf32, #tpu.memory_space<vmem>>, vector<1x2x32xf32>,
    %363 = vector.extract_strided_slice %358 {offsets = [0, 32], sizes = [2, 32], strides = [1, 1]} : vector<2x128xf32> to vector<2x32xf32>
    %c4_159 = arith.constant 4 : index
    %c0_160 = arith.constant 0 : index
    %c32_161 = arith.constant 32 : index
    %364 = vector.load %arg19[%c4_159, %c0_160, %c32_161] : memref<10x2x64xf32, #tpu.memory_space<vmem>>, vector<1x2x32xf32>
    %365 = vector.shape_cast %364 : vector<1x2x32xf32> to vector<2x32xf32>
    %366 = vector.shape_cast %363 : vector<2x32xf32> to vector<1x2x32xf32>
    tpu.vector_store %arg19[%c4_159, %c0_160, %c32_161], %366 {strides = array<i32>} : memref<10x2x64xf32, #tpu.memory_space<vmem>>, vector<1x2x32xf32>,
    %367 = vector.extract_strided_slice %358 {offsets = [0, 64], sizes = [2, 32], strides = [1, 1]} : vector<2x128xf32> to vector<2x32xf32>
    %c5_162 = arith.constant 5 : index
    %c0_163 = arith.constant 0 : index
    %c0_164 = arith.constant 0 : index
    %368 = vector.load %arg20[%c5_162, %c0_163, %c0_164] : memref<8x2x64xf32, #tpu.memory_space<vmem>>, vector<1x2x32xf32>
    %369 = vector.shape_cast %368 : vector<1x2x32xf32> to vector<2x32xf32>
    %370 = vector.shape_cast %367 : vector<2x32xf32> to vector<1x2x32xf32>
    tpu.vector_store %arg20[%c5_162, %c0_163, %c0_164], %370 {strides = array<i32>} : memref<8x2x64xf32, #tpu.memory_space<vmem>>, vector<1x2x32xf32>,
    %371 = vector.extract_strided_slice %358 {offsets = [0, 96], sizes = [2, 32], strides = [1, 1]} : vector<2x128xf32> to vector<2x32xf32>
    %c2_165 = arith.constant 2 : index
    %c0_166 = arith.constant 0 : index
    %c32_167 = arith.constant 32 : index
    %372 = vector.load %arg20[%c2_165, %c0_166, %c32_167] : memref<8x2x64xf32, #tpu.memory_space<vmem>>, vector<1x2x32xf32>
    %373 = vector.shape_cast %372 : vector<1x2x32xf32> to vector<2x32xf32>
    %374 = vector.shape_cast %371 : vector<2x32xf32> to vector<1x2x32xf32>
    tpu.vector_store %arg20[%c2_165, %c0_166, %c32_167], %374 {strides = array<i32>} : memref<8x2x64xf32, #tpu.memory_space<vmem>>, vector<1x2x32xf32>,
    %cst_168 = arith.constant dense<0.000000e+00> : vector<2x384xf32>
    %375 = tpu.matmul %357, %46, %cst_168 {dimension_numbers = #tpu.dot_dimension_numbers<[1], [0], [0], [1], [0, 0, 1, 1], [], []>} : vector<2x128xf32>, vector<128x384xf32>, vector<2x384xf32> -> vector<2x384xf32>
    %c6_169 = arith.constant 6 : index
    %c0_170 = arith.constant 0 : index
    %c0_171 = arith.constant 0 : index
    %376 = vector.load %arg18[%c6_169, %c0_170, %c0_171] : memref<10x2x384xf32, #tpu.memory_space<vmem>>, vector<1x2x384xf32>
    %377 = vector.shape_cast %376 : vector<1x2x384xf32> to vector<2x384xf32>
    %c6_172 = arith.constant 6 : index
    %c0_173 = arith.constant 0 : index
    %c0_174 = arith.constant 0 : index
    %378 = vector.load %arg1[%c6_172, %c0_173, %c0_174] : memref<10x2x128xf32, #tpu.memory_space<vmem>>, vector<1x2x128xf32>
    %379 = vector.shape_cast %378 : vector<1x2x128xf32> to vector<2x128xf32>
    %380 = vector.extract_strided_slice %377 {offsets = [0, 0], sizes = [2, 128], strides = [1, 1]} : vector<2x384xf32> to vector<2x128xf32>
    %381 = vector.extract_strided_slice %375 {offsets = [0, 0], sizes = [2, 128], strides = [1, 1]} : vector<2x384xf32> to vector<2x128xf32>
    %382 = arith.addf %380, %381 : vector<2x128xf32>
    %383 = arith.negf %382 : vector<2x128xf32>
    %384 = math.exp %383 : vector<2x128xf32>
    %cst_175 = arith.constant 1.000000e+00 : f32
    %385 = vector.broadcast %cst_175 : f32 to vector<2x128xf32>
    %386 = arith.addf %385, %384 : vector<2x128xf32>
    %387 = arith.divf %385, %386 : vector<2x128xf32>
    %388 = vector.extract_strided_slice %377 {offsets = [0, 128], sizes = [2, 128], strides = [1, 1]} : vector<2x384xf32> to vector<2x128xf32>
    %389 = vector.extract_strided_slice %375 {offsets = [0, 128], sizes = [2, 128], strides = [1, 1]} : vector<2x384xf32> to vector<2x128xf32>
    %390 = arith.addf %388, %389 : vector<2x128xf32>
    %391 = arith.negf %390 : vector<2x128xf32>
    %392 = math.exp %391 : vector<2x128xf32>
    %cst_176 = arith.constant 1.000000e+00 : f32
    %393 = vector.broadcast %cst_176 : f32 to vector<2x128xf32>
    %394 = arith.addf %393, %392 : vector<2x128xf32>
    %395 = arith.divf %393, %394 : vector<2x128xf32>
    %396 = vector.extract_strided_slice %377 {offsets = [0, 256], sizes = [2, 128], strides = [1, 1]} : vector<2x384xf32> to vector<2x128xf32>
    %397 = vector.extract_strided_slice %375 {offsets = [0, 256], sizes = [2, 128], strides = [1, 1]} : vector<2x384xf32> to vector<2x128xf32>
    %398 = arith.addf %397, %49 : vector<2x128xf32>
    %399 = arith.mulf %387, %398 : vector<2x128xf32>
    %400 = arith.addf %396, %399 : vector<2x128xf32>
    %401 = math.tanh %400 : vector<2x128xf32>
    %cst_177 = arith.constant 1.000000e+00 : f32
    %402 = vector.broadcast %cst_177 : f32 to vector<2x128xf32>
    %403 = arith.subf %402, %395 : vector<2x128xf32>
    %404 = arith.mulf %403, %401 : vector<2x128xf32>
    %405 = arith.mulf %395, %357 : vector<2x128xf32>
    %406 = arith.addf %404, %405 : vector<2x128xf32>
    %407 = arith.mulf %379, %406 : vector<2x128xf32>
    %cst_178 = arith.constant 1.000000e+00 : f32
    %408 = vector.broadcast %cst_178 : f32 to vector<2x128xf32>
    %409 = arith.subf %408, %379 : vector<2x128xf32>
    %410 = arith.mulf %409, %357 : vector<2x128xf32>
    %411 = arith.addf %407, %410 : vector<2x128xf32>
    %412 = arith.mulf %379, %411 : vector<2x128xf32>
    %413 = vector.extract_strided_slice %412 {offsets = [0, 0], sizes = [2, 32], strides = [1, 1]} : vector<2x128xf32> to vector<2x32xf32>
    %c6_179 = arith.constant 6 : index
    %c0_180 = arith.constant 0 : index
    %c0_181 = arith.constant 0 : index
    %414 = vector.load %arg19[%c6_179, %c0_180, %c0_181] : memref<10x2x64xf32, #tpu.memory_space<vmem>>, vector<1x2x32xf32>
    %415 = vector.shape_cast %414 : vector<1x2x32xf32> to vector<2x32xf32>
    %416 = vector.shape_cast %413 : vector<2x32xf32> to vector<1x2x32xf32>
    tpu.vector_store %arg19[%c6_179, %c0_180, %c0_181], %416 {strides = array<i32>} : memref<10x2x64xf32, #tpu.memory_space<vmem>>, vector<1x2x32xf32>,
    %417 = vector.extract_strided_slice %412 {offsets = [0, 32], sizes = [2, 32], strides = [1, 1]} : vector<2x128xf32> to vector<2x32xf32>
    %c3_182 = arith.constant 3 : index
    %c0_183 = arith.constant 0 : index
    %c32_184 = arith.constant 32 : index
    %418 = vector.load %arg19[%c3_182, %c0_183, %c32_184] : memref<10x2x64xf32, #tpu.memory_space<vmem>>, vector<1x2x32xf32>
    %419 = vector.shape_cast %418 : vector<1x2x32xf32> to vector<2x32xf32>
    %420 = vector.shape_cast %417 : vector<2x32xf32> to vector<1x2x32xf32>
    tpu.vector_store %arg19[%c3_182, %c0_183, %c32_184], %420 {strides = array<i32>} : memref<10x2x64xf32, #tpu.memory_space<vmem>>, vector<1x2x32xf32>,
    %421 = vector.extract_strided_slice %412 {offsets = [0, 64], sizes = [2, 32], strides = [1, 1]} : vector<2x128xf32> to vector<2x32xf32>
    %c6_185 = arith.constant 6 : index
    %c0_186 = arith.constant 0 : index
    %c0_187 = arith.constant 0 : index
    %422 = vector.load %arg20[%c6_185, %c0_186, %c0_187] : memref<8x2x64xf32, #tpu.memory_space<vmem>>, vector<1x2x32xf32>
    %423 = vector.shape_cast %422 : vector<1x2x32xf32> to vector<2x32xf32>
    %424 = vector.shape_cast %421 : vector<2x32xf32> to vector<1x2x32xf32>
    tpu.vector_store %arg20[%c6_185, %c0_186, %c0_187], %424 {strides = array<i32>} : memref<8x2x64xf32, #tpu.memory_space<vmem>>, vector<1x2x32xf32>,
    %425 = vector.extract_strided_slice %412 {offsets = [0, 96], sizes = [2, 32], strides = [1, 1]} : vector<2x128xf32> to vector<2x32xf32>
    %c1_188 = arith.constant 1 : index
    %c0_189 = arith.constant 0 : index
    %c32_190 = arith.constant 32 : index
    %426 = vector.load %arg20[%c1_188, %c0_189, %c32_190] : memref<8x2x64xf32, #tpu.memory_space<vmem>>, vector<1x2x32xf32>
    %427 = vector.shape_cast %426 : vector<1x2x32xf32> to vector<2x32xf32>
    %428 = vector.shape_cast %425 : vector<2x32xf32> to vector<1x2x32xf32>
    tpu.vector_store %arg20[%c1_188, %c0_189, %c32_190], %428 {strides = array<i32>} : memref<8x2x64xf32, #tpu.memory_space<vmem>>, vector<1x2x32xf32>,
    %cst_191 = arith.constant dense<0.000000e+00> : vector<2x384xf32>
    %429 = tpu.matmul %411, %46, %cst_191 {dimension_numbers = #tpu.dot_dimension_numbers<[1], [0], [0], [1], [0, 0, 1, 1], [], []>} : vector<2x128xf32>, vector<128x384xf32>, vector<2x384xf32> -> vector<2x384xf32>
    %c7_192 = arith.constant 7 : index
    %c0_193 = arith.constant 0 : index
    %c0_194 = arith.constant 0 : index
    %430 = vector.load %arg18[%c7_192, %c0_193, %c0_194] : memref<10x2x384xf32, #tpu.memory_space<vmem>>, vector<1x2x384xf32>
    %431 = vector.shape_cast %430 : vector<1x2x384xf32> to vector<2x384xf32>
    %c7_195 = arith.constant 7 : index
    %c0_196 = arith.constant 0 : index
    %c0_197 = arith.constant 0 : index
    %432 = vector.load %arg1[%c7_195, %c0_196, %c0_197] : memref<10x2x128xf32, #tpu.memory_space<vmem>>, vector<1x2x128xf32>
    %433 = vector.shape_cast %432 : vector<1x2x128xf32> to vector<2x128xf32>
    %434 = vector.extract_strided_slice %431 {offsets = [0, 0], sizes = [2, 128], strides = [1, 1]} : vector<2x384xf32> to vector<2x128xf32>
    %435 = vector.extract_strided_slice %429 {offsets = [0, 0], sizes = [2, 128], strides = [1, 1]} : vector<2x384xf32> to vector<2x128xf32>
    %436 = arith.addf %434, %435 : vector<2x128xf32>
    %437 = arith.negf %436 : vector<2x128xf32>
    %438 = math.exp %437 : vector<2x128xf32>
    %cst_198 = arith.constant 1.000000e+00 : f32
    %439 = vector.broadcast %cst_198 : f32 to vector<2x128xf32>
    %440 = arith.addf %439, %438 : vector<2x128xf32>
    %441 = arith.divf %439, %440 : vector<2x128xf32>
    %442 = vector.extract_strided_slice %431 {offsets = [0, 128], sizes = [2, 128], strides = [1, 1]} : vector<2x384xf32> to vector<2x128xf32>
    %443 = vector.extract_strided_slice %429 {offsets = [0, 128], sizes = [2, 128], strides = [1, 1]} : vector<2x384xf32> to vector<2x128xf32>
    %444 = arith.addf %442, %443 : vector<2x128xf32>
    %445 = arith.negf %444 : vector<2x128xf32>
    %446 = math.exp %445 : vector<2x128xf32>
    %cst_199 = arith.constant 1.000000e+00 : f32
    %447 = vector.broadcast %cst_199 : f32 to vector<2x128xf32>
    %448 = arith.addf %447, %446 : vector<2x128xf32>
    %449 = arith.divf %447, %448 : vector<2x128xf32>
    %450 = vector.extract_strided_slice %431 {offsets = [0, 256], sizes = [2, 128], strides = [1, 1]} : vector<2x384xf32> to vector<2x128xf32>
    %451 = vector.extract_strided_slice %429 {offsets = [0, 256], sizes = [2, 128], strides = [1, 1]} : vector<2x384xf32> to vector<2x128xf32>
    %452 = arith.addf %451, %49 : vector<2x128xf32>
    %453 = arith.mulf %441, %452 : vector<2x128xf32>
    %454 = arith.addf %450, %453 : vector<2x128xf32>
    %455 = math.tanh %454 : vector<2x128xf32>
    %cst_200 = arith.constant 1.000000e+00 : f32
    %456 = vector.broadcast %cst_200 : f32 to vector<2x128xf32>
    %457 = arith.subf %456, %449 : vector<2x128xf32>
    %458 = arith.mulf %457, %455 : vector<2x128xf32>
    %459 = arith.mulf %449, %411 : vector<2x128xf32>
    %460 = arith.addf %458, %459 : vector<2x128xf32>
    %461 = arith.mulf %433, %460 : vector<2x128xf32>
    %cst_201 = arith.constant 1.000000e+00 : f32
    %462 = vector.broadcast %cst_201 : f32 to vector<2x128xf32>
    %463 = arith.subf %462, %433 : vector<2x128xf32>
    %464 = arith.mulf %463, %411 : vector<2x128xf32>
    %465 = arith.addf %461, %464 : vector<2x128xf32>
    %466 = arith.mulf %433, %465 : vector<2x128xf32>
    %467 = vector.extract_strided_slice %466 {offsets = [0, 0], sizes = [2, 32], strides = [1, 1]} : vector<2x128xf32> to vector<2x32xf32>
    %c7_202 = arith.constant 7 : index
    %c0_203 = arith.constant 0 : index
    %c0_204 = arith.constant 0 : index
    %468 = vector.load %arg19[%c7_202, %c0_203, %c0_204] : memref<10x2x64xf32, #tpu.memory_space<vmem>>, vector<1x2x32xf32>
    %469 = vector.shape_cast %468 : vector<1x2x32xf32> to vector<2x32xf32>
    %470 = vector.shape_cast %467 : vector<2x32xf32> to vector<1x2x32xf32>
    tpu.vector_store %arg19[%c7_202, %c0_203, %c0_204], %470 {strides = array<i32>} : memref<10x2x64xf32, #tpu.memory_space<vmem>>, vector<1x2x32xf32>,
    %471 = vector.extract_strided_slice %466 {offsets = [0, 32], sizes = [2, 32], strides = [1, 1]} : vector<2x128xf32> to vector<2x32xf32>
    %c2_205 = arith.constant 2 : index
    %c0_206 = arith.constant 0 : index
    %c32_207 = arith.constant 32 : index
    %472 = vector.load %arg19[%c2_205, %c0_206, %c32_207] : memref<10x2x64xf32, #tpu.memory_space<vmem>>, vector<1x2x32xf32>
    %473 = vector.shape_cast %472 : vector<1x2x32xf32> to vector<2x32xf32>
    %474 = vector.shape_cast %471 : vector<2x32xf32> to vector<1x2x32xf32>
    tpu.vector_store %arg19[%c2_205, %c0_206, %c32_207], %474 {strides = array<i32>} : memref<10x2x64xf32, #tpu.memory_space<vmem>>, vector<1x2x32xf32>,
    %475 = vector.extract_strided_slice %466 {offsets = [0, 64], sizes = [2, 32], strides = [1, 1]} : vector<2x128xf32> to vector<2x32xf32>
    %c7_208 = arith.constant 7 : index
    %c0_209 = arith.constant 0 : index
    %c0_210 = arith.constant 0 : index
    %476 = vector.load %arg20[%c7_208, %c0_209, %c0_210] : memref<8x2x64xf32, #tpu.memory_space<vmem>>, vector<1x2x32xf32>
    %477 = vector.shape_cast %476 : vector<1x2x32xf32> to vector<2x32xf32>
    %478 = vector.shape_cast %475 : vector<2x32xf32> to vector<1x2x32xf32>
    tpu.vector_store %arg20[%c7_208, %c0_209, %c0_210], %478 {strides = array<i32>} : memref<8x2x64xf32, #tpu.memory_space<vmem>>, vector<1x2x32xf32>,
    %479 = vector.extract_strided_slice %466 {offsets = [0, 96], sizes = [2, 32], strides = [1, 1]} : vector<2x128xf32> to vector<2x32xf32>
    %c0_211 = arith.constant 0 : index
    %c0_212 = arith.constant 0 : index
    %c32_213 = arith.constant 32 : index
    %480 = vector.load %arg20[%c0_211, %c0_212, %c32_213] : memref<8x2x64xf32, #tpu.memory_space<vmem>>, vector<1x2x32xf32>
    %481 = vector.shape_cast %480 : vector<1x2x32xf32> to vector<2x32xf32>
    %482 = vector.shape_cast %479 : vector<2x32xf32> to vector<1x2x32xf32>
    tpu.vector_store %arg20[%c0_211, %c0_212, %c32_213], %482 {strides = array<i32>} : memref<8x2x64xf32, #tpu.memory_space<vmem>>, vector<1x2x32xf32>,
    %cst_214 = arith.constant dense<0.000000e+00> : vector<2x384xf32>
    %483 = tpu.matmul %465, %46, %cst_214 {dimension_numbers = #tpu.dot_dimension_numbers<[1], [0], [0], [1], [0, 0, 1, 1], [], []>} : vector<2x128xf32>, vector<128x384xf32>, vector<2x384xf32> -> vector<2x384xf32>
    %c8_215 = arith.constant 8 : index
    %c0_216 = arith.constant 0 : index
    %c0_217 = arith.constant 0 : index
    %484 = vector.load %arg18[%c8_215, %c0_216, %c0_217] : memref<10x2x384xf32, #tpu.memory_space<vmem>>, vector<1x2x384xf32>
    %485 = vector.shape_cast %484 : vector<1x2x384xf32> to vector<2x384xf32>
    %c8_218 = arith.constant 8 : index
    %c0_219 = arith.constant 0 : index
    %c0_220 = arith.constant 0 : index
    %486 = vector.load %arg1[%c8_218, %c0_219, %c0_220] : memref<10x2x128xf32, #tpu.memory_space<vmem>>, vector<1x2x128xf32>
    %487 = vector.shape_cast %486 : vector<1x2x128xf32> to vector<2x128xf32>
    %488 = vector.extract_strided_slice %485 {offsets = [0, 0], sizes = [2, 128], strides = [1, 1]} : vector<2x384xf32> to vector<2x128xf32>
    %489 = vector.extract_strided_slice %483 {offsets = [0, 0], sizes = [2, 128], strides = [1, 1]} : vector<2x384xf32> to vector<2x128xf32>
    %490 = arith.addf %488, %489 : vector<2x128xf32>
    %491 = arith.negf %490 : vector<2x128xf32>
    %492 = math.exp %491 : vector<2x128xf32>
    %cst_221 = arith.constant 1.000000e+00 : f32
    %493 = vector.broadcast %cst_221 : f32 to vector<2x128xf32>
    %494 = arith.addf %493, %492 : vector<2x128xf32>
    %495 = arith.divf %493, %494 : vector<2x128xf32>
    %496 = vector.extract_strided_slice %485 {offsets = [0, 128], sizes = [2, 128], strides = [1, 1]} : vector<2x384xf32> to vector<2x128xf32>
    %497 = vector.extract_strided_slice %483 {offsets = [0, 128], sizes = [2, 128], strides = [1, 1]} : vector<2x384xf32> to vector<2x128xf32>
    %498 = arith.addf %496, %497 : vector<2x128xf32>
    %499 = arith.negf %498 : vector<2x128xf32>
    %500 = math.exp %499 : vector<2x128xf32>
    %cst_222 = arith.constant 1.000000e+00 : f32
    %501 = vector.broadcast %cst_222 : f32 to vector<2x128xf32>
    %502 = arith.addf %501, %500 : vector<2x128xf32>
    %503 = arith.divf %501, %502 : vector<2x128xf32>
    %504 = vector.extract_strided_slice %485 {offsets = [0, 256], sizes = [2, 128], strides = [1, 1]} : vector<2x384xf32> to vector<2x128xf32>
    %505 = vector.extract_strided_slice %483 {offsets = [0, 256], sizes = [2, 128], strides = [1, 1]} : vector<2x384xf32> to vector<2x128xf32>
    %506 = arith.addf %505, %49 : vector<2x128xf32>
    %507 = arith.mulf %495, %506 : vector<2x128xf32>
    %508 = arith.addf %504, %507 : vector<2x128xf32>
    %509 = math.tanh %508 : vector<2x128xf32>
    %cst_223 = arith.constant 1.000000e+00 : f32
    %510 = vector.broadcast %cst_223 : f32 to vector<2x128xf32>
    %511 = arith.subf %510, %503 : vector<2x128xf32>
    %512 = arith.mulf %511, %509 : vector<2x128xf32>
    %513 = arith.mulf %503, %465 : vector<2x128xf32>
    %514 = arith.addf %512, %513 : vector<2x128xf32>
    %515 = arith.mulf %487, %514 : vector<2x128xf32>
    %cst_224 = arith.constant 1.000000e+00 : f32
    %516 = vector.broadcast %cst_224 : f32 to vector<2x128xf32>
    %517 = arith.subf %516, %487 : vector<2x128xf32>
    %518 = arith.mulf %517, %465 : vector<2x128xf32>
    %519 = arith.addf %515, %518 : vector<2x128xf32>
    %520 = arith.mulf %487, %519 : vector<2x128xf32>
    %521 = vector.extract_strided_slice %520 {offsets = [0, 0], sizes = [2, 32], strides = [1, 1]} : vector<2x128xf32> to vector<2x32xf32>
    %c8_225 = arith.constant 8 : index
    %c0_226 = arith.constant 0 : index
    %c0_227 = arith.constant 0 : index
    %522 = vector.load %arg19[%c8_225, %c0_226, %c0_227] : memref<10x2x64xf32, #tpu.memory_space<vmem>>, vector<1x2x32xf32>
    %523 = vector.shape_cast %522 : vector<1x2x32xf32> to vector<2x32xf32>
    %524 = vector.shape_cast %521 : vector<2x32xf32> to vector<1x2x32xf32>
    tpu.vector_store %arg19[%c8_225, %c0_226, %c0_227], %524 {strides = array<i32>} : memref<10x2x64xf32, #tpu.memory_space<vmem>>, vector<1x2x32xf32>,
    %525 = vector.extract_strided_slice %520 {offsets = [0, 32], sizes = [2, 32], strides = [1, 1]} : vector<2x128xf32> to vector<2x32xf32>
    %c1_228 = arith.constant 1 : index
    %c0_229 = arith.constant 0 : index
    %c32_230 = arith.constant 32 : index
    %526 = vector.load %arg19[%c1_228, %c0_229, %c32_230] : memref<10x2x64xf32, #tpu.memory_space<vmem>>, vector<1x2x32xf32>
    %527 = vector.shape_cast %526 : vector<1x2x32xf32> to vector<2x32xf32>
    %528 = vector.shape_cast %525 : vector<2x32xf32> to vector<1x2x32xf32>
    tpu.vector_store %arg19[%c1_228, %c0_229, %c32_230], %528 {strides = array<i32>} : memref<10x2x64xf32, #tpu.memory_space<vmem>>, vector<1x2x32xf32>,
    %cst_231 = arith.constant dense<0.000000e+00> : vector<2x384xf32>
    %529 = tpu.matmul %519, %46, %cst_231 {dimension_numbers = #tpu.dot_dimension_numbers<[1], [0], [0], [1], [0, 0, 1, 1], [], []>} : vector<2x128xf32>, vector<128x384xf32>, vector<2x384xf32> -> vector<2x384xf32>
    %c9_232 = arith.constant 9 : index
    %c0_233 = arith.constant 0 : index
    %c0_234 = arith.constant 0 : index
    %530 = vector.load %arg18[%c9_232, %c0_233, %c0_234] : memref<10x2x384xf32, #tpu.memory_space<vmem>>, vector<1x2x384xf32>
    %531 = vector.shape_cast %530 : vector<1x2x384xf32> to vector<2x384xf32>
    %c9_235 = arith.constant 9 : index
    %c0_236 = arith.constant 0 : index
    %c0_237 = arith.constant 0 : index
    %532 = vector.load %arg1[%c9_235, %c0_236, %c0_237] : memref<10x2x128xf32, #tpu.memory_space<vmem>>, vector<1x2x128xf32>
    %533 = vector.shape_cast %532 : vector<1x2x128xf32> to vector<2x128xf32>
    %534 = vector.extract_strided_slice %531 {offsets = [0, 0], sizes = [2, 128], strides = [1, 1]} : vector<2x384xf32> to vector<2x128xf32>
    %535 = vector.extract_strided_slice %529 {offsets = [0, 0], sizes = [2, 128], strides = [1, 1]} : vector<2x384xf32> to vector<2x128xf32>
    %536 = arith.addf %534, %535 : vector<2x128xf32>
    %537 = arith.negf %536 : vector<2x128xf32>
    %538 = math.exp %537 : vector<2x128xf32>
    %cst_238 = arith.constant 1.000000e+00 : f32
    %539 = vector.broadcast %cst_238 : f32 to vector<2x128xf32>
    %540 = arith.addf %539, %538 : vector<2x128xf32>
    %541 = arith.divf %539, %540 : vector<2x128xf32>
    %542 = vector.extract_strided_slice %531 {offsets = [0, 128], sizes = [2, 128], strides = [1, 1]} : vector<2x384xf32> to vector<2x128xf32>
    %543 = vector.extract_strided_slice %529 {offsets = [0, 128], sizes = [2, 128], strides = [1, 1]} : vector<2x384xf32> to vector<2x128xf32>
    %544 = arith.addf %542, %543 : vector<2x128xf32>
    %545 = arith.negf %544 : vector<2x128xf32>
    %546 = math.exp %545 : vector<2x128xf32>
    %cst_239 = arith.constant 1.000000e+00 : f32
    %547 = vector.broadcast %cst_239 : f32 to vector<2x128xf32>
    %548 = arith.addf %547, %546 : vector<2x128xf32>
    %549 = arith.divf %547, %548 : vector<2x128xf32>
    %550 = vector.extract_strided_slice %531 {offsets = [0, 256], sizes = [2, 128], strides = [1, 1]} : vector<2x384xf32> to vector<2x128xf32>
    %551 = vector.extract_strided_slice %529 {offsets = [0, 256], sizes = [2, 128], strides = [1, 1]} : vector<2x384xf32> to vector<2x128xf32>
    %552 = arith.addf %551, %49 : vector<2x128xf32>
    %553 = arith.mulf %541, %552 : vector<2x128xf32>
    %554 = arith.addf %550, %553 : vector<2x128xf32>
    %555 = math.tanh %554 : vector<2x128xf32>
    %cst_240 = arith.constant 1.000000e+00 : f32
    %556 = vector.broadcast %cst_240 : f32 to vector<2x128xf32>
    %557 = arith.subf %556, %549 : vector<2x128xf32>
    %558 = arith.mulf %557, %555 : vector<2x128xf32>
    %559 = arith.mulf %549, %519 : vector<2x128xf32>
    %560 = arith.addf %558, %559 : vector<2x128xf32>
    %561 = arith.mulf %533, %560 : vector<2x128xf32>
    %cst_241 = arith.constant 1.000000e+00 : f32
    %562 = vector.broadcast %cst_241 : f32 to vector<2x128xf32>
    %563 = arith.subf %562, %533 : vector<2x128xf32>
    %564 = arith.mulf %563, %519 : vector<2x128xf32>
    %565 = arith.addf %561, %564 : vector<2x128xf32>
    %566 = arith.mulf %533, %565 : vector<2x128xf32>
    %567 = vector.extract_strided_slice %566 {offsets = [0, 0], sizes = [2, 32], strides = [1, 1]} : vector<2x128xf32> to vector<2x32xf32>
    %c9_242 = arith.constant 9 : index
    %c0_243 = arith.constant 0 : index
    %c0_244 = arith.constant 0 : index
    %568 = vector.load %arg19[%c9_242, %c0_243, %c0_244] : memref<10x2x64xf32, #tpu.memory_space<vmem>>, vector<1x2x32xf32>
    %569 = vector.shape_cast %568 : vector<1x2x32xf32> to vector<2x32xf32>
    %570 = vector.shape_cast %567 : vector<2x32xf32> to vector<1x2x32xf32>
    tpu.vector_store %arg19[%c9_242, %c0_243, %c0_244], %570 {strides = array<i32>} : memref<10x2x64xf32, #tpu.memory_space<vmem>>, vector<1x2x32xf32>,
    %571 = vector.extract_strided_slice %566 {offsets = [0, 32], sizes = [2, 32], strides = [1, 1]} : vector<2x128xf32> to vector<2x32xf32>
    %c0_245 = arith.constant 0 : index
    %c0_246 = arith.constant 0 : index
    %c32_247 = arith.constant 32 : index
    %572 = vector.load %arg19[%c0_245, %c0_246, %c32_247] : memref<10x2x64xf32, #tpu.memory_space<vmem>>, vector<1x2x32xf32>
    %573 = vector.shape_cast %572 : vector<1x2x32xf32> to vector<2x32xf32>
    %574 = vector.shape_cast %571 : vector<2x32xf32> to vector<1x2x32xf32>
    tpu.vector_store %arg19[%c0_245, %c0_246, %c32_247], %574 {strides = array<i32>} : memref<10x2x64xf32, #tpu.memory_space<vmem>>, vector<1x2x32xf32>,
    %c0_248 = arith.constant 0 : index
    %c0_249 = arith.constant 0 : index
    %c0_250 = arith.constant 0 : index
    %575 = vector.load %arg19[%c0_248, %c0_249, %c0_250] : memref<10x2x64xf32, #tpu.memory_space<vmem>>, vector<10x2x64xf32>
    %576 = tpu.transpose %575, [1, 0, 2] : vector<10x2x64xf32> -> vector<2x10x64xf32>
    %c0_251 = arith.constant 0 : index
    %c0_252 = arith.constant 0 : index
    %c0_253 = arith.constant 0 : index
    %577 = vector.load %arg20[%c0_251, %c0_252, %c0_253] : memref<8x2x64xf32, #tpu.memory_space<vmem>>, vector<8x2x64xf32>
    %578 = tpu.transpose %577, [1, 0, 2] : vector<8x2x64xf32> -> vector<2x8x64xf32>
    %579 = vector.shape_cast %578 : vector<2x8x64xf32> to vector<16x64xf32>
    %c0_254 = arith.constant 0 : index
    %c0_255 = arith.constant 0 : index
    %580 = vector.load %arg14[%c0_254, %c0_255] : memref<64x64xf32, #tpu.memory_space<vmem>>, vector<64x64xf32>
    %cst_256 = arith.constant dense<0.000000e+00> : vector<16x64xf32>
    %581 = tpu.matmul %579, %580, %cst_256 {dimension_numbers = #tpu.dot_dimension_numbers<[1], [0], [0], [1], [0, 0, 1, 1], [], []>} : vector<16x64xf32>, vector<64x64xf32>, vector<16x64xf32> -> vector<16x64xf32>
    %582 = vector.shape_cast %581 : vector<16x64xf32> to vector<2x8x64xf32>
    "tpu.trace_start"() <{level = 10 : i32, message = "bqd,bkd->bqk"}> : () -> ()
    %cst_257 = arith.constant dense<0.000000e+00> : vector<2x8x10xf32>
    %583 = tpu.matmul %582, %576, %cst_257 {dimension_numbers = #tpu.dot_dimension_numbers<[2], [2], [1], [1], [0, 0, 0, 1, 1, 1], [0], [0]>} : vector<2x8x64xf32>, vector<2x10x64xf32>, vector<2x8x10xf32> -> vector<2x8x10xf32>
    "tpu.trace_stop"() : () -> ()
    %c0_258 = arith.constant 0 : index
    %c0_259 = arith.constant 0 : index
    %c0_260 = arith.constant 0 : index
    %584 = vector.load %arg3[%c0_258, %c0_259, %c0_260] : memref<2x1x10xf32, #tpu.memory_space<vmem>>, vector<2x1x10xf32>
    %cst_261 = arith.constant 0.000000e+00 : f32
    %585 = vector.broadcast %cst_261 : f32 to vector<2x1x10xf32>
    %586 = arith.cmpf ogt, %584, %585 : vector<2x1x10xf32>
    %cst_262 = arith.constant -1.000000e+30 : f32
    %587 = vector.shape_cast %586 : vector<2x1x10xi1> to vector<2x1x10xi1>
    %588 = vector.broadcast %587 : vector<2x1x10xi1> to vector<2x8x10xi1>
    %589 = vector.broadcast %cst_262 : f32 to vector<2x8x10xf32>
    %590 = arith.select %588, %583, %589 : vector<2x8x10xi1>, vector<2x8x10xf32>
    %cst_263 = arith.constant dense<0xFF800000> : vector<2x8xf32>
    %591 = vector.multi_reduction <maximumf>, %590, %cst_263 [2] : vector<2x8x10xf32> to vector<2x8xf32>
    %592 = vector.shape_cast %591 : vector<2x8xf32> to vector<2x8x1xf32>
    %593 = vector.broadcast %592 : vector<2x8x1xf32> to vector<2x8x10xf32>
    %594 = arith.subf %590, %593 : vector<2x8x10xf32>
    %595 = math.exp %594 : vector<2x8x10xf32>
    %cst_264 = arith.constant dense<0.000000e+00> : vector<2x8xf32>
    %596 = vector.multi_reduction <add>, %595, %cst_264 [2] : vector<2x8x10xf32> to vector<2x8xf32>
    %597 = vector.shape_cast %596 : vector<2x8xf32> to vector<2x8x1xf32>
    %598 = tpu.reciprocal %597 {approx = true} : vector<2x8x1xf32> -> vector<2x8x1xf32>
    %599 = vector.broadcast %598 : vector<2x8x1xf32> to vector<2x8x10xf32>
    %600 = arith.mulf %595, %599 : vector<2x8x10xf32>
    "tpu.trace_start"() <{level = 10 : i32, message = "bqk,bkd->bqd"}> : () -> ()
    %cst_265 = arith.constant dense<0.000000e+00> : vector<2x8x64xf32>
    %601 = tpu.matmul %600, %576, %cst_265 {dimension_numbers = #tpu.dot_dimension_numbers<[2], [1], [1], [2], [0, 0, 0, 1, 1, 2], [0], [0]>} : vector<2x8x10xf32>, vector<2x10x64xf32>, vector<2x8x64xf32> -> vector<2x8x64xf32>
    "tpu.trace_stop"() : () -> ()
    %602 = tpu.concatenate %601, %578 in 2 : vector<2x8x64xf32>, vector<2x8x64xf32> -> vector<2x8x128xf32>
    %c0_266 = arith.constant 0 : index
    %c0_267 = arith.constant 0 : index
    %c0_268 = arith.constant 0 : index
    %603 = vector.load %arg4[%c0_266, %c0_267, %c0_268] : memref<2x8x1xf32, #tpu.memory_space<vmem>>, vector<2x8x1xf32>
    %604 = vector.broadcast %603 : vector<2x8x1xf32> to vector<2x8x128xf32>
    %605 = arith.mulf %602, %604 : vector<2x8x128xf32>
    %606 = tpu.transpose %605, [1, 0, 2] : vector<2x8x128xf32> -> vector<8x2x128xf32>
    %607 = vector.shape_cast %606 : vector<8x2x128xf32> to vector<16x128xf32>
    %c0_269 = arith.constant 0 : index
    %c0_270 = arith.constant 0 : index
    %608 = vector.load %arg10[%c0_269, %c0_270] : memref<128x192xf32, #tpu.memory_space<vmem>>, vector<128x192xf32>
    %cst_271 = arith.constant dense<0.000000e+00> : vector<16x192xf32>
    %609 = tpu.matmul %607, %608, %cst_271 {dimension_numbers = #tpu.dot_dimension_numbers<[1], [0], [0], [1], [0, 0, 1, 1], [], []>} : vector<16x128xf32>, vector<128x192xf32>, vector<16x192xf32> -> vector<16x192xf32>
    %c0_272 = arith.constant 0 : index
    %c0_273 = arith.constant 0 : index
    %610 = vector.load %arg12[%c0_272, %c0_273] : memref<1x192xf32, #tpu.memory_space<vmem>>, vector<1x192xf32>
    %611 = vector.broadcast %610 : vector<1x192xf32> to vector<16x192xf32>
    %612 = arith.addf %609, %611 : vector<16x192xf32>
    %613 = vector.extract_strided_slice %612 {offsets = [0, 0], sizes = [2, 192], strides = [1, 1]} : vector<16x192xf32> to vector<2x192xf32>
    %c0_274 = arith.constant 0 : index
    %c0_275 = arith.constant 0 : index
    %c0_276 = arith.constant 0 : index
    %614 = vector.load %arg21[%c0_274, %c0_275, %c0_276] : memref<8x2x192xf32, #tpu.memory_space<vmem>>, vector<1x2x192xf32>
    %615 = vector.shape_cast %614 : vector<1x2x192xf32> to vector<2x192xf32>
    %616 = vector.shape_cast %613 : vector<2x192xf32> to vector<1x2x192xf32>
    tpu.vector_store %arg21[%c0_274, %c0_275, %c0_276], %616 {strides = array<i32>} : memref<8x2x192xf32, #tpu.memory_space<vmem>>, vector<1x2x192xf32>,
    %617 = vector.extract_strided_slice %612 {offsets = [2, 0], sizes = [2, 192], strides = [1, 1]} : vector<16x192xf32> to vector<2x192xf32>
    %c1_277 = arith.constant 1 : index
    %c0_278 = arith.constant 0 : index
    %c0_279 = arith.constant 0 : index
    %618 = vector.load %arg21[%c1_277, %c0_278, %c0_279] : memref<8x2x192xf32, #tpu.memory_space<vmem>>, vector<1x2x192xf32>
    %619 = vector.shape_cast %618 : vector<1x2x192xf32> to vector<2x192xf32>
    %620 = vector.shape_cast %617 : vector<2x192xf32> to vector<1x2x192xf32>
    tpu.vector_store %arg21[%c1_277, %c0_278, %c0_279], %620 {strides = array<i32>} : memref<8x2x192xf32, #tpu.memory_space<vmem>>, vector<1x2x192xf32>,
    %621 = vector.extract_strided_slice %612 {offsets = [4, 0], sizes = [2, 192], strides = [1, 1]} : vector<16x192xf32> to vector<2x192xf32>
    %c2_280 = arith.constant 2 : index
    %c0_281 = arith.constant 0 : index
    %c0_282 = arith.constant 0 : index
    %622 = vector.load %arg21[%c2_280, %c0_281, %c0_282] : memref<8x2x192xf32, #tpu.memory_space<vmem>>, vector<1x2x192xf32>
    %623 = vector.shape_cast %622 : vector<1x2x192xf32> to vector<2x192xf32>
    %624 = vector.shape_cast %621 : vector<2x192xf32> to vector<1x2x192xf32>
    tpu.vector_store %arg21[%c2_280, %c0_281, %c0_282], %624 {strides = array<i32>} : memref<8x2x192xf32, #tpu.memory_space<vmem>>, vector<1x2x192xf32>,
    %625 = vector.extract_strided_slice %612 {offsets = [6, 0], sizes = [2, 192], strides = [1, 1]} : vector<16x192xf32> to vector<2x192xf32>
    %c3_283 = arith.constant 3 : index
    %c0_284 = arith.constant 0 : index
    %c0_285 = arith.constant 0 : index
    %626 = vector.load %arg21[%c3_283, %c0_284, %c0_285] : memref<8x2x192xf32, #tpu.memory_space<vmem>>, vector<1x2x192xf32>
    %627 = vector.shape_cast %626 : vector<1x2x192xf32> to vector<2x192xf32>
    %628 = vector.shape_cast %625 : vector<2x192xf32> to vector<1x2x192xf32>
    tpu.vector_store %arg21[%c3_283, %c0_284, %c0_285], %628 {strides = array<i32>} : memref<8x2x192xf32, #tpu.memory_space<vmem>>, vector<1x2x192xf32>,
    %629 = vector.extract_strided_slice %612 {offsets = [8, 0], sizes = [2, 192], strides = [1, 1]} : vector<16x192xf32> to vector<2x192xf32>
    %c4_286 = arith.constant 4 : index
    %c0_287 = arith.constant 0 : index
    %c0_288 = arith.constant 0 : index
    %630 = vector.load %arg21[%c4_286, %c0_287, %c0_288] : memref<8x2x192xf32, #tpu.memory_space<vmem>>, vector<1x2x192xf32>
    %631 = vector.shape_cast %630 : vector<1x2x192xf32> to vector<2x192xf32>
    %632 = vector.shape_cast %629 : vector<2x192xf32> to vector<1x2x192xf32>
    tpu.vector_store %arg21[%c4_286, %c0_287, %c0_288], %632 {strides = array<i32>} : memref<8x2x192xf32, #tpu.memory_space<vmem>>, vector<1x2x192xf32>,
    %633 = vector.extract_strided_slice %612 {offsets = [10, 0], sizes = [2, 192], strides = [1, 1]} : vector<16x192xf32> to vector<2x192xf32>
    %c5_289 = arith.constant 5 : index
    %c0_290 = arith.constant 0 : index
    %c0_291 = arith.constant 0 : index
    %634 = vector.load %arg21[%c5_289, %c0_290, %c0_291] : memref<8x2x192xf32, #tpu.memory_space<vmem>>, vector<1x2x192xf32>
    %635 = vector.shape_cast %634 : vector<1x2x192xf32> to vector<2x192xf32>
    %636 = vector.shape_cast %633 : vector<2x192xf32> to vector<1x2x192xf32>
    tpu.vector_store %arg21[%c5_289, %c0_290, %c0_291], %636 {strides = array<i32>} : memref<8x2x192xf32, #tpu.memory_space<vmem>>, vector<1x2x192xf32>,
    %637 = vector.extract_strided_slice %612 {offsets = [12, 0], sizes = [2, 192], strides = [1, 1]} : vector<16x192xf32> to vector<2x192xf32>
    %c6_292 = arith.constant 6 : index
    %c0_293 = arith.constant 0 : index
    %c0_294 = arith.constant 0 : index
    %638 = vector.load %arg21[%c6_292, %c0_293, %c0_294] : memref<8x2x192xf32, #tpu.memory_space<vmem>>, vector<1x2x192xf32>
    %639 = vector.shape_cast %638 : vector<1x2x192xf32> to vector<2x192xf32>
    %640 = vector.shape_cast %637 : vector<2x192xf32> to vector<1x2x192xf32>
    tpu.vector_store %arg21[%c6_292, %c0_293, %c0_294], %640 {strides = array<i32>} : memref<8x2x192xf32, #tpu.memory_space<vmem>>, vector<1x2x192xf32>,
    %641 = vector.extract_strided_slice %612 {offsets = [14, 0], sizes = [2, 192], strides = [1, 1]} : vector<16x192xf32> to vector<2x192xf32>
    %c7_295 = arith.constant 7 : index
    %c0_296 = arith.constant 0 : index
    %c0_297 = arith.constant 0 : index
    %642 = vector.load %arg21[%c7_295, %c0_296, %c0_297] : memref<8x2x192xf32, #tpu.memory_space<vmem>>, vector<1x2x192xf32>
    %643 = vector.shape_cast %642 : vector<1x2x192xf32> to vector<2x192xf32>
    %644 = vector.shape_cast %641 : vector<2x192xf32> to vector<1x2x192xf32>
    tpu.vector_store %arg21[%c7_295, %c0_296, %c0_297], %644 {strides = array<i32>} : memref<8x2x192xf32, #tpu.memory_space<vmem>>, vector<1x2x192xf32>,
    %c0_298 = arith.constant 0 : index
    %c0_299 = arith.constant 0 : index
    %645 = vector.load %arg16[%c0_298, %c0_299] : memref<1x192xf32, #tpu.memory_space<vmem>>, vector<1x192xf32>
    %cst_300 = arith.constant 0.000000e+00 : f32
    %646 = vector.broadcast %cst_300 : f32 to vector<1x192xf32>
    %647 = arith.cmpf ogt, %645, %646 : vector<1x192xf32>
    %c0_301 = arith.constant 0 : index
    %c0_302 = arith.constant 0 : index
    %648 = vector.load %arg11[%c0_301, %c0_302] : memref<64x192xf32, #tpu.memory_space<vmem>>, vector<64x192xf32>
    %c0_303 = arith.constant 0 : index
    %c0_304 = arith.constant 0 : index
    %649 = vector.load %arg13[%c0_303, %c0_304] : memref<1x64xf32, #tpu.memory_space<vmem>>, vector<1x64xf32>
    %650 = vector.shape_cast %649 : vector<1x64xf32> to vector<1x64xf32>
    %651 = vector.broadcast %650 : vector<1x64xf32> to vector<2x64xf32>
    %cst_305 = arith.constant 0.000000e+00 : f32
    %652 = vector.broadcast %cst_305 : f32 to vector<2x64xf32>
    %cst_306 = arith.constant dense<0.000000e+00> : vector<2x192xf32>
    %653 = tpu.matmul %652, %648, %cst_306 {dimension_numbers = #tpu.dot_dimension_numbers<[1], [0], [0], [1], [0, 0, 1, 1], [], []>} : vector<2x64xf32>, vector<64x192xf32>, vector<2x192xf32> -> vector<2x192xf32>
    %c0_307 = arith.constant 0 : index
    %c0_308 = arith.constant 0 : index
    %c0_309 = arith.constant 0 : index
    %654 = vector.load %arg21[%c0_307, %c0_308, %c0_309] : memref<8x2x192xf32, #tpu.memory_space<vmem>>, vector<1x2x192xf32>
    %655 = vector.shape_cast %654 : vector<1x2x192xf32> to vector<2x192xf32>
    %c7_310 = arith.constant 7 : index
    %c0_311 = arith.constant 0 : index
    %c0_312 = arith.constant 0 : index
    %656 = vector.load %arg21[%c7_310, %c0_311, %c0_312] : memref<8x2x192xf32, #tpu.memory_space<vmem>>, vector<1x2x192xf32>
    %657 = vector.shape_cast %656 : vector<1x2x192xf32> to vector<2x192xf32>
    %658 = vector.shape_cast %647 : vector<1x192xi1> to vector<1x192xi1>
    %659 = vector.broadcast %658 : vector<1x192xi1> to vector<2x192xi1>
    %660 = arith.select %659, %655, %657 : vector<2x192xi1>, vector<2x192xf32>
    %c0_313 = arith.constant 0 : index
    %c0_314 = arith.constant 0 : index
    %c0_315 = arith.constant 0 : index
    %661 = vector.load %arg2[%c0_313, %c0_314, %c0_315] : memref<8x2x64xf32, #tpu.memory_space<vmem>>, vector<1x2x64xf32>
    %662 = vector.shape_cast %661 : vector<1x2x64xf32> to vector<2x64xf32>
    %663 = vector.extract_strided_slice %660 {offsets = [0, 0], sizes = [2, 64], strides = [1, 1]} : vector<2x192xf32> to vector<2x64xf32>
    %664 = vector.extract_strided_slice %653 {offsets = [0, 0], sizes = [2, 64], strides = [1, 1]} : vector<2x192xf32> to vector<2x64xf32>
    %665 = arith.addf %663, %664 : vector<2x64xf32>
    %666 = arith.negf %665 : vector<2x64xf32>
    %667 = math.exp %666 : vector<2x64xf32>
    %cst_316 = arith.constant 1.000000e+00 : f32
    %668 = vector.broadcast %cst_316 : f32 to vector<2x64xf32>
    %669 = arith.addf %668, %667 : vector<2x64xf32>
    %670 = arith.divf %668, %669 : vector<2x64xf32>
    %671 = vector.extract_strided_slice %660 {offsets = [0, 64], sizes = [2, 64], strides = [1, 1]} : vector<2x192xf32> to vector<2x64xf32>
    %672 = vector.extract_strided_slice %653 {offsets = [0, 64], sizes = [2, 64], strides = [1, 1]} : vector<2x192xf32> to vector<2x64xf32>
    %673 = arith.addf %671, %672 : vector<2x64xf32>
    %674 = arith.negf %673 : vector<2x64xf32>
    %675 = math.exp %674 : vector<2x64xf32>
    %cst_317 = arith.constant 1.000000e+00 : f32
    %676 = vector.broadcast %cst_317 : f32 to vector<2x64xf32>
    %677 = arith.addf %676, %675 : vector<2x64xf32>
    %678 = arith.divf %676, %677 : vector<2x64xf32>
    %679 = vector.extract_strided_slice %660 {offsets = [0, 128], sizes = [2, 64], strides = [1, 1]} : vector<2x192xf32> to vector<2x64xf32>
    %680 = vector.extract_strided_slice %653 {offsets = [0, 128], sizes = [2, 64], strides = [1, 1]} : vector<2x192xf32> to vector<2x64xf32>
    %681 = arith.addf %680, %651 : vector<2x64xf32>
    %682 = arith.mulf %670, %681 : vector<2x64xf32>
    %683 = arith.addf %679, %682 : vector<2x64xf32>
    %684 = math.tanh %683 : vector<2x64xf32>
    %cst_318 = arith.constant 1.000000e+00 : f32
    %685 = vector.broadcast %cst_318 : f32 to vector<2x64xf32>
    %686 = arith.subf %685, %678 : vector<2x64xf32>
    %687 = arith.mulf %686, %684 : vector<2x64xf32>
    %688 = arith.mulf %678, %652 : vector<2x64xf32>
    %689 = arith.addf %687, %688 : vector<2x64xf32>
    %690 = arith.mulf %662, %689 : vector<2x64xf32>
    %cst_319 = arith.constant 1.000000e+00 : f32
    %691 = vector.broadcast %cst_319 : f32 to vector<2x64xf32>
    %692 = arith.subf %691, %662 : vector<2x64xf32>
    %693 = arith.mulf %692, %652 : vector<2x64xf32>
    %694 = arith.addf %690, %693 : vector<2x64xf32>
    %695 = arith.mulf %662, %694 : vector<2x64xf32>
    %696 = vector.extract_strided_slice %695 {offsets = [0, 0], sizes = [2, 32], strides = [1, 1]} : vector<2x64xf32> to vector<2x32xf32>
    %c0_320 = arith.constant 0 : index
    %c0_321 = arith.constant 0 : index
    %c0_322 = arith.constant 0 : index
    %697 = vector.load %arg22[%c0_320, %c0_321, %c0_322] : memref<8x2x64xf32, #tpu.memory_space<vmem>>, vector<1x2x32xf32>
    %698 = vector.shape_cast %697 : vector<1x2x32xf32> to vector<2x32xf32>
    %699 = vector.shape_cast %696 : vector<2x32xf32> to vector<1x2x32xf32>
    tpu.vector_store %arg22[%c0_320, %c0_321, %c0_322], %699 {strides = array<i32>} : memref<8x2x64xf32, #tpu.memory_space<vmem>>, vector<1x2x32xf32>,
    %700 = vector.extract_strided_slice %695 {offsets = [0, 32], sizes = [2, 32], strides = [1, 1]} : vector<2x64xf32> to vector<2x32xf32>
    %c7_323 = arith.constant 7 : index
    %c0_324 = arith.constant 0 : index
    %c32_325 = arith.constant 32 : index
    %701 = vector.load %arg22[%c7_323, %c0_324, %c32_325] : memref<8x2x64xf32, #tpu.memory_space<vmem>>, vector<1x2x32xf32>
    %702 = vector.shape_cast %701 : vector<1x2x32xf32> to vector<2x32xf32>
    %703 = vector.shape_cast %700 : vector<2x32xf32> to vector<1x2x32xf32>
    tpu.vector_store %arg22[%c7_323, %c0_324, %c32_325], %703 {strides = array<i32>} : memref<8x2x64xf32, #tpu.memory_space<vmem>>, vector<1x2x32xf32>,
    %cst_326 = arith.constant dense<0.000000e+00> : vector<2x192xf32>
    %704 = tpu.matmul %694, %648, %cst_326 {dimension_numbers = #tpu.dot_dimension_numbers<[1], [0], [0], [1], [0, 0, 1, 1], [], []>} : vector<2x64xf32>, vector<64x192xf32>, vector<2x192xf32> -> vector<2x192xf32>
    %c1_327 = arith.constant 1 : index
    %c0_328 = arith.constant 0 : index
    %c0_329 = arith.constant 0 : index
    %705 = vector.load %arg21[%c1_327, %c0_328, %c0_329] : memref<8x2x192xf32, #tpu.memory_space<vmem>>, vector<1x2x192xf32>
    %706 = vector.shape_cast %705 : vector<1x2x192xf32> to vector<2x192xf32>
    %c6_330 = arith.constant 6 : index
    %c0_331 = arith.constant 0 : index
    %c0_332 = arith.constant 0 : index
    %707 = vector.load %arg21[%c6_330, %c0_331, %c0_332] : memref<8x2x192xf32, #tpu.memory_space<vmem>>, vector<1x2x192xf32>
    %708 = vector.shape_cast %707 : vector<1x2x192xf32> to vector<2x192xf32>
    %709 = vector.shape_cast %647 : vector<1x192xi1> to vector<1x192xi1>
    %710 = vector.broadcast %709 : vector<1x192xi1> to vector<2x192xi1>
    %711 = arith.select %710, %706, %708 : vector<2x192xi1>, vector<2x192xf32>
    %c1_333 = arith.constant 1 : index
    %c0_334 = arith.constant 0 : index
    %c0_335 = arith.constant 0 : index
    %712 = vector.load %arg2[%c1_333, %c0_334, %c0_335] : memref<8x2x64xf32, #tpu.memory_space<vmem>>, vector<1x2x64xf32>
    %713 = vector.shape_cast %712 : vector<1x2x64xf32> to vector<2x64xf32>
    %714 = vector.extract_strided_slice %711 {offsets = [0, 0], sizes = [2, 64], strides = [1, 1]} : vector<2x192xf32> to vector<2x64xf32>
    %715 = vector.extract_strided_slice %704 {offsets = [0, 0], sizes = [2, 64], strides = [1, 1]} : vector<2x192xf32> to vector<2x64xf32>
    %716 = arith.addf %714, %715 : vector<2x64xf32>
    %717 = arith.negf %716 : vector<2x64xf32>
    %718 = math.exp %717 : vector<2x64xf32>
    %cst_336 = arith.constant 1.000000e+00 : f32
    %719 = vector.broadcast %cst_336 : f32 to vector<2x64xf32>
    %720 = arith.addf %719, %718 : vector<2x64xf32>
    %721 = arith.divf %719, %720 : vector<2x64xf32>
    %722 = vector.extract_strided_slice %711 {offsets = [0, 64], sizes = [2, 64], strides = [1, 1]} : vector<2x192xf32> to vector<2x64xf32>
    %723 = vector.extract_strided_slice %704 {offsets = [0, 64], sizes = [2, 64], strides = [1, 1]} : vector<2x192xf32> to vector<2x64xf32>
    %724 = arith.addf %722, %723 : vector<2x64xf32>
    %725 = arith.negf %724 : vector<2x64xf32>
    %726 = math.exp %725 : vector<2x64xf32>
    %cst_337 = arith.constant 1.000000e+00 : f32
    %727 = vector.broadcast %cst_337 : f32 to vector<2x64xf32>
    %728 = arith.addf %727, %726 : vector<2x64xf32>
    %729 = arith.divf %727, %728 : vector<2x64xf32>
    %730 = vector.extract_strided_slice %711 {offsets = [0, 128], sizes = [2, 64], strides = [1, 1]} : vector<2x192xf32> to vector<2x64xf32>
    %731 = vector.extract_strided_slice %704 {offsets = [0, 128], sizes = [2, 64], strides = [1, 1]} : vector<2x192xf32> to vector<2x64xf32>
    %732 = arith.addf %731, %651 : vector<2x64xf32>
    %733 = arith.mulf %721, %732 : vector<2x64xf32>
    %734 = arith.addf %730, %733 : vector<2x64xf32>
    %735 = math.tanh %734 : vector<2x64xf32>
    %cst_338 = arith.constant 1.000000e+00 : f32
    %736 = vector.broadcast %cst_338 : f32 to vector<2x64xf32>
    %737 = arith.subf %736, %729 : vector<2x64xf32>
    %738 = arith.mulf %737, %735 : vector<2x64xf32>
    %739 = arith.mulf %729, %694 : vector<2x64xf32>
    %740 = arith.addf %738, %739 : vector<2x64xf32>
    %741 = arith.mulf %713, %740 : vector<2x64xf32>
    %cst_339 = arith.constant 1.000000e+00 : f32
    %742 = vector.broadcast %cst_339 : f32 to vector<2x64xf32>
    %743 = arith.subf %742, %713 : vector<2x64xf32>
    %744 = arith.mulf %743, %694 : vector<2x64xf32>
    %745 = arith.addf %741, %744 : vector<2x64xf32>
    %746 = arith.mulf %713, %745 : vector<2x64xf32>
    %747 = vector.extract_strided_slice %746 {offsets = [0, 0], sizes = [2, 32], strides = [1, 1]} : vector<2x64xf32> to vector<2x32xf32>
    %c1_340 = arith.constant 1 : index
    %c0_341 = arith.constant 0 : index
    %c0_342 = arith.constant 0 : index
    %748 = vector.load %arg22[%c1_340, %c0_341, %c0_342] : memref<8x2x64xf32, #tpu.memory_space<vmem>>, vector<1x2x32xf32>
    %749 = vector.shape_cast %748 : vector<1x2x32xf32> to vector<2x32xf32>
    %750 = vector.shape_cast %747 : vector<2x32xf32> to vector<1x2x32xf32>
    tpu.vector_store %arg22[%c1_340, %c0_341, %c0_342], %750 {strides = array<i32>} : memref<8x2x64xf32, #tpu.memory_space<vmem>>, vector<1x2x32xf32>,
    %751 = vector.extract_strided_slice %746 {offsets = [0, 32], sizes = [2, 32], strides = [1, 1]} : vector<2x64xf32> to vector<2x32xf32>
    %c6_343 = arith.constant 6 : index
    %c0_344 = arith.constant 0 : index
    %c32_345 = arith.constant 32 : index
    %752 = vector.load %arg22[%c6_343, %c0_344, %c32_345] : memref<8x2x64xf32, #tpu.memory_space<vmem>>, vector<1x2x32xf32>
    %753 = vector.shape_cast %752 : vector<1x2x32xf32> to vector<2x32xf32>
    %754 = vector.shape_cast %751 : vector<2x32xf32> to vector<1x2x32xf32>
    tpu.vector_store %arg22[%c6_343, %c0_344, %c32_345], %754 {strides = array<i32>} : memref<8x2x64xf32, #tpu.memory_space<vmem>>, vector<1x2x32xf32>,
    %cst_346 = arith.constant dense<0.000000e+00> : vector<2x192xf32>
    %755 = tpu.matmul %745, %648, %cst_346 {dimension_numbers = #tpu.dot_dimension_numbers<[1], [0], [0], [1], [0, 0, 1, 1], [], []>} : vector<2x64xf32>, vector<64x192xf32>, vector<2x192xf32> -> vector<2x192xf32>
    %c2_347 = arith.constant 2 : index
    %c0_348 = arith.constant 0 : index
    %c0_349 = arith.constant 0 : index
    %756 = vector.load %arg21[%c2_347, %c0_348, %c0_349] : memref<8x2x192xf32, #tpu.memory_space<vmem>>, vector<1x2x192xf32>
    %757 = vector.shape_cast %756 : vector<1x2x192xf32> to vector<2x192xf32>
    %c5_350 = arith.constant 5 : index
    %c0_351 = arith.constant 0 : index
    %c0_352 = arith.constant 0 : index
    %758 = vector.load %arg21[%c5_350, %c0_351, %c0_352] : memref<8x2x192xf32, #tpu.memory_space<vmem>>, vector<1x2x192xf32>
    %759 = vector.shape_cast %758 : vector<1x2x192xf32> to vector<2x192xf32>
    %760 = vector.shape_cast %647 : vector<1x192xi1> to vector<1x192xi1>
    %761 = vector.broadcast %760 : vector<1x192xi1> to vector<2x192xi1>
    %762 = arith.select %761, %757, %759 : vector<2x192xi1>, vector<2x192xf32>
    %c2_353 = arith.constant 2 : index
    %c0_354 = arith.constant 0 : index
    %c0_355 = arith.constant 0 : index
    %763 = vector.load %arg2[%c2_353, %c0_354, %c0_355] : memref<8x2x64xf32, #tpu.memory_space<vmem>>, vector<1x2x64xf32>
    %764 = vector.shape_cast %763 : vector<1x2x64xf32> to vector<2x64xf32>
    %765 = vector.extract_strided_slice %762 {offsets = [0, 0], sizes = [2, 64], strides = [1, 1]} : vector<2x192xf32> to vector<2x64xf32>
    %766 = vector.extract_strided_slice %755 {offsets = [0, 0], sizes = [2, 64], strides = [1, 1]} : vector<2x192xf32> to vector<2x64xf32>
    %767 = arith.addf %765, %766 : vector<2x64xf32>
    %768 = arith.negf %767 : vector<2x64xf32>
    %769 = math.exp %768 : vector<2x64xf32>
    %cst_356 = arith.constant 1.000000e+00 : f32
    %770 = vector.broadcast %cst_356 : f32 to vector<2x64xf32>
    %771 = arith.addf %770, %769 : vector<2x64xf32>
    %772 = arith.divf %770, %771 : vector<2x64xf32>
    %773 = vector.extract_strided_slice %762 {offsets = [0, 64], sizes = [2, 64], strides = [1, 1]} : vector<2x192xf32> to vector<2x64xf32>
    %774 = vector.extract_strided_slice %755 {offsets = [0, 64], sizes = [2, 64], strides = [1, 1]} : vector<2x192xf32> to vector<2x64xf32>
    %775 = arith.addf %773, %774 : vector<2x64xf32>
    %776 = arith.negf %775 : vector<2x64xf32>
    %777 = math.exp %776 : vector<2x64xf32>
    %cst_357 = arith.constant 1.000000e+00 : f32
    %778 = vector.broadcast %cst_357 : f32 to vector<2x64xf32>
    %779 = arith.addf %778, %777 : vector<2x64xf32>
    %780 = arith.divf %778, %779 : vector<2x64xf32>
    %781 = vector.extract_strided_slice %762 {offsets = [0, 128], sizes = [2, 64], strides = [1, 1]} : vector<2x192xf32> to vector<2x64xf32>
    %782 = vector.extract_strided_slice %755 {offsets = [0, 128], sizes = [2, 64], strides = [1, 1]} : vector<2x192xf32> to vector<2x64xf32>
    %783 = arith.addf %782, %651 : vector<2x64xf32>
    %784 = arith.mulf %772, %783 : vector<2x64xf32>
    %785 = arith.addf %781, %784 : vector<2x64xf32>
    %786 = math.tanh %785 : vector<2x64xf32>
    %cst_358 = arith.constant 1.000000e+00 : f32
    %787 = vector.broadcast %cst_358 : f32 to vector<2x64xf32>
    %788 = arith.subf %787, %780 : vector<2x64xf32>
    %789 = arith.mulf %788, %786 : vector<2x64xf32>
    %790 = arith.mulf %780, %745 : vector<2x64xf32>
    %791 = arith.addf %789, %790 : vector<2x64xf32>
    %792 = arith.mulf %764, %791 : vector<2x64xf32>
    %cst_359 = arith.constant 1.000000e+00 : f32
    %793 = vector.broadcast %cst_359 : f32 to vector<2x64xf32>
    %794 = arith.subf %793, %764 : vector<2x64xf32>
    %795 = arith.mulf %794, %745 : vector<2x64xf32>
    %796 = arith.addf %792, %795 : vector<2x64xf32>
    %797 = arith.mulf %764, %796 : vector<2x64xf32>
    %798 = vector.extract_strided_slice %797 {offsets = [0, 0], sizes = [2, 32], strides = [1, 1]} : vector<2x64xf32> to vector<2x32xf32>
    %c2_360 = arith.constant 2 : index
    %c0_361 = arith.constant 0 : index
    %c0_362 = arith.constant 0 : index
    %799 = vector.load %arg22[%c2_360, %c0_361, %c0_362] : memref<8x2x64xf32, #tpu.memory_space<vmem>>, vector<1x2x32xf32>
    %800 = vector.shape_cast %799 : vector<1x2x32xf32> to vector<2x32xf32>
    %801 = vector.shape_cast %798 : vector<2x32xf32> to vector<1x2x32xf32>
    tpu.vector_store %arg22[%c2_360, %c0_361, %c0_362], %801 {strides = array<i32>} : memref<8x2x64xf32, #tpu.memory_space<vmem>>, vector<1x2x32xf32>,
    %802 = vector.extract_strided_slice %797 {offsets = [0, 32], sizes = [2, 32], strides = [1, 1]} : vector<2x64xf32> to vector<2x32xf32>
    %c5_363 = arith.constant 5 : index
    %c0_364 = arith.constant 0 : index
    %c32_365 = arith.constant 32 : index
    %803 = vector.load %arg22[%c5_363, %c0_364, %c32_365] : memref<8x2x64xf32, #tpu.memory_space<vmem>>, vector<1x2x32xf32>
    %804 = vector.shape_cast %803 : vector<1x2x32xf32> to vector<2x32xf32>
    %805 = vector.shape_cast %802 : vector<2x32xf32> to vector<1x2x32xf32>
    tpu.vector_store %arg22[%c5_363, %c0_364, %c32_365], %805 {strides = array<i32>} : memref<8x2x64xf32, #tpu.memory_space<vmem>>, vector<1x2x32xf32>,
    %cst_366 = arith.constant dense<0.000000e+00> : vector<2x192xf32>
    %806 = tpu.matmul %796, %648, %cst_366 {dimension_numbers = #tpu.dot_dimension_numbers<[1], [0], [0], [1], [0, 0, 1, 1], [], []>} : vector<2x64xf32>, vector<64x192xf32>, vector<2x192xf32> -> vector<2x192xf32>
    %c3_367 = arith.constant 3 : index
    %c0_368 = arith.constant 0 : index
    %c0_369 = arith.constant 0 : index
    %807 = vector.load %arg21[%c3_367, %c0_368, %c0_369] : memref<8x2x192xf32, #tpu.memory_space<vmem>>, vector<1x2x192xf32>
    %808 = vector.shape_cast %807 : vector<1x2x192xf32> to vector<2x192xf32>
    %c4_370 = arith.constant 4 : index
    %c0_371 = arith.constant 0 : index
    %c0_372 = arith.constant 0 : index
    %809 = vector.load %arg21[%c4_370, %c0_371, %c0_372] : memref<8x2x192xf32, #tpu.memory_space<vmem>>, vector<1x2x192xf32>
    %810 = vector.shape_cast %809 : vector<1x2x192xf32> to vector<2x192xf32>
    %811 = vector.shape_cast %647 : vector<1x192xi1> to vector<1x192xi1>
    %812 = vector.broadcast %811 : vector<1x192xi1> to vector<2x192xi1>
    %813 = arith.select %812, %808, %810 : vector<2x192xi1>, vector<2x192xf32>
    %c3_373 = arith.constant 3 : index
    %c0_374 = arith.constant 0 : index
    %c0_375 = arith.constant 0 : index
    %814 = vector.load %arg2[%c3_373, %c0_374, %c0_375] : memref<8x2x64xf32, #tpu.memory_space<vmem>>, vector<1x2x64xf32>
    %815 = vector.shape_cast %814 : vector<1x2x64xf32> to vector<2x64xf32>
    %816 = vector.extract_strided_slice %813 {offsets = [0, 0], sizes = [2, 64], strides = [1, 1]} : vector<2x192xf32> to vector<2x64xf32>
    %817 = vector.extract_strided_slice %806 {offsets = [0, 0], sizes = [2, 64], strides = [1, 1]} : vector<2x192xf32> to vector<2x64xf32>
    %818 = arith.addf %816, %817 : vector<2x64xf32>
    %819 = arith.negf %818 : vector<2x64xf32>
    %820 = math.exp %819 : vector<2x64xf32>
    %cst_376 = arith.constant 1.000000e+00 : f32
    %821 = vector.broadcast %cst_376 : f32 to vector<2x64xf32>
    %822 = arith.addf %821, %820 : vector<2x64xf32>
    %823 = arith.divf %821, %822 : vector<2x64xf32>
    %824 = vector.extract_strided_slice %813 {offsets = [0, 64], sizes = [2, 64], strides = [1, 1]} : vector<2x192xf32> to vector<2x64xf32>
    %825 = vector.extract_strided_slice %806 {offsets = [0, 64], sizes = [2, 64], strides = [1, 1]} : vector<2x192xf32> to vector<2x64xf32>
    %826 = arith.addf %824, %825 : vector<2x64xf32>
    %827 = arith.negf %826 : vector<2x64xf32>
    %828 = math.exp %827 : vector<2x64xf32>
    %cst_377 = arith.constant 1.000000e+00 : f32
    %829 = vector.broadcast %cst_377 : f32 to vector<2x64xf32>
    %830 = arith.addf %829, %828 : vector<2x64xf32>
    %831 = arith.divf %829, %830 : vector<2x64xf32>
    %832 = vector.extract_strided_slice %813 {offsets = [0, 128], sizes = [2, 64], strides = [1, 1]} : vector<2x192xf32> to vector<2x64xf32>
    %833 = vector.extract_strided_slice %806 {offsets = [0, 128], sizes = [2, 64], strides = [1, 1]} : vector<2x192xf32> to vector<2x64xf32>
    %834 = arith.addf %833, %651 : vector<2x64xf32>
    %835 = arith.mulf %823, %834 : vector<2x64xf32>
    %836 = arith.addf %832, %835 : vector<2x64xf32>
    %837 = math.tanh %836 : vector<2x64xf32>
    %cst_378 = arith.constant 1.000000e+00 : f32
    %838 = vector.broadcast %cst_378 : f32 to vector<2x64xf32>
    %839 = arith.subf %838, %831 : vector<2x64xf32>
    %840 = arith.mulf %839, %837 : vector<2x64xf32>
    %841 = arith.mulf %831, %796 : vector<2x64xf32>
    %842 = arith.addf %840, %841 : vector<2x64xf32>
    %843 = arith.mulf %815, %842 : vector<2x64xf32>
    %cst_379 = arith.constant 1.000000e+00 : f32
    %844 = vector.broadcast %cst_379 : f32 to vector<2x64xf32>
    %845 = arith.subf %844, %815 : vector<2x64xf32>
    %846 = arith.mulf %845, %796 : vector<2x64xf32>
    %847 = arith.addf %843, %846 : vector<2x64xf32>
    %848 = arith.mulf %815, %847 : vector<2x64xf32>
    %849 = vector.extract_strided_slice %848 {offsets = [0, 0], sizes = [2, 32], strides = [1, 1]} : vector<2x64xf32> to vector<2x32xf32>
    %c3_380 = arith.constant 3 : index
    %c0_381 = arith.constant 0 : index
    %c0_382 = arith.constant 0 : index
    %850 = vector.load %arg22[%c3_380, %c0_381, %c0_382] : memref<8x2x64xf32, #tpu.memory_space<vmem>>, vector<1x2x32xf32>
    %851 = vector.shape_cast %850 : vector<1x2x32xf32> to vector<2x32xf32>
    %852 = vector.shape_cast %849 : vector<2x32xf32> to vector<1x2x32xf32>
    tpu.vector_store %arg22[%c3_380, %c0_381, %c0_382], %852 {strides = array<i32>} : memref<8x2x64xf32, #tpu.memory_space<vmem>>, vector<1x2x32xf32>,
    %853 = vector.extract_strided_slice %848 {offsets = [0, 32], sizes = [2, 32], strides = [1, 1]} : vector<2x64xf32> to vector<2x32xf32>
    %c4_383 = arith.constant 4 : index
    %c0_384 = arith.constant 0 : index
    %c32_385 = arith.constant 32 : index
    %854 = vector.load %arg22[%c4_383, %c0_384, %c32_385] : memref<8x2x64xf32, #tpu.memory_space<vmem>>, vector<1x2x32xf32>
    %855 = vector.shape_cast %854 : vector<1x2x32xf32> to vector<2x32xf32>
    %856 = vector.shape_cast %853 : vector<2x32xf32> to vector<1x2x32xf32>
    tpu.vector_store %arg22[%c4_383, %c0_384, %c32_385], %856 {strides = array<i32>} : memref<8x2x64xf32, #tpu.memory_space<vmem>>, vector<1x2x32xf32>,
    %cst_386 = arith.constant dense<0.000000e+00> : vector<2x192xf32>
    %857 = tpu.matmul %847, %648, %cst_386 {dimension_numbers = #tpu.dot_dimension_numbers<[1], [0], [0], [1], [0, 0, 1, 1], [], []>} : vector<2x64xf32>, vector<64x192xf32>, vector<2x192xf32> -> vector<2x192xf32>
    %c4_387 = arith.constant 4 : index
    %c0_388 = arith.constant 0 : index
    %c0_389 = arith.constant 0 : index
    %858 = vector.load %arg21[%c4_387, %c0_388, %c0_389] : memref<8x2x192xf32, #tpu.memory_space<vmem>>, vector<1x2x192xf32>
    %859 = vector.shape_cast %858 : vector<1x2x192xf32> to vector<2x192xf32>
    %c3_390 = arith.constant 3 : index
    %c0_391 = arith.constant 0 : index
    %c0_392 = arith.constant 0 : index
    %860 = vector.load %arg21[%c3_390, %c0_391, %c0_392] : memref<8x2x192xf32, #tpu.memory_space<vmem>>, vector<1x2x192xf32>
    %861 = vector.shape_cast %860 : vector<1x2x192xf32> to vector<2x192xf32>
    %862 = vector.shape_cast %647 : vector<1x192xi1> to vector<1x192xi1>
    %863 = vector.broadcast %862 : vector<1x192xi1> to vector<2x192xi1>
    %864 = arith.select %863, %859, %861 : vector<2x192xi1>, vector<2x192xf32>
    %c4_393 = arith.constant 4 : index
    %c0_394 = arith.constant 0 : index
    %c0_395 = arith.constant 0 : index
    %865 = vector.load %arg2[%c4_393, %c0_394, %c0_395] : memref<8x2x64xf32, #tpu.memory_space<vmem>>, vector<1x2x64xf32>
    %866 = vector.shape_cast %865 : vector<1x2x64xf32> to vector<2x64xf32>
    %867 = vector.extract_strided_slice %864 {offsets = [0, 0], sizes = [2, 64], strides = [1, 1]} : vector<2x192xf32> to vector<2x64xf32>
    %868 = vector.extract_strided_slice %857 {offsets = [0, 0], sizes = [2, 64], strides = [1, 1]} : vector<2x192xf32> to vector<2x64xf32>
    %869 = arith.addf %867, %868 : vector<2x64xf32>
    %870 = arith.negf %869 : vector<2x64xf32>
    %871 = math.exp %870 : vector<2x64xf32>
    %cst_396 = arith.constant 1.000000e+00 : f32
    %872 = vector.broadcast %cst_396 : f32 to vector<2x64xf32>
    %873 = arith.addf %872, %871 : vector<2x64xf32>
    %874 = arith.divf %872, %873 : vector<2x64xf32>
    %875 = vector.extract_strided_slice %864 {offsets = [0, 64], sizes = [2, 64], strides = [1, 1]} : vector<2x192xf32> to vector<2x64xf32>
    %876 = vector.extract_strided_slice %857 {offsets = [0, 64], sizes = [2, 64], strides = [1, 1]} : vector<2x192xf32> to vector<2x64xf32>
    %877 = arith.addf %875, %876 : vector<2x64xf32>
    %878 = arith.negf %877 : vector<2x64xf32>
    %879 = math.exp %878 : vector<2x64xf32>
    %cst_397 = arith.constant 1.000000e+00 : f32
    %880 = vector.broadcast %cst_397 : f32 to vector<2x64xf32>
    %881 = arith.addf %880, %879 : vector<2x64xf32>
    %882 = arith.divf %880, %881 : vector<2x64xf32>
    %883 = vector.extract_strided_slice %864 {offsets = [0, 128], sizes = [2, 64], strides = [1, 1]} : vector<2x192xf32> to vector<2x64xf32>
    %884 = vector.extract_strided_slice %857 {offsets = [0, 128], sizes = [2, 64], strides = [1, 1]} : vector<2x192xf32> to vector<2x64xf32>
    %885 = arith.addf %884, %651 : vector<2x64xf32>
    %886 = arith.mulf %874, %885 : vector<2x64xf32>
    %887 = arith.addf %883, %886 : vector<2x64xf32>
    %888 = math.tanh %887 : vector<2x64xf32>
    %cst_398 = arith.constant 1.000000e+00 : f32
    %889 = vector.broadcast %cst_398 : f32 to vector<2x64xf32>
    %890 = arith.subf %889, %882 : vector<2x64xf32>
    %891 = arith.mulf %890, %888 : vector<2x64xf32>
    %892 = arith.mulf %882, %847 : vector<2x64xf32>
    %893 = arith.addf %891, %892 : vector<2x64xf32>
    %894 = arith.mulf %866, %893 : vector<2x64xf32>
    %cst_399 = arith.constant 1.000000e+00 : f32
    %895 = vector.broadcast %cst_399 : f32 to vector<2x64xf32>
    %896 = arith.subf %895, %866 : vector<2x64xf32>
    %897 = arith.mulf %896, %847 : vector<2x64xf32>
    %898 = arith.addf %894, %897 : vector<2x64xf32>
    %899 = arith.mulf %866, %898 : vector<2x64xf32>
    %900 = vector.extract_strided_slice %899 {offsets = [0, 0], sizes = [2, 32], strides = [1, 1]} : vector<2x64xf32> to vector<2x32xf32>
    %c4_400 = arith.constant 4 : index
    %c0_401 = arith.constant 0 : index
    %c0_402 = arith.constant 0 : index
    %901 = vector.load %arg22[%c4_400, %c0_401, %c0_402] : memref<8x2x64xf32, #tpu.memory_space<vmem>>, vector<1x2x32xf32>
    %902 = vector.shape_cast %901 : vector<1x2x32xf32> to vector<2x32xf32>
    %903 = vector.shape_cast %900 : vector<2x32xf32> to vector<1x2x32xf32>
    tpu.vector_store %arg22[%c4_400, %c0_401, %c0_402], %903 {strides = array<i32>} : memref<8x2x64xf32, #tpu.memory_space<vmem>>, vector<1x2x32xf32>,
    %904 = vector.extract_strided_slice %899 {offsets = [0, 32], sizes = [2, 32], strides = [1, 1]} : vector<2x64xf32> to vector<2x32xf32>
    %c3_403 = arith.constant 3 : index
    %c0_404 = arith.constant 0 : index
    %c32_405 = arith.constant 32 : index
    %905 = vector.load %arg22[%c3_403, %c0_404, %c32_405] : memref<8x2x64xf32, #tpu.memory_space<vmem>>, vector<1x2x32xf32>
    %906 = vector.shape_cast %905 : vector<1x2x32xf32> to vector<2x32xf32>
    %907 = vector.shape_cast %904 : vector<2x32xf32> to vector<1x2x32xf32>
    tpu.vector_store %arg22[%c3_403, %c0_404, %c32_405], %907 {strides = array<i32>} : memref<8x2x64xf32, #tpu.memory_space<vmem>>, vector<1x2x32xf32>,
    %cst_406 = arith.constant dense<0.000000e+00> : vector<2x192xf32>
    %908 = tpu.matmul %898, %648, %cst_406 {dimension_numbers = #tpu.dot_dimension_numbers<[1], [0], [0], [1], [0, 0, 1, 1], [], []>} : vector<2x64xf32>, vector<64x192xf32>, vector<2x192xf32> -> vector<2x192xf32>
    %c5_407 = arith.constant 5 : index
    %c0_408 = arith.constant 0 : index
    %c0_409 = arith.constant 0 : index
    %909 = vector.load %arg21[%c5_407, %c0_408, %c0_409] : memref<8x2x192xf32, #tpu.memory_space<vmem>>, vector<1x2x192xf32>
    %910 = vector.shape_cast %909 : vector<1x2x192xf32> to vector<2x192xf32>
    %c2_410 = arith.constant 2 : index
    %c0_411 = arith.constant 0 : index
    %c0_412 = arith.constant 0 : index
    %911 = vector.load %arg21[%c2_410, %c0_411, %c0_412] : memref<8x2x192xf32, #tpu.memory_space<vmem>>, vector<1x2x192xf32>
    %912 = vector.shape_cast %911 : vector<1x2x192xf32> to vector<2x192xf32>
    %913 = vector.shape_cast %647 : vector<1x192xi1> to vector<1x192xi1>
    %914 = vector.broadcast %913 : vector<1x192xi1> to vector<2x192xi1>
    %915 = arith.select %914, %910, %912 : vector<2x192xi1>, vector<2x192xf32>
    %c5_413 = arith.constant 5 : index
    %c0_414 = arith.constant 0 : index
    %c0_415 = arith.constant 0 : index
    %916 = vector.load %arg2[%c5_413, %c0_414, %c0_415] : memref<8x2x64xf32, #tpu.memory_space<vmem>>, vector<1x2x64xf32>
    %917 = vector.shape_cast %916 : vector<1x2x64xf32> to vector<2x64xf32>
    %918 = vector.extract_strided_slice %915 {offsets = [0, 0], sizes = [2, 64], strides = [1, 1]} : vector<2x192xf32> to vector<2x64xf32>
    %919 = vector.extract_strided_slice %908 {offsets = [0, 0], sizes = [2, 64], strides = [1, 1]} : vector<2x192xf32> to vector<2x64xf32>
    %920 = arith.addf %918, %919 : vector<2x64xf32>
    %921 = arith.negf %920 : vector<2x64xf32>
    %922 = math.exp %921 : vector<2x64xf32>
    %cst_416 = arith.constant 1.000000e+00 : f32
    %923 = vector.broadcast %cst_416 : f32 to vector<2x64xf32>
    %924 = arith.addf %923, %922 : vector<2x64xf32>
    %925 = arith.divf %923, %924 : vector<2x64xf32>
    %926 = vector.extract_strided_slice %915 {offsets = [0, 64], sizes = [2, 64], strides = [1, 1]} : vector<2x192xf32> to vector<2x64xf32>
    %927 = vector.extract_strided_slice %908 {offsets = [0, 64], sizes = [2, 64], strides = [1, 1]} : vector<2x192xf32> to vector<2x64xf32>
    %928 = arith.addf %926, %927 : vector<2x64xf32>
    %929 = arith.negf %928 : vector<2x64xf32>
    %930 = math.exp %929 : vector<2x64xf32>
    %cst_417 = arith.constant 1.000000e+00 : f32
    %931 = vector.broadcast %cst_417 : f32 to vector<2x64xf32>
    %932 = arith.addf %931, %930 : vector<2x64xf32>
    %933 = arith.divf %931, %932 : vector<2x64xf32>
    %934 = vector.extract_strided_slice %915 {offsets = [0, 128], sizes = [2, 64], strides = [1, 1]} : vector<2x192xf32> to vector<2x64xf32>
    %935 = vector.extract_strided_slice %908 {offsets = [0, 128], sizes = [2, 64], strides = [1, 1]} : vector<2x192xf32> to vector<2x64xf32>
    %936 = arith.addf %935, %651 : vector<2x64xf32>
    %937 = arith.mulf %925, %936 : vector<2x64xf32>
    %938 = arith.addf %934, %937 : vector<2x64xf32>
    %939 = math.tanh %938 : vector<2x64xf32>
    %cst_418 = arith.constant 1.000000e+00 : f32
    %940 = vector.broadcast %cst_418 : f32 to vector<2x64xf32>
    %941 = arith.subf %940, %933 : vector<2x64xf32>
    %942 = arith.mulf %941, %939 : vector<2x64xf32>
    %943 = arith.mulf %933, %898 : vector<2x64xf32>
    %944 = arith.addf %942, %943 : vector<2x64xf32>
    %945 = arith.mulf %917, %944 : vector<2x64xf32>
    %cst_419 = arith.constant 1.000000e+00 : f32
    %946 = vector.broadcast %cst_419 : f32 to vector<2x64xf32>
    %947 = arith.subf %946, %917 : vector<2x64xf32>
    %948 = arith.mulf %947, %898 : vector<2x64xf32>
    %949 = arith.addf %945, %948 : vector<2x64xf32>
    %950 = arith.mulf %917, %949 : vector<2x64xf32>
    %951 = vector.extract_strided_slice %950 {offsets = [0, 0], sizes = [2, 32], strides = [1, 1]} : vector<2x64xf32> to vector<2x32xf32>
    %c5_420 = arith.constant 5 : index
    %c0_421 = arith.constant 0 : index
    %c0_422 = arith.constant 0 : index
    %952 = vector.load %arg22[%c5_420, %c0_421, %c0_422] : memref<8x2x64xf32, #tpu.memory_space<vmem>>, vector<1x2x32xf32>
    %953 = vector.shape_cast %952 : vector<1x2x32xf32> to vector<2x32xf32>
    %954 = vector.shape_cast %951 : vector<2x32xf32> to vector<1x2x32xf32>
    tpu.vector_store %arg22[%c5_420, %c0_421, %c0_422], %954 {strides = array<i32>} : memref<8x2x64xf32, #tpu.memory_space<vmem>>, vector<1x2x32xf32>,
    %955 = vector.extract_strided_slice %950 {offsets = [0, 32], sizes = [2, 32], strides = [1, 1]} : vector<2x64xf32> to vector<2x32xf32>
    %c2_423 = arith.constant 2 : index
    %c0_424 = arith.constant 0 : index
    %c32_425 = arith.constant 32 : index
    %956 = vector.load %arg22[%c2_423, %c0_424, %c32_425] : memref<8x2x64xf32, #tpu.memory_space<vmem>>, vector<1x2x32xf32>
    %957 = vector.shape_cast %956 : vector<1x2x32xf32> to vector<2x32xf32>
    %958 = vector.shape_cast %955 : vector<2x32xf32> to vector<1x2x32xf32>
    tpu.vector_store %arg22[%c2_423, %c0_424, %c32_425], %958 {strides = array<i32>} : memref<8x2x64xf32, #tpu.memory_space<vmem>>, vector<1x2x32xf32>,
    %cst_426 = arith.constant dense<0.000000e+00> : vector<2x192xf32>
    %959 = tpu.matmul %949, %648, %cst_426 {dimension_numbers = #tpu.dot_dimension_numbers<[1], [0], [0], [1], [0, 0, 1, 1], [], []>} : vector<2x64xf32>, vector<64x192xf32>, vector<2x192xf32> -> vector<2x192xf32>
    %c6_427 = arith.constant 6 : index
    %c0_428 = arith.constant 0 : index
    %c0_429 = arith.constant 0 : index
    %960 = vector.load %arg21[%c6_427, %c0_428, %c0_429] : memref<8x2x192xf32, #tpu.memory_space<vmem>>, vector<1x2x192xf32>
    %961 = vector.shape_cast %960 : vector<1x2x192xf32> to vector<2x192xf32>
    %c1_430 = arith.constant 1 : index
    %c0_431 = arith.constant 0 : index
    %c0_432 = arith.constant 0 : index
    %962 = vector.load %arg21[%c1_430, %c0_431, %c0_432] : memref<8x2x192xf32, #tpu.memory_space<vmem>>, vector<1x2x192xf32>
    %963 = vector.shape_cast %962 : vector<1x2x192xf32> to vector<2x192xf32>
    %964 = vector.shape_cast %647 : vector<1x192xi1> to vector<1x192xi1>
    %965 = vector.broadcast %964 : vector<1x192xi1> to vector<2x192xi1>
    %966 = arith.select %965, %961, %963 : vector<2x192xi1>, vector<2x192xf32>
    %c6_433 = arith.constant 6 : index
    %c0_434 = arith.constant 0 : index
    %c0_435 = arith.constant 0 : index
    %967 = vector.load %arg2[%c6_433, %c0_434, %c0_435] : memref<8x2x64xf32, #tpu.memory_space<vmem>>, vector<1x2x64xf32>
    %968 = vector.shape_cast %967 : vector<1x2x64xf32> to vector<2x64xf32>
    %969 = vector.extract_strided_slice %966 {offsets = [0, 0], sizes = [2, 64], strides = [1, 1]} : vector<2x192xf32> to vector<2x64xf32>
    %970 = vector.extract_strided_slice %959 {offsets = [0, 0], sizes = [2, 64], strides = [1, 1]} : vector<2x192xf32> to vector<2x64xf32>
    %971 = arith.addf %969, %970 : vector<2x64xf32>
    %972 = arith.negf %971 : vector<2x64xf32>
    %973 = math.exp %972 : vector<2x64xf32>
    %cst_436 = arith.constant 1.000000e+00 : f32
    %974 = vector.broadcast %cst_436 : f32 to vector<2x64xf32>
    %975 = arith.addf %974, %973 : vector<2x64xf32>
    %976 = arith.divf %974, %975 : vector<2x64xf32>
    %977 = vector.extract_strided_slice %966 {offsets = [0, 64], sizes = [2, 64], strides = [1, 1]} : vector<2x192xf32> to vector<2x64xf32>
    %978 = vector.extract_strided_slice %959 {offsets = [0, 64], sizes = [2, 64], strides = [1, 1]} : vector<2x192xf32> to vector<2x64xf32>
    %979 = arith.addf %977, %978 : vector<2x64xf32>
    %980 = arith.negf %979 : vector<2x64xf32>
    %981 = math.exp %980 : vector<2x64xf32>
    %cst_437 = arith.constant 1.000000e+00 : f32
    %982 = vector.broadcast %cst_437 : f32 to vector<2x64xf32>
    %983 = arith.addf %982, %981 : vector<2x64xf32>
    %984 = arith.divf %982, %983 : vector<2x64xf32>
    %985 = vector.extract_strided_slice %966 {offsets = [0, 128], sizes = [2, 64], strides = [1, 1]} : vector<2x192xf32> to vector<2x64xf32>
    %986 = vector.extract_strided_slice %959 {offsets = [0, 128], sizes = [2, 64], strides = [1, 1]} : vector<2x192xf32> to vector<2x64xf32>
    %987 = arith.addf %986, %651 : vector<2x64xf32>
    %988 = arith.mulf %976, %987 : vector<2x64xf32>
    %989 = arith.addf %985, %988 : vector<2x64xf32>
    %990 = math.tanh %989 : vector<2x64xf32>
    %cst_438 = arith.constant 1.000000e+00 : f32
    %991 = vector.broadcast %cst_438 : f32 to vector<2x64xf32>
    %992 = arith.subf %991, %984 : vector<2x64xf32>
    %993 = arith.mulf %992, %990 : vector<2x64xf32>
    %994 = arith.mulf %984, %949 : vector<2x64xf32>
    %995 = arith.addf %993, %994 : vector<2x64xf32>
    %996 = arith.mulf %968, %995 : vector<2x64xf32>
    %cst_439 = arith.constant 1.000000e+00 : f32
    %997 = vector.broadcast %cst_439 : f32 to vector<2x64xf32>
    %998 = arith.subf %997, %968 : vector<2x64xf32>
    %999 = arith.mulf %998, %949 : vector<2x64xf32>
    %1000 = arith.addf %996, %999 : vector<2x64xf32>
    %1001 = arith.mulf %968, %1000 : vector<2x64xf32>
    %1002 = vector.extract_strided_slice %1001 {offsets = [0, 0], sizes = [2, 32], strides = [1, 1]} : vector<2x64xf32> to vector<2x32xf32>
    %c6_440 = arith.constant 6 : index
    %c0_441 = arith.constant 0 : index
    %c0_442 = arith.constant 0 : index
    %1003 = vector.load %arg22[%c6_440, %c0_441, %c0_442] : memref<8x2x64xf32, #tpu.memory_space<vmem>>, vector<1x2x32xf32>
    %1004 = vector.shape_cast %1003 : vector<1x2x32xf32> to vector<2x32xf32>
    %1005 = vector.shape_cast %1002 : vector<2x32xf32> to vector<1x2x32xf32>
    tpu.vector_store %arg22[%c6_440, %c0_441, %c0_442], %1005 {strides = array<i32>} : memref<8x2x64xf32, #tpu.memory_space<vmem>>, vector<1x2x32xf32>,
    %1006 = vector.extract_strided_slice %1001 {offsets = [0, 32], sizes = [2, 32], strides = [1, 1]} : vector<2x64xf32> to vector<2x32xf32>
    %c1_443 = arith.constant 1 : index
    %c0_444 = arith.constant 0 : index
    %c32_445 = arith.constant 32 : index
    %1007 = vector.load %arg22[%c1_443, %c0_444, %c32_445] : memref<8x2x64xf32, #tpu.memory_space<vmem>>, vector<1x2x32xf32>
    %1008 = vector.shape_cast %1007 : vector<1x2x32xf32> to vector<2x32xf32>
    %1009 = vector.shape_cast %1006 : vector<2x32xf32> to vector<1x2x32xf32>
    tpu.vector_store %arg22[%c1_443, %c0_444, %c32_445], %1009 {strides = array<i32>} : memref<8x2x64xf32, #tpu.memory_space<vmem>>, vector<1x2x32xf32>,
    %cst_446 = arith.constant dense<0.000000e+00> : vector<2x192xf32>
    %1010 = tpu.matmul %1000, %648, %cst_446 {dimension_numbers = #tpu.dot_dimension_numbers<[1], [0], [0], [1], [0, 0, 1, 1], [], []>} : vector<2x64xf32>, vector<64x192xf32>, vector<2x192xf32> -> vector<2x192xf32>
    %c7_447 = arith.constant 7 : index
    %c0_448 = arith.constant 0 : index
    %c0_449 = arith.constant 0 : index
    %1011 = vector.load %arg21[%c7_447, %c0_448, %c0_449] : memref<8x2x192xf32, #tpu.memory_space<vmem>>, vector<1x2x192xf32>
    %1012 = vector.shape_cast %1011 : vector<1x2x192xf32> to vector<2x192xf32>
    %c0_450 = arith.constant 0 : index
    %c0_451 = arith.constant 0 : index
    %c0_452 = arith.constant 0 : index
    %1013 = vector.load %arg21[%c0_450, %c0_451, %c0_452] : memref<8x2x192xf32, #tpu.memory_space<vmem>>, vector<1x2x192xf32>
    %1014 = vector.shape_cast %1013 : vector<1x2x192xf32> to vector<2x192xf32>
    %1015 = vector.shape_cast %647 : vector<1x192xi1> to vector<1x192xi1>
    %1016 = vector.broadcast %1015 : vector<1x192xi1> to vector<2x192xi1>
    %1017 = arith.select %1016, %1012, %1014 : vector<2x192xi1>, vector<2x192xf32>
    %c7_453 = arith.constant 7 : index
    %c0_454 = arith.constant 0 : index
    %c0_455 = arith.constant 0 : index
    %1018 = vector.load %arg2[%c7_453, %c0_454, %c0_455] : memref<8x2x64xf32, #tpu.memory_space<vmem>>, vector<1x2x64xf32>
    %1019 = vector.shape_cast %1018 : vector<1x2x64xf32> to vector<2x64xf32>
    %1020 = vector.extract_strided_slice %1017 {offsets = [0, 0], sizes = [2, 64], strides = [1, 1]} : vector<2x192xf32> to vector<2x64xf32>
    %1021 = vector.extract_strided_slice %1010 {offsets = [0, 0], sizes = [2, 64], strides = [1, 1]} : vector<2x192xf32> to vector<2x64xf32>
    %1022 = arith.addf %1020, %1021 : vector<2x64xf32>
    %1023 = arith.negf %1022 : vector<2x64xf32>
    %1024 = math.exp %1023 : vector<2x64xf32>
    %cst_456 = arith.constant 1.000000e+00 : f32
    %1025 = vector.broadcast %cst_456 : f32 to vector<2x64xf32>
    %1026 = arith.addf %1025, %1024 : vector<2x64xf32>
    %1027 = arith.divf %1025, %1026 : vector<2x64xf32>
    %1028 = vector.extract_strided_slice %1017 {offsets = [0, 64], sizes = [2, 64], strides = [1, 1]} : vector<2x192xf32> to vector<2x64xf32>
    %1029 = vector.extract_strided_slice %1010 {offsets = [0, 64], sizes = [2, 64], strides = [1, 1]} : vector<2x192xf32> to vector<2x64xf32>
    %1030 = arith.addf %1028, %1029 : vector<2x64xf32>
    %1031 = arith.negf %1030 : vector<2x64xf32>
    %1032 = math.exp %1031 : vector<2x64xf32>
    %cst_457 = arith.constant 1.000000e+00 : f32
    %1033 = vector.broadcast %cst_457 : f32 to vector<2x64xf32>
    %1034 = arith.addf %1033, %1032 : vector<2x64xf32>
    %1035 = arith.divf %1033, %1034 : vector<2x64xf32>
    %1036 = vector.extract_strided_slice %1017 {offsets = [0, 128], sizes = [2, 64], strides = [1, 1]} : vector<2x192xf32> to vector<2x64xf32>
    %1037 = vector.extract_strided_slice %1010 {offsets = [0, 128], sizes = [2, 64], strides = [1, 1]} : vector<2x192xf32> to vector<2x64xf32>
    %1038 = arith.addf %1037, %651 : vector<2x64xf32>
    %1039 = arith.mulf %1027, %1038 : vector<2x64xf32>
    %1040 = arith.addf %1036, %1039 : vector<2x64xf32>
    %1041 = math.tanh %1040 : vector<2x64xf32>
    %cst_458 = arith.constant 1.000000e+00 : f32
    %1042 = vector.broadcast %cst_458 : f32 to vector<2x64xf32>
    %1043 = arith.subf %1042, %1035 : vector<2x64xf32>
    %1044 = arith.mulf %1043, %1041 : vector<2x64xf32>
    %1045 = arith.mulf %1035, %1000 : vector<2x64xf32>
    %1046 = arith.addf %1044, %1045 : vector<2x64xf32>
    %1047 = arith.mulf %1019, %1046 : vector<2x64xf32>
    %cst_459 = arith.constant 1.000000e+00 : f32
    %1048 = vector.broadcast %cst_459 : f32 to vector<2x64xf32>
    %1049 = arith.subf %1048, %1019 : vector<2x64xf32>
    %1050 = arith.mulf %1049, %1000 : vector<2x64xf32>
    %1051 = arith.addf %1047, %1050 : vector<2x64xf32>
    %1052 = arith.mulf %1019, %1051 : vector<2x64xf32>
    %1053 = vector.extract_strided_slice %1052 {offsets = [0, 0], sizes = [2, 32], strides = [1, 1]} : vector<2x64xf32> to vector<2x32xf32>
    %c7_460 = arith.constant 7 : index
    %c0_461 = arith.constant 0 : index
    %c0_462 = arith.constant 0 : index
    %1054 = vector.load %arg22[%c7_460, %c0_461, %c0_462] : memref<8x2x64xf32, #tpu.memory_space<vmem>>, vector<1x2x32xf32>
    %1055 = vector.shape_cast %1054 : vector<1x2x32xf32> to vector<2x32xf32>
    %1056 = vector.shape_cast %1053 : vector<2x32xf32> to vector<1x2x32xf32>
    tpu.vector_store %arg22[%c7_460, %c0_461, %c0_462], %1056 {strides = array<i32>} : memref<8x2x64xf32, #tpu.memory_space<vmem>>, vector<1x2x32xf32>,
    %1057 = vector.extract_strided_slice %1052 {offsets = [0, 32], sizes = [2, 32], strides = [1, 1]} : vector<2x64xf32> to vector<2x32xf32>
    %c0_463 = arith.constant 0 : index
    %c0_464 = arith.constant 0 : index
    %c32_465 = arith.constant 32 : index
    %1058 = vector.load %arg22[%c0_463, %c0_464, %c32_465] : memref<8x2x64xf32, #tpu.memory_space<vmem>>, vector<1x2x32xf32>
    %1059 = vector.shape_cast %1058 : vector<1x2x32xf32> to vector<2x32xf32>
    %1060 = vector.shape_cast %1057 : vector<2x32xf32> to vector<1x2x32xf32>
    tpu.vector_store %arg22[%c0_463, %c0_464, %c32_465], %1060 {strides = array<i32>} : memref<8x2x64xf32, #tpu.memory_space<vmem>>, vector<1x2x32xf32>,
    %c0_466 = arith.constant 0 : index
    %c0_467 = arith.constant 0 : index
    %c0_468 = arith.constant 0 : index
    %1061 = vector.load %arg22[%c0_466, %c0_467, %c0_468] : memref<8x2x64xf32, #tpu.memory_space<vmem>>, vector<8x2x64xf32>
    %c0_469 = arith.constant 0 : index
    %c0_470 = arith.constant 0 : index
    %c0_471 = arith.constant 0 : index
    %1062 = vector.load %arg15[%c0_469, %c0_470, %c0_471] : memref<1x1x64xf32, #tpu.memory_space<vmem>>, vector<1x1x64xf32>
    %1063 = vector.broadcast %1062 : vector<1x1x64xf32> to vector<8x2x64xf32>
    %1064 = arith.mulf %1061, %1063 : vector<8x2x64xf32>
    %cst_472 = arith.constant dense<0.000000e+00> : vector<8x2xf32>
    %1065 = vector.multi_reduction <add>, %1064, %cst_472 [2] : vector<8x2x64xf32> to vector<8x2xf32>
    %1066 = vector.shape_cast %1065 : vector<8x2xf32> to vector<8x2x1xf32>
    %c0_473 = arith.constant 0 : index
    %c0_474 = arith.constant 0 : index
    %c0_475 = arith.constant 0 : index
    %1067 = vector.load %arg2[%c0_473, %c0_474, %c0_475] : memref<8x2x64xf32, #tpu.memory_space<vmem>>, vector<8x2x1xf32>
    %1068 = arith.negf %1066 : vector<8x2x1xf32>
    %1069 = math.exp %1068 : vector<8x2x1xf32>
    %cst_476 = arith.constant 1.000000e+00 : f32
    %1070 = vector.broadcast %cst_476 : f32 to vector<8x2x1xf32>
    %1071 = arith.addf %1070, %1069 : vector<8x2x1xf32>
    %1072 = arith.divf %1070, %1071 : vector<8x2x1xf32>
    %1073 = arith.mulf %1072, %1067 : vector<8x2x1xf32>
    %cst_477 = arith.constant dense<0.000000e+00> : vector<2x1xf32>
    %1074 = vector.multi_reduction <add>, %1067, %cst_477 [0] : vector<8x2x1xf32> to vector<2x1xf32>
    %cst_478 = arith.constant dense<0.000000e+00> : vector<2x1xf32>
    %1075 = vector.multi_reduction <add>, %1073, %cst_478 [0] : vector<8x2x1xf32> to vector<2x1xf32>
    %1076 = arith.divf %1075, %1074 : vector<2x1xf32>
    %c0_479 = arith.constant 0 : index
    %c0_480 = arith.constant 0 : index
    %1077 = vector.load %arg5[%c0_479, %c0_480] : memref<2x1xf32, #tpu.memory_space<vmem>>, vector<2x1xf32>
    %1078 = math.log %1076 : vector<2x1xf32>
    %cst_481 = arith.constant -1.000000e+02 : f32
    %1079 = vector.broadcast %cst_481 : f32 to vector<2x1xf32>
    %1080 = arith.maximumf %1078, %1079 : vector<2x1xf32>
    %cst_482 = arith.constant 1.000000e+00 : f32
    %1081 = vector.broadcast %cst_482 : f32 to vector<2x1xf32>
    %1082 = arith.subf %1081, %1076 : vector<2x1xf32>
    %1083 = math.log %1082 : vector<2x1xf32>
    %cst_483 = arith.constant -1.000000e+02 : f32
    %1084 = vector.broadcast %cst_483 : f32 to vector<2x1xf32>
    %1085 = arith.maximumf %1083, %1084 : vector<2x1xf32>
    %1086 = arith.mulf %1077, %1080 : vector<2x1xf32>
    %cst_484 = arith.constant 1.000000e+00 : f32
    %1087 = vector.broadcast %cst_484 : f32 to vector<2x1xf32>
    %1088 = arith.subf %1087, %1077 : vector<2x1xf32>
    %1089 = arith.mulf %1088, %1085 : vector<2x1xf32>
    %1090 = arith.addf %1086, %1089 : vector<2x1xf32>
    %cst_485 = arith.constant 0.000000e+00 : f32
    %1091 = vector.broadcast %cst_485 : f32 to vector<2x1xf32>
    %1092 = arith.subf %1091, %1090 : vector<2x1xf32>
    %1093 = arith.mulf %1076, %1080 : vector<2x1xf32>
    %cst_486 = arith.constant 1.000000e+00 : f32
    %1094 = vector.broadcast %cst_486 : f32 to vector<2x1xf32>
    %1095 = arith.subf %1094, %1076 : vector<2x1xf32>
    %1096 = arith.mulf %1095, %1085 : vector<2x1xf32>
    %1097 = arith.addf %1093, %1096 : vector<2x1xf32>
    %cst_487 = arith.constant 0.000000e+00 : f32
    %1098 = vector.broadcast %cst_487 : f32 to vector<2x1xf32>
    %1099 = arith.subf %1098, %1097 : vector<2x1xf32>
    %cst_488 = arith.constant dense<0.000000e+00> : vector<1xf32>
    %1100 = vector.multi_reduction <add>, %1092, %cst_488 [0] : vector<2x1xf32> to vector<1xf32>
    %1101 = vector.shape_cast %1100 : vector<1xf32> to vector<1x1xf32>
    %cst_489 = arith.constant dense<0.000000e+00> : vector<1xf32>
    %1102 = vector.multi_reduction <add>, %1099, %cst_489 [0] : vector<2x1xf32> to vector<1xf32>
    %1103 = vector.shape_cast %1102 : vector<1xf32> to vector<1x1xf32>
    %cst_490 = arith.constant 0.00999999977 : f32
    %1104 = vector.broadcast %cst_490 : f32 to vector<1x1xf32>
    %1105 = arith.mulf %1104, %1103 : vector<1x1xf32>
    %1106 = arith.addf %1101, %1105 : vector<1x1xf32>
    %cst_491 = arith.constant 5.000000e-01 : f32
    %1107 = vector.broadcast %cst_491 : f32 to vector<1x1xf32>
    %1108 = arith.mulf %1106, %1107 : vector<1x1xf32>
    %c0_492 = arith.constant 0 : index
    %c0_493 = arith.constant 0 : index
    %1109 = vector.load %arg17[%c0_492, %c0_493] : memref<1x1xf32, #tpu.memory_space<vmem>>, vector<1x1xf32>
    tpu.vector_store %arg17[%c0_492, %c0_493], %1108 {strides = array<i32>} : memref<1x1xf32, #tpu.memory_space<vmem>>, vector<1x1xf32>,
    return
  }
}

</mosaic_0001>

<llo_original>
// kernel: tpu_custom_call.1
$region0: #{tpu_custom_call.1}
  #allocation0 [shape = 'u32[]', space=smem, size = 0x4, offset = 0x4, fixed_abs, tag = 'smem constant byte address 0x4 - core index']
  #allocation1 [shape = 'u32[144,128]{1,0:T(1,128)}', space=vmem, size = 0x12000, scoped, tag = 'internal scratch']
  #allocation2 [shape = 'f32[10,2,384]{2,1,0:T(2,128)}', space=vmem, size = 0x7800, scoped, tag = 'scratch operand']
  #allocation3 [shape = 'f32[10,2,64]{2,1,0:T(2,128)}', space=vmem, size = 0x2800, scoped, tag = 'scratch operand']
  #allocation4 [shape = 'f32[8,2,64]{2,1,0:T(2,128)}', space=vmem, size = 0x2000, scoped, tag = 'scratch operand']
  #allocation5 [shape = 'f32[8,2,192]{2,1,0:T(2,128)}', space=vmem, size = 0x4000, scoped, tag = 'scratch operand']
  #allocation6 [shape = 'f32[8,2,64]{2,1,0:T(2,128)}', space=vmem, size = 0x2000, scoped, tag = 'scratch operand']
  %s0 = inlined_call_operand.vmem [shape: f32[20,56], index: 0, kind: input, shape index: {}]
  %s1 = inlined_call_operand.hbm [shape: f32[10,2,128], index: 1, kind: input, shape index: {}]
  %s2 = inlined_call_operand.hbm [shape: f32[8,2,64], index: 2, kind: input, shape index: {}]
  %s3 = inlined_call_operand.vmem [shape: f32[2,1,10], index: 3, kind: input, shape index: {}]
  %s4 = inlined_call_operand.vmem [shape: f32[2,8,1], index: 4, kind: input, shape index: {}]
  %s5 = inlined_call_operand.vmem [shape: f32[2,1], index: 5, kind: input, shape index: {}]
  %s6 = inlined_call_operand.hbm [shape: f32[56,384], index: 6, kind: input, shape index: {}]
  %s7 = inlined_call_operand.vmem [shape: f32[1,384], index: 7, kind: input, shape index: {}]
  %s8 = inlined_call_operand.vmem [shape: f32[128,384], index: 8, kind: input, shape index: {}]
  %s9 = inlined_call_operand.vmem [shape: f32[1,128], index: 9, kind: input, shape index: {}]
  %s10 = inlined_call_operand.vmem [shape: f32[128,192], index: 10, kind: input, shape index: {}]
  %s11 = inlined_call_operand.hbm [shape: f32[64,192], index: 11, kind: input, shape index: {}]
  %s12 = inlined_call_operand.vmem [shape: f32[1,192], index: 12, kind: input, shape index: {}]
  %s13 = inlined_call_operand.vmem [shape: f32[1,64], index: 13, kind: input, shape index: {}]
  %s14 = inlined_call_operand.vmem [shape: f32[64,64], index: 14, kind: input, shape index: {}]
  %s15 = inlined_call_operand.vmem [shape: f32[1,1,64], index: 15, kind: input, shape index: {}]
  %s16 = inlined_call_operand.vmem [shape: f32[1,192], index: 16, kind: input, shape index: {}]
  %s17 = inlined_call_operand.hbm [shape: f32[1,1], index: 17, kind: output, shape index: {}]
  %s18 = sld [smem:[#allocation0]]
  $region94: #{tpu_custom_call.1} parent=0
    _
  %s20 = ssub.s32 1, %s18
  %s21 = scalar_select 0, %s20, %s18
  $region1: #{tpu_custom_call.1} parent=0
    #allocation7 [shape = 'u8[10240]{0}', space=vmem, size = 0x2800, scoped, tag = 'input window, operand 1, single buffered']
    #allocation8 [shape = 's32[1]{0}', space=sflag, size = 0x4, scoped, tag = 'scoped memory for tpu_custom_call.1']
    #allocation9 [shape = 's32[1]{0}', space=sflag, size = 0x4, scoped, tag = 'scoped memory for tpu_custom_call.1']
    #allocation10 [shape = 'u8[8192]{0}', space=vmem, size = 0x2000, scoped, tag = 'input window, operand 2, single buffered']
    #allocation11 [shape = 's32[1]{0}', space=sflag, size = 0x4, scoped, tag = 'scoped memory for tpu_custom_call.1']
    #allocation12 [shape = 'u8[86016]{0}', space=vmem, size = 0x15000, scoped, tag = 'input window, operand 6, single buffered']
    #allocation13 [shape = 'u8[65536]{0}', space=vmem, size = 0x10000, scoped, tag = 'input window, operand 11, single buffered']
    #allocation14 [shape = 's32[1]{0}', space=sflag, size = 0x4, scoped, tag = 'scoped memory for tpu_custom_call.1']
    #allocation15 [shape = 'u8[512]{0}', space=vmem, size = 0x400, scoped, tag = 'output window, operand 0, single buffered']
    %22 = vsyncpa [#allocation8], 0
    %23 = vsyncpa [#allocation11], 0
    %24 = vsyncpa [#allocation14], 0
    %25 = vsyncpa [#allocation9], 0
    // Predicated region
    $region2: #{tpu_custom_call.1} parent=1 // pred_check
      _
    $region3: #{tpu_custom_call.1} parent=1 // pred_check_branch
      %27 = sbr.rel (0) target = $region5
    $region4: #{tpu_custom_call.1} parent=1 // pred_region
      _
    $region5: #{tpu_custom_call.1} parent=1 // pred_fallthru
      _
    // Predicated region
    $region6: #{tpu_custom_call.1} parent=1 // pred_check
      _
    $region7: #{tpu_custom_call.1} parent=1 // pred_check_branch
      %29 = sbr.rel (0) target = $region9
    $region8: #{tpu_custom_call.1} parent=1 // pred_region
      %s31 = ssub.s32 320, 320
      %32 = vsyncadd [#allocation8], %s31
      %s33 = sshll.u32 [#allocation7], 4
      %s34 = int_to_ptr.vmem [resolvable:$true] %s33
      %39 = dma.hbm_to_vmem [thread:$0]  %s1, 320, %s34, [#allocation8], 32, 32, 2
    $region9: #{tpu_custom_call.1} parent=1 // pred_fallthru
      _
    // Predicated region
    $region10: #{tpu_custom_call.1} parent=1 // pred_check
      _
    $region11: #{tpu_custom_call.1} parent=1 // pred_check_branch
      %41 = sbr.rel (0) target = $region13
    $region12: #{tpu_custom_call.1} parent=1 // pred_region
      %s43 = ssub.s32 256, 256
      %44 = vsyncadd [#allocation11], %s43
      %s45 = sshll.u32 [#allocation10], 4
      %s46 = int_to_ptr.vmem [resolvable:$true] %s45
      %51 = dma.hbm_to_vmem [thread:$0]  %s2, 256, %s46, [#allocation11], 32, 32, 2
    $region13: #{tpu_custom_call.1} parent=1 // pred_fallthru
      _
    // Predicated region
    $region14: #{tpu_custom_call.1} parent=1 // pred_check
      _
    $region15: #{tpu_custom_call.1} parent=1 // pred_check_branch
      %53 = sbr.rel (0) target = $region17
    $region16: #{tpu_custom_call.1} parent=1 // pred_region
      _
    $region17: #{tpu_custom_call.1} parent=1 // pred_fallthru
      _
    // Predicated region
    $region18: #{tpu_custom_call.1} parent=1 // pred_check
      _
    $region19: #{tpu_custom_call.1} parent=1 // pred_check_branch
      %55 = sbr.rel (0) target = $region21
    $region20: #{tpu_custom_call.1} parent=1 // pred_region
      _
    $region21: #{tpu_custom_call.1} parent=1 // pred_fallthru
      _
    // Predicated region
    $region22: #{tpu_custom_call.1} parent=1 // pred_check
      _
    $region23: #{tpu_custom_call.1} parent=1 // pred_check_branch
      %57 = sbr.rel (0) target = $region25
    $region24: #{tpu_custom_call.1} parent=1 // pred_region
      _
    $region25: #{tpu_custom_call.1} parent=1 // pred_fallthru
      _
    // Predicated region
    $region26: #{tpu_custom_call.1} parent=1 // pred_check
      _
    $region27: #{tpu_custom_call.1} parent=1 // pred_check_branch
      %59 = sbr.rel (0) target = $region29
    $region28: #{tpu_custom_call.1} parent=1 // pred_region
      %s61 = ssub.s32 2688, 2688
      %62 = vsyncadd [#allocation11], %s61
      %s63 = sshll.u32 [#allocation12], 4
      %s64 = int_to_ptr.vmem [resolvable:$true] %s63
      %69 = dma.hbm_to_vmem [thread:$0]  %s6, 2688, %s64, [#allocation11], 384, 384, 24
    $region29: #{tpu_custom_call.1} parent=1 // pred_fallthru
      _
    // Predicated region
    $region30: #{tpu_custom_call.1} parent=1 // pred_check
      _
    $region31: #{tpu_custom_call.1} parent=1 // pred_check_branch
      %71 = sbr.rel (0) target = $region33
    $region32: #{tpu_custom_call.1} parent=1 // pred_region
      _
    $region33: #{tpu_custom_call.1} parent=1 // pred_fallthru
      _
    // Predicated region
    $region34: #{tpu_custom_call.1} parent=1 // pred_check
      _
    $region35: #{tpu_custom_call.1} parent=1 // pred_check_branch
      %73 = sbr.rel (0) target = $region37
    $region36: #{tpu_custom_call.1} parent=1 // pred_region
      _
    $region37: #{tpu_custom_call.1} parent=1 // pred_fallthru
      _
    // Predicated region
    $region38: #{tpu_custom_call.1} parent=1 // pred_check
      _
    $region39: #{tpu_custom_call.1} parent=1 // pred_check_branch
      %75 = sbr.rel (0) target = $region41
    $region40: #{tpu_custom_call.1} parent=1 // pred_region
      _
    $region41: #{tpu_custom_call.1} parent=1 // pred_fallthru
      _
    // Predicated region
    $region42: #{tpu_custom_call.1} parent=1 // pred_check
      _
    $region43: #{tpu_custom_call.1} parent=1 // pred_check_branch
      %77 = sbr.rel (0) target = $region45
    $region44: #{tpu_custom_call.1} parent=1 // pred_region
      _
    $region45: #{tpu_custom_call.1} parent=1 // pred_fallthru
      _
    // Predicated region
    $region46: #{tpu_custom_call.1} parent=1 // pred_check
      _
    $region47: #{tpu_custom_call.1} parent=1 // pred_check_branch
      %79 = sbr.rel (0) target = $region49
    $region48: #{tpu_custom_call.1} parent=1 // pred_region
      %s81 = ssub.s32 2048, 2048
      %82 = vsyncadd [#allocation14], %s81
      %s83 = sshll.u32 [#allocation13], 4
      %s84 = int_to_ptr.vmem [resolvable:$true] %s83
      %89 = dma.hbm_to_vmem [thread:$0]  %s11, 2048, %s84, [#allocation14], 256, 256, 16
    $region49: #{tpu_custom_call.1} parent=1 // pred_fallthru
      _
    // Predicated region
    $region50: #{tpu_custom_call.1} parent=1 // pred_check
      _
    $region51: #{tpu_custom_call.1} parent=1 // pred_check_branch
      %91 = sbr.rel (0) target = $region53
    $region52: #{tpu_custom_call.1} parent=1 // pred_region
      _
    $region53: #{tpu_custom_call.1} parent=1 // pred_fallthru
      _
    // Predicated region
    $region54: #{tpu_custom_call.1} parent=1 // pred_check
      _
    $region55: #{tpu_custom_call.1} parent=1 // pred_check_branch
      %93 = sbr.rel (0) target = $region57
    $region56: #{tpu_custom_call.1} parent=1 // pred_region
      _
    $region57: #{tpu_custom_call.1} parent=1 // pred_fallthru
      _
    // Predicated region
    $region58: #{tpu_custom_call.1} parent=1 // pred_check
      _
    $region59: #{tpu_custom_call.1} parent=1 // pred_check_branch
      %95 = sbr.rel (0) target = $region61
    $region60: #{tpu_custom_call.1} parent=1 // pred_region
      _
    $region61: #{tpu_custom_call.1} parent=1 // pred_fallthru
      _
    // Predicated region
    $region62: #{tpu_custom_call.1} parent=1 // pred_check
      _
    $region63: #{tpu_custom_call.1} parent=1 // pred_check_branch
      %97 = sbr.rel (0) target = $region65
    $region64: #{tpu_custom_call.1} parent=1 // pred_region
      _
    $region65: #{tpu_custom_call.1} parent=1 // pred_fallthru
      _
    // Predicated region
    $region66: #{tpu_custom_call.1} parent=1 // pred_check
      _
    $region67: #{tpu_custom_call.1} parent=1 // pred_check_branch
      %99 = sbr.rel (0) target = $region69
    $region68: #{tpu_custom_call.1} parent=1 // pred_region
      _
    $region69: #{tpu_custom_call.1} parent=1 // pred_fallthru
      _
    // Predicated region
    $region70: #{tpu_custom_call.1} parent=1 // pred_check
      _
    $region71: #{tpu_custom_call.1} parent=1 // pred_check_branch
      %101 = sbr.rel (0) target = $region73
    $region72: #{tpu_custom_call.1} parent=1 // pred_region
      %102 = dma.done [#allocation8], 320
    $region73: #{tpu_custom_call.1} parent=1 // pred_fallthru
      _
    // Predicated region
    $region74: #{tpu_custom_call.1} parent=1 // pred_check
      _
    $region75: #{tpu_custom_call.1} parent=1 // pred_check_branch
      %104 = sbr.rel (0) target = $region77
    $region76: #{tpu_custom_call.1} parent=1 // pred_region
      %105 = dma.done [#allocation11], 256
    $region77: #{tpu_custom_call.1} parent=1 // pred_fallthru
      _
    // Predicated region
    $region78: #{tpu_custom_call.1} parent=1 // pred_check
      _
    $region79: #{tpu_custom_call.1} parent=1 // pred_check_branch
      %107 = sbr.rel (0) target = $region81
    $region80: #{tpu_custom_call.1} parent=1 // pred_region
      %108 = dma.done [#allocation11], 2688
    $region81: #{tpu_custom_call.1} parent=1 // pred_fallthru
      _
    // Predicated region
    $region82: #{tpu_custom_call.1} parent=1 // pred_check
      _
    $region83: #{tpu_custom_call.1} parent=1 // pred_check_branch
      %110 = sbr.rel (0) target = $region85
    $region84: #{tpu_custom_call.1} parent=1 // pred_region
      %111 = dma.done [#allocation14], 2048
    $region85: #{tpu_custom_call.1} parent=1 // pred_fallthru
      _
    %v112 = vld [vmem:[%s0] sm:$0xff]
    %v113 = vld [vmem:[%s0 + $0x8] sm:$0xff]
    %v114 = vld [vmem:[%s0 + $0x10] sm:$0xf]
    %v115 = vld [vmem:[#allocation12] sm:$0xff]
    %v116 = vld [vmem:[#allocation12 + $0x8] sm:$0xff]
    %v117 = vld [vmem:[#allocation12 + $0x10] sm:$0xff]
    %v118 = vld [vmem:[#allocation12 + $0x18] sm:$0xff]
    %v119 = vld [vmem:[#allocation12 + $0x20] sm:$0xff]
    %v120 = vld [vmem:[#allocation12 + $0x28] sm:$0xff]
    %v121 = vld [vmem:[#allocation12 + $0x30] sm:$0xff]
    %v122 = vld [vmem:[#allocation12 + $0x38] sm:$0xff]
    %v123 = vld [vmem:[#allocation12 + $0x40] sm:$0xff]
    %v124 = vld [vmem:[#allocation12 + $0x48] sm:$0xff]
    %v125 = vld [vmem:[#allocation12 + $0x50] sm:$0xff]
    %v126 = vld [vmem:[#allocation12 + $0x58] sm:$0xff]
    %v127 = vld [vmem:[#allocation12 + $0x60] sm:$0xff]
    %v128 = vld [vmem:[#allocation12 + $0x68] sm:$0xff]
    %v129 = vld [vmem:[#allocation12 + $0x70] sm:$0xff]
    %v130 = vld [vmem:[#allocation12 + $0x78] sm:$0xff]
    %v131 = vld [vmem:[#allocation12 + $0x80] sm:$0xff]
    %v132 = vld [vmem:[#allocation12 + $0x88] sm:$0xff]
    %v133 = vld [vmem:[#allocation12 + $0x90] sm:$0xff]
    %v134 = vld [vmem:[#allocation12 + $0x98] sm:$0xff]
    %v135 = vld [vmem:[#allocation12 + $0xa0] sm:$0xff]
    %v136 = vld [vmem:[%s7] sm:$0x7]
    %v138 = vlaneseq
    %v139 = vshrl.u32 %v138, 7
    %v140 = vsub.s32 0, %v139
    %v141 = vrot.slane %v136, %v140
    %v142 = vlaneseq
    %v143 = vshrl.u32 %v142, 7
    %v144 = vsub.s32 1, %v143
    %v145 = vrot.slane %v136, %v144
    %v146 = vlaneseq
    %v147 = vshrl.u32 %v146, 7
    %v148 = vsub.s32 2, %v147
    %v149 = vrot.slane %v136, %v148
    %vm153 = vcmask 457728
    %v155 = vsel %vm153, %v112, 0
    %v158 = vsel %vm153, %v113, 0
    %v161 = vsel %vm153, %v114, 0
    %163 = vmatprep.subr.mxu0 0.0
    %164 = vmatpush1.msra.mxu0 0.0
    %165 = vmatprep.subr.mxu0 0.0
    %166 = vmatpush1.msra.mxu0 0.0
    %167 = vmatprep.subr.mxu0 0.0
    %168 = vmatpush1.msra.mxu0 0.0
    %169 = vmatprep.subr.mxu0 0.0
    %170 = vmatpush1.msra.mxu0 0.0
    %171 = vmatprep.subr.mxu0 0.0
    %172 = vmatpush1.msra.mxu0 0.0
    %173 = vmatprep.subr.mxu0 0.0
    %174 = vmatpush1.msra.mxu0 0.0
    %175 = vmatprep.subr.mxu0 0.0
    %176 = vmatpush1.msra.mxu0 0.0
    %177 = vmatprep.subr.mxu0 0.0
    %178 = vmatpush1.msra.mxu0 0.0
    %179 = vmatprep.subr.mxu0 0.0
    %180 = vmatpush1.msra.mxu0 0.0
    %181 = vmatprep.subr.mxu0 %v134
    %182 = vmatpush1.msra.mxu0 %v133
    %183 = vmatprep.subr.mxu0 %v131
    %184 = vmatpush1.msra.mxu0 %v130
    %185 = vmatprep.subr.mxu0 %v128
    %186 = vmatpush1.msra.mxu0 %v127
    %187 = vmatprep.subr.mxu0 %v125
    %188 = vmatpush1.msra.mxu0 %v124
    %189 = vmatprep.subr.mxu0 %v122
    %190 = vmatpush1.msra.mxu0 %v121
    %191 = vmatprep.subr.mxu0 %v119
    %192 = vmatpush1.msra.mxu0 %v118
    %193 = vmatprep.subr.mxu0 %v116
    %194 = vmatpush1.msra.mxu0 %v115
    %195 = vmatprep.subr.mxu0 0.0
    %196 = vmatpush2.msra.mxu0 0.0
    %197 = vmatprep.subr.mxu0 0.0
    %198 = vmatpush2.msra.mxu0 0.0
    %199 = vmatprep.subr.mxu0 0.0
    %200 = vmatpush2.msra.mxu0 0.0
    %201 = vmatprep.subr.mxu0 0.0
    %202 = vmatpush2.msra.mxu0 0.0
    %203 = vmatprep.subr.mxu0 0.0
    %204 = vmatpush2.msra.mxu0 0.0
    %205 = vmatprep.subr.mxu0 0.0
    %206 = vmatpush2.msra.mxu0 0.0
    %207 = vmatprep.subr.mxu0 0.0
    %208 = vmatpush2.msra.mxu0 0.0
    %209 = vmatprep.subr.mxu0 0.0
    %210 = vmatpush2.msra.mxu0 0.0
    %211 = vmatprep.subr.mxu0 0.0
    %212 = vmatpush2.msra.mxu0 0.0
    %213 = vmatprep.subr.mxu0 0.0
    %214 = vmatpush2.msra.mxu0 0.0
    %215 = vmatprep.subr.mxu0 0.0
    %216 = vmatpush2.msra.mxu0 0.0
    %217 = vmatprep.subr.mxu0 0.0
    %218 = vmatpush2.msra.mxu0 0.0
    %219 = vmatprep.subr.mxu0 0.0
    %220 = vmatpush2.msra.mxu0 0.0
    %221 = vmatprep.subr.mxu0 0.0
    %222 = vmatpush2.msra.mxu0 0.0
    %223 = vmatprep.subr.mxu0 0.0
    %224 = vmatpush2.msra.mxu0 0.0
    %225 = vmatprep.subr.mxu0 0.0
    %226 = vmatpush2.msra.mxu0 0.0
    %227 = vmatprep.mubr.f32.mxu0 0.0
    %228 = vmatmul.mubr.f32.gmra.mxu0 %v155
    %v229 = vpop.f32.mrf.mxu0
    %v230 = vadd.f32 %v141, %v229
    %v231 = vpop.f32.mrf.mxu0
    %v232 = vadd.f32 %v145, %v231
    %233 = vmatprep.mubr.f32.mxu0 0.0
    %234 = vmatmul.mubr.f32.gmra.mxu0 %v158
    %v235 = vpop.f32.mrf.mxu0
    %v236 = vadd.f32 %v141, %v235
    %v237 = vpop.f32.mrf.mxu0
    %v238 = vadd.f32 %v145, %v237
    %239 = vmatprep.mubr.f32.mxu0 0.0
    %240 = vmatmul.mubr.f32.gmra.mxu0 %v161
    %v241 = vpop.f32.mrf.mxu0
    %v242 = vadd.f32 %v141, %v241
    %v243 = vpop.f32.mrf.mxu0
    %v244 = vadd.f32 %v145, %v243
    %245 = vdwg.mxu0
    %246 = vmatprep.subr.mxu0 0.0
    %247 = vmatpush1.msra.mxu0 0.0
    %248 = vmatprep.subr.mxu0 0.0
    %249 = vmatpush1.msra.mxu0 0.0
    %250 = vmatprep.subr.mxu0 0.0
    %251 = vmatpush1.msra.mxu0 0.0
    %252 = vmatprep.subr.mxu0 0.0
    %253 = vmatpush1.msra.mxu0 0.0
    %254 = vmatprep.subr.mxu0 0.0
    %255 = vmatpush1.msra.mxu0 0.0
    %256 = vmatprep.subr.mxu0 0.0
    %257 = vmatpush1.msra.mxu0 0.0
    %258 = vmatprep.subr.mxu0 0.0
    %259 = vmatpush1.msra.mxu0 0.0
    %260 = vmatprep.subr.mxu0 0.0
    %261 = vmatpush1.msra.mxu0 0.0
    %262 = vmatprep.subr.mxu0 0.0
    %263 = vmatpush1.msra.mxu0 0.0
    %264 = vmatprep.subr.mxu0 0.0
    %265 = vmatpush1.msra.mxu0 %v135
    %266 = vmatprep.subr.mxu0 0.0
    %267 = vmatpush1.msra.mxu0 %v132
    %268 = vmatprep.subr.mxu0 0.0
    %269 = vmatpush1.msra.mxu0 %v129
    %270 = vmatprep.subr.mxu0 0.0
    %271 = vmatpush1.msra.mxu0 %v126
    %272 = vmatprep.subr.mxu0 0.0
    %273 = vmatpush1.msra.mxu0 %v123
    %274 = vmatprep.subr.mxu0 0.0
    %275 = vmatpush1.msra.mxu0 %v120
    %276 = vmatprep.subr.mxu0 0.0
    %277 = vmatpush1.msra.mxu0 %v117
    %278 = vmatprep.subr.mxu0 0.0
    %279 = vmatpush2.msra.mxu0 0.0
    %280 = vmatprep.subr.mxu0 0.0
    %281 = vmatpush2.msra.mxu0 0.0
    %282 = vmatprep.subr.mxu0 0.0
    %283 = vmatpush2.msra.mxu0 0.0
    %284 = vmatprep.subr.mxu0 0.0
    %285 = vmatpush2.msra.mxu0 0.0
    %286 = vmatprep.subr.mxu0 0.0
    %287 = vmatpush2.msra.mxu0 0.0
    %288 = vmatprep.subr.mxu0 0.0
    %289 = vmatpush2.msra.mxu0 0.0
    %290 = vmatprep.subr.mxu0 0.0
    %291 = vmatpush2.msra.mxu0 0.0
    %292 = vmatprep.subr.mxu0 0.0
    %293 = vmatpush2.msra.mxu0 0.0
    %294 = vmatprep.subr.mxu0 0.0
    %295 = vmatpush2.msra.mxu0 0.0
    %296 = vmatprep.subr.mxu0 0.0
    %297 = vmatpush2.msra.mxu0 0.0
    %298 = vmatprep.subr.mxu0 0.0
    %299 = vmatpush2.msra.mxu0 0.0
    %300 = vmatprep.subr.mxu0 0.0
    %301 = vmatpush2.msra.mxu0 0.0
    %302 = vmatprep.subr.mxu0 0.0
    %303 = vmatpush2.msra.mxu0 0.0
    %304 = vmatprep.subr.mxu0 0.0
    %305 = vmatpush2.msra.mxu0 0.0
    %306 = vmatprep.subr.mxu0 0.0
    %307 = vmatpush2.msra.mxu0 0.0
    %308 = vmatprep.subr.mxu0 0.0
    %309 = vmatpush2.msra.mxu0 0.0
    %310 = vmatprep.mubr.f32.mxu0 0.0
    %311 = vmatmul.mubr.f32.gmra.mxu0 %v155
    %v312 = vpop.f32.mrf.mxu0
    %v313 = vadd.f32 %v149, %v312
    %v314 = vpop.f32.mrf.mxu0
    %315 = vmatprep.mubr.f32.mxu0 0.0
    %316 = vmatmul.mubr.f32.gmra.mxu0 %v158
    %v317 = vpop.f32.mrf.mxu0
    %v318 = vadd.f32 %v149, %v317
    %v319 = vpop.f32.mrf.mxu0
    %320 = vmatprep.mubr.f32.mxu0 0.0
    %321 = vmatmul.mubr.f32.gmra.mxu0 %v161
    %v322 = vpop.f32.mrf.mxu0
    %v323 = vadd.f32 %v149, %v322
    %v324 = vpop.f32.mrf.mxu0
    %325 = vdwg.mxu0
    %v329 = vcombine.low %v230, %v232
    %v331 = vunpack.c.l.s4 1983009808
    %v332 = vunpack.c.0.s8 %v331
    %v333 = vlaneseq
    %v334 = vshrl.u32 %v333, 7
    %v335 = vsub.s32 %v332, %v334
    %v336 = vrot.slane %v329, %v335
    %v338 = vunpack.c.l.s4 1983009808
    %v339 = vunpack.c.0.s8 %v338
    %v340 = vlaneseq
    %v341 = vshrl.u32 %v340, 7
    %v342 = vsub.s32 %v339, %v341
    %v343 = vrot.slane %v313, %v342
    %v344 = vcombine.low %v336, %v343
    %346 = vst [vmem:[#allocation2] sm:$0x3f] %v344
    %v347 = vcombine.high %v336, %v343
    %s349 = scalar_lea.vmem [#allocation2], 6
    %350 = vst [vmem:[%s349] sm:$0x3f] %v347
    %v351 = vcombine.high %v230, %v232
    %v352 = vcombine.high %v313, %v313
    %v354 = vunpack.c.l.s4 1983009808
    %v355 = vunpack.c.0.s8 %v354
    %v356 = vlaneseq
    %v357 = vshrl.u32 %v356, 7
    %v358 = vsub.s32 %v355, %v357
    %v359 = vrot.slane %v351, %v358
    %v361 = vunpack.c.l.s4 1983009808
    %v362 = vunpack.c.0.s8 %v361
    %v363 = vlaneseq
    %v364 = vshrl.u32 %v363, 7
    %v365 = vsub.s32 %v362, %v364
    %v366 = vrot.slane %v352, %v365
    %v367 = vcombine.low %v359, %v366
    %s369 = scalar_lea.vmem [#allocation2], 12
    %370 = vst [vmem:[%s369] sm:$0x3f] %v367
    %v371 = vcombine.high %v359, %v366
    %s373 = scalar_lea.vmem [#allocation2], 18
    %374 = vst [vmem:[%s373] sm:$0x3f] %v371
    %v378 = vcombine.low %v236, %v238
    %v380 = vunpack.c.l.s4 1983009808
    %v381 = vunpack.c.0.s8 %v380
    %v382 = vlaneseq
    %v383 = vshrl.u32 %v382, 7
    %v384 = vsub.s32 %v381, %v383
    %v385 = vrot.slane %v378, %v384
    %v387 = vunpack.c.l.s4 1983009808
    %v388 = vunpack.c.0.s8 %v387
    %v389 = vlaneseq
    %v390 = vshrl.u32 %v389, 7
    %v391 = vsub.s32 %v388, %v390
    %v392 = vrot.slane %v318, %v391
    %v393 = vcombine.low %v385, %v392
    %s395 = scalar_lea.vmem [#allocation2], 24
    %396 = vst [vmem:[%s395] sm:$0x3f] %v393
    %v397 = vcombine.high %v385, %v392
    %s399 = scalar_lea.vmem [#allocation2], 30
    %400 = vst [vmem:[%s399] sm:$0x3f] %v397
    %v401 = vcombine.high %v236, %v238
    %v402 = vcombine.high %v318, %v318
    %v404 = vunpack.c.l.s4 1983009808
    %v405 = vunpack.c.0.s8 %v404
    %v406 = vlaneseq
    %v407 = vshrl.u32 %v406, 7
    %v408 = vsub.s32 %v405, %v407
    %v409 = vrot.slane %v401, %v408
    %v411 = vunpack.c.l.s4 1983009808
    %v412 = vunpack.c.0.s8 %v411
    %v413 = vlaneseq
    %v414 = vshrl.u32 %v413, 7
    %v415 = vsub.s32 %v412, %v414
    %v416 = vrot.slane %v402, %v415
    %v417 = vcombine.low %v409, %v416
    %s419 = scalar_lea.vmem [#allocation2], 36
    %420 = vst [vmem:[%s419] sm:$0x3f] %v417
    %v421 = vcombine.high %v409, %v416
    %s423 = scalar_lea.vmem [#allocation2], 42
    %424 = vst [vmem:[%s423] sm:$0x3f] %v421
    %v428 = vcombine.low %v242, %v244
    %v430 = vunpack.c.l.s4 1983009808
    %v431 = vunpack.c.0.s8 %v430
    %v432 = vlaneseq
    %v433 = vshrl.u32 %v432, 7
    %v434 = vsub.s32 %v431, %v433
    %v435 = vrot.slane %v428, %v434
    %v437 = vunpack.c.l.s4 1983009808
    %v438 = vunpack.c.0.s8 %v437
    %v439 = vlaneseq
    %v440 = vshrl.u32 %v439, 7
    %v441 = vsub.s32 %v438, %v440
    %v442 = vrot.slane %v323, %v441
    %v443 = vcombine.low %v435, %v442
    %s445 = scalar_lea.vmem [#allocation2], 48
    %446 = vst [vmem:[%s445] sm:$0x3f] %v443
    %v447 = vcombine.high %v435, %v442
    %s449 = scalar_lea.vmem [#allocation2], 54
    %450 = vst [vmem:[%s449] sm:$0x3f] %v447
    %v451 = vld [vmem:[%s8] sm:$0xff]
    %v452 = vld [vmem:[%s8 + $0x8] sm:$0xff]
    %v453 = vld [vmem:[%s8 + $0x10] sm:$0xff]
    %v454 = vld [vmem:[%s8 + $0x18] sm:$0xff]
    %v455 = vld [vmem:[%s8 + $0x20] sm:$0xff]
    %v456 = vld [vmem:[%s8 + $0x28] sm:$0xff]
    %v457 = vld [vmem:[%s8 + $0x30] sm:$0xff]
    %v458 = vld [vmem:[%s8 + $0x38] sm:$0xff]
    %v459 = vld [vmem:[%s8 + $0x40] sm:$0xff]
    %v460 = vld [vmem:[%s8 + $0x48] sm:$0xff]
    %v461 = vld [vmem:[%s8 + $0x50] sm:$0xff]
    %v462 = vld [vmem:[%s8 + $0x58] sm:$0xff]
    %v463 = vld [vmem:[%s8 + $0x60] sm:$0xff]
    %v464 = vld [vmem:[%s8 + $0x68] sm:$0xff]
    %v465 = vld [vmem:[%s8 + $0x70] sm:$0xff]
    %v466 = vld [vmem:[%s8 + $0x78] sm:$0xff]
    %v467 = vld [vmem:[%s8 + $0x80] sm:$0xff]
    %v468 = vld [vmem:[%s8 + $0x88] sm:$0xff]
    %v469 = vld [vmem:[%s8 + $0x90] sm:$0xff]
    %v470 = vld [vmem:[%s8 + $0x98] sm:$0xff]
    %v471 = vld [vmem:[%s8 + $0xa0] sm:$0xff]
    %v472 = vld [vmem:[%s8 + $0xa8] sm:$0xff]
    %v473 = vld [vmem:[%s8 + $0xb0] sm:$0xff]
    %v474 = vld [vmem:[%s8 + $0xb8] sm:$0xff]
    %v475 = vld [vmem:[%s8 + $0xc0] sm:$0xff]
    %v476 = vld [vmem:[%s8 + $0xc8] sm:$0xff]
    %v477 = vld [vmem:[%s8 + $0xd0] sm:$0xff]
    %v478 = vld [vmem:[%s8 + $0xd8] sm:$0xff]
    %v479 = vld [vmem:[%s8 + $0xe0] sm:$0xff]
    %v480 = vld [vmem:[%s8 + $0xe8] sm:$0xff]
    %v481 = vld [vmem:[%s8 + $0xf0] sm:$0xff]
    %v482 = vld [vmem:[%s8 + $0xf8] sm:$0xff]
    %v483 = vld [vmem:[%s8 + $0x100] sm:$0xff]
    %v484 = vld [vmem:[%s8 + $0x108] sm:$0xff]
    %v485 = vld [vmem:[%s8 + $0x110] sm:$0xff]
    %v486 = vld [vmem:[%s8 + $0x118] sm:$0xff]
    %v487 = vld [vmem:[%s8 + $0x120] sm:$0xff]
    %v488 = vld [vmem:[%s8 + $0x128] sm:$0xff]
    %v489 = vld [vmem:[%s8 + $0x130] sm:$0xff]
    %v490 = vld [vmem:[%s8 + $0x138] sm:$0xff]
    %v491 = vld [vmem:[%s8 + $0x140] sm:$0xff]
    %v492 = vld [vmem:[%s8 + $0x148] sm:$0xff]
    %v493 = vld [vmem:[%s8 + $0x150] sm:$0xff]
    %v494 = vld [vmem:[%s8 + $0x158] sm:$0xff]
    %v495 = vld [vmem:[%s8 + $0x160] sm:$0xff]
    %v496 = vld [vmem:[%s8 + $0x168] sm:$0xff]
    %v497 = vld [vmem:[%s8 + $0x170] sm:$0xff]
    %v498 = vld [vmem:[%s8 + $0x178] sm:$0xff]
    %v499 = vld [vmem:[%s9] sm:$0x1]
    %v501 = vlaneseq
    %v502 = vshrl.u32 %v501, 7
    %v503 = vsub.s32 0, %v502
    %v504 = vrot.slane %v499, %v503
    %506 = vmatprep.subr.mxu0 %v497
    %507 = vmatpush1.msra.mxu0 %v496
    %508 = vmatprep.subr.mxu0 %v494
    %509 = vmatpush1.msra.mxu0 %v493
    %510 = vmatprep.subr.mxu0 %v491
    %511 = vmatpush1.msra.mxu0 %v490
    %512 = vmatprep.subr.mxu0 %v488
    %513 = vmatpush1.msra.mxu0 %v487
    %514 = vmatprep.subr.mxu0 %v485
    %515 = vmatpush1.msra.mxu0 %v484
    %516 = vmatprep.subr.mxu0 %v482
    %517 = vmatpush1.msra.mxu0 %v481
    %518 = vmatprep.subr.mxu0 %v479
    %519 = vmatpush1.msra.mxu0 %v478
    %520 = vmatprep.subr.mxu0 %v476
    %521 = vmatpush1.msra.mxu0 %v475
    %522 = vmatprep.subr.mxu0 %v473
    %523 = vmatpush1.msra.mxu0 %v472
    %524 = vmatprep.subr.mxu0 %v470
    %525 = vmatpush1.msra.mxu0 %v469
    %526 = vmatprep.subr.mxu0 %v467
    %527 = vmatpush1.msra.mxu0 %v466
    %528 = vmatprep.subr.mxu0 %v464
    %529 = vmatpush1.msra.mxu0 %v463
    %530 = vmatprep.subr.mxu0 %v461
    %531 = vmatpush1.msra.mxu0 %v460
    %532 = vmatprep.subr.mxu0 %v458
    %533 = vmatpush1.msra.mxu0 %v457
    %534 = vmatprep.subr.mxu0 %v455
    %535 = vmatpush1.msra.mxu0 %v454
    %536 = vmatprep.subr.mxu0 %v452
    %537 = vmatpush1.msra.mxu0 %v451
    %538 = vmatprep.subr.mxu0 0.0
    %539 = vmatpush2.msra.mxu0 0.0
    %540 = vmatprep.subr.mxu0 0.0
    %541 = vmatpush2.msra.mxu0 0.0
    %542 = vmatprep.subr.mxu0 0.0
    %543 = vmatpush2.msra.mxu0 0.0
    %544 = vmatprep.subr.mxu0 0.0
    %545 = vmatpush2.msra.mxu0 0.0
    %546 = vmatprep.subr.mxu0 0.0
    %547 = vmatpush2.msra.mxu0 0.0
    %548 = vmatprep.subr.mxu0 0.0
    %549 = vmatpush2.msra.mxu0 0.0
    %550 = vmatprep.subr.mxu0 0.0
    %551 = vmatpush2.msra.mxu0 0.0
    %552 = vmatprep.subr.mxu0 0.0
    %553 = vmatpush2.msra.mxu0 0.0
    %554 = vmatprep.subr.mxu0 0.0
    %555 = vmatpush2.msra.mxu0 0.0
    %556 = vmatprep.subr.mxu0 0.0
    %557 = vmatpush2.msra.mxu0 0.0
    %558 = vmatprep.subr.mxu0 0.0
    %559 = vmatpush2.msra.mxu0 0.0
    %560 = vmatprep.subr.mxu0 0.0
    %561 = vmatpush2.msra.mxu0 0.0
    %562 = vmatprep.subr.mxu0 0.0
    %563 = vmatpush2.msra.mxu0 0.0
    %564 = vmatprep.subr.mxu0 0.0
    %565 = vmatpush2.msra.mxu0 0.0
    %566 = vmatprep.subr.mxu0 0.0
    %567 = vmatpush2.msra.mxu0 0.0
    %568 = vmatprep.subr.mxu0 0.0
    %569 = vmatpush2.msra.mxu0 0.0
    %570 = vmatprep.mubr.f32.mxu0 0.0
    %571 = vmatmul.mubr.f32.gmra.mxu0 0.0
    %v572 = vpop.f32.mrf.mxu0
    %v573 = vadd.f32 0.0, %v572
    %v574 = vpop.f32.mrf.mxu0
    %v575 = vadd.f32 0.0, %v574
    %576 = vdwg.mxu0
    %577 = vmatprep.subr.mxu0 0.0
    %578 = vmatpush1.msra.mxu0 %v498
    %579 = vmatprep.subr.mxu0 0.0
    %580 = vmatpush1.msra.mxu0 %v495
    %581 = vmatprep.subr.mxu0 0.0
    %582 = vmatpush1.msra.mxu0 %v492
    %583 = vmatprep.subr.mxu0 0.0
    %584 = vmatpush1.msra.mxu0 %v489
    %585 = vmatprep.subr.mxu0 0.0
    %586 = vmatpush1.msra.mxu0 %v486
    %587 = vmatprep.subr.mxu0 0.0
    %588 = vmatpush1.msra.mxu0 %v483
    %589 = vmatprep.subr.mxu0 0.0
    %590 = vmatpush1.msra.mxu0 %v480
    %591 = vmatprep.subr.mxu0 0.0
    %592 = vmatpush1.msra.mxu0 %v477
    %593 = vmatprep.subr.mxu0 0.0
    %594 = vmatpush1.msra.mxu0 %v474
    %595 = vmatprep.subr.mxu0 0.0
    %596 = vmatpush1.msra.mxu0 %v471
    %597 = vmatprep.subr.mxu0 0.0
    %598 = vmatpush1.msra.mxu0 %v468
    %599 = vmatprep.subr.mxu0 0.0
    %600 = vmatpush1.msra.mxu0 %v465
    %601 = vmatprep.subr.mxu0 0.0
    %602 = vmatpush1.msra.mxu0 %v462
    %603 = vmatprep.subr.mxu0 0.0
    %604 = vmatpush1.msra.mxu0 %v459
    %605 = vmatprep.subr.mxu0 0.0
    %606 = vmatpush1.msra.mxu0 %v456
    %607 = vmatprep.subr.mxu0 0.0
    %608 = vmatpush1.msra.mxu0 %v453
    %609 = vmatprep.subr.mxu0 0.0
    %610 = vmatpush2.msra.mxu0 0.0
    %611 = vmatprep.subr.mxu0 0.0
    %612 = vmatpush2.msra.mxu0 0.0
    %613 = vmatprep.subr.mxu0 0.0
    %614 = vmatpush2.msra.mxu0 0.0
    %615 = vmatprep.subr.mxu0 0.0
    %616 = vmatpush2.msra.mxu0 0.0
    %617 = vmatprep.subr.mxu0 0.0
    %618 = vmatpush2.msra.mxu0 0.0
    %619 = vmatprep.subr.mxu0 0.0
    %620 = vmatpush2.msra.mxu0 0.0
    %621 = vmatprep.subr.mxu0 0.0
    %622 = vmatpush2.msra.mxu0 0.0
    %623 = vmatprep.subr.mxu0 0.0
    %624 = vmatpush2.msra.mxu0 0.0
    %625 = vmatprep.subr.mxu0 0.0
    %626 = vmatpush2.msra.mxu0 0.0
    %627 = vmatprep.subr.mxu0 0.0
    %628 = vmatpush2.msra.mxu0 0.0
    %629 = vmatprep.subr.mxu0 0.0
    %630 = vmatpush2.msra.mxu0 0.0
    %631 = vmatprep.subr.mxu0 0.0
    %632 = vmatpush2.msra.mxu0 0.0
    %633 = vmatprep.subr.mxu0 0.0
    %634 = vmatpush2.msra.mxu0 0.0
    %635 = vmatprep.subr.mxu0 0.0
    %636 = vmatpush2.msra.mxu0 0.0
    %637 = vmatprep.subr.mxu0 0.0
    %638 = vmatpush2.msra.mxu0 0.0
    %639 = vmatprep.subr.mxu0 0.0
    %640 = vmatpush2.msra.mxu0 0.0
    %641 = vmatprep.mubr.f32.mxu0 0.0
    %642 = vmatmul.mubr.f32.gmra.mxu0 0.0
    %v643 = vpop.f32.mrf.mxu0
    %v644 = vadd.f32 0.0, %v643
    %v645 = vpop.f32.mrf.mxu0
    %646 = vdwg.mxu0
    %v647 = vld [vmem:[#allocation2] sm:$0x3f]
    %v648 = vld [vmem:[#allocation7] sm:$0x3]
    %v649 = vadd.f32 %v647, %v573
    %v650 = vxor.u32 %v649, 2147483648
    %v651 = vmul.f32 %v650, 1.442695
    %v652 = vpow.pop %v651
    %v653 = vadd.f32 %v652, 1.0
    %v654 = vrcp.pop %v653
    %v655 = vmul.f32 1.0, %v654
    %v657 = vrot.slane %v647, 2
    %v659 = vadd.f32 %v657, %v575
    %v660 = vxor.u32 %v659, 2147483648
    %v661 = vmul.f32 %v660, 1.442695
    %v662 = vpow.pop %v661
    %v663 = vadd.f32 %v662, 1.0
    %v664 = vrcp.pop %v663
    %v665 = vmul.f32 1.0, %v664
    %v666 = vadd.f32 %v644, %v504
    %v667 = vmul.f32 %v655, %v666
    %v668 = vrot.slane %v647, 4
    %v670 = vadd.f32 %v668, %v667
    %v671 = vtanh.pop %v670
    %v672 = vsub.f32 1.0, %v665
    %v673 = vmul.f32 %v672, %v671
    %v674 = vmul.f32 %v665, 0.0
    %v675 = vadd.f32 %v673, %v674
    %v676 = vmul.f32 %v648, %v675
    %v677 = vsub.f32 1.0, %v648
    %v678 = vmul.f32 %v677, 0.0
    %v679 = vadd.f32 %v676, %v678
    %v680 = vmul.f32 %v648, %v679
    %vm681 = vcmask 254976
    %682 = vst.msk [vmem:[#allocation3] sm:$0x3] %vm681, %v680
    %s683 = scalar_lea.vmem [#allocation3], 18
    %vm684 = vcmask 517376
    %685 = vst.msk [vmem:[%s683] sm:$0x3] %vm684, %v680
    %687 = vrot.lane.b32.xlu0 %v680, 64
    %v688 = vpop.permute.xlu0 %687
    %690 = vst.msk [vmem:[#allocation4] sm:$0x3] %vm681, %v688
    %s691 = scalar_lea.vmem [#allocation4], 14
    %692 = vst.msk [vmem:[%s691] sm:$0x3] %vm684, %v688
    %693 = vmatprep.subr.mxu0 %v497
    %694 = vmatpush1.msra.mxu0 %v496
    %695 = vmatprep.subr.mxu0 %v494
    %696 = vmatpush1.msra.mxu0 %v493
    %697 = vmatprep.subr.mxu0 %v491
    %698 = vmatpush1.msra.mxu0 %v490
    %699 = vmatprep.subr.mxu0 %v488
    %700 = vmatpush1.msra.mxu0 %v487
    %701 = vmatprep.subr.mxu0 %v485
    %702 = vmatpush1.msra.mxu0 %v484
    %703 = vmatprep.subr.mxu0 %v482
    %704 = vmatpush1.msra.mxu0 %v481
    %705 = vmatprep.subr.mxu0 %v479
    %706 = vmatpush1.msra.mxu0 %v478
    %707 = vmatprep.subr.mxu0 %v476
    %708 = vmatpush1.msra.mxu0 %v475
    %709 = vmatprep.subr.mxu0 %v473
    %710 = vmatpush1.msra.mxu0 %v472
    %711 = vmatprep.subr.mxu0 %v470
    %712 = vmatpush1.msra.mxu0 %v469
    %713 = vmatprep.subr.mxu0 %v467
    %714 = vmatpush1.msra.mxu0 %v466
    %715 = vmatprep.subr.mxu0 %v464
    %716 = vmatpush1.msra.mxu0 %v463
    %717 = vmatprep.subr.mxu0 %v461
    %718 = vmatpush1.msra.mxu0 %v460
    %719 = vmatprep.subr.mxu0 %v458
    %720 = vmatpush1.msra.mxu0 %v457
    %721 = vmatprep.subr.mxu0 %v455
    %722 = vmatpush1.msra.mxu0 %v454
    %723 = vmatprep.subr.mxu0 %v452
    %724 = vmatpush1.msra.mxu0 %v451
    %725 = vmatprep.subr.mxu0 0.0
    %726 = vmatpush2.msra.mxu0 0.0
    %727 = vmatprep.subr.mxu0 0.0
    %728 = vmatpush2.msra.mxu0 0.0
    %729 = vmatprep.subr.mxu0 0.0
    %730 = vmatpush2.msra.mxu0 0.0
    %731 = vmatprep.subr.mxu0 0.0
    %732 = vmatpush2.msra.mxu0 0.0
    %733 = vmatprep.subr.mxu0 0.0
    %734 = vmatpush2.msra.mxu0 0.0
    %735 = vmatprep.subr.mxu0 0.0
    %736 = vmatpush2.msra.mxu0 0.0
    %737 = vmatprep.subr.mxu0 0.0
    %738 = vmatpush2.msra.mxu0 0.0
    %739 = vmatprep.subr.mxu0 0.0
    %740 = vmatpush2.msra.mxu0 0.0
    %741 = vmatprep.subr.mxu0 0.0
    %742 = vmatpush2.msra.mxu0 0.0
    %743 = vmatprep.subr.mxu0 0.0
    %744 = vmatpush2.msra.mxu0 0.0
    %745 = vmatprep.subr.mxu0 0.0
    %746 = vmatpush2.msra.mxu0 0.0
    %747 = vmatprep.subr.mxu0 0.0
    %748 = vmatpush2.msra.mxu0 0.0
    %749 = vmatprep.subr.mxu0 0.0
    %750 = vmatpush2.msra.mxu0 0.0
    %751 = vmatprep.subr.mxu0 0.0
    %752 = vmatpush2.msra.mxu0 0.0
    %753 = vmatprep.subr.mxu0 0.0
    %754 = vmatpush2.msra.mxu0 0.0
    %755 = vmatprep.subr.mxu0 0.0
    %756 = vmatpush2.msra.mxu0 0.0
    %757 = vmatprep.mubr.f32.mxu0 0.0
    %758 = vmatmul.mubr.f32.gmra.mxu0 %v679
    %v759 = vpop.f32.mrf.mxu0
    %v760 = vadd.f32 0.0, %v759
    %v761 = vpop.f32.mrf.mxu0
    %v762 = vadd.f32 0.0, %v761
    %763 = vdwg.mxu0
    %764 = vmatprep.subr.mxu0 0.0
    %765 = vmatpush1.msra.mxu0 %v498
    %766 = vmatprep.subr.mxu0 0.0
    %767 = vmatpush1.msra.mxu0 %v495
    %768 = vmatprep.subr.mxu0 0.0
    %769 = vmatpush1.msra.mxu0 %v492
    %770 = vmatprep.subr.mxu0 0.0
    %771 = vmatpush1.msra.mxu0 %v489
    %772 = vmatprep.subr.mxu0 0.0
    %773 = vmatpush1.msra.mxu0 %v486
    %774 = vmatprep.subr.mxu0 0.0
    %775 = vmatpush1.msra.mxu0 %v483
    %776 = vmatprep.subr.mxu0 0.0
    %777 = vmatpush1.msra.mxu0 %v480
    %778 = vmatprep.subr.mxu0 0.0
    %779 = vmatpush1.msra.mxu0 %v477
    %780 = vmatprep.subr.mxu0 0.0
    %781 = vmatpush1.msra.mxu0 %v474
    %782 = vmatprep.subr.mxu0 0.0
    %783 = vmatpush1.msra.mxu0 %v471
    %784 = vmatprep.subr.mxu0 0.0
    %785 = vmatpush1.msra.mxu0 %v468
    %786 = vmatprep.subr.mxu0 0.0
    %787 = vmatpush1.msra.mxu0 %v465
    %788 = vmatprep.subr.mxu0 0.0
    %789 = vmatpush1.msra.mxu0 %v462
    %790 = vmatprep.subr.mxu0 0.0
    %791 = vmatpush1.msra.mxu0 %v459
    %792 = vmatprep.subr.mxu0 0.0
    %793 = vmatpush1.msra.mxu0 %v456
    %794 = vmatprep.subr.mxu0 0.0
    %795 = vmatpush1.msra.mxu0 %v453
    %796 = vmatprep.subr.mxu0 0.0
    %797 = vmatpush2.msra.mxu0 0.0
    %798 = vmatprep.subr.mxu0 0.0
    %799 = vmatpush2.msra.mxu0 0.0
    %800 = vmatprep.subr.mxu0 0.0
    %801 = vmatpush2.msra.mxu0 0.0
    %802 = vmatprep.subr.mxu0 0.0
    %803 = vmatpush2.msra.mxu0 0.0
    %804 = vmatprep.subr.mxu0 0.0
    %805 = vmatpush2.msra.mxu0 0.0
    %806 = vmatprep.subr.mxu0 0.0
    %807 = vmatpush2.msra.mxu0 0.0
    %808 = vmatprep.subr.mxu0 0.0
    %809 = vmatpush2.msra.mxu0 0.0
    %810 = vmatprep.subr.mxu0 0.0
    %811 = vmatpush2.msra.mxu0 0.0
    %812 = vmatprep.subr.mxu0 0.0
    %813 = vmatpush2.msra.mxu0 0.0
    %814 = vmatprep.subr.mxu0 0.0
    %815 = vmatpush2.msra.mxu0 0.0
    %816 = vmatprep.subr.mxu0 0.0
    %817 = vmatpush2.msra.mxu0 0.0
    %818 = vmatprep.subr.mxu0 0.0
    %819 = vmatpush2.msra.mxu0 0.0
    %820 = vmatprep.subr.mxu0 0.0
    %821 = vmatpush2.msra.mxu0 0.0
    %822 = vmatprep.subr.mxu0 0.0
    %823 = vmatpush2.msra.mxu0 0.0
    %824 = vmatprep.subr.mxu0 0.0
    %825 = vmatpush2.msra.mxu0 0.0
    %826 = vmatprep.subr.mxu0 0.0
    %827 = vmatpush2.msra.mxu0 0.0
    %828 = vmatprep.mubr.f32.mxu0 0.0
    %829 = vmatmul.mubr.f32.gmra.mxu0 %v679
    %v830 = vpop.f32.mrf.mxu0
    %v831 = vadd.f32 0.0, %v830
    %v832 = vpop.f32.mrf.mxu0
    %833 = vdwg.mxu0
    %v834 = vld [vmem:[%s349] sm:$0x3f]
    %s835 = scalar_lea.vmem [#allocation7], 2
    %v836 = vld [vmem:[%s835] sm:$0x3]
    %v837 = vadd.f32 %v834, %v760
    %v838 = vxor.u32 %v837, 2147483648
    %v839 = vmul.f32 %v838, 1.442695
    %v840 = vpow.pop %v839
    %v841 = vadd.f32 %v840, 1.0
    %v842 = vrcp.pop %v841
    %v843 = vmul.f32 1.0, %v842
    %v845 = vrot.slane %v834, 2
    %v847 = vadd.f32 %v845, %v762
    %v848 = vxor.u32 %v847, 2147483648
    %v849 = vmul.f32 %v848, 1.442695
    %v850 = vpow.pop %v849
    %v851 = vadd.f32 %v850, 1.0
    %v852 = vrcp.pop %v851
    %v853 = vmul.f32 1.0, %v852
    %v854 = vadd.f32 %v831, %v504
    %v855 = vmul.f32 %v843, %v854
    %v856 = vrot.slane %v834, 4
    %v858 = vadd.f32 %v856, %v855
    %v859 = vtanh.pop %v858
    %v860 = vsub.f32 1.0, %v853
    %v861 = vmul.f32 %v860, %v859
    %v862 = vmul.f32 %v853, %v679
    %v863 = vadd.f32 %v861, %v862
    %v864 = vmul.f32 %v836, %v863
    %v865 = vsub.f32 1.0, %v836
    %v866 = vmul.f32 %v865, %v679
    %v867 = vadd.f32 %v864, %v866
    %v868 = vmul.f32 %v836, %v867
    %s869 = scalar_lea.vmem [#allocation3], 2
    %870 = vst.msk [vmem:[%s869] sm:$0x3] %vm681, %v868
    %s871 = scalar_lea.vmem [#allocation3], 16
    %872 = vst.msk [vmem:[%s871] sm:$0x3] %vm684, %v868
    %874 = vrot.lane.b32.xlu0 %v868, 64
    %v875 = vpop.permute.xlu0 %874
    %s877 = scalar_lea.vmem [#allocation4], 2
    %878 = vst.msk [vmem:[%s877] sm:$0x3] %vm681, %v875
    %s879 = scalar_lea.vmem [#allocation4], 12
    %880 = vst.msk [vmem:[%s879] sm:$0x3] %vm684, %v875
    %881 = vmatprep.subr.mxu0 %v497
    %882 = vmatpush1.msra.mxu0 %v496
    %883 = vmatprep.subr.mxu0 %v494
    %884 = vmatpush1.msra.mxu0 %v493
    %885 = vmatprep.subr.mxu0 %v491
    %886 = vmatpush1.msra.mxu0 %v490
    %887 = vmatprep.subr.mxu0 %v488
    %888 = vmatpush1.msra.mxu0 %v487
    %889 = vmatprep.subr.mxu0 %v485
    %890 = vmatpush1.msra.mxu0 %v484
    %891 = vmatprep.subr.mxu0 %v482
    %892 = vmatpush1.msra.mxu0 %v481
    %893 = vmatprep.subr.mxu0 %v479
    %894 = vmatpush1.msra.mxu0 %v478
    %895 = vmatprep.subr.mxu0 %v476
    %896 = vmatpush1.msra.mxu0 %v475
    %897 = vmatprep.subr.mxu0 %v473
    %898 = vmatpush1.msra.mxu0 %v472
    %899 = vmatprep.subr.mxu0 %v470
    %900 = vmatpush1.msra.mxu0 %v469
    %901 = vmatprep.subr.mxu0 %v467
    %902 = vmatpush1.msra.mxu0 %v466
    %903 = vmatprep.subr.mxu0 %v464
    %904 = vmatpush1.msra.mxu0 %v463
    %905 = vmatprep.subr.mxu0 %v461
    %906 = vmatpush1.msra.mxu0 %v460
    %907 = vmatprep.subr.mxu0 %v458
    %908 = vmatpush1.msra.mxu0 %v457
    %909 = vmatprep.subr.mxu0 %v455
    %910 = vmatpush1.msra.mxu0 %v454
    %911 = vmatprep.subr.mxu0 %v452
    %912 = vmatpush1.msra.mxu0 %v451
    %913 = vmatprep.subr.mxu0 0.0
    %914 = vmatpush2.msra.mxu0 0.0
    %915 = vmatprep.subr.mxu0 0.0
    %916 = vmatpush2.msra.mxu0 0.0
    %917 = vmatprep.subr.mxu0 0.0
    %918 = vmatpush2.msra.mxu0 0.0
    %919 = vmatprep.subr.mxu0 0.0
    %920 = vmatpush2.msra.mxu0 0.0
    %921 = vmatprep.subr.mxu0 0.0
    %922 = vmatpush2.msra.mxu0 0.0
    %923 = vmatprep.subr.mxu0 0.0
    %924 = vmatpush2.msra.mxu0 0.0
    %925 = vmatprep.subr.mxu0 0.0
    %926 = vmatpush2.msra.mxu0 0.0
    %927 = vmatprep.subr.mxu0 0.0
    %928 = vmatpush2.msra.mxu0 0.0
    %929 = vmatprep.subr.mxu0 0.0
    %930 = vmatpush2.msra.mxu0 0.0
    %931 = vmatprep.subr.mxu0 0.0
    %932 = vmatpush2.msra.mxu0 0.0
    %933 = vmatprep.subr.mxu0 0.0
    %934 = vmatpush2.msra.mxu0 0.0
    %935 = vmatprep.subr.mxu0 0.0
    %936 = vmatpush2.msra.mxu0 0.0
    %937 = vmatprep.subr.mxu0 0.0
    %938 = vmatpush2.msra.mxu0 0.0
    %939 = vmatprep.subr.mxu0 0.0
    %940 = vmatpush2.msra.mxu0 0.0
    %941 = vmatprep.subr.mxu0 0.0
    %942 = vmatpush2.msra.mxu0 0.0
    %943 = vmatprep.subr.mxu0 0.0
    %944 = vmatpush2.msra.mxu0 0.0
    %945 = vmatprep.mubr.f32.mxu0 0.0
    %946 = vmatmul.mubr.f32.gmra.mxu0 %v867
    %v947 = vpop.f32.mrf.mxu0
    %v948 = vadd.f32 0.0, %v947
    %v949 = vpop.f32.mrf.mxu0
    %v950 = vadd.f32 0.0, %v949
    %951 = vdwg.mxu0
    %952 = vmatprep.subr.mxu0 0.0
    %953 = vmatpush1.msra.mxu0 %v498
    %954 = vmatprep.subr.mxu0 0.0
    %955 = vmatpush1.msra.mxu0 %v495
    %956 = vmatprep.subr.mxu0 0.0
    %957 = vmatpush1.msra.mxu0 %v492
    %958 = vmatprep.subr.mxu0 0.0
    %959 = vmatpush1.msra.mxu0 %v489
    %960 = vmatprep.subr.mxu0 0.0
    %961 = vmatpush1.msra.mxu0 %v486
    %962 = vmatprep.subr.mxu0 0.0
    %963 = vmatpush1.msra.mxu0 %v483
    %964 = vmatprep.subr.mxu0 0.0
    %965 = vmatpush1.msra.mxu0 %v480
    %966 = vmatprep.subr.mxu0 0.0
    %967 = vmatpush1.msra.mxu0 %v477
    %968 = vmatprep.subr.mxu0 0.0
    %969 = vmatpush1.msra.mxu0 %v474
    %970 = vmatprep.subr.mxu0 0.0
    %971 = vmatpush1.msra.mxu0 %v471
    %972 = vmatprep.subr.mxu0 0.0
    %973 = vmatpush1.msra.mxu0 %v468
    %974 = vmatprep.subr.mxu0 0.0
    %975 = vmatpush1.msra.mxu0 %v465
    %976 = vmatprep.subr.mxu0 0.0
    %977 = vmatpush1.msra.mxu0 %v462
    %978 = vmatprep.subr.mxu0 0.0
    %979 = vmatpush1.msra.mxu0 %v459
    %980 = vmatprep.subr.mxu0 0.0
    %981 = vmatpush1.msra.mxu0 %v456
    %982 = vmatprep.subr.mxu0 0.0
    %983 = vmatpush1.msra.mxu0 %v453
    %984 = vmatprep.subr.mxu0 0.0
    %985 = vmatpush2.msra.mxu0 0.0
    %986 = vmatprep.subr.mxu0 0.0
    %987 = vmatpush2.msra.mxu0 0.0
    %988 = vmatprep.subr.mxu0 0.0
    %989 = vmatpush2.msra.mxu0 0.0
    %990 = vmatprep.subr.mxu0 0.0
    %991 = vmatpush2.msra.mxu0 0.0
    %992 = vmatprep.subr.mxu0 0.0
    %993 = vmatpush2.msra.mxu0 0.0
    %994 = vmatprep.subr.mxu0 0.0
    %995 = vmatpush2.msra.mxu0 0.0
    %996 = vmatprep.subr.mxu0 0.0
    %997 = vmatpush2.msra.mxu0 0.0
    %998 = vmatprep.subr.mxu0 0.0
    %999 = vmatpush2.msra.mxu0 0.0
    %1000 = vmatprep.subr.mxu0 0.0
    %1001 = vmatpush2.msra.mxu0 0.0
    %1002 = vmatprep.subr.mxu0 0.0
    %1003 = vmatpush2.msra.mxu0 0.0
    %1004 = vmatprep.subr.mxu0 0.0
    %1005 = vmatpush2.msra.mxu0 0.0
    %1006 = vmatprep.subr.mxu0 0.0
    %1007 = vmatpush2.msra.mxu0 0.0
    %1008 = vmatprep.subr.mxu0 0.0
    %1009 = vmatpush2.msra.mxu0 0.0
    %1010 = vmatprep.subr.mxu0 0.0
    %1011 = vmatpush2.msra.mxu0 0.0
    %1012 = vmatprep.subr.mxu0 0.0
    %1013 = vmatpush2.msra.mxu0 0.0
    %1014 = vmatprep.subr.mxu0 0.0
    %1015 = vmatpush2.msra.mxu0 0.0
    %1016 = vmatprep.mubr.f32.mxu0 0.0
    %1017 = vmatmul.mubr.f32.gmra.mxu0 %v867
    %v1018 = vpop.f32.mrf.mxu0
    %v1019 = vadd.f32 0.0, %v1018
    %v1020 = vpop.f32.mrf.mxu0
    %1021 = vdwg.mxu0
    %v1022 = vld [vmem:[%s369] sm:$0x3f]
    %s1023 = scalar_lea.vmem [#allocation7], 4
    %v1024 = vld [vmem:[%s1023] sm:$0x3]
    %v1025 = vadd.f32 %v1022, %v948
    %v1026 = vxor.u32 %v1025, 2147483648
    %v1027 = vmul.f32 %v1026, 1.442695
    %v1028 = vpow.pop %v1027
    %v1029 = vadd.f32 %v1028, 1.0
    %v1030 = vrcp.pop %v1029
    %v1031 = vmul.f32 1.0, %v1030
    %v1033 = vrot.slane %v1022, 2
    %v1035 = vadd.f32 %v1033, %v950
    %v1036 = vxor.u32 %v1035, 2147483648
    %v1037 = vmul.f32 %v1036, 1.442695
    %v1038 = vpow.pop %v1037
    %v1039 = vadd.f32 %v1038, 1.0
    %v1040 = vrcp.pop %v1039
    %v1041 = vmul.f32 1.0, %v1040
    %v1042 = vadd.f32 %v1019, %v504
    %v1043 = vmul.f32 %v1031, %v1042
    %v1044 = vrot.slane %v1022, 4
    %v1046 = vadd.f32 %v1044, %v1043
    %v1047 = vtanh.pop %v1046
    %v1048 = vsub.f32 1.0, %v1041
    %v1049 = vmul.f32 %v1048, %v1047
    %v1050 = vmul.f32 %v1041, %v867
    %v1051 = vadd.f32 %v1049, %v1050
    %v1052 = vmul.f32 %v1024, %v1051
    %v1053 = vsub.f32 1.0, %v1024
    %v1054 = vmul.f32 %v1053, %v867
    %v1055 = vadd.f32 %v1052, %v1054
    %v1056 = vmul.f32 %v1024, %v1055
    %s1057 = scalar_lea.vmem [#allocation3], 4
    %1058 = vst.msk [vmem:[%s1057] sm:$0x3] %vm681, %v1056
    %s1059 = scalar_lea.vmem [#allocation3], 14
    %1060 = vst.msk [vmem:[%s1059] sm:$0x3] %vm684, %v1056
    %1062 = vrot.lane.b32.xlu0 %v1056, 64
    %v1063 = vpop.permute.xlu0 %1062
    %s1065 = scalar_lea.vmem [#allocation4], 4
    %1066 = vst.msk [vmem:[%s1065] sm:$0x3] %vm681, %v1063
    %s1067 = scalar_lea.vmem [#allocation4], 10
    %1068 = vst.msk [vmem:[%s1067] sm:$0x3] %vm684, %v1063
    %1069 = vmatprep.subr.mxu0 %v497
    %1070 = vmatpush1.msra.mxu0 %v496
    %1071 = vmatprep.subr.mxu0 %v494
    %1072 = vmatpush1.msra.mxu0 %v493
    %1073 = vmatprep.subr.mxu0 %v491
    %1074 = vmatpush1.msra.mxu0 %v490
    %1075 = vmatprep.subr.mxu0 %v488
    %1076 = vmatpush1.msra.mxu0 %v487
    %1077 = vmatprep.subr.mxu0 %v485
    %1078 = vmatpush1.msra.mxu0 %v484
    %1079 = vmatprep.subr.mxu0 %v482
    %1080 = vmatpush1.msra.mxu0 %v481
    %1081 = vmatprep.subr.mxu0 %v479
    %1082 = vmatpush1.msra.mxu0 %v478
    %1083 = vmatprep.subr.mxu0 %v476
    %1084 = vmatpush1.msra.mxu0 %v475
    %1085 = vmatprep.subr.mxu0 %v473
    %1086 = vmatpush1.msra.mxu0 %v472
    %1087 = vmatprep.subr.mxu0 %v470
    %1088 = vmatpush1.msra.mxu0 %v469
    %1089 = vmatprep.subr.mxu0 %v467
    %1090 = vmatpush1.msra.mxu0 %v466
    %1091 = vmatprep.subr.mxu0 %v464
    %1092 = vmatpush1.msra.mxu0 %v463
    %1093 = vmatprep.subr.mxu0 %v461
    %1094 = vmatpush1.msra.mxu0 %v460
    %1095 = vmatprep.subr.mxu0 %v458
    %1096 = vmatpush1.msra.mxu0 %v457
    %1097 = vmatprep.subr.mxu0 %v455
    %1098 = vmatpush1.msra.mxu0 %v454
    %1099 = vmatprep.subr.mxu0 %v452
    %1100 = vmatpush1.msra.mxu0 %v451
    %1101 = vmatprep.subr.mxu0 0.0
    %1102 = vmatpush2.msra.mxu0 0.0
    %1103 = vmatprep.subr.mxu0 0.0
    %1104 = vmatpush2.msra.mxu0 0.0
    %1105 = vmatprep.subr.mxu0 0.0
    %1106 = vmatpush2.msra.mxu0 0.0
    %1107 = vmatprep.subr.mxu0 0.0
    %1108 = vmatpush2.msra.mxu0 0.0
    %1109 = vmatprep.subr.mxu0 0.0
    %1110 = vmatpush2.msra.mxu0 0.0
    %1111 = vmatprep.subr.mxu0 0.0
    %1112 = vmatpush2.msra.mxu0 0.0
    %1113 = vmatprep.subr.mxu0 0.0
    %1114 = vmatpush2.msra.mxu0 0.0
    %1115 = vmatprep.subr.mxu0 0.0
    %1116 = vmatpush2.msra.mxu0 0.0
    %1117 = vmatprep.subr.mxu0 0.0
    %1118 = vmatpush2.msra.mxu0 0.0
    %1119 = vmatprep.subr.mxu0 0.0
    %1120 = vmatpush2.msra.mxu0 0.0
    %1121 = vmatprep.subr.mxu0 0.0
    %1122 = vmatpush2.msra.mxu0 0.0
    %1123 = vmatprep.subr.mxu0 0.0
    %1124 = vmatpush2.msra.mxu0 0.0
    %1125 = vmatprep.subr.mxu0 0.0
    %1126 = vmatpush2.msra.mxu0 0.0
    %1127 = vmatprep.subr.mxu0 0.0
    %1128 = vmatpush2.msra.mxu0 0.0
    %1129 = vmatprep.subr.mxu0 0.0
    %1130 = vmatpush2.msra.mxu0 0.0
    %1131 = vmatprep.subr.mxu0 0.0
    %1132 = vmatpush2.msra.mxu0 0.0
    %1133 = vmatprep.mubr.f32.mxu0 0.0
    %1134 = vmatmul.mubr.f32.gmra.mxu0 %v1055
    %v1135 = vpop.f32.mrf.mxu0
    %v1136 = vadd.f32 0.0, %v1135
    %v1137 = vpop.f32.mrf.mxu0
    %v1138 = vadd.f32 0.0, %v1137
    %1139 = vdwg.mxu0
    %1140 = vmatprep.subr.mxu0 0.0
    %1141 = vmatpush1.msra.mxu0 %v498
    %1142 = vmatprep.subr.mxu0 0.0
    %1143 = vmatpush1.msra.mxu0 %v495
    %1144 = vmatprep.subr.mxu0 0.0
    %1145 = vmatpush1.msra.mxu0 %v492
    %1146 = vmatprep.subr.mxu0 0.0
    %1147 = vmatpush1.msra.mxu0 %v489
    %1148 = vmatprep.subr.mxu0 0.0
    %1149 = vmatpush1.msra.mxu0 %v486
    %1150 = vmatprep.subr.mxu0 0.0
    %1151 = vmatpush1.msra.mxu0 %v483
    %1152 = vmatprep.subr.mxu0 0.0
    %1153 = vmatpush1.msra.mxu0 %v480
    %1154 = vmatprep.subr.mxu0 0.0
    %1155 = vmatpush1.msra.mxu0 %v477
    %1156 = vmatprep.subr.mxu0 0.0
    %1157 = vmatpush1.msra.mxu0 %v474
    %1158 = vmatprep.subr.mxu0 0.0
    %1159 = vmatpush1.msra.mxu0 %v471
    %1160 = vmatprep.subr.mxu0 0.0
    %1161 = vmatpush1.msra.mxu0 %v468
    %1162 = vmatprep.subr.mxu0 0.0
    %1163 = vmatpush1.msra.mxu0 %v465
    %1164 = vmatprep.subr.mxu0 0.0
    %1165 = vmatpush1.msra.mxu0 %v462
    %1166 = vmatprep.subr.mxu0 0.0
    %1167 = vmatpush1.msra.mxu0 %v459
    %1168 = vmatprep.subr.mxu0 0.0
    %1169 = vmatpush1.msra.mxu0 %v456
    %1170 = vmatprep.subr.mxu0 0.0
    %1171 = vmatpush1.msra.mxu0 %v453
    %1172 = vmatprep.subr.mxu0 0.0
    %1173 = vmatpush2.msra.mxu0 0.0
    %1174 = vmatprep.subr.mxu0 0.0
    %1175 = vmatpush2.msra.mxu0 0.0
    %1176 = vmatprep.subr.mxu0 0.0
    %1177 = vmatpush2.msra.mxu0 0.0
    %1178 = vmatprep.subr.mxu0 0.0
    %1179 = vmatpush2.msra.mxu0 0.0
    %1180 = vmatprep.subr.mxu0 0.0
    %1181 = vmatpush2.msra.mxu0 0.0
    %1182 = vmatprep.subr.mxu0 0.0
    %1183 = vmatpush2.msra.mxu0 0.0
    %1184 = vmatprep.subr.mxu0 0.0
    %1185 = vmatpush2.msra.mxu0 0.0
    %1186 = vmatprep.subr.mxu0 0.0
    %1187 = vmatpush2.msra.mxu0 0.0
    %1188 = vmatprep.subr.mxu0 0.0
    %1189 = vmatpush2.msra.mxu0 0.0
    %1190 = vmatprep.subr.mxu0 0.0
    %1191 = vmatpush2.msra.mxu0 0.0
    %1192 = vmatprep.subr.mxu0 0.0
    %1193 = vmatpush2.msra.mxu0 0.0
    %1194 = vmatprep.subr.mxu0 0.0
    %1195 = vmatpush2.msra.mxu0 0.0
    %1196 = vmatprep.subr.mxu0 0.0
    %1197 = vmatpush2.msra.mxu0 0.0
    %1198 = vmatprep.subr.mxu0 0.0
    %1199 = vmatpush2.msra.mxu0 0.0
    %1200 = vmatprep.subr.mxu0 0.0
    %1201 = vmatpush2.msra.mxu0 0.0
    %1202 = vmatprep.subr.mxu0 0.0
    %1203 = vmatpush2.msra.mxu0 0.0
    %1204 = vmatprep.mubr.f32.mxu0 0.0
    %1205 = vmatmul.mubr.f32.gmra.mxu0 %v1055
    %v1206 = vpop.f32.mrf.mxu0
    %v1207 = vadd.f32 0.0, %v1206
    %v1208 = vpop.f32.mrf.mxu0
    %1209 = vdwg.mxu0
    %v1210 = vld [vmem:[%s373] sm:$0x3f]
    %s1211 = scalar_lea.vmem [#allocation7], 6
    %v1212 = vld [vmem:[%s1211] sm:$0x3]
    %v1213 = vadd.f32 %v1210, %v1136
    %v1214 = vxor.u32 %v1213, 2147483648
    %v1215 = vmul.f32 %v1214, 1.442695
    %v1216 = vpow.pop %v1215
    %v1217 = vadd.f32 %v1216, 1.0
    %v1218 = vrcp.pop %v1217
    %v1219 = vmul.f32 1.0, %v1218
    %v1221 = vrot.slane %v1210, 2
    %v1223 = vadd.f32 %v1221, %v1138
    %v1224 = vxor.u32 %v1223, 2147483648
    %v1225 = vmul.f32 %v1224, 1.442695
    %v1226 = vpow.pop %v1225
    %v1227 = vadd.f32 %v1226, 1.0
    %v1228 = vrcp.pop %v1227
    %v1229 = vmul.f32 1.0, %v1228
    %v1230 = vadd.f32 %v1207, %v504
    %v1231 = vmul.f32 %v1219, %v1230
    %v1232 = vrot.slane %v1210, 4
    %v1234 = vadd.f32 %v1232, %v1231
    %v1235 = vtanh.pop %v1234
    %v1236 = vsub.f32 1.0, %v1229
    %v1237 = vmul.f32 %v1236, %v1235
    %v1238 = vmul.f32 %v1229, %v1055
    %v1239 = vadd.f32 %v1237, %v1238
    %v1240 = vmul.f32 %v1212, %v1239
    %v1241 = vsub.f32 1.0, %v1212
    %v1242 = vmul.f32 %v1241, %v1055
    %v1243 = vadd.f32 %v1240, %v1242
    %v1244 = vmul.f32 %v1212, %v1243
    %s1245 = scalar_lea.vmem [#allocation3], 6
    %1246 = vst.msk [vmem:[%s1245] sm:$0x3] %vm681, %v1244
    %s1247 = scalar_lea.vmem [#allocation3], 12
    %1248 = vst.msk [vmem:[%s1247] sm:$0x3] %vm684, %v1244
    %1250 = vrot.lane.b32.xlu0 %v1244, 64
    %v1251 = vpop.permute.xlu0 %1250
    %s1253 = scalar_lea.vmem [#allocation4], 6
    %1254 = vst.msk [vmem:[%s1253] sm:$0x3] %vm681, %v1251
    %s1255 = scalar_lea.vmem [#allocation4], 8
    %1256 = vst.msk [vmem:[%s1255] sm:$0x3] %vm684, %v1251
    %1257 = vmatprep.subr.mxu0 %v497
    %1258 = vmatpush1.msra.mxu0 %v496
    %1259 = vmatprep.subr.mxu0 %v494
    %1260 = vmatpush1.msra.mxu0 %v493
    %1261 = vmatprep.subr.mxu0 %v491
    %1262 = vmatpush1.msra.mxu0 %v490
    %1263 = vmatprep.subr.mxu0 %v488
    %1264 = vmatpush1.msra.mxu0 %v487
    %1265 = vmatprep.subr.mxu0 %v485
    %1266 = vmatpush1.msra.mxu0 %v484
    %1267 = vmatprep.subr.mxu0 %v482
    %1268 = vmatpush1.msra.mxu0 %v481
    %1269 = vmatprep.subr.mxu0 %v479
    %1270 = vmatpush1.msra.mxu0 %v478
    %1271 = vmatprep.subr.mxu0 %v476
    %1272 = vmatpush1.msra.mxu0 %v475
    %1273 = vmatprep.subr.mxu0 %v473
    %1274 = vmatpush1.msra.mxu0 %v472
    %1275 = vmatprep.subr.mxu0 %v470
    %1276 = vmatpush1.msra.mxu0 %v469
    %1277 = vmatprep.subr.mxu0 %v467
    %1278 = vmatpush1.msra.mxu0 %v466
    %1279 = vmatprep.subr.mxu0 %v464
    %1280 = vmatpush1.msra.mxu0 %v463
    %1281 = vmatprep.subr.mxu0 %v461
    %1282 = vmatpush1.msra.mxu0 %v460
    %1283 = vmatprep.subr.mxu0 %v458
    %1284 = vmatpush1.msra.mxu0 %v457
    %1285 = vmatprep.subr.mxu0 %v455
    %1286 = vmatpush1.msra.mxu0 %v454
    %1287 = vmatprep.subr.mxu0 %v452
    %1288 = vmatpush1.msra.mxu0 %v451
    %1289 = vmatprep.subr.mxu0 0.0
    %1290 = vmatpush2.msra.mxu0 0.0
    %1291 = vmatprep.subr.mxu0 0.0
    %1292 = vmatpush2.msra.mxu0 0.0
    %1293 = vmatprep.subr.mxu0 0.0
    %1294 = vmatpush2.msra.mxu0 0.0
    %1295 = vmatprep.subr.mxu0 0.0
    %1296 = vmatpush2.msra.mxu0 0.0
    %1297 = vmatprep.subr.mxu0 0.0
    %1298 = vmatpush2.msra.mxu0 0.0
    %1299 = vmatprep.subr.mxu0 0.0
    %1300 = vmatpush2.msra.mxu0 0.0
    %1301 = vmatprep.subr.mxu0 0.0
    %1302 = vmatpush2.msra.mxu0 0.0
    %1303 = vmatprep.subr.mxu0 0.0
    %1304 = vmatpush2.msra.mxu0 0.0
    %1305 = vmatprep.subr.mxu0 0.0
    %1306 = vmatpush2.msra.mxu0 0.0
    %1307 = vmatprep.subr.mxu0 0.0
    %1308 = vmatpush2.msra.mxu0 0.0
    %1309 = vmatprep.subr.mxu0 0.0
    %1310 = vmatpush2.msra.mxu0 0.0
    %1311 = vmatprep.subr.mxu0 0.0
    %1312 = vmatpush2.msra.mxu0 0.0
    %1313 = vmatprep.subr.mxu0 0.0
    %1314 = vmatpush2.msra.mxu0 0.0
    %1315 = vmatprep.subr.mxu0 0.0
    %1316 = vmatpush2.msra.mxu0 0.0
    %1317 = vmatprep.subr.mxu0 0.0
    %1318 = vmatpush2.msra.mxu0 0.0
    %1319 = vmatprep.subr.mxu0 0.0
    %1320 = vmatpush2.msra.mxu0 0.0
    %1321 = vmatprep.mubr.f32.mxu0 0.0
    %1322 = vmatmul.mubr.f32.gmra.mxu0 %v1243
    %v1323 = vpop.f32.mrf.mxu0
    %v1324 = vadd.f32 0.0, %v1323
    %v1325 = vpop.f32.mrf.mxu0
    %v1326 = vadd.f32 0.0, %v1325
    %1327 = vdwg.mxu0
    %1328 = vmatprep.subr.mxu0 0.0
    %1329 = vmatpush1.msra.mxu0 %v498
    %1330 = vmatprep.subr.mxu0 0.0
    %1331 = vmatpush1.msra.mxu0 %v495
    %1332 = vmatprep.subr.mxu0 0.0
    %1333 = vmatpush1.msra.mxu0 %v492
    %1334 = vmatprep.subr.mxu0 0.0
    %1335 = vmatpush1.msra.mxu0 %v489
    %1336 = vmatprep.subr.mxu0 0.0
    %1337 = vmatpush1.msra.mxu0 %v486
    %1338 = vmatprep.subr.mxu0 0.0
    %1339 = vmatpush1.msra.mxu0 %v483
    %1340 = vmatprep.subr.mxu0 0.0
    %1341 = vmatpush1.msra.mxu0 %v480
    %1342 = vmatprep.subr.mxu0 0.0
    %1343 = vmatpush1.msra.mxu0 %v477
    %1344 = vmatprep.subr.mxu0 0.0
    %1345 = vmatpush1.msra.mxu0 %v474
    %1346 = vmatprep.subr.mxu0 0.0
    %1347 = vmatpush1.msra.mxu0 %v471
    %1348 = vmatprep.subr.mxu0 0.0
    %1349 = vmatpush1.msra.mxu0 %v468
    %1350 = vmatprep.subr.mxu0 0.0
    %1351 = vmatpush1.msra.mxu0 %v465
    %1352 = vmatprep.subr.mxu0 0.0
    %1353 = vmatpush1.msra.mxu0 %v462
    %1354 = vmatprep.subr.mxu0 0.0
    %1355 = vmatpush1.msra.mxu0 %v459
    %1356 = vmatprep.subr.mxu0 0.0
    %1357 = vmatpush1.msra.mxu0 %v456
    %1358 = vmatprep.subr.mxu0 0.0
    %1359 = vmatpush1.msra.mxu0 %v453
    %1360 = vmatprep.subr.mxu0 0.0
    %1361 = vmatpush2.msra.mxu0 0.0
    %1362 = vmatprep.subr.mxu0 0.0
    %1363 = vmatpush2.msra.mxu0 0.0
    %1364 = vmatprep.subr.mxu0 0.0
    %1365 = vmatpush2.msra.mxu0 0.0
    %1366 = vmatprep.subr.mxu0 0.0
    %1367 = vmatpush2.msra.mxu0 0.0
    %1368 = vmatprep.subr.mxu0 0.0
    %1369 = vmatpush2.msra.mxu0 0.0
    %1370 = vmatprep.subr.mxu0 0.0
    %1371 = vmatpush2.msra.mxu0 0.0
    %1372 = vmatprep.subr.mxu0 0.0
    %1373 = vmatpush2.msra.mxu0 0.0
    %1374 = vmatprep.subr.mxu0 0.0
    %1375 = vmatpush2.msra.mxu0 0.0
    %1376 = vmatprep.subr.mxu0 0.0
    %1377 = vmatpush2.msra.mxu0 0.0
    %1378 = vmatprep.subr.mxu0 0.0
    %1379 = vmatpush2.msra.mxu0 0.0
    %1380 = vmatprep.subr.mxu0 0.0
    %1381 = vmatpush2.msra.mxu0 0.0
    %1382 = vmatprep.subr.mxu0 0.0
    %1383 = vmatpush2.msra.mxu0 0.0
    %1384 = vmatprep.subr.mxu0 0.0
    %1385 = vmatpush2.msra.mxu0 0.0
    %1386 = vmatprep.subr.mxu0 0.0
    %1387 = vmatpush2.msra.mxu0 0.0
    %1388 = vmatprep.subr.mxu0 0.0
    %1389 = vmatpush2.msra.mxu0 0.0
    %1390 = vmatprep.subr.mxu0 0.0
    %1391 = vmatpush2.msra.mxu0 0.0
    %1392 = vmatprep.mubr.f32.mxu0 0.0
    %1393 = vmatmul.mubr.f32.gmra.mxu0 %v1243
    %v1394 = vpop.f32.mrf.mxu0
    %v1395 = vadd.f32 0.0, %v1394
    %v1396 = vpop.f32.mrf.mxu0
    %1397 = vdwg.mxu0
    %v1398 = vld [vmem:[%s395] sm:$0x3f]
    %s1399 = scalar_lea.vmem [#allocation7], 8
    %v1400 = vld [vmem:[%s1399] sm:$0x3]
    %v1401 = vadd.f32 %v1398, %v1324
    %v1402 = vxor.u32 %v1401, 2147483648
    %v1403 = vmul.f32 %v1402, 1.442695
    %v1404 = vpow.pop %v1403
    %v1405 = vadd.f32 %v1404, 1.0
    %v1406 = vrcp.pop %v1405
    %v1407 = vmul.f32 1.0, %v1406
    %v1409 = vrot.slane %v1398, 2
    %v1411 = vadd.f32 %v1409, %v1326
    %v1412 = vxor.u32 %v1411, 2147483648
    %v1413 = vmul.f32 %v1412, 1.442695
    %v1414 = vpow.pop %v1413
    %v1415 = vadd.f32 %v1414, 1.0
    %v1416 = vrcp.pop %v1415
    %v1417 = vmul.f32 1.0, %v1416
    %v1418 = vadd.f32 %v1395, %v504
    %v1419 = vmul.f32 %v1407, %v1418
    %v1420 = vrot.slane %v1398, 4
    %v1422 = vadd.f32 %v1420, %v1419
    %v1423 = vtanh.pop %v1422
    %v1424 = vsub.f32 1.0, %v1417
    %v1425 = vmul.f32 %v1424, %v1423
    %v1426 = vmul.f32 %v1417, %v1243
    %v1427 = vadd.f32 %v1425, %v1426
    %v1428 = vmul.f32 %v1400, %v1427
    %v1429 = vsub.f32 1.0, %v1400
    %v1430 = vmul.f32 %v1429, %v1243
    %v1431 = vadd.f32 %v1428, %v1430
    %v1432 = vmul.f32 %v1400, %v1431
    %s1433 = scalar_lea.vmem [#allocation3], 8
    %1434 = vst.msk [vmem:[%s1433] sm:$0x3] %vm681, %v1432
    %s1435 = scalar_lea.vmem [#allocation3], 10
    %1436 = vst.msk [vmem:[%s1435] sm:$0x3] %vm684, %v1432
    %1438 = vrot.lane.b32.xlu0 %v1432, 64
    %v1439 = vpop.permute.xlu0 %1438
    %1441 = vst.msk [vmem:[%s1255] sm:$0x3] %vm681, %v1439
    %1442 = vst.msk [vmem:[%s1253] sm:$0x3] %vm684, %v1439
    %1443 = vmatprep.subr.mxu0 %v497
    %1444 = vmatpush1.msra.mxu0 %v496
    %1445 = vmatprep.subr.mxu0 %v494
    %1446 = vmatpush1.msra.mxu0 %v493
    %1447 = vmatprep.subr.mxu0 %v491
    %1448 = vmatpush1.msra.mxu0 %v490
    %1449 = vmatprep.subr.mxu0 %v488
    %1450 = vmatpush1.msra.mxu0 %v487
    %1451 = vmatprep.subr.mxu0 %v485
    %1452 = vmatpush1.msra.mxu0 %v484
    %1453 = vmatprep.subr.mxu0 %v482
    %1454 = vmatpush1.msra.mxu0 %v481
    %1455 = vmatprep.subr.mxu0 %v479
    %1456 = vmatpush1.msra.mxu0 %v478
    %1457 = vmatprep.subr.mxu0 %v476
    %1458 = vmatpush1.msra.mxu0 %v475
    %1459 = vmatprep.subr.mxu0 %v473
    %1460 = vmatpush1.msra.mxu0 %v472
    %1461 = vmatprep.subr.mxu0 %v470
    %1462 = vmatpush1.msra.mxu0 %v469
    %1463 = vmatprep.subr.mxu0 %v467
    %1464 = vmatpush1.msra.mxu0 %v466
    %1465 = vmatprep.subr.mxu0 %v464
    %1466 = vmatpush1.msra.mxu0 %v463
    %1467 = vmatprep.subr.mxu0 %v461
    %1468 = vmatpush1.msra.mxu0 %v460
    %1469 = vmatprep.subr.mxu0 %v458
    %1470 = vmatpush1.msra.mxu0 %v457
    %1471 = vmatprep.subr.mxu0 %v455
    %1472 = vmatpush1.msra.mxu0 %v454
    %1473 = vmatprep.subr.mxu0 %v452
    %1474 = vmatpush1.msra.mxu0 %v451
    %1475 = vmatprep.subr.mxu0 0.0
    %1476 = vmatpush2.msra.mxu0 0.0
    %1477 = vmatprep.subr.mxu0 0.0
    %1478 = vmatpush2.msra.mxu0 0.0
    %1479 = vmatprep.subr.mxu0 0.0
    %1480 = vmatpush2.msra.mxu0 0.0
    %1481 = vmatprep.subr.mxu0 0.0
    %1482 = vmatpush2.msra.mxu0 0.0
    %1483 = vmatprep.subr.mxu0 0.0
    %1484 = vmatpush2.msra.mxu0 0.0
    %1485 = vmatprep.subr.mxu0 0.0
    %1486 = vmatpush2.msra.mxu0 0.0
    %1487 = vmatprep.subr.mxu0 0.0
    %1488 = vmatpush2.msra.mxu0 0.0
    %1489 = vmatprep.subr.mxu0 0.0
    %1490 = vmatpush2.msra.mxu0 0.0
    %1491 = vmatprep.subr.mxu0 0.0
    %1492 = vmatpush2.msra.mxu0 0.0
    %1493 = vmatprep.subr.mxu0 0.0
    %1494 = vmatpush2.msra.mxu0 0.0
    %1495 = vmatprep.subr.mxu0 0.0
    %1496 = vmatpush2.msra.mxu0 0.0
    %1497 = vmatprep.subr.mxu0 0.0
    %1498 = vmatpush2.msra.mxu0 0.0
    %1499 = vmatprep.subr.mxu0 0.0
    %1500 = vmatpush2.msra.mxu0 0.0
    %1501 = vmatprep.subr.mxu0 0.0
    %1502 = vmatpush2.msra.mxu0 0.0
    %1503 = vmatprep.subr.mxu0 0.0
    %1504 = vmatpush2.msra.mxu0 0.0
    %1505 = vmatprep.subr.mxu0 0.0
    %1506 = vmatpush2.msra.mxu0 0.0
    %1507 = vmatprep.mubr.f32.mxu0 0.0
    %1508 = vmatmul.mubr.f32.gmra.mxu0 %v1431
    %v1509 = vpop.f32.mrf.mxu0
    %v1510 = vadd.f32 0.0, %v1509
    %v1511 = vpop.f32.mrf.mxu0
    %v1512 = vadd.f32 0.0, %v1511
    %1513 = vdwg.mxu0
    %1514 = vmatprep.subr.mxu0 0.0
    %1515 = vmatpush1.msra.mxu0 %v498
    %1516 = vmatprep.subr.mxu0 0.0
    %1517 = vmatpush1.msra.mxu0 %v495
    %1518 = vmatprep.subr.mxu0 0.0
    %1519 = vmatpush1.msra.mxu0 %v492
    %1520 = vmatprep.subr.mxu0 0.0
    %1521 = vmatpush1.msra.mxu0 %v489
    %1522 = vmatprep.subr.mxu0 0.0
    %1523 = vmatpush1.msra.mxu0 %v486
    %1524 = vmatprep.subr.mxu0 0.0
    %1525 = vmatpush1.msra.mxu0 %v483
    %1526 = vmatprep.subr.mxu0 0.0
    %1527 = vmatpush1.msra.mxu0 %v480
    %1528 = vmatprep.subr.mxu0 0.0
    %1529 = vmatpush1.msra.mxu0 %v477
    %1530 = vmatprep.subr.mxu0 0.0
    %1531 = vmatpush1.msra.mxu0 %v474
    %1532 = vmatprep.subr.mxu0 0.0
    %1533 = vmatpush1.msra.mxu0 %v471
    %1534 = vmatprep.subr.mxu0 0.0
    %1535 = vmatpush1.msra.mxu0 %v468
    %1536 = vmatprep.subr.mxu0 0.0
    %1537 = vmatpush1.msra.mxu0 %v465
    %1538 = vmatprep.subr.mxu0 0.0
    %1539 = vmatpush1.msra.mxu0 %v462
    %1540 = vmatprep.subr.mxu0 0.0
    %1541 = vmatpush1.msra.mxu0 %v459
    %1542 = vmatprep.subr.mxu0 0.0
    %1543 = vmatpush1.msra.mxu0 %v456
    %1544 = vmatprep.subr.mxu0 0.0
    %1545 = vmatpush1.msra.mxu0 %v453
    %1546 = vmatprep.subr.mxu0 0.0
    %1547 = vmatpush2.msra.mxu0 0.0
    %1548 = vmatprep.subr.mxu0 0.0
    %1549 = vmatpush2.msra.mxu0 0.0
    %1550 = vmatprep.subr.mxu0 0.0
    %1551 = vmatpush2.msra.mxu0 0.0
    %1552 = vmatprep.subr.mxu0 0.0
    %1553 = vmatpush2.msra.mxu0 0.0
    %1554 = vmatprep.subr.mxu0 0.0
    %1555 = vmatpush2.msra.mxu0 0.0
    %1556 = vmatprep.subr.mxu0 0.0
    %1557 = vmatpush2.msra.mxu0 0.0
    %1558 = vmatprep.subr.mxu0 0.0
    %1559 = vmatpush2.msra.mxu0 0.0
    %1560 = vmatprep.subr.mxu0 0.0
    %1561 = vmatpush2.msra.mxu0 0.0
    %1562 = vmatprep.subr.mxu0 0.0
    %1563 = vmatpush2.msra.mxu0 0.0
    %1564 = vmatprep.subr.mxu0 0.0
    %1565 = vmatpush2.msra.mxu0 0.0
    %1566 = vmatprep.subr.mxu0 0.0
    %1567 = vmatpush2.msra.mxu0 0.0
    %1568 = vmatprep.subr.mxu0 0.0
    %1569 = vmatpush2.msra.mxu0 0.0
    %1570 = vmatprep.subr.mxu0 0.0
    %1571 = vmatpush2.msra.mxu0 0.0
    %1572 = vmatprep.subr.mxu0 0.0
    %1573 = vmatpush2.msra.mxu0 0.0
    %1574 = vmatprep.subr.mxu0 0.0
    %1575 = vmatpush2.msra.mxu0 0.0
    %1576 = vmatprep.subr.mxu0 0.0
    %1577 = vmatpush2.msra.mxu0 0.0
    %1578 = vmatprep.mubr.f32.mxu0 0.0
    %1579 = vmatmul.mubr.f32.gmra.mxu0 %v1431
    %v1580 = vpop.f32.mrf.mxu0
    %v1581 = vadd.f32 0.0, %v1580
    %v1582 = vpop.f32.mrf.mxu0
    %1583 = vdwg.mxu0
    %v1584 = vld [vmem:[%s399] sm:$0x3f]
    %s1585 = scalar_lea.vmem [#allocation7], 10
    %v1586 = vld [vmem:[%s1585] sm:$0x3]
    %v1587 = vadd.f32 %v1584, %v1510
    %v1588 = vxor.u32 %v1587, 2147483648
    %v1589 = vmul.f32 %v1588, 1.442695
    %v1590 = vpow.pop %v1589
    %v1591 = vadd.f32 %v1590, 1.0
    %v1592 = vrcp.pop %v1591
    %v1593 = vmul.f32 1.0, %v1592
    %v1595 = vrot.slane %v1584, 2
    %v1597 = vadd.f32 %v1595, %v1512
    %v1598 = vxor.u32 %v1597, 2147483648
    %v1599 = vmul.f32 %v1598, 1.442695
    %v1600 = vpow.pop %v1599
    %v1601 = vadd.f32 %v1600, 1.0
    %v1602 = vrcp.pop %v1601
    %v1603 = vmul.f32 1.0, %v1602
    %v1604 = vadd.f32 %v1581, %v504
    %v1605 = vmul.f32 %v1593, %v1604
    %v1606 = vrot.slane %v1584, 4
    %v1608 = vadd.f32 %v1606, %v1605
    %v1609 = vtanh.pop %v1608
    %v1610 = vsub.f32 1.0, %v1603
    %v1611 = vmul.f32 %v1610, %v1609
    %v1612 = vmul.f32 %v1603, %v1431
    %v1613 = vadd.f32 %v1611, %v1612
    %v1614 = vmul.f32 %v1586, %v1613
    %v1615 = vsub.f32 1.0, %v1586
    %v1616 = vmul.f32 %v1615, %v1431
    %v1617 = vadd.f32 %v1614, %v1616
    %v1618 = vmul.f32 %v1586, %v1617
    %1619 = vst.msk [vmem:[%s1435] sm:$0x3] %vm681, %v1618
    %1620 = vst.msk [vmem:[%s1433] sm:$0x3] %vm684, %v1618
    %1622 = vrot.lane.b32.xlu0 %v1618, 64
    %v1623 = vpop.permute.xlu0 %1622
    %1625 = vst.msk [vmem:[%s1067] sm:$0x3] %vm681, %v1623
    %1626 = vst.msk [vmem:[%s1065] sm:$0x3] %vm684, %v1623
    %1627 = vmatprep.subr.mxu0 %v497
    %1628 = vmatpush1.msra.mxu0 %v496
    %1629 = vmatprep.subr.mxu0 %v494
    %1630 = vmatpush1.msra.mxu0 %v493
    %1631 = vmatprep.subr.mxu0 %v491
    %1632 = vmatpush1.msra.mxu0 %v490
    %1633 = vmatprep.subr.mxu0 %v488
    %1634 = vmatpush1.msra.mxu0 %v487
    %1635 = vmatprep.subr.mxu0 %v485
    %1636 = vmatpush1.msra.mxu0 %v484
    %1637 = vmatprep.subr.mxu0 %v482
    %1638 = vmatpush1.msra.mxu0 %v481
    %1639 = vmatprep.subr.mxu0 %v479
    %1640 = vmatpush1.msra.mxu0 %v478
    %1641 = vmatprep.subr.mxu0 %v476
    %1642 = vmatpush1.msra.mxu0 %v475
    %1643 = vmatprep.subr.mxu0 %v473
    %1644 = vmatpush1.msra.mxu0 %v472
    %1645 = vmatprep.subr.mxu0 %v470
    %1646 = vmatpush1.msra.mxu0 %v469
    %1647 = vmatprep.subr.mxu0 %v467
    %1648 = vmatpush1.msra.mxu0 %v466
    %1649 = vmatprep.subr.mxu0 %v464
    %1650 = vmatpush1.msra.mxu0 %v463
    %1651 = vmatprep.subr.mxu0 %v461
    %1652 = vmatpush1.msra.mxu0 %v460
    %1653 = vmatprep.subr.mxu0 %v458
    %1654 = vmatpush1.msra.mxu0 %v457
    %1655 = vmatprep.subr.mxu0 %v455
    %1656 = vmatpush1.msra.mxu0 %v454
    %1657 = vmatprep.subr.mxu0 %v452
    %1658 = vmatpush1.msra.mxu0 %v451
    %1659 = vmatprep.subr.mxu0 0.0
    %1660 = vmatpush2.msra.mxu0 0.0
    %1661 = vmatprep.subr.mxu0 0.0
    %1662 = vmatpush2.msra.mxu0 0.0
    %1663 = vmatprep.subr.mxu0 0.0
    %1664 = vmatpush2.msra.mxu0 0.0
    %1665 = vmatprep.subr.mxu0 0.0
    %1666 = vmatpush2.msra.mxu0 0.0
    %1667 = vmatprep.subr.mxu0 0.0
    %1668 = vmatpush2.msra.mxu0 0.0
    %1669 = vmatprep.subr.mxu0 0.0
    %1670 = vmatpush2.msra.mxu0 0.0
    %1671 = vmatprep.subr.mxu0 0.0
    %1672 = vmatpush2.msra.mxu0 0.0
    %1673 = vmatprep.subr.mxu0 0.0
    %1674 = vmatpush2.msra.mxu0 0.0
    %1675 = vmatprep.subr.mxu0 0.0
    %1676 = vmatpush2.msra.mxu0 0.0
    %1677 = vmatprep.subr.mxu0 0.0
    %1678 = vmatpush2.msra.mxu0 0.0
    %1679 = vmatprep.subr.mxu0 0.0
    %1680 = vmatpush2.msra.mxu0 0.0
    %1681 = vmatprep.subr.mxu0 0.0
    %1682 = vmatpush2.msra.mxu0 0.0
    %1683 = vmatprep.subr.mxu0 0.0
    %1684 = vmatpush2.msra.mxu0 0.0
    %1685 = vmatprep.subr.mxu0 0.0
    %1686 = vmatpush2.msra.mxu0 0.0
    %1687 = vmatprep.subr.mxu0 0.0
    %1688 = vmatpush2.msra.mxu0 0.0
    %1689 = vmatprep.subr.mxu0 0.0
    %1690 = vmatpush2.msra.mxu0 0.0
    %1691 = vmatprep.mubr.f32.mxu0 0.0
    %1692 = vmatmul.mubr.f32.gmra.mxu0 %v1617
    %v1693 = vpop.f32.mrf.mxu0
    %v1694 = vadd.f32 0.0, %v1693
    %v1695 = vpop.f32.mrf.mxu0
    %v1696 = vadd.f32 0.0, %v1695
    %1697 = vdwg.mxu0
    %1698 = vmatprep.subr.mxu0 0.0
    %1699 = vmatpush1.msra.mxu0 %v498
    %1700 = vmatprep.subr.mxu0 0.0
    %1701 = vmatpush1.msra.mxu0 %v495
    %1702 = vmatprep.subr.mxu0 0.0
    %1703 = vmatpush1.msra.mxu0 %v492
    %1704 = vmatprep.subr.mxu0 0.0
    %1705 = vmatpush1.msra.mxu0 %v489
    %1706 = vmatprep.subr.mxu0 0.0
    %1707 = vmatpush1.msra.mxu0 %v486
    %1708 = vmatprep.subr.mxu0 0.0
    %1709 = vmatpush1.msra.mxu0 %v483
    %1710 = vmatprep.subr.mxu0 0.0
    %1711 = vmatpush1.msra.mxu0 %v480
    %1712 = vmatprep.subr.mxu0 0.0
    %1713 = vmatpush1.msra.mxu0 %v477
    %1714 = vmatprep.subr.mxu0 0.0
    %1715 = vmatpush1.msra.mxu0 %v474
    %1716 = vmatprep.subr.mxu0 0.0
    %1717 = vmatpush1.msra.mxu0 %v471
    %1718 = vmatprep.subr.mxu0 0.0
    %1719 = vmatpush1.msra.mxu0 %v468
    %1720 = vmatprep.subr.mxu0 0.0
    %1721 = vmatpush1.msra.mxu0 %v465
    %1722 = vmatprep.subr.mxu0 0.0
    %1723 = vmatpush1.msra.mxu0 %v462
    %1724 = vmatprep.subr.mxu0 0.0
    %1725 = vmatpush1.msra.mxu0 %v459
    %1726 = vmatprep.subr.mxu0 0.0
    %1727 = vmatpush1.msra.mxu0 %v456
    %1728 = vmatprep.subr.mxu0 0.0
    %1729 = vmatpush1.msra.mxu0 %v453
    %1730 = vmatprep.subr.mxu0 0.0
    %1731 = vmatpush2.msra.mxu0 0.0
    %1732 = vmatprep.subr.mxu0 0.0
    %1733 = vmatpush2.msra.mxu0 0.0
    %1734 = vmatprep.subr.mxu0 0.0
    %1735 = vmatpush2.msra.mxu0 0.0
    %1736 = vmatprep.subr.mxu0 0.0
    %1737 = vmatpush2.msra.mxu0 0.0
    %1738 = vmatprep.subr.mxu0 0.0
    %1739 = vmatpush2.msra.mxu0 0.0
    %1740 = vmatprep.subr.mxu0 0.0
    %1741 = vmatpush2.msra.mxu0 0.0
    %1742 = vmatprep.subr.mxu0 0.0
    %1743 = vmatpush2.msra.mxu0 0.0
    %1744 = vmatprep.subr.mxu0 0.0
    %1745 = vmatpush2.msra.mxu0 0.0
    %1746 = vmatprep.subr.mxu0 0.0
    %1747 = vmatpush2.msra.mxu0 0.0
    %1748 = vmatprep.subr.mxu0 0.0
    %1749 = vmatpush2.msra.mxu0 0.0
    %1750 = vmatprep.subr.mxu0 0.0
    %1751 = vmatpush2.msra.mxu0 0.0
    %1752 = vmatprep.subr.mxu0 0.0
    %1753 = vmatpush2.msra.mxu0 0.0
    %1754 = vmatprep.subr.mxu0 0.0
    %1755 = vmatpush2.msra.mxu0 0.0
    %1756 = vmatprep.subr.mxu0 0.0
    %1757 = vmatpush2.msra.mxu0 0.0
    %1758 = vmatprep.subr.mxu0 0.0
    %1759 = vmatpush2.msra.mxu0 0.0
    %1760 = vmatprep.subr.mxu0 0.0
    %1761 = vmatpush2.msra.mxu0 0.0
    %1762 = vmatprep.mubr.f32.mxu0 0.0
    %1763 = vmatmul.mubr.f32.gmra.mxu0 %v1617
    %v1764 = vpop.f32.mrf.mxu0
    %v1765 = vadd.f32 0.0, %v1764
    %v1766 = vpop.f32.mrf.mxu0
    %1767 = vdwg.mxu0
    %v1768 = vld [vmem:[%s419] sm:$0x3f]
    %s1769 = scalar_lea.vmem [#allocation7], 12
    %v1770 = vld [vmem:[%s1769] sm:$0x3]
    %v1771 = vadd.f32 %v1768, %v1694
    %v1772 = vxor.u32 %v1771, 2147483648
    %v1773 = vmul.f32 %v1772, 1.442695
    %v1774 = vpow.pop %v1773
    %v1775 = vadd.f32 %v1774, 1.0
    %v1776 = vrcp.pop %v1775
    %v1777 = vmul.f32 1.0, %v1776
    %v1779 = vrot.slane %v1768, 2
    %v1781 = vadd.f32 %v1779, %v1696
    %v1782 = vxor.u32 %v1781, 2147483648
    %v1783 = vmul.f32 %v1782, 1.442695
    %v1784 = vpow.pop %v1783
    %v1785 = vadd.f32 %v1784, 1.0
    %v1786 = vrcp.pop %v1785
    %v1787 = vmul.f32 1.0, %v1786
    %v1788 = vadd.f32 %v1765, %v504
    %v1789 = vmul.f32 %v1777, %v1788
    %v1790 = vrot.slane %v1768, 4
    %v1792 = vadd.f32 %v1790, %v1789
    %v1793 = vtanh.pop %v1792
    %v1794 = vsub.f32 1.0, %v1787
    %v1795 = vmul.f32 %v1794, %v1793
    %v1796 = vmul.f32 %v1787, %v1617
    %v1797 = vadd.f32 %v1795, %v1796
    %v1798 = vmul.f32 %v1770, %v1797
    %v1799 = vsub.f32 1.0, %v1770
    %v1800 = vmul.f32 %v1799, %v1617
    %v1801 = vadd.f32 %v1798, %v1800
    %v1802 = vmul.f32 %v1770, %v1801
    %1803 = vst.msk [vmem:[%s1247] sm:$0x3] %vm681, %v1802
    %1804 = vst.msk [vmem:[%s1245] sm:$0x3] %vm684, %v1802
    %1806 = vrot.lane.b32.xlu0 %v1802, 64
    %v1807 = vpop.permute.xlu0 %1806
    %1809 = vst.msk [vmem:[%s879] sm:$0x3] %vm681, %v1807
    %1810 = vst.msk [vmem:[%s877] sm:$0x3] %vm684, %v1807
    %1811 = vmatprep.subr.mxu0 %v497
    %1812 = vmatpush1.msra.mxu0 %v496
    %1813 = vmatprep.subr.mxu0 %v494
    %1814 = vmatpush1.msra.mxu0 %v493
    %1815 = vmatprep.subr.mxu0 %v491
    %1816 = vmatpush1.msra.mxu0 %v490
    %1817 = vmatprep.subr.mxu0 %v488
    %1818 = vmatpush1.msra.mxu0 %v487
    %1819 = vmatprep.subr.mxu0 %v485
    %1820 = vmatpush1.msra.mxu0 %v484
    %1821 = vmatprep.subr.mxu0 %v482
    %1822 = vmatpush1.msra.mxu0 %v481
    %1823 = vmatprep.subr.mxu0 %v479
    %1824 = vmatpush1.msra.mxu0 %v478
    %1825 = vmatprep.subr.mxu0 %v476
    %1826 = vmatpush1.msra.mxu0 %v475
    %1827 = vmatprep.subr.mxu0 %v473
    %1828 = vmatpush1.msra.mxu0 %v472
    %1829 = vmatprep.subr.mxu0 %v470
    %1830 = vmatpush1.msra.mxu0 %v469
    %1831 = vmatprep.subr.mxu0 %v467
    %1832 = vmatpush1.msra.mxu0 %v466
    %1833 = vmatprep.subr.mxu0 %v464
    %1834 = vmatpush1.msra.mxu0 %v463
    %1835 = vmatprep.subr.mxu0 %v461
    %1836 = vmatpush1.msra.mxu0 %v460
    %1837 = vmatprep.subr.mxu0 %v458
    %1838 = vmatpush1.msra.mxu0 %v457
    %1839 = vmatprep.subr.mxu0 %v455
    %1840 = vmatpush1.msra.mxu0 %v454
    %1841 = vmatprep.subr.mxu0 %v452
    %1842 = vmatpush1.msra.mxu0 %v451
    %1843 = vmatprep.subr.mxu0 0.0
    %1844 = vmatpush2.msra.mxu0 0.0
    %1845 = vmatprep.subr.mxu0 0.0
    %1846 = vmatpush2.msra.mxu0 0.0
    %1847 = vmatprep.subr.mxu0 0.0
    %1848 = vmatpush2.msra.mxu0 0.0
    %1849 = vmatprep.subr.mxu0 0.0
    %1850 = vmatpush2.msra.mxu0 0.0
    %1851 = vmatprep.subr.mxu0 0.0
    %1852 = vmatpush2.msra.mxu0 0.0
    %1853 = vmatprep.subr.mxu0 0.0
    %1854 = vmatpush2.msra.mxu0 0.0
    %1855 = vmatprep.subr.mxu0 0.0
    %1856 = vmatpush2.msra.mxu0 0.0
    %1857 = vmatprep.subr.mxu0 0.0
    %1858 = vmatpush2.msra.mxu0 0.0
    %1859 = vmatprep.subr.mxu0 0.0
    %1860 = vmatpush2.msra.mxu0 0.0
    %1861 = vmatprep.subr.mxu0 0.0
    %1862 = vmatpush2.msra.mxu0 0.0
    %1863 = vmatprep.subr.mxu0 0.0
    %1864 = vmatpush2.msra.mxu0 0.0
    %1865 = vmatprep.subr.mxu0 0.0
    %1866 = vmatpush2.msra.mxu0 0.0
    %1867 = vmatprep.subr.mxu0 0.0
    %1868 = vmatpush2.msra.mxu0 0.0
    %1869 = vmatprep.subr.mxu0 0.0
    %1870 = vmatpush2.msra.mxu0 0.0
    %1871 = vmatprep.subr.mxu0 0.0
    %1872 = vmatpush2.msra.mxu0 0.0
    %1873 = vmatprep.subr.mxu0 0.0
    %1874 = vmatpush2.msra.mxu0 0.0
    %1875 = vmatprep.mubr.f32.mxu0 0.0
    %1876 = vmatmul.mubr.f32.gmra.mxu0 %v1801
    %v1877 = vpop.f32.mrf.mxu0
    %v1878 = vadd.f32 0.0, %v1877
    %v1879 = vpop.f32.mrf.mxu0
    %v1880 = vadd.f32 0.0, %v1879
    %1881 = vdwg.mxu0
    %1882 = vmatprep.subr.mxu0 0.0
    %1883 = vmatpush1.msra.mxu0 %v498
    %1884 = vmatprep.subr.mxu0 0.0
    %1885 = vmatpush1.msra.mxu0 %v495
    %1886 = vmatprep.subr.mxu0 0.0
    %1887 = vmatpush1.msra.mxu0 %v492
    %1888 = vmatprep.subr.mxu0 0.0
    %1889 = vmatpush1.msra.mxu0 %v489
    %1890 = vmatprep.subr.mxu0 0.0
    %1891 = vmatpush1.msra.mxu0 %v486
    %1892 = vmatprep.subr.mxu0 0.0
    %1893 = vmatpush1.msra.mxu0 %v483
    %1894 = vmatprep.subr.mxu0 0.0
    %1895 = vmatpush1.msra.mxu0 %v480
    %1896 = vmatprep.subr.mxu0 0.0
    %1897 = vmatpush1.msra.mxu0 %v477
    %1898 = vmatprep.subr.mxu0 0.0
    %1899 = vmatpush1.msra.mxu0 %v474
    %1900 = vmatprep.subr.mxu0 0.0
    %1901 = vmatpush1.msra.mxu0 %v471
    %1902 = vmatprep.subr.mxu0 0.0
    %1903 = vmatpush1.msra.mxu0 %v468
    %1904 = vmatprep.subr.mxu0 0.0
    %1905 = vmatpush1.msra.mxu0 %v465
    %1906 = vmatprep.subr.mxu0 0.0
    %1907 = vmatpush1.msra.mxu0 %v462
    %1908 = vmatprep.subr.mxu0 0.0
    %1909 = vmatpush1.msra.mxu0 %v459
    %1910 = vmatprep.subr.mxu0 0.0
    %1911 = vmatpush1.msra.mxu0 %v456
    %1912 = vmatprep.subr.mxu0 0.0
    %1913 = vmatpush1.msra.mxu0 %v453
    %1914 = vmatprep.subr.mxu0 0.0
    %1915 = vmatpush2.msra.mxu0 0.0
    %1916 = vmatprep.subr.mxu0 0.0
    %1917 = vmatpush2.msra.mxu0 0.0
    %1918 = vmatprep.subr.mxu0 0.0
    %1919 = vmatpush2.msra.mxu0 0.0
    %1920 = vmatprep.subr.mxu0 0.0
    %1921 = vmatpush2.msra.mxu0 0.0
    %1922 = vmatprep.subr.mxu0 0.0
    %1923 = vmatpush2.msra.mxu0 0.0
    %1924 = vmatprep.subr.mxu0 0.0
    %1925 = vmatpush2.msra.mxu0 0.0
    %1926 = vmatprep.subr.mxu0 0.0
    %1927 = vmatpush2.msra.mxu0 0.0
    %1928 = vmatprep.subr.mxu0 0.0
    %1929 = vmatpush2.msra.mxu0 0.0
    %1930 = vmatprep.subr.mxu0 0.0
    %1931 = vmatpush2.msra.mxu0 0.0
    %1932 = vmatprep.subr.mxu0 0.0
    %1933 = vmatpush2.msra.mxu0 0.0
    %1934 = vmatprep.subr.mxu0 0.0
    %1935 = vmatpush2.msra.mxu0 0.0
    %1936 = vmatprep.subr.mxu0 0.0
    %1937 = vmatpush2.msra.mxu0 0.0
    %1938 = vmatprep.subr.mxu0 0.0
    %1939 = vmatpush2.msra.mxu0 0.0
    %1940 = vmatprep.subr.mxu0 0.0
    %1941 = vmatpush2.msra.mxu0 0.0
    %1942 = vmatprep.subr.mxu0 0.0
    %1943 = vmatpush2.msra.mxu0 0.0
    %1944 = vmatprep.subr.mxu0 0.0
    %1945 = vmatpush2.msra.mxu0 0.0
    %1946 = vmatprep.mubr.f32.mxu0 0.0
    %1947 = vmatmul.mubr.f32.gmra.mxu0 %v1801
    %v1948 = vpop.f32.mrf.mxu0
    %v1949 = vadd.f32 0.0, %v1948
    %v1950 = vpop.f32.mrf.mxu0
    %1951 = vdwg.mxu0
    %v1952 = vld [vmem:[%s423] sm:$0x3f]
    %s1953 = scalar_lea.vmem [#allocation7], 14
    %v1954 = vld [vmem:[%s1953] sm:$0x3]
    %v1955 = vadd.f32 %v1952, %v1878
    %v1956 = vxor.u32 %v1955, 2147483648
    %v1957 = vmul.f32 %v1956, 1.442695
    %v1958 = vpow.pop %v1957
    %v1959 = vadd.f32 %v1958, 1.0
    %v1960 = vrcp.pop %v1959
    %v1961 = vmul.f32 1.0, %v1960
    %v1963 = vrot.slane %v1952, 2
    %v1965 = vadd.f32 %v1963, %v1880
    %v1966 = vxor.u32 %v1965, 2147483648
    %v1967 = vmul.f32 %v1966, 1.442695
    %v1968 = vpow.pop %v1967
    %v1969 = vadd.f32 %v1968, 1.0
    %v1970 = vrcp.pop %v1969
    %v1971 = vmul.f32 1.0, %v1970
    %v1972 = vadd.f32 %v1949, %v504
    %v1973 = vmul.f32 %v1961, %v1972
    %v1974 = vrot.slane %v1952, 4
    %v1976 = vadd.f32 %v1974, %v1973
    %v1977 = vtanh.pop %v1976
    %v1978 = vsub.f32 1.0, %v1971
    %v1979 = vmul.f32 %v1978, %v1977
    %v1980 = vmul.f32 %v1971, %v1801
    %v1981 = vadd.f32 %v1979, %v1980
    %v1982 = vmul.f32 %v1954, %v1981
    %v1983 = vsub.f32 1.0, %v1954
    %v1984 = vmul.f32 %v1983, %v1801
    %v1985 = vadd.f32 %v1982, %v1984
    %v1986 = vmul.f32 %v1954, %v1985
    %1987 = vst.msk [vmem:[%s1059] sm:$0x3] %vm681, %v1986
    %1988 = vst.msk [vmem:[%s1057] sm:$0x3] %vm684, %v1986
    %1990 = vrot.lane.b32.xlu0 %v1986, 64
    %v1991 = vpop.permute.xlu0 %1990
    %1993 = vst.msk [vmem:[%s691] sm:$0x3] %vm681, %v1991
    %1994 = vst.msk [vmem:[#allocation4] sm:$0x3] %vm684, %v1991
    %1995 = vmatprep.subr.mxu0 %v497
    %1996 = vmatpush1.msra.mxu0 %v496
    %1997 = vmatprep.subr.mxu0 %v494
    %1998 = vmatpush1.msra.mxu0 %v493
    %1999 = vmatprep.subr.mxu0 %v491
    %2000 = vmatpush1.msra.mxu0 %v490
    %2001 = vmatprep.subr.mxu0 %v488
    %2002 = vmatpush1.msra.mxu0 %v487
    %2003 = vmatprep.subr.mxu0 %v485
    %2004 = vmatpush1.msra.mxu0 %v484
    %2005 = vmatprep.subr.mxu0 %v482
    %2006 = vmatpush1.msra.mxu0 %v481
    %2007 = vmatprep.subr.mxu0 %v479
    %2008 = vmatpush1.msra.mxu0 %v478
    %2009 = vmatprep.subr.mxu0 %v476
    %2010 = vmatpush1.msra.mxu0 %v475
    %2011 = vmatprep.subr.mxu0 %v473
    %2012 = vmatpush1.msra.mxu0 %v472
    %2013 = vmatprep.subr.mxu0 %v470
    %2014 = vmatpush1.msra.mxu0 %v469
    %2015 = vmatprep.subr.mxu0 %v467
    %2016 = vmatpush1.msra.mxu0 %v466
    %2017 = vmatprep.subr.mxu0 %v464
    %2018 = vmatpush1.msra.mxu0 %v463
    %2019 = vmatprep.subr.mxu0 %v461
    %2020 = vmatpush1.msra.mxu0 %v460
    %2021 = vmatprep.subr.mxu0 %v458
    %2022 = vmatpush1.msra.mxu0 %v457
    %2023 = vmatprep.subr.mxu0 %v455
    %2024 = vmatpush1.msra.mxu0 %v454
    %2025 = vmatprep.subr.mxu0 %v452
    %2026 = vmatpush1.msra.mxu0 %v451
    %2027 = vmatprep.subr.mxu0 0.0
    %2028 = vmatpush2.msra.mxu0 0.0
    %2029 = vmatprep.subr.mxu0 0.0
    %2030 = vmatpush2.msra.mxu0 0.0
    %2031 = vmatprep.subr.mxu0 0.0
    %2032 = vmatpush2.msra.mxu0 0.0
    %2033 = vmatprep.subr.mxu0 0.0
    %2034 = vmatpush2.msra.mxu0 0.0
    %2035 = vmatprep.subr.mxu0 0.0
    %2036 = vmatpush2.msra.mxu0 0.0
    %2037 = vmatprep.subr.mxu0 0.0
    %2038 = vmatpush2.msra.mxu0 0.0
    %2039 = vmatprep.subr.mxu0 0.0
    %2040 = vmatpush2.msra.mxu0 0.0
    %2041 = vmatprep.subr.mxu0 0.0
    %2042 = vmatpush2.msra.mxu0 0.0
    %2043 = vmatprep.subr.mxu0 0.0
    %2044 = vmatpush2.msra.mxu0 0.0
    %2045 = vmatprep.subr.mxu0 0.0
    %2046 = vmatpush2.msra.mxu0 0.0
    %2047 = vmatprep.subr.mxu0 0.0
    %2048 = vmatpush2.msra.mxu0 0.0
    %2049 = vmatprep.subr.mxu0 0.0
    %2050 = vmatpush2.msra.mxu0 0.0
    %2051 = vmatprep.subr.mxu0 0.0
    %2052 = vmatpush2.msra.mxu0 0.0
    %2053 = vmatprep.subr.mxu0 0.0
    %2054 = vmatpush2.msra.mxu0 0.0
    %2055 = vmatprep.subr.mxu0 0.0
    %2056 = vmatpush2.msra.mxu0 0.0
    %2057 = vmatprep.subr.mxu0 0.0
    %2058 = vmatpush2.msra.mxu0 0.0
    %2059 = vmatprep.mubr.f32.mxu0 0.0
    %2060 = vmatmul.mubr.f32.gmra.mxu0 %v1985
    %v2061 = vpop.f32.mrf.mxu0
    %v2062 = vadd.f32 0.0, %v2061
    %v2063 = vpop.f32.mrf.mxu0
    %v2064 = vadd.f32 0.0, %v2063
    %2065 = vdwg.mxu0
    %2066 = vmatprep.subr.mxu0 0.0
    %2067 = vmatpush1.msra.mxu0 %v498
    %2068 = vmatprep.subr.mxu0 0.0
    %2069 = vmatpush1.msra.mxu0 %v495
    %2070 = vmatprep.subr.mxu0 0.0
    %2071 = vmatpush1.msra.mxu0 %v492
    %2072 = vmatprep.subr.mxu0 0.0
    %2073 = vmatpush1.msra.mxu0 %v489
    %2074 = vmatprep.subr.mxu0 0.0
    %2075 = vmatpush1.msra.mxu0 %v486
    %2076 = vmatprep.subr.mxu0 0.0
    %2077 = vmatpush1.msra.mxu0 %v483
    %2078 = vmatprep.subr.mxu0 0.0
    %2079 = vmatpush1.msra.mxu0 %v480
    %2080 = vmatprep.subr.mxu0 0.0
    %2081 = vmatpush1.msra.mxu0 %v477
    %2082 = vmatprep.subr.mxu0 0.0
    %2083 = vmatpush1.msra.mxu0 %v474
    %2084 = vmatprep.subr.mxu0 0.0
    %2085 = vmatpush1.msra.mxu0 %v471
    %2086 = vmatprep.subr.mxu0 0.0
    %2087 = vmatpush1.msra.mxu0 %v468
    %2088 = vmatprep.subr.mxu0 0.0
    %2089 = vmatpush1.msra.mxu0 %v465
    %2090 = vmatprep.subr.mxu0 0.0
    %2091 = vmatpush1.msra.mxu0 %v462
    %2092 = vmatprep.subr.mxu0 0.0
    %2093 = vmatpush1.msra.mxu0 %v459
    %2094 = vmatprep.subr.mxu0 0.0
    %2095 = vmatpush1.msra.mxu0 %v456
    %2096 = vmatprep.subr.mxu0 0.0
    %2097 = vmatpush1.msra.mxu0 %v453
    %2098 = vmatprep.subr.mxu0 0.0
    %2099 = vmatpush2.msra.mxu0 0.0
    %2100 = vmatprep.subr.mxu0 0.0
    %2101 = vmatpush2.msra.mxu0 0.0
    %2102 = vmatprep.subr.mxu0 0.0
    %2103 = vmatpush2.msra.mxu0 0.0
    %2104 = vmatprep.subr.mxu0 0.0
    %2105 = vmatpush2.msra.mxu0 0.0
    %2106 = vmatprep.subr.mxu0 0.0
    %2107 = vmatpush2.msra.mxu0 0.0
    %2108 = vmatprep.subr.mxu0 0.0
    %2109 = vmatpush2.msra.mxu0 0.0
    %2110 = vmatprep.subr.mxu0 0.0
    %2111 = vmatpush2.msra.mxu0 0.0
    %2112 = vmatprep.subr.mxu0 0.0
    %2113 = vmatpush2.msra.mxu0 0.0
    %2114 = vmatprep.subr.mxu0 0.0
    %2115 = vmatpush2.msra.mxu0 0.0
    %2116 = vmatprep.subr.mxu0 0.0
    %2117 = vmatpush2.msra.mxu0 0.0
    %2118 = vmatprep.subr.mxu0 0.0
    %2119 = vmatpush2.msra.mxu0 0.0
    %2120 = vmatprep.subr.mxu0 0.0
    %2121 = vmatpush2.msra.mxu0 0.0
    %2122 = vmatprep.subr.mxu0 0.0
    %2123 = vmatpush2.msra.mxu0 0.0
    %2124 = vmatprep.subr.mxu0 0.0
    %2125 = vmatpush2.msra.mxu0 0.0
    %2126 = vmatprep.subr.mxu0 0.0
    %2127 = vmatpush2.msra.mxu0 0.0
    %2128 = vmatprep.subr.mxu0 0.0
    %2129 = vmatpush2.msra.mxu0 0.0
    %2130 = vmatprep.mubr.f32.mxu0 0.0
    %2131 = vmatmul.mubr.f32.gmra.mxu0 %v1985
    %v2132 = vpop.f32.mrf.mxu0
    %v2133 = vadd.f32 0.0, %v2132
    %v2134 = vpop.f32.mrf.mxu0
    %2135 = vdwg.mxu0
    %v2136 = vld [vmem:[%s445] sm:$0x3f]
    %s2137 = scalar_lea.vmem [#allocation7], 16
    %v2138 = vld [vmem:[%s2137] sm:$0x3]
    %v2139 = vadd.f32 %v2136, %v2062
    %v2140 = vxor.u32 %v2139, 2147483648
    %v2141 = vmul.f32 %v2140, 1.442695
    %v2142 = vpow.pop %v2141
    %v2143 = vadd.f32 %v2142, 1.0
    %v2144 = vrcp.pop %v2143
    %v2145 = vmul.f32 1.0, %v2144
    %v2147 = vrot.slane %v2136, 2
    %v2149 = vadd.f32 %v2147, %v2064
    %v2150 = vxor.u32 %v2149, 2147483648
    %v2151 = vmul.f32 %v2150, 1.442695
    %v2152 = vpow.pop %v2151
    %v2153 = vadd.f32 %v2152, 1.0
    %v2154 = vrcp.pop %v2153
    %v2155 = vmul.f32 1.0, %v2154
    %v2156 = vadd.f32 %v2133, %v504
    %v2157 = vmul.f32 %v2145, %v2156
    %v2158 = vrot.slane %v2136, 4
    %v2160 = vadd.f32 %v2158, %v2157
    %v2161 = vtanh.pop %v2160
    %v2162 = vsub.f32 1.0, %v2155
    %v2163 = vmul.f32 %v2162, %v2161
    %v2164 = vmul.f32 %v2155, %v1985
    %v2165 = vadd.f32 %v2163, %v2164
    %v2166 = vmul.f32 %v2138, %v2165
    %v2167 = vsub.f32 1.0, %v2138
    %v2168 = vmul.f32 %v2167, %v1985
    %v2169 = vadd.f32 %v2166, %v2168
    %v2170 = vmul.f32 %v2138, %v2169
    %2171 = vst.msk [vmem:[%s871] sm:$0x3] %vm681, %v2170
    %2172 = vst.msk [vmem:[%s869] sm:$0x3] %vm684, %v2170
    %2173 = vmatprep.subr.mxu0 %v497
    %2174 = vmatpush1.msra.mxu0 %v496
    %2175 = vmatprep.subr.mxu0 %v494
    %2176 = vmatpush1.msra.mxu0 %v493
    %2177 = vmatprep.subr.mxu0 %v491
    %2178 = vmatpush1.msra.mxu0 %v490
    %2179 = vmatprep.subr.mxu0 %v488
    %2180 = vmatpush1.msra.mxu0 %v487
    %2181 = vmatprep.subr.mxu0 %v485
    %2182 = vmatpush1.msra.mxu0 %v484
    %2183 = vmatprep.subr.mxu0 %v482
    %2184 = vmatpush1.msra.mxu0 %v481
    %2185 = vmatprep.subr.mxu0 %v479
    %2186 = vmatpush1.msra.mxu0 %v478
    %2187 = vmatprep.subr.mxu0 %v476
    %2188 = vmatpush1.msra.mxu0 %v475
    %2189 = vmatprep.subr.mxu0 %v473
    %2190 = vmatpush1.msra.mxu0 %v472
    %2191 = vmatprep.subr.mxu0 %v470
    %2192 = vmatpush1.msra.mxu0 %v469
    %2193 = vmatprep.subr.mxu0 %v467
    %2194 = vmatpush1.msra.mxu0 %v466
    %2195 = vmatprep.subr.mxu0 %v464
    %2196 = vmatpush1.msra.mxu0 %v463
    %2197 = vmatprep.subr.mxu0 %v461
    %2198 = vmatpush1.msra.mxu0 %v460
    %2199 = vmatprep.subr.mxu0 %v458
    %2200 = vmatpush1.msra.mxu0 %v457
    %2201 = vmatprep.subr.mxu0 %v455
    %2202 = vmatpush1.msra.mxu0 %v454
    %2203 = vmatprep.subr.mxu0 %v452
    %2204 = vmatpush1.msra.mxu0 %v451
    %2205 = vmatprep.subr.mxu0 0.0
    %2206 = vmatpush2.msra.mxu0 0.0
    %2207 = vmatprep.subr.mxu0 0.0
    %2208 = vmatpush2.msra.mxu0 0.0
    %2209 = vmatprep.subr.mxu0 0.0
    %2210 = vmatpush2.msra.mxu0 0.0
    %2211 = vmatprep.subr.mxu0 0.0
    %2212 = vmatpush2.msra.mxu0 0.0
    %2213 = vmatprep.subr.mxu0 0.0
    %2214 = vmatpush2.msra.mxu0 0.0
    %2215 = vmatprep.subr.mxu0 0.0
    %2216 = vmatpush2.msra.mxu0 0.0
    %2217 = vmatprep.subr.mxu0 0.0
    %2218 = vmatpush2.msra.mxu0 0.0
    %2219 = vmatprep.subr.mxu0 0.0
    %2220 = vmatpush2.msra.mxu0 0.0
    %2221 = vmatprep.subr.mxu0 0.0
    %2222 = vmatpush2.msra.mxu0 0.0
    %2223 = vmatprep.subr.mxu0 0.0
    %2224 = vmatpush2.msra.mxu0 0.0
    %2225 = vmatprep.subr.mxu0 0.0
    %2226 = vmatpush2.msra.mxu0 0.0
    %2227 = vmatprep.subr.mxu0 0.0
    %2228 = vmatpush2.msra.mxu0 0.0
    %2229 = vmatprep.subr.mxu0 0.0
    %2230 = vmatpush2.msra.mxu0 0.0
    %2231 = vmatprep.subr.mxu0 0.0
    %2232 = vmatpush2.msra.mxu0 0.0
    %2233 = vmatprep.subr.mxu0 0.0
    %2234 = vmatpush2.msra.mxu0 0.0
    %2235 = vmatprep.subr.mxu0 0.0
    %2236 = vmatpush2.msra.mxu0 0.0
    %2237 = vmatprep.mubr.f32.mxu0 0.0
    %2238 = vmatmul.mubr.f32.gmra.mxu0 %v2169
    %v2239 = vpop.f32.mrf.mxu0
    %v2240 = vadd.f32 0.0, %v2239
    %v2241 = vpop.f32.mrf.mxu0
    %v2242 = vadd.f32 0.0, %v2241
    %2243 = vdwg.mxu0
    %2244 = vmatprep.subr.mxu0 0.0
    %2245 = vmatpush1.msra.mxu0 %v498
    %2246 = vmatprep.subr.mxu0 0.0
    %2247 = vmatpush1.msra.mxu0 %v495
    %2248 = vmatprep.subr.mxu0 0.0
    %2249 = vmatpush1.msra.mxu0 %v492
    %2250 = vmatprep.subr.mxu0 0.0
    %2251 = vmatpush1.msra.mxu0 %v489
    %2252 = vmatprep.subr.mxu0 0.0
    %2253 = vmatpush1.msra.mxu0 %v486
    %2254 = vmatprep.subr.mxu0 0.0
    %2255 = vmatpush1.msra.mxu0 %v483
    %2256 = vmatprep.subr.mxu0 0.0
    %2257 = vmatpush1.msra.mxu0 %v480
    %2258 = vmatprep.subr.mxu0 0.0
    %2259 = vmatpush1.msra.mxu0 %v477
    %2260 = vmatprep.subr.mxu0 0.0
    %2261 = vmatpush1.msra.mxu0 %v474
    %2262 = vmatprep.subr.mxu0 0.0
    %2263 = vmatpush1.msra.mxu0 %v471
    %2264 = vmatprep.subr.mxu0 0.0
    %2265 = vmatpush1.msra.mxu0 %v468
    %2266 = vmatprep.subr.mxu0 0.0
    %2267 = vmatpush1.msra.mxu0 %v465
    %2268 = vmatprep.subr.mxu0 0.0
    %2269 = vmatpush1.msra.mxu0 %v462
    %2270 = vmatprep.subr.mxu0 0.0
    %2271 = vmatpush1.msra.mxu0 %v459
    %2272 = vmatprep.subr.mxu0 0.0
    %2273 = vmatpush1.msra.mxu0 %v456
    %2274 = vmatprep.subr.mxu0 0.0
    %2275 = vmatpush1.msra.mxu0 %v453
    %2276 = vmatprep.subr.mxu0 0.0
    %2277 = vmatpush2.msra.mxu0 0.0
    %2278 = vmatprep.subr.mxu0 0.0
    %2279 = vmatpush2.msra.mxu0 0.0
    %2280 = vmatprep.subr.mxu0 0.0
    %2281 = vmatpush2.msra.mxu0 0.0
    %2282 = vmatprep.subr.mxu0 0.0
    %2283 = vmatpush2.msra.mxu0 0.0
    %2284 = vmatprep.subr.mxu0 0.0
    %2285 = vmatpush2.msra.mxu0 0.0
    %2286 = vmatprep.subr.mxu0 0.0
    %2287 = vmatpush2.msra.mxu0 0.0
    %2288 = vmatprep.subr.mxu0 0.0
    %2289 = vmatpush2.msra.mxu0 0.0
    %2290 = vmatprep.subr.mxu0 0.0
    %2291 = vmatpush2.msra.mxu0 0.0
    %2292 = vmatprep.subr.mxu0 0.0
    %2293 = vmatpush2.msra.mxu0 0.0
    %2294 = vmatprep.subr.mxu0 0.0
    %2295 = vmatpush2.msra.mxu0 0.0
    %2296 = vmatprep.subr.mxu0 0.0
    %2297 = vmatpush2.msra.mxu0 0.0
    %2298 = vmatprep.subr.mxu0 0.0
    %2299 = vmatpush2.msra.mxu0 0.0
    %2300 = vmatprep.subr.mxu0 0.0
    %2301 = vmatpush2.msra.mxu0 0.0
    %2302 = vmatprep.subr.mxu0 0.0
    %2303 = vmatpush2.msra.mxu0 0.0
    %2304 = vmatprep.subr.mxu0 0.0
    %2305 = vmatpush2.msra.mxu0 0.0
    %2306 = vmatprep.subr.mxu0 0.0
    %2307 = vmatpush2.msra.mxu0 0.0
    %2308 = vmatprep.mubr.f32.mxu0 0.0
    %2309 = vmatmul.mubr.f32.gmra.mxu0 %v2169
    %v2310 = vpop.f32.mrf.mxu0
    %v2311 = vadd.f32 0.0, %v2310
    %v2312 = vpop.f32.mrf.mxu0
    %2313 = vdwg.mxu0
    %v2314 = vld [vmem:[%s449] sm:$0x3f]
    %s2315 = scalar_lea.vmem [#allocation7], 18
    %v2316 = vld [vmem:[%s2315] sm:$0x3]
    %v2317 = vadd.f32 %v2314, %v2240
    %v2318 = vxor.u32 %v2317, 2147483648
    %v2319 = vmul.f32 %v2318, 1.442695
    %v2320 = vpow.pop %v2319
    %v2321 = vadd.f32 %v2320, 1.0
    %v2322 = vrcp.pop %v2321
    %v2323 = vmul.f32 1.0, %v2322
    %v2325 = vrot.slane %v2314, 2
    %v2327 = vadd.f32 %v2325, %v2242
    %v2328 = vxor.u32 %v2327, 2147483648
    %v2329 = vmul.f32 %v2328, 1.442695
    %v2330 = vpow.pop %v2329
    %v2331 = vadd.f32 %v2330, 1.0
    %v2332 = vrcp.pop %v2331
    %v2333 = vmul.f32 1.0, %v2332
    %v2334 = vadd.f32 %v2311, %v504
    %v2335 = vmul.f32 %v2323, %v2334
    %v2336 = vrot.slane %v2314, 4
    %v2338 = vadd.f32 %v2336, %v2335
    %v2339 = vtanh.pop %v2338
    %v2340 = vsub.f32 1.0, %v2333
    %v2341 = vmul.f32 %v2340, %v2339
    %v2342 = vmul.f32 %v2333, %v2169
    %v2343 = vadd.f32 %v2341, %v2342
    %v2344 = vmul.f32 %v2316, %v2343
    %v2345 = vsub.f32 1.0, %v2316
    %v2346 = vmul.f32 %v2345, %v2169
    %v2347 = vadd.f32 %v2344, %v2346
    %v2348 = vmul.f32 %v2316, %v2347
    %2349 = vst.msk [vmem:[%s683] sm:$0x3] %vm681, %v2348
    %2350 = vst.msk [vmem:[#allocation3] sm:$0x3] %vm684, %v2348
    %v2351 = vld [vmem:[#allocation3] sm:$0x3]
    %v2352 = vld [vmem:[#allocation3 + $0x2] sm:$0x3]
    %v2353 = vld [vmem:[#allocation3 + $0x4] sm:$0x3]
    %v2354 = vld [vmem:[#allocation3 + $0x6] sm:$0x3]
    %v2355 = vld [vmem:[#allocation3 + $0x8] sm:$0x3]
    %v2356 = vld [vmem:[#allocation3 + $0xa] sm:$0x3]
    %v2357 = vld [vmem:[#allocation3 + $0xc] sm:$0x3]
    %v2358 = vld [vmem:[#allocation3 + $0xe] sm:$0x3]
    %v2359 = vcombine.low %v2351, %v2353
    %v2361 = vunpack.c.l.s4 1983009808
    %v2362 = vunpack.c.0.s8 %v2361
    %v2363 = vlaneseq
    %v2364 = vshrl.u32 %v2363, 7
    %v2365 = vsub.s32 %v2362, %v2364
    %v2366 = vrot.slane %v2359, %v2365
    %v2367 = vcombine.low %v2352, %v2354
    %v2369 = vunpack.c.l.s4 1983009808
    %v2370 = vunpack.c.0.s8 %v2369
    %v2371 = vlaneseq
    %v2372 = vshrl.u32 %v2371, 7
    %v2373 = vsub.s32 %v2370, %v2372
    %v2374 = vrot.slane %v2367, %v2373
    %v2375 = vcombine.low %v2355, %v2357
    %v2377 = vunpack.c.l.s4 1983009808
    %v2378 = vunpack.c.0.s8 %v2377
    %v2379 = vlaneseq
    %v2380 = vshrl.u32 %v2379, 7
    %v2381 = vsub.s32 %v2378, %v2380
    %v2382 = vrot.slane %v2375, %v2381
    %v2383 = vcombine.low %v2356, %v2358
    %v2385 = vunpack.c.l.s4 1983009808
    %v2386 = vunpack.c.0.s8 %v2385
    %v2387 = vlaneseq
    %v2388 = vshrl.u32 %v2387, 7
    %v2389 = vsub.s32 %v2386, %v2388
    %v2390 = vrot.slane %v2383, %v2389
    %v2391 = vcombine.low %v2366, %v2374
    %v2393 = vunpack.c.l.s4 1934713408
    %v2394 = vunpack.c.0.s8 %v2393
    %v2395 = vlaneseq
    %v2396 = vshrl.u32 %v2395, 7
    %v2397 = vsub.s32 %v2394, %v2396
    %v2398 = vrot.slane %v2391, %v2397
    %v2399 = vcombine.low %v2382, %v2390
    %v2401 = vunpack.c.l.s4 1934713408
    %v2402 = vunpack.c.0.s8 %v2401
    %v2403 = vlaneseq
    %v2404 = vshrl.u32 %v2403, 7
    %v2405 = vsub.s32 %v2402, %v2404
    %v2406 = vrot.slane %v2399, %v2405
    %v2407 = vcombine.low %v2398, %v2406
    %v2408 = vcombine.high %v2398, %v2406
    %v2409 = vld [vmem:[#allocation3 + $0x10] sm:$0x3]
    %v2410 = vld [vmem:[#allocation3 + $0x12] sm:$0x3]
    %v2411 = vcombine.low %v2409, %v2410
    %v2413 = vunpack.c.l.s4 1934713408
    %v2414 = vunpack.c.0.s8 %v2413
    %v2415 = vlaneseq
    %v2416 = vshrl.u32 %v2415, 7
    %v2417 = vsub.s32 %v2414, %v2416
    %v2418 = vrot.slane %v2411, %v2417
    %v2419 = vcombine.high %v2418, 0.0
    %v2420 = vld [vmem:[#allocation4] sm:$0x3]
    %v2421 = vld [vmem:[#allocation4 + $0x2] sm:$0x3]
    %v2422 = vld [vmem:[#allocation4 + $0x4] sm:$0x3]
    %v2423 = vld [vmem:[#allocation4 + $0x6] sm:$0x3]
    %v2424 = vld [vmem:[#allocation4 + $0x8] sm:$0x3]
    %v2425 = vld [vmem:[#allocation4 + $0xa] sm:$0x3]
    %v2426 = vld [vmem:[#allocation4 + $0xc] sm:$0x3]
    %v2427 = vld [vmem:[#allocation4 + $0xe] sm:$0x3]
    %v2428 = vcombine.low %v2420, %v2422
    %v2430 = vunpack.c.l.s4 1983009808
    %v2431 = vunpack.c.0.s8 %v2430
    %v2432 = vlaneseq
    %v2433 = vshrl.u32 %v2432, 7
    %v2434 = vsub.s32 %v2431, %v2433
    %v2435 = vrot.slane %v2428, %v2434
    %v2436 = vcombine.low %v2421, %v2423
    %v2438 = vunpack.c.l.s4 1983009808
    %v2439 = vunpack.c.0.s8 %v2438
    %v2440 = vlaneseq
    %v2441 = vshrl.u32 %v2440, 7
    %v2442 = vsub.s32 %v2439, %v2441
    %v2443 = vrot.slane %v2436, %v2442
    %v2444 = vcombine.low %v2424, %v2426
    %v2446 = vunpack.c.l.s4 1983009808
    %v2447 = vunpack.c.0.s8 %v2446
    %v2448 = vlaneseq
    %v2449 = vshrl.u32 %v2448, 7
    %v2450 = vsub.s32 %v2447, %v2449
    %v2451 = vrot.slane %v2444, %v2450
    %v2452 = vcombine.low %v2425, %v2427
    %v2454 = vunpack.c.l.s4 1983009808
    %v2455 = vunpack.c.0.s8 %v2454
    %v2456 = vlaneseq
    %v2457 = vshrl.u32 %v2456, 7
    %v2458 = vsub.s32 %v2455, %v2457
    %v2459 = vrot.slane %v2452, %v2458
    %v2460 = vcombine.low %v2435, %v2443
    %v2462 = vunpack.c.l.s4 1934713408
    %v2463 = vunpack.c.0.s8 %v2462
    %v2464 = vlaneseq
    %v2465 = vshrl.u32 %v2464, 7
    %v2466 = vsub.s32 %v2463, %v2465
    %v2467 = vrot.slane %v2460, %v2466
    %v2468 = vcombine.low %v2451, %v2459
    %v2470 = vunpack.c.l.s4 1934713408
    %v2471 = vunpack.c.0.s8 %v2470
    %v2472 = vlaneseq
    %v2473 = vshrl.u32 %v2472, 7
    %v2474 = vsub.s32 %v2471, %v2473
    %v2475 = vrot.slane %v2468, %v2474
    %v2476 = vcombine.low %v2467, %v2475
    %v2477 = vcombine.high %v2467, %v2475
    %v2478 = vld [vmem:[%s14] sm:$0xff]
    %v2479 = vld [vmem:[%s14 + $0x8] sm:$0xff]
    %v2480 = vld [vmem:[%s14 + $0x10] sm:$0xff]
    %v2481 = vld [vmem:[%s14 + $0x18] sm:$0xff]
    %v2482 = vld [vmem:[%s14 + $0x20] sm:$0xff]
    %v2483 = vld [vmem:[%s14 + $0x28] sm:$0xff]
    %v2484 = vld [vmem:[%s14 + $0x30] sm:$0xff]
    %v2485 = vld [vmem:[%s14 + $0x38] sm:$0xff]
    %vm2486 = vcmask 523264
    %v2488 = vsel %vm2486, %v2476, 0
    %v2491 = vsel %vm2486, %v2477, 0
    %2493 = vmatprep.subr.mxu0 0.0
    %2494 = vmatpush1.msra.mxu0 0.0
    %2495 = vmatprep.subr.mxu0 0.0
    %2496 = vmatpush1.msra.mxu0 0.0
    %2497 = vmatprep.subr.mxu0 0.0
    %2498 = vmatpush1.msra.mxu0 0.0
    %2499 = vmatprep.subr.mxu0 0.0
    %2500 = vmatpush1.msra.mxu0 0.0
    %2501 = vmatprep.subr.mxu0 0.0
    %2502 = vmatpush1.msra.mxu0 0.0
    %2503 = vmatprep.subr.mxu0 0.0
    %2504 = vmatpush1.msra.mxu0 0.0
    %2505 = vmatprep.subr.mxu0 0.0
    %2506 = vmatpush1.msra.mxu0 0.0
    %2507 = vmatprep.subr.mxu0 0.0
    %2508 = vmatpush1.msra.mxu0 0.0
    %2509 = vmatprep.subr.mxu0 0.0
    %2510 = vmatpush1.msra.mxu0 %v2485
    %2511 = vmatprep.subr.mxu0 0.0
    %2512 = vmatpush1.msra.mxu0 %v2484
    %2513 = vmatprep.subr.mxu0 0.0
    %2514 = vmatpush1.msra.mxu0 %v2483
    %2515 = vmatprep.subr.mxu0 0.0
    %2516 = vmatpush1.msra.mxu0 %v2482
    %2517 = vmatprep.subr.mxu0 0.0
    %2518 = vmatpush1.msra.mxu0 %v2481
    %2519 = vmatprep.subr.mxu0 0.0
    %2520 = vmatpush1.msra.mxu0 %v2480
    %2521 = vmatprep.subr.mxu0 0.0
    %2522 = vmatpush1.msra.mxu0 %v2479
    %2523 = vmatprep.subr.mxu0 0.0
    %2524 = vmatpush1.msra.mxu0 %v2478
    %2525 = vmatprep.subr.mxu0 0.0
    %2526 = vmatpush2.msra.mxu0 0.0
    %2527 = vmatprep.subr.mxu0 0.0
    %2528 = vmatpush2.msra.mxu0 0.0
    %2529 = vmatprep.subr.mxu0 0.0
    %2530 = vmatpush2.msra.mxu0 0.0
    %2531 = vmatprep.subr.mxu0 0.0
    %2532 = vmatpush2.msra.mxu0 0.0
    %2533 = vmatprep.subr.mxu0 0.0
    %2534 = vmatpush2.msra.mxu0 0.0
    %2535 = vmatprep.subr.mxu0 0.0
    %2536 = vmatpush2.msra.mxu0 0.0
    %2537 = vmatprep.subr.mxu0 0.0
    %2538 = vmatpush2.msra.mxu0 0.0
    %2539 = vmatprep.subr.mxu0 0.0
    %2540 = vmatpush2.msra.mxu0 0.0
    %2541 = vmatprep.subr.mxu0 0.0
    %2542 = vmatpush2.msra.mxu0 0.0
    %2543 = vmatprep.subr.mxu0 0.0
    %2544 = vmatpush2.msra.mxu0 0.0
    %2545 = vmatprep.subr.mxu0 0.0
    %2546 = vmatpush2.msra.mxu0 0.0
    %2547 = vmatprep.subr.mxu0 0.0
    %2548 = vmatpush2.msra.mxu0 0.0
    %2549 = vmatprep.subr.mxu0 0.0
    %2550 = vmatpush2.msra.mxu0 0.0
    %2551 = vmatprep.subr.mxu0 0.0
    %2552 = vmatpush2.msra.mxu0 0.0
    %2553 = vmatprep.subr.mxu0 0.0
    %2554 = vmatpush2.msra.mxu0 0.0
    %2555 = vmatprep.subr.mxu0 0.0
    %2556 = vmatpush2.msra.mxu0 0.0
    %2557 = vmatprep.mubr.f32.mxu0 0.0
    %2558 = vmatmul.mubr.f32.gmra.mxu0 %v2488
    %v2559 = vpop.f32.mrf.mxu0
    %v2560 = vadd.f32 0.0, %v2559
    %v2561 = vpop.f32.mrf.mxu0
    %2562 = vmatprep.mubr.f32.mxu0 0.0
    %2563 = vmatmul.mubr.f32.gmra.mxu0 %v2491
    %v2564 = vpop.f32.mrf.mxu0
    %v2565 = vadd.f32 0.0, %v2564
    %v2566 = vpop.f32.mrf.mxu0
    %2567 = vdwg.mxu0
    %v2569 = vsel %vm2486, %v2560, 0
    %v2572 = vsel %vm2486, %v2407, 0
    %v2575 = vsel %vm2486, %v2418, 0
    %2577 = vmatprep.subr.mxu0 0.0
    %2578 = vmatpush1.xpose.msra.mxu0 0.0
    %2579 = vmatprep.subr.mxu0 0.0
    %2580 = vmatpush1.xpose.msra.mxu0 0.0
    %2581 = vmatprep.subr.mxu0 0.0
    %2582 = vmatpush1.xpose.msra.mxu0 0.0
    %2583 = vmatprep.subr.mxu0 0.0
    %2584 = vmatpush1.xpose.msra.mxu0 0.0
    %2585 = vmatprep.subr.mxu0 0.0
    %2586 = vmatpush1.xpose.msra.mxu0 0.0
    %2587 = vmatprep.subr.mxu0 0.0
    %2588 = vmatpush1.xpose.msra.mxu0 0.0
    %2589 = vmatprep.subr.mxu0 0.0
    %2590 = vmatpush1.xpose.msra.mxu0 0.0
    %2591 = vmatprep.subr.mxu0 0.0
    %2592 = vmatpush1.xpose.msra.mxu0 0.0
    %2593 = vmatprep.subr.mxu0 0.0
    %2594 = vmatpush1.xpose.msra.mxu0 0.0
    %2595 = vmatprep.subr.mxu0 0.0
    %2596 = vmatpush1.xpose.msra.mxu0 0.0
    %2597 = vmatprep.subr.mxu0 0.0
    %2598 = vmatpush1.xpose.msra.mxu0 0.0
    %2599 = vmatprep.subr.mxu0 0.0
    %2600 = vmatpush1.xpose.msra.mxu0 0.0
    %2601 = vmatprep.subr.mxu0 0.0
    %2602 = vmatpush1.xpose.msra.mxu0 0.0
    %2603 = vmatprep.subr.mxu0 0.0
    %2604 = vmatpush1.xpose.msra.mxu0 0.0
    %2605 = vmatprep.subr.mxu0 0.0
    %2606 = vmatpush1.xpose.msra.mxu0 %v2575
    %2607 = vmatprep.subr.mxu0 0.0
    %2608 = vmatpush1.xpose.msra.mxu0 %v2572
    %2609 = vmatprep.subr.mxu0 0.0
    %2610 = vmatpush2.xpose.msra.mxu0 0.0
    %2611 = vmatprep.subr.mxu0 0.0
    %2612 = vmatpush2.xpose.msra.mxu0 0.0
    %2613 = vmatprep.subr.mxu0 0.0
    %2614 = vmatpush2.xpose.msra.mxu0 0.0
    %2615 = vmatprep.subr.mxu0 0.0
    %2616 = vmatpush2.xpose.msra.mxu0 0.0
    %2617 = vmatprep.subr.mxu0 0.0
    %2618 = vmatpush2.xpose.msra.mxu0 0.0
    %2619 = vmatprep.subr.mxu0 0.0
    %2620 = vmatpush2.xpose.msra.mxu0 0.0
    %2621 = vmatprep.subr.mxu0 0.0
    %2622 = vmatpush2.xpose.msra.mxu0 0.0
    %2623 = vmatprep.subr.mxu0 0.0
    %2624 = vmatpush2.xpose.msra.mxu0 0.0
    %2625 = vmatprep.subr.mxu0 0.0
    %2626 = vmatpush2.xpose.msra.mxu0 0.0
    %2627 = vmatprep.subr.mxu0 0.0
    %2628 = vmatpush2.xpose.msra.mxu0 0.0
    %2629 = vmatprep.subr.mxu0 0.0
    %2630 = vmatpush2.xpose.msra.mxu0 0.0
    %2631 = vmatprep.subr.mxu0 0.0
    %2632 = vmatpush2.xpose.msra.mxu0 0.0
    %2633 = vmatprep.subr.mxu0 0.0
    %2634 = vmatpush2.xpose.msra.mxu0 0.0
    %2635 = vmatprep.subr.mxu0 0.0
    %2636 = vmatpush2.xpose.msra.mxu0 0.0
    %2637 = vmatprep.subr.mxu0 0.0
    %2638 = vmatpush2.xpose.msra.mxu0 0.0
    %2639 = vmatprep.subr.mxu0 0.0
    %2640 = vmatpush2.xpose.msra.mxu0 0.0
    %2641 = vmatprep.mubr.f32.mxu0 0.0
    %2642 = vmatmul.mubr.f32.gmra.mxu0 %v2569
    %v2643 = vpop.f32.mrf.mxu0
    %v2644 = vadd.f32 0.0, %v2643
    %v2645 = vpop.f32.mrf.mxu0
    %2646 = vdwg.mxu0
    %v2648 = vsel %vm2486, %v2565, 0
    %v2651 = vsel %vm2486, %v2408, 0
    %v2654 = vsel %vm2486, %v2419, 0
    %2656 = vmatprep.subr.mxu0 0.0
    %2657 = vmatpush1.xpose.msra.mxu0 0.0
    %2658 = vmatprep.subr.mxu0 0.0
    %2659 = vmatpush1.xpose.msra.mxu0 0.0
    %2660 = vmatprep.subr.mxu0 0.0
    %2661 = vmatpush1.xpose.msra.mxu0 0.0
    %2662 = vmatprep.subr.mxu0 0.0
    %2663 = vmatpush1.xpose.msra.mxu0 0.0
    %2664 = vmatprep.subr.mxu0 0.0
    %2665 = vmatpush1.xpose.msra.mxu0 0.0
    %2666 = vmatprep.subr.mxu0 0.0
    %2667 = vmatpush1.xpose.msra.mxu0 0.0
    %2668 = vmatprep.subr.mxu0 0.0
    %2669 = vmatpush1.xpose.msra.mxu0 0.0
    %2670 = vmatprep.subr.mxu0 0.0
    %2671 = vmatpush1.xpose.msra.mxu0 0.0
    %2672 = vmatprep.subr.mxu0 0.0
    %2673 = vmatpush1.xpose.msra.mxu0 0.0
    %2674 = vmatprep.subr.mxu0 0.0
    %2675 = vmatpush1.xpose.msra.mxu0 0.0
    %2676 = vmatprep.subr.mxu0 0.0
    %2677 = vmatpush1.xpose.msra.mxu0 0.0
    %2678 = vmatprep.subr.mxu0 0.0
    %2679 = vmatpush1.xpose.msra.mxu0 0.0
    %2680 = vmatprep.subr.mxu0 0.0
    %2681 = vmatpush1.xpose.msra.mxu0 0.0
    %2682 = vmatprep.subr.mxu0 0.0
    %2683 = vmatpush1.xpose.msra.mxu0 0.0
    %2684 = vmatprep.subr.mxu0 0.0
    %2685 = vmatpush1.xpose.msra.mxu0 %v2654
    %2686 = vmatprep.subr.mxu0 0.0
    %2687 = vmatpush1.xpose.msra.mxu0 %v2651
    %2688 = vmatprep.subr.mxu0 0.0
    %2689 = vmatpush2.xpose.msra.mxu0 0.0
    %2690 = vmatprep.subr.mxu0 0.0
    %2691 = vmatpush2.xpose.msra.mxu0 0.0
    %2692 = vmatprep.subr.mxu0 0.0
    %2693 = vmatpush2.xpose.msra.mxu0 0.0
    %2694 = vmatprep.subr.mxu0 0.0
    %2695 = vmatpush2.xpose.msra.mxu0 0.0
    %2696 = vmatprep.subr.mxu0 0.0
    %2697 = vmatpush2.xpose.msra.mxu0 0.0
    %2698 = vmatprep.subr.mxu0 0.0
    %2699 = vmatpush2.xpose.msra.mxu0 0.0
    %2700 = vmatprep.subr.mxu0 0.0
    %2701 = vmatpush2.xpose.msra.mxu0 0.0
    %2702 = vmatprep.subr.mxu0 0.0
    %2703 = vmatpush2.xpose.msra.mxu0 0.0
    %2704 = vmatprep.subr.mxu0 0.0
    %2705 = vmatpush2.xpose.msra.mxu0 0.0
    %2706 = vmatprep.subr.mxu0 0.0
    %2707 = vmatpush2.xpose.msra.mxu0 0.0
    %2708 = vmatprep.subr.mxu0 0.0
    %2709 = vmatpush2.xpose.msra.mxu0 0.0
    %2710 = vmatprep.subr.mxu0 0.0
    %2711 = vmatpush2.xpose.msra.mxu0 0.0
    %2712 = vmatprep.subr.mxu0 0.0
    %2713 = vmatpush2.xpose.msra.mxu0 0.0
    %2714 = vmatprep.subr.mxu0 0.0
    %2715 = vmatpush2.xpose.msra.mxu0 0.0
    %2716 = vmatprep.subr.mxu0 0.0
    %2717 = vmatpush2.xpose.msra.mxu0 0.0
    %2718 = vmatprep.subr.mxu0 0.0
    %2719 = vmatpush2.xpose.msra.mxu0 0.0
    %2720 = vmatprep.mubr.f32.mxu0 0.0
    %2721 = vmatmul.mubr.f32.gmra.mxu0 %v2648
    %v2722 = vpop.f32.mrf.mxu0
    %v2723 = vadd.f32 0.0, %v2722
    %v2724 = vpop.f32.mrf.mxu0
    %2725 = vdwg.mxu0
    %v2726 = vld [vmem:[%s3] sm:$0x1]
    %v2727 = vld [vmem:[%s3 + $0x1] sm:$0x1]
    %vm2728 = vcmp.gt.f32.partialorder %v2726, 0.0
    %vm2729 = vcmp.gt.f32.partialorder %v2727, 0.0
    %v2730 = vsel %vm2728, 1, 0
    %v2731 = vsel %vm2729, 1, 0
    %v2732 = vlaneseq
    %v2733 = vshrl.u32 %v2732, 7
    %v2734 = vsub.s32 0, %v2733
    %v2735 = vrot.slane %v2730, %v2734
    %v2736 = vlaneseq
    %v2737 = vshrl.u32 %v2736, 7
    %v2738 = vsub.s32 0, %v2737
    %v2739 = vrot.slane %v2731, %v2738
    %vm2740 = vcmp.eq.s32.totalorder %v2735, 1
    %vm2741 = vcmp.eq.s32.totalorder %v2739, 1
    %v2742 = vsel %vm2740, %v2644, -1e+30
    %v2743 = vsel %vm2741, %v2723, -1e+30
    %vm2744 = vcmask 80896
    %v2745 = vsel %vm2744, %v2742, -inf
    %2746 = vmax.xlane.f32.xlu0 %v2745
    %v2747 = vpop.xlane.xlu0 %2746
    %v2748 = vsel %vm2744, %v2743, -inf
    %2749 = vmax.xlane.f32.xlu0 %v2748
    %v2750 = vpop.xlane.xlu0 %2749
    %v2751 = vsub.f32 %v2742, %v2747
    %v2752 = vsub.f32 %v2743, %v2750
    %v2753 = vmul.f32 %v2751, 1.442695
    %v2754 = vpow.pop %v2753
    %v2755 = vmul.f32 %v2752, 1.442695
    %v2756 = vpow.pop %v2755
    %v2757 = vsel %vm2744, %v2754, 0.0
    %2758 = vadd.xlane.f32.xlu0 %v2757
    %v2759 = vpop.xlane.xlu0 %2758
    %v2760 = vsel %vm2744, %v2756, 0.0
    %2761 = vadd.xlane.f32.xlu0 %v2760
    %v2762 = vpop.xlane.xlu0 %2761
    %v2763 = vrcp.pop %v2759
    %v2764 = vrcp.pop %v2762
    %v2765 = vmul.f32 %v2754, %v2763
    %v2766 = vmul.f32 %v2756, %v2764
    %v2768 = vsel %vm2744, %v2765, 0
    %vm2770 = vcmask 1041408
    %v2771 = vsel %vm2770, %v2418, 0
    %2773 = vmatprep.subr.mxu0 0.0
    %2774 = vmatpush1.msra.mxu0 0.0
    %2775 = vmatprep.subr.mxu0 0.0
    %2776 = vmatpush1.msra.mxu0 0.0
    %2777 = vmatprep.subr.mxu0 0.0
    %2778 = vmatpush1.msra.mxu0 0.0
    %2779 = vmatprep.subr.mxu0 0.0
    %2780 = vmatpush1.msra.mxu0 0.0
    %2781 = vmatprep.subr.mxu0 0.0
    %2782 = vmatpush1.msra.mxu0 0.0
    %2783 = vmatprep.subr.mxu0 0.0
    %2784 = vmatpush1.msra.mxu0 0.0
    %2785 = vmatprep.subr.mxu0 0.0
    %2786 = vmatpush1.msra.mxu0 0.0
    %2787 = vmatprep.subr.mxu0 0.0
    %2788 = vmatpush1.msra.mxu0 0.0
    %2789 = vmatprep.subr.mxu0 0.0
    %2790 = vmatpush1.msra.mxu0 0.0
    %2791 = vmatprep.subr.mxu0 0.0
    %2792 = vmatpush1.msra.mxu0 0.0
    %2793 = vmatprep.subr.mxu0 0.0
    %2794 = vmatpush1.msra.mxu0 0.0
    %2795 = vmatprep.subr.mxu0 0.0
    %2796 = vmatpush1.msra.mxu0 0.0
    %2797 = vmatprep.subr.mxu0 0.0
    %2798 = vmatpush1.msra.mxu0 0.0
    %2799 = vmatprep.subr.mxu0 0.0
    %2800 = vmatpush1.msra.mxu0 0.0
    %2801 = vmatprep.subr.mxu0 0.0
    %2802 = vmatpush1.msra.mxu0 %v2771
    %2803 = vmatprep.subr.mxu0 0.0
    %2804 = vmatpush1.msra.mxu0 %v2407
    %2805 = vmatprep.subr.mxu0 0.0
    %2806 = vmatpush2.msra.mxu0 0.0
    %2807 = vmatprep.subr.mxu0 0.0
    %2808 = vmatpush2.msra.mxu0 0.0
    %2809 = vmatprep.subr.mxu0 0.0
    %2810 = vmatpush2.msra.mxu0 0.0
    %2811 = vmatprep.subr.mxu0 0.0
    %2812 = vmatpush2.msra.mxu0 0.0
    %2813 = vmatprep.subr.mxu0 0.0
    %2814 = vmatpush2.msra.mxu0 0.0
    %2815 = vmatprep.subr.mxu0 0.0
    %2816 = vmatpush2.msra.mxu0 0.0
    %2817 = vmatprep.subr.mxu0 0.0
    %2818 = vmatpush2.msra.mxu0 0.0
    %2819 = vmatprep.subr.mxu0 0.0
    %2820 = vmatpush2.msra.mxu0 0.0
    %2821 = vmatprep.subr.mxu0 0.0
    %2822 = vmatpush2.msra.mxu0 0.0
    %2823 = vmatprep.subr.mxu0 0.0
    %2824 = vmatpush2.msra.mxu0 0.0
    %2825 = vmatprep.subr.mxu0 0.0
    %2826 = vmatpush2.msra.mxu0 0.0
    %2827 = vmatprep.subr.mxu0 0.0
    %2828 = vmatpush2.msra.mxu0 0.0
    %2829 = vmatprep.subr.mxu0 0.0
    %2830 = vmatpush2.msra.mxu0 0.0
    %2831 = vmatprep.subr.mxu0 0.0
    %2832 = vmatpush2.msra.mxu0 0.0
    %2833 = vmatprep.subr.mxu0 0.0
    %2834 = vmatpush2.msra.mxu0 0.0
    %2835 = vmatprep.subr.mxu0 0.0
    %2836 = vmatpush2.msra.mxu0 0.0
    %2837 = vmatprep.mubr.f32.mxu0 0.0
    %2838 = vmatmul.mubr.f32.gmra.mxu0 %v2768
    %v2839 = vpop.f32.mrf.mxu0
    %v2840 = vadd.f32 0.0, %v2839
    %v2841 = vpop.f32.mrf.mxu0
    %2842 = vdwg.mxu0
    %v2844 = vsel %vm2744, %v2766, 0
    %v2846 = vsel %vm2770, %v2419, 0
    %2848 = vmatprep.subr.mxu0 0.0
    %2849 = vmatpush1.msra.mxu0 0.0
    %2850 = vmatprep.subr.mxu0 0.0
    %2851 = vmatpush1.msra.mxu0 0.0
    %2852 = vmatprep.subr.mxu0 0.0
    %2853 = vmatpush1.msra.mxu0 0.0
    %2854 = vmatprep.subr.mxu0 0.0
    %2855 = vmatpush1.msra.mxu0 0.0
    %2856 = vmatprep.subr.mxu0 0.0
    %2857 = vmatpush1.msra.mxu0 0.0
    %2858 = vmatprep.subr.mxu0 0.0
    %2859 = vmatpush1.msra.mxu0 0.0
    %2860 = vmatprep.subr.mxu0 0.0
    %2861 = vmatpush1.msra.mxu0 0.0
    %2862 = vmatprep.subr.mxu0 0.0
    %2863 = vmatpush1.msra.mxu0 0.0
    %2864 = vmatprep.subr.mxu0 0.0
    %2865 = vmatpush1.msra.mxu0 0.0
    %2866 = vmatprep.subr.mxu0 0.0
    %2867 = vmatpush1.msra.mxu0 0.0
    %2868 = vmatprep.subr.mxu0 0.0
    %2869 = vmatpush1.msra.mxu0 0.0
    %2870 = vmatprep.subr.mxu0 0.0
    %2871 = vmatpush1.msra.mxu0 0.0
    %2872 = vmatprep.subr.mxu0 0.0
    %2873 = vmatpush1.msra.mxu0 0.0
    %2874 = vmatprep.subr.mxu0 0.0
    %2875 = vmatpush1.msra.mxu0 0.0
    %2876 = vmatprep.subr.mxu0 0.0
    %2877 = vmatpush1.msra.mxu0 %v2846
    %2878 = vmatprep.subr.mxu0 0.0
    %2879 = vmatpush1.msra.mxu0 %v2408
    %2880 = vmatprep.subr.mxu0 0.0
    %2881 = vmatpush2.msra.mxu0 0.0
    %2882 = vmatprep.subr.mxu0 0.0
    %2883 = vmatpush2.msra.mxu0 0.0
    %2884 = vmatprep.subr.mxu0 0.0
    %2885 = vmatpush2.msra.mxu0 0.0
    %2886 = vmatprep.subr.mxu0 0.0
    %2887 = vmatpush2.msra.mxu0 0.0
    %2888 = vmatprep.subr.mxu0 0.0
    %2889 = vmatpush2.msra.mxu0 0.0
    %2890 = vmatprep.subr.mxu0 0.0
    %2891 = vmatpush2.msra.mxu0 0.0
    %2892 = vmatprep.subr.mxu0 0.0
    %2893 = vmatpush2.msra.mxu0 0.0
    %2894 = vmatprep.subr.mxu0 0.0
    %2895 = vmatpush2.msra.mxu0 0.0
    %2896 = vmatprep.subr.mxu0 0.0
    %2897 = vmatpush2.msra.mxu0 0.0
    %2898 = vmatprep.subr.mxu0 0.0
    %2899 = vmatpush2.msra.mxu0 0.0
    %2900 = vmatprep.subr.mxu0 0.0
    %2901 = vmatpush2.msra.mxu0 0.0
    %2902 = vmatprep.subr.mxu0 0.0
    %2903 = vmatpush2.msra.mxu0 0.0
    %2904 = vmatprep.subr.mxu0 0.0
    %2905 = vmatpush2.msra.mxu0 0.0
    %2906 = vmatprep.subr.mxu0 0.0
    %2907 = vmatpush2.msra.mxu0 0.0
    %2908 = vmatprep.subr.mxu0 0.0
    %2909 = vmatpush2.msra.mxu0 0.0
    %2910 = vmatprep.subr.mxu0 0.0
    %2911 = vmatpush2.msra.mxu0 0.0
    %2912 = vmatprep.mubr.f32.mxu0 0.0
    %2913 = vmatmul.mubr.f32.gmra.mxu0 %v2844
    %v2914 = vpop.f32.mrf.mxu0
    %v2915 = vadd.f32 0.0, %v2914
    %v2916 = vpop.f32.mrf.mxu0
    %2917 = vdwg.mxu0
    %2918 = vrot.lane.b32.xlu0 %v2476, 64
    %v2919 = vpop.permute.xlu0 %2918
    %2920 = vrot.lane.b32.xlu0 %v2477, 64
    %v2921 = vpop.permute.xlu0 %2920
    %v2924 = vsel %vm2486, %v2840, %v2919
    %v2925 = vsel %vm2486, %v2915, %v2921
    %v2926 = vld [vmem:[%s4] sm:$0xff]
    %v2927 = vld [vmem:[%s4 + $0x8] sm:$0xff]
    %2929 = vset.pattern.permute.xlu0 0
    %2930 = vperm.xlu0 %2929, %v2926
    %v2931 = vpop.permute.xlu0 %2930
    %2934 = vset.pattern.permute.xlu0 0
    %2935 = vperm.xlu0 %2934, %v2927
    %v2936 = vpop.permute.xlu0 %2935
    %v2938 = vmul.f32 %v2924, %v2931
    %v2939 = vmul.f32 %v2925, %v2936
    %v2940 = vcombine.high %v2938, 0.0
    %v2942 = vunpack.c.l.s4 1983009808
    %v2943 = vunpack.c.0.s8 %v2942
    %v2944 = vlaneseq
    %v2945 = vshrl.u32 %v2944, 7
    %v2946 = vsub.s32 %v2943, %v2945
    %v2947 = vrot.slane %v2938, %v2946
    %v2949 = vunpack.c.l.s4 1983009808
    %v2950 = vunpack.c.0.s8 %v2949
    %v2951 = vlaneseq
    %v2952 = vshrl.u32 %v2951, 7
    %v2953 = vsub.s32 %v2950, %v2952
    %v2954 = vrot.slane %v2940, %v2953
    %v2955 = vcombine.high %v2939, 0.0
    %v2957 = vunpack.c.l.s4 1983009808
    %v2958 = vunpack.c.0.s8 %v2957
    %v2959 = vlaneseq
    %v2960 = vshrl.u32 %v2959, 7
    %v2961 = vsub.s32 %v2958, %v2960
    %v2962 = vrot.slane %v2939, %v2961
    %v2964 = vunpack.c.l.s4 1983009808
    %v2965 = vunpack.c.0.s8 %v2964
    %v2966 = vlaneseq
    %v2967 = vshrl.u32 %v2966, 7
    %v2968 = vsub.s32 %v2965, %v2967
    %v2969 = vrot.slane %v2955, %v2968
    %v2970 = vcombine.low %v2947, %v2962
    %v2971 = vcombine.high %v2947, %v2962
    %v2973 = vunpack.c.l.s4 1934713408
    %v2974 = vunpack.c.0.s8 %v2973
    %v2975 = vlaneseq
    %v2976 = vshrl.u32 %v2975, 7
    %v2977 = vsub.s32 %v2974, %v2976
    %v2978 = vrot.slane %v2970, %v2977
    %v2980 = vunpack.c.l.s4 1934713408
    %v2981 = vunpack.c.0.s8 %v2980
    %v2982 = vlaneseq
    %v2983 = vshrl.u32 %v2982, 7
    %v2984 = vsub.s32 %v2981, %v2983
    %v2985 = vrot.slane %v2971, %v2984
    %v2986 = vcombine.low %v2954, %v2969
    %v2987 = vcombine.high %v2954, %v2969
    %v2989 = vunpack.c.l.s4 1934713408
    %v2990 = vunpack.c.0.s8 %v2989
    %v2991 = vlaneseq
    %v2992 = vshrl.u32 %v2991, 7
    %v2993 = vsub.s32 %v2990, %v2992
    %v2994 = vrot.slane %v2986, %v2993
    %v2996 = vunpack.c.l.s4 1934713408
    %v2997 = vunpack.c.0.s8 %v2996
    %v2998 = vlaneseq
    %v2999 = vshrl.u32 %v2998, 7
    %v3000 = vsub.s32 %v2997, %v2999
    %v3001 = vrot.slane %v2987, %v3000
    %v3002 = vcombine.high %v2978, 0.0
    %v3003 = vcombine.high %v2985, 0.0
    %v3004 = vcombine.high %v2994, 0.0
    %v3005 = vcombine.high %v3001, 0.0
    %v3006 = vld [vmem:[%s10] sm:$0xff]
    %v3007 = vld [vmem:[%s10 + $0x8] sm:$0xff]
    %v3008 = vld [vmem:[%s10 + $0x10] sm:$0xff]
    %v3009 = vld [vmem:[%s10 + $0x18] sm:$0xff]
    %v3010 = vld [vmem:[%s10 + $0x20] sm:$0xff]
    %v3011 = vld [vmem:[%s10 + $0x28] sm:$0xff]
    %v3012 = vld [vmem:[%s10 + $0x30] sm:$0xff]
    %v3013 = vld [vmem:[%s10 + $0x38] sm:$0xff]
    %v3014 = vld [vmem:[%s10 + $0x40] sm:$0xff]
    %v3015 = vld [vmem:[%s10 + $0x48] sm:$0xff]
    %v3016 = vld [vmem:[%s10 + $0x50] sm:$0xff]
    %v3017 = vld [vmem:[%s10 + $0x58] sm:$0xff]
    %v3018 = vld [vmem:[%s10 + $0x60] sm:$0xff]
    %v3019 = vld [vmem:[%s10 + $0x68] sm:$0xff]
    %v3020 = vld [vmem:[%s10 + $0x70] sm:$0xff]
    %v3021 = vld [vmem:[%s10 + $0x78] sm:$0xff]
    %v3022 = vld [vmem:[%s10 + $0x80] sm:$0xff]
    %v3023 = vld [vmem:[%s10 + $0x88] sm:$0xff]
    %v3024 = vld [vmem:[%s10 + $0x90] sm:$0xff]
    %v3025 = vld [vmem:[%s10 + $0x98] sm:$0xff]
    %v3026 = vld [vmem:[%s10 + $0xa0] sm:$0xff]
    %v3027 = vld [vmem:[%s10 + $0xa8] sm:$0xff]
    %v3028 = vld [vmem:[%s10 + $0xb0] sm:$0xff]
    %v3029 = vld [vmem:[%s10 + $0xb8] sm:$0xff]
    %v3030 = vld [vmem:[%s10 + $0xc0] sm:$0xff]
    %v3031 = vld [vmem:[%s10 + $0xc8] sm:$0xff]
    %v3032 = vld [vmem:[%s10 + $0xd0] sm:$0xff]
    %v3033 = vld [vmem:[%s10 + $0xd8] sm:$0xff]
    %v3034 = vld [vmem:[%s10 + $0xe0] sm:$0xff]
    %v3035 = vld [vmem:[%s10 + $0xe8] sm:$0xff]
    %v3036 = vld [vmem:[%s10 + $0xf0] sm:$0xff]
    %v3037 = vld [vmem:[%s10 + $0xf8] sm:$0xff]
    %v3038 = vld [vmem:[%s12] sm:$0x3]
    %v3040 = vlaneseq
    %v3041 = vshrl.u32 %v3040, 7
    %v3042 = vsub.s32 0, %v3041
    %v3043 = vrot.slane %v3038, %v3042
    %v3044 = vlaneseq
    %v3045 = vshrl.u32 %v3044, 7
    %v3046 = vsub.s32 1, %v3045
    %v3047 = vrot.slane %v3038, %v3046
    %v3058 = vcombine.low %v2978, %v3002
    %v3059 = vcombine.low %v2985, %v3003
    %v3061 = vunpack.c.l.s4 1983009808
    %v3062 = vunpack.c.0.s8 %v3061
    %v3063 = vlaneseq
    %v3064 = vshrl.u32 %v3063, 7
    %v3065 = vsub.s32 %v3062, %v3064
    %v3066 = vrot.slane %v3058, %v3065
    %v3068 = vunpack.c.l.s4 1983009808
    %v3069 = vunpack.c.0.s8 %v3068
    %v3070 = vlaneseq
    %v3071 = vshrl.u32 %v3070, 7
    %v3072 = vsub.s32 %v3069, %v3071
    %v3073 = vrot.slane %v3059, %v3072
    %v3074 = vcombine.low %v3066, %v3073
    %v3075 = vcombine.low %v2994, %v3004
    %v3076 = vcombine.low %v3001, %v3005
    %v3078 = vunpack.c.l.s4 1983009808
    %v3079 = vunpack.c.0.s8 %v3078
    %v3080 = vlaneseq
    %v3081 = vshrl.u32 %v3080, 7
    %v3082 = vsub.s32 %v3079, %v3081
    %v3083 = vrot.slane %v3075, %v3082
    %v3085 = vunpack.c.l.s4 1983009808
    %v3086 = vunpack.c.0.s8 %v3085
    %v3087 = vlaneseq
    %v3088 = vshrl.u32 %v3087, 7
    %v3089 = vsub.s32 %v3086, %v3088
    %v3090 = vrot.slane %v3076, %v3089
    %v3091 = vcombine.low %v3083, %v3090
    %3094 = vmatprep.subr.mxu0 %v3037
    %3095 = vmatpush1.msra.mxu0 %v3036
    %3096 = vmatprep.subr.mxu0 %v3035
    %3097 = vmatpush1.msra.mxu0 %v3034
    %3098 = vmatprep.subr.mxu0 %v3033
    %3099 = vmatpush1.msra.mxu0 %v3032
    %3100 = vmatprep.subr.mxu0 %v3031
    %3101 = vmatpush1.msra.mxu0 %v3030
    %3102 = vmatprep.subr.mxu0 %v3029
    %3103 = vmatpush1.msra.mxu0 %v3028
    %3104 = vmatprep.subr.mxu0 %v3027
    %3105 = vmatpush1.msra.mxu0 %v3026
    %3106 = vmatprep.subr.mxu0 %v3025
    %3107 = vmatpush1.msra.mxu0 %v3024
    %3108 = vmatprep.subr.mxu0 %v3023
    %3109 = vmatpush1.msra.mxu0 %v3022
    %3110 = vmatprep.subr.mxu0 %v3021
    %3111 = vmatpush1.msra.mxu0 %v3020
    %3112 = vmatprep.subr.mxu0 %v3019
    %3113 = vmatpush1.msra.mxu0 %v3018
    %3114 = vmatprep.subr.mxu0 %v3017
    %3115 = vmatpush1.msra.mxu0 %v3016
    %3116 = vmatprep.subr.mxu0 %v3015
    %3117 = vmatpush1.msra.mxu0 %v3014
    %3118 = vmatprep.subr.mxu0 %v3013
    %3119 = vmatpush1.msra.mxu0 %v3012
    %3120 = vmatprep.subr.mxu0 %v3011
    %3121 = vmatpush1.msra.mxu0 %v3010
    %3122 = vmatprep.subr.mxu0 %v3009
    %3123 = vmatpush1.msra.mxu0 %v3008
    %3124 = vmatprep.subr.mxu0 %v3007
    %3125 = vmatpush1.msra.mxu0 %v3006
    %3126 = vmatprep.subr.mxu0 0.0
    %3127 = vmatpush2.msra.mxu0 0.0
    %3128 = vmatprep.subr.mxu0 0.0
    %3129 = vmatpush2.msra.mxu0 0.0
    %3130 = vmatprep.subr.mxu0 0.0
    %3131 = vmatpush2.msra.mxu0 0.0
    %3132 = vmatprep.subr.mxu0 0.0
    %3133 = vmatpush2.msra.mxu0 0.0
    %3134 = vmatprep.subr.mxu0 0.0
    %3135 = vmatpush2.msra.mxu0 0.0
    %3136 = vmatprep.subr.mxu0 0.0
    %3137 = vmatpush2.msra.mxu0 0.0
    %3138 = vmatprep.subr.mxu0 0.0
    %3139 = vmatpush2.msra.mxu0 0.0
    %3140 = vmatprep.subr.mxu0 0.0
    %3141 = vmatpush2.msra.mxu0 0.0
    %3142 = vmatprep.subr.mxu0 0.0
    %3143 = vmatpush2.msra.mxu0 0.0
    %3144 = vmatprep.subr.mxu0 0.0
    %3145 = vmatpush2.msra.mxu0 0.0
    %3146 = vmatprep.subr.mxu0 0.0
    %3147 = vmatpush2.msra.mxu0 0.0
    %3148 = vmatprep.subr.mxu0 0.0
    %3149 = vmatpush2.msra.mxu0 0.0
    %3150 = vmatprep.subr.mxu0 0.0
    %3151 = vmatpush2.msra.mxu0 0.0
    %3152 = vmatprep.subr.mxu0 0.0
    %3153 = vmatpush2.msra.mxu0 0.0
    %3154 = vmatprep.subr.mxu0 0.0
    %3155 = vmatpush2.msra.mxu0 0.0
    %3156 = vmatprep.subr.mxu0 0.0
    %3157 = vmatpush2.msra.mxu0 0.0
    %3158 = vmatprep.mubr.f32.mxu0 0.0
    %3159 = vmatmul.mubr.f32.gmra.mxu0 %v3074
    %v3160 = vpop.f32.mrf.mxu0
    %v3161 = vadd.f32 %v3043, %v3160
    %v3162 = vpop.f32.mrf.mxu0
    %v3163 = vadd.f32 %v3047, %v3162
    %3164 = vmatprep.mubr.f32.mxu0 0.0
    %3165 = vmatmul.mubr.f32.gmra.mxu0 %v3091
    %v3166 = vpop.f32.mrf.mxu0
    %v3167 = vadd.f32 %v3043, %v3166
    %v3168 = vpop.f32.mrf.mxu0
    %v3169 = vadd.f32 %v3047, %v3168
    %3170 = vdwg.mxu0
    %v3173 = vcombine.low %v3161, %v3163
    %v3175 = vunpack.c.l.s4 1983009808
    %v3176 = vunpack.c.0.s8 %v3175
    %v3177 = vlaneseq
    %v3178 = vshrl.u32 %v3177, 7
    %v3179 = vsub.s32 %v3176, %v3178
    %v3180 = vrot.slane %v3173, %v3179
    %vm3182 = vcmask 519170
    %vm3183 = vmor %vm3182, %vm2770
    %3184 = vst.msk [vmem:[#allocation5] sm:$0xf] %vm3183, %v3180
    %v3185 = vcombine.high %v3180, %v3180
    %s3187 = scalar_lea.vmem [#allocation5], 4
    %3188 = vst.msk [vmem:[%s3187] sm:$0xf] %vm3183, %v3185
    %v3189 = vcombine.high %v3161, %v3163
    %v3191 = vunpack.c.l.s4 1983009808
    %v3192 = vunpack.c.0.s8 %v3191
    %v3193 = vlaneseq
    %v3194 = vshrl.u32 %v3193, 7
    %v3195 = vsub.s32 %v3192, %v3194
    %v3196 = vrot.slane %v3189, %v3195
    %s3198 = scalar_lea.vmem [#allocation5], 8
    %3199 = vst.msk [vmem:[%s3198] sm:$0xf] %vm3183, %v3196
    %v3200 = vcombine.high %v3196, %v3196
    %s3202 = scalar_lea.vmem [#allocation5], 12
    %3203 = vst.msk [vmem:[%s3202] sm:$0xf] %vm3183, %v3200
    %v3206 = vcombine.low %v3167, %v3169
    %v3208 = vunpack.c.l.s4 1983009808
    %v3209 = vunpack.c.0.s8 %v3208
    %v3210 = vlaneseq
    %v3211 = vshrl.u32 %v3210, 7
    %v3212 = vsub.s32 %v3209, %v3211
    %v3213 = vrot.slane %v3206, %v3212
    %s3215 = scalar_lea.vmem [#allocation5], 16
    %3216 = vst.msk [vmem:[%s3215] sm:$0xf] %vm3183, %v3213
    %v3217 = vcombine.high %v3213, %v3213
    %s3219 = scalar_lea.vmem [#allocation5], 20
    %3220 = vst.msk [vmem:[%s3219] sm:$0xf] %vm3183, %v3217
    %v3221 = vcombine.high %v3167, %v3169
    %v3223 = vunpack.c.l.s4 1983009808
    %v3224 = vunpack.c.0.s8 %v3223
    %v3225 = vlaneseq
    %v3226 = vshrl.u32 %v3225, 7
    %v3227 = vsub.s32 %v3224, %v3226
    %v3228 = vrot.slane %v3221, %v3227
    %s3230 = scalar_lea.vmem [#allocation5], 24
    %3231 = vst.msk [vmem:[%s3230] sm:$0xf] %vm3183, %v3228
    %v3232 = vcombine.high %v3228, %v3228
    %s3234 = scalar_lea.vmem [#allocation5], 28
    %3235 = vst.msk [vmem:[%s3234] sm:$0xf] %vm3183, %v3232
    %v3236 = vld [vmem:[%s16] sm:$0x3]
    %vm3237 = vcmp.gt.f32.partialorder %v3236, 0.0
    %v3238 = vld [vmem:[#allocation13] sm:$0xff]
    %v3239 = vld [vmem:[#allocation13 + $0x8] sm:$0xff]
    %v3240 = vld [vmem:[#allocation13 + $0x10] sm:$0xff]
    %v3241 = vld [vmem:[#allocation13 + $0x18] sm:$0xff]
    %v3242 = vld [vmem:[#allocation13 + $0x20] sm:$0xff]
    %v3243 = vld [vmem:[#allocation13 + $0x28] sm:$0xff]
    %v3244 = vld [vmem:[#allocation13 + $0x30] sm:$0xff]
    %v3245 = vld [vmem:[#allocation13 + $0x38] sm:$0xff]
    %v3246 = vld [vmem:[#allocation13 + $0x40] sm:$0xff]
    %v3247 = vld [vmem:[#allocation13 + $0x48] sm:$0xff]
    %v3248 = vld [vmem:[#allocation13 + $0x50] sm:$0xff]
    %v3249 = vld [vmem:[#allocation13 + $0x58] sm:$0xff]
    %v3250 = vld [vmem:[#allocation13 + $0x60] sm:$0xff]
    %v3251 = vld [vmem:[#allocation13 + $0x68] sm:$0xff]
    %v3252 = vld [vmem:[#allocation13 + $0x70] sm:$0xff]
    %v3253 = vld [vmem:[#allocation13 + $0x78] sm:$0xff]
    %v3254 = vld [vmem:[%s13] sm:$0x1]
    %v3256 = vlaneseq
    %v3257 = vshrl.u32 %v3256, 7
    %v3258 = vsub.s32 0, %v3257
    %v3259 = vrot.slane %v3254, %v3258
    %v3262 = vsel %vm2486, 0.0, 0
    %3264 = vmatprep.subr.mxu0 0.0
    %3265 = vmatpush1.msra.mxu0 0.0
    %3266 = vmatprep.subr.mxu0 0.0
    %3267 = vmatpush1.msra.mxu0 0.0
    %3268 = vmatprep.subr.mxu0 0.0
    %3269 = vmatpush1.msra.mxu0 0.0
    %3270 = vmatprep.subr.mxu0 0.0
    %3271 = vmatpush1.msra.mxu0 0.0
    %3272 = vmatprep.subr.mxu0 0.0
    %3273 = vmatpush1.msra.mxu0 0.0
    %3274 = vmatprep.subr.mxu0 0.0
    %3275 = vmatpush1.msra.mxu0 0.0
    %3276 = vmatprep.subr.mxu0 0.0
    %3277 = vmatpush1.msra.mxu0 0.0
    %3278 = vmatprep.subr.mxu0 0.0
    %3279 = vmatpush1.msra.mxu0 0.0
    %3280 = vmatprep.subr.mxu0 %v3253
    %3281 = vmatpush1.msra.mxu0 %v3252
    %3282 = vmatprep.subr.mxu0 %v3251
    %3283 = vmatpush1.msra.mxu0 %v3250
    %3284 = vmatprep.subr.mxu0 %v3249
    %3285 = vmatpush1.msra.mxu0 %v3248
    %3286 = vmatprep.subr.mxu0 %v3247
    %3287 = vmatpush1.msra.mxu0 %v3246
    %3288 = vmatprep.subr.mxu0 %v3245
    %3289 = vmatpush1.msra.mxu0 %v3244
    %3290 = vmatprep.subr.mxu0 %v3243
    %3291 = vmatpush1.msra.mxu0 %v3242
    %3292 = vmatprep.subr.mxu0 %v3241
    %3293 = vmatpush1.msra.mxu0 %v3240
    %3294 = vmatprep.subr.mxu0 %v3239
    %3295 = vmatpush1.msra.mxu0 %v3238
    %3296 = vmatprep.subr.mxu0 0.0
    %3297 = vmatpush2.msra.mxu0 0.0
    %3298 = vmatprep.subr.mxu0 0.0
    %3299 = vmatpush2.msra.mxu0 0.0
    %3300 = vmatprep.subr.mxu0 0.0
    %3301 = vmatpush2.msra.mxu0 0.0
    %3302 = vmatprep.subr.mxu0 0.0
    %3303 = vmatpush2.msra.mxu0 0.0
    %3304 = vmatprep.subr.mxu0 0.0
    %3305 = vmatpush2.msra.mxu0 0.0
    %3306 = vmatprep.subr.mxu0 0.0
    %3307 = vmatpush2.msra.mxu0 0.0
    %3308 = vmatprep.subr.mxu0 0.0
    %3309 = vmatpush2.msra.mxu0 0.0
    %3310 = vmatprep.subr.mxu0 0.0
    %3311 = vmatpush2.msra.mxu0 0.0
    %3312 = vmatprep.subr.mxu0 0.0
    %3313 = vmatpush2.msra.mxu0 0.0
    %3314 = vmatprep.subr.mxu0 0.0
    %3315 = vmatpush2.msra.mxu0 0.0
    %3316 = vmatprep.subr.mxu0 0.0
    %3317 = vmatpush2.msra.mxu0 0.0
    %3318 = vmatprep.subr.mxu0 0.0
    %3319 = vmatpush2.msra.mxu0 0.0
    %3320 = vmatprep.subr.mxu0 0.0
    %3321 = vmatpush2.msra.mxu0 0.0
    %3322 = vmatprep.subr.mxu0 0.0
    %3323 = vmatpush2.msra.mxu0 0.0
    %3324 = vmatprep.subr.mxu0 0.0
    %3325 = vmatpush2.msra.mxu0 0.0
    %3326 = vmatprep.subr.mxu0 0.0
    %3327 = vmatpush2.msra.mxu0 0.0
    %3328 = vmatprep.mubr.f32.mxu0 0.0
    %3329 = vmatmul.mubr.f32.gmra.mxu0 %v3262
    %v3330 = vpop.f32.mrf.mxu0
    %v3331 = vadd.f32 0.0, %v3330
    %v3332 = vpop.f32.mrf.mxu0
    %v3333 = vadd.f32 0.0, %v3332
    %3334 = vdwg.mxu0
    %v3335 = vld [vmem:[#allocation5] sm:$0xf]
    %v3336 = vld [vmem:[%s3234] sm:$0xf]
    %v3337 = vsel %vm3237, 1, 0
    %v3338 = vlaneseq
    %v3339 = vshrl.u32 %v3338, 7
    %v3340 = vsub.s32 0, %v3339
    %v3341 = vrot.slane %v3337, %v3340
    %v3342 = vlaneseq
    %v3343 = vshrl.u32 %v3342, 7
    %v3344 = vsub.s32 1, %v3343
    %v3345 = vrot.slane %v3337, %v3344
    %vm3346 = vcmp.eq.s32.totalorder %v3341, 1
    %vm3347 = vcmp.eq.s32.totalorder %v3345, 1
    %v3350 = vunpack.c.l.s4 1983009808
    %v3351 = vunpack.c.0.s8 %v3350
    %v3352 = vlaneseq
    %v3353 = vshrl.u32 %v3352, 7
    %v3354 = vsub.s32 %v3351, %v3353
    %v3355 = vrot.slane %v3335, %v3354
    %v3356 = vcombine.high %v3355, %v3355
    %v3361 = vunpack.c.l.s4 1983009808
    %v3362 = vunpack.c.0.s8 %v3361
    %v3363 = vlaneseq
    %v3364 = vshrl.u32 %v3363, 7
    %v3365 = vsub.s32 %v3362, %v3364
    %v3366 = vrot.slane %v3336, %v3365
    %v3367 = vcombine.high %v3366, %v3366
    %v3370 = vsel %vm3346, %v3355, %v3366
    %v3371 = vsel %vm3347, %v3356, %v3367
    %v3372 = vld [vmem:[#allocation10] sm:$0x3]
    %v3373 = vadd.f32 %v3370, %v3331
    %v3374 = vxor.u32 %v3373, 2147483648
    %v3375 = vmul.f32 %v3374, 1.442695
    %v3376 = vpow.pop %v3375
    %v3377 = vadd.f32 %v3376, 1.0
    %v3378 = vrcp.pop %v3377
    %v3379 = vmul.f32 1.0, %v3378
    %v3380 = vadd.f32 %v3333, %v3259
    %v3381 = vmul.f32 %v3379, %v3380
    %v3382 = vadd.f32 %v3371, %v3381
    %v3383 = vtanh.pop %v3382
    %v3384 = vsub.f32 1.0, %v3379
    %3386 = vrot.lane.b32.xlu0 %v3383, 64
    %v3387 = vpop.permute.xlu0 %3386
    %v3389 = vmul.f32 %v3384, %v3387
    %v3390 = vmul.f32 %v3379, 0.0
    %v3391 = vadd.f32 %v3389, %v3390
    %3393 = vrot.lane.b32.xlu0 %v3391, 64
    %v3394 = vpop.permute.xlu0 %3393
    %v3396 = vmul.f32 %v3372, %v3394
    %v3397 = vsub.f32 1.0, %v3372
    %v3398 = vmul.f32 %v3397, 0.0
    %v3399 = vadd.f32 %v3396, %v3398
    %v3400 = vmul.f32 %v3372, %v3399
    %3401 = vst.msk [vmem:[#allocation6] sm:$0x3] %vm681, %v3400
    %s3402 = scalar_lea.vmem [#allocation6], 14
    %3403 = vst.msk [vmem:[%s3402] sm:$0x3] %vm684, %v3400
    %v3405 = vsel %vm2486, %v3399, 0
    %3407 = vmatprep.subr.mxu0 0.0
    %3408 = vmatpush1.msra.mxu0 0.0
    %3409 = vmatprep.subr.mxu0 0.0
    %3410 = vmatpush1.msra.mxu0 0.0
    %3411 = vmatprep.subr.mxu0 0.0
    %3412 = vmatpush1.msra.mxu0 0.0
    %3413 = vmatprep.subr.mxu0 0.0
    %3414 = vmatpush1.msra.mxu0 0.0
    %3415 = vmatprep.subr.mxu0 0.0
    %3416 = vmatpush1.msra.mxu0 0.0
    %3417 = vmatprep.subr.mxu0 0.0
    %3418 = vmatpush1.msra.mxu0 0.0
    %3419 = vmatprep.subr.mxu0 0.0
    %3420 = vmatpush1.msra.mxu0 0.0
    %3421 = vmatprep.subr.mxu0 0.0
    %3422 = vmatpush1.msra.mxu0 0.0
    %3423 = vmatprep.subr.mxu0 %v3253
    %3424 = vmatpush1.msra.mxu0 %v3252
    %3425 = vmatprep.subr.mxu0 %v3251
    %3426 = vmatpush1.msra.mxu0 %v3250
    %3427 = vmatprep.subr.mxu0 %v3249
    %3428 = vmatpush1.msra.mxu0 %v3248
    %3429 = vmatprep.subr.mxu0 %v3247
    %3430 = vmatpush1.msra.mxu0 %v3246
    %3431 = vmatprep.subr.mxu0 %v3245
    %3432 = vmatpush1.msra.mxu0 %v3244
    %3433 = vmatprep.subr.mxu0 %v3243
    %3434 = vmatpush1.msra.mxu0 %v3242
    %3435 = vmatprep.subr.mxu0 %v3241
    %3436 = vmatpush1.msra.mxu0 %v3240
    %3437 = vmatprep.subr.mxu0 %v3239
    %3438 = vmatpush1.msra.mxu0 %v3238
    %3439 = vmatprep.subr.mxu0 0.0
    %3440 = vmatpush2.msra.mxu0 0.0
    %3441 = vmatprep.subr.mxu0 0.0
    %3442 = vmatpush2.msra.mxu0 0.0
    %3443 = vmatprep.subr.mxu0 0.0
    %3444 = vmatpush2.msra.mxu0 0.0
    %3445 = vmatprep.subr.mxu0 0.0
    %3446 = vmatpush2.msra.mxu0 0.0
    %3447 = vmatprep.subr.mxu0 0.0
    %3448 = vmatpush2.msra.mxu0 0.0
    %3449 = vmatprep.subr.mxu0 0.0
    %3450 = vmatpush2.msra.mxu0 0.0
    %3451 = vmatprep.subr.mxu0 0.0
    %3452 = vmatpush2.msra.mxu0 0.0
    %3453 = vmatprep.subr.mxu0 0.0
    %3454 = vmatpush2.msra.mxu0 0.0
    %3455 = vmatprep.subr.mxu0 0.0
    %3456 = vmatpush2.msra.mxu0 0.0
    %3457 = vmatprep.subr.mxu0 0.0
    %3458 = vmatpush2.msra.mxu0 0.0
    %3459 = vmatprep.subr.mxu0 0.0
    %3460 = vmatpush2.msra.mxu0 0.0
    %3461 = vmatprep.subr.mxu0 0.0
    %3462 = vmatpush2.msra.mxu0 0.0
    %3463 = vmatprep.subr.mxu0 0.0
    %3464 = vmatpush2.msra.mxu0 0.0
    %3465 = vmatprep.subr.mxu0 0.0
    %3466 = vmatpush2.msra.mxu0 0.0
    %3467 = vmatprep.subr.mxu0 0.0
    %3468 = vmatpush2.msra.mxu0 0.0
    %3469 = vmatprep.subr.mxu0 0.0
    %3470 = vmatpush2.msra.mxu0 0.0
    %3471 = vmatprep.mubr.f32.mxu0 0.0
    %3472 = vmatmul.mubr.f32.gmra.mxu0 %v3405
    %v3473 = vpop.f32.mrf.mxu0
    %v3474 = vadd.f32 0.0, %v3473
    %v3475 = vpop.f32.mrf.mxu0
    %v3476 = vadd.f32 0.0, %v3475
    %3477 = vdwg.mxu0
    %v3478 = vld [vmem:[%s3187] sm:$0xf]
    %v3479 = vld [vmem:[%s3230] sm:$0xf]
    %v3482 = vunpack.c.l.s4 1983009808
    %v3483 = vunpack.c.0.s8 %v3482
    %v3484 = vlaneseq
    %v3485 = vshrl.u32 %v3484, 7
    %v3486 = vsub.s32 %v3483, %v3485
    %v3487 = vrot.slane %v3478, %v3486
    %v3488 = vcombine.high %v3487, %v3487
    %v3493 = vunpack.c.l.s4 1983009808
    %v3494 = vunpack.c.0.s8 %v3493
    %v3495 = vlaneseq
    %v3496 = vshrl.u32 %v3495, 7
    %v3497 = vsub.s32 %v3494, %v3496
    %v3498 = vrot.slane %v3479, %v3497
    %v3499 = vcombine.high %v3498, %v3498
    %v3502 = vsel %vm3346, %v3487, %v3498
    %v3503 = vsel %vm3347, %v3488, %v3499
    %s3504 = scalar_lea.vmem [#allocation10], 2
    %v3505 = vld [vmem:[%s3504] sm:$0x3]
    %v3506 = vadd.f32 %v3502, %v3474
    %v3507 = vxor.u32 %v3506, 2147483648
    %v3508 = vmul.f32 %v3507, 1.442695
    %v3509 = vpow.pop %v3508
    %v3510 = vadd.f32 %v3509, 1.0
    %v3511 = vrcp.pop %v3510
    %v3512 = vmul.f32 1.0, %v3511
    %v3513 = vadd.f32 %v3476, %v3259
    %v3514 = vmul.f32 %v3512, %v3513
    %v3515 = vadd.f32 %v3503, %v3514
    %v3516 = vtanh.pop %v3515
    %v3517 = vsub.f32 1.0, %v3512
    %3519 = vrot.lane.b32.xlu0 %v3516, 64
    %v3520 = vpop.permute.xlu0 %3519
    %v3522 = vmul.f32 %v3517, %v3520
    %3523 = vrot.lane.b32.xlu0 %v3399, 64
    %v3524 = vpop.permute.xlu0 %3523
    %v3526 = vmul.f32 %v3512, %v3524
    %v3527 = vadd.f32 %v3522, %v3526
    %3529 = vrot.lane.b32.xlu0 %v3527, 64
    %v3530 = vpop.permute.xlu0 %3529
    %v3532 = vmul.f32 %v3505, %v3530
    %v3533 = vsub.f32 1.0, %v3505
    %v3534 = vmul.f32 %v3533, %v3399
    %v3535 = vadd.f32 %v3532, %v3534
    %v3536 = vmul.f32 %v3505, %v3535
    %s3537 = scalar_lea.vmem [#allocation6], 2
    %3538 = vst.msk [vmem:[%s3537] sm:$0x3] %vm681, %v3536
    %s3539 = scalar_lea.vmem [#allocation6], 12
    %3540 = vst.msk [vmem:[%s3539] sm:$0x3] %vm684, %v3536
    %v3542 = vsel %vm2486, %v3535, 0
    %3544 = vmatprep.subr.mxu0 0.0
    %3545 = vmatpush1.msra.mxu0 0.0
    %3546 = vmatprep.subr.mxu0 0.0
    %3547 = vmatpush1.msra.mxu0 0.0
    %3548 = vmatprep.subr.mxu0 0.0
    %3549 = vmatpush1.msra.mxu0 0.0
    %3550 = vmatprep.subr.mxu0 0.0
    %3551 = vmatpush1.msra.mxu0 0.0
    %3552 = vmatprep.subr.mxu0 0.0
    %3553 = vmatpush1.msra.mxu0 0.0
    %3554 = vmatprep.subr.mxu0 0.0
    %3555 = vmatpush1.msra.mxu0 0.0
    %3556 = vmatprep.subr.mxu0 0.0
    %3557 = vmatpush1.msra.mxu0 0.0
    %3558 = vmatprep.subr.mxu0 0.0
    %3559 = vmatpush1.msra.mxu0 0.0
    %3560 = vmatprep.subr.mxu0 %v3253
    %3561 = vmatpush1.msra.mxu0 %v3252
    %3562 = vmatprep.subr.mxu0 %v3251
    %3563 = vmatpush1.msra.mxu0 %v3250
    %3564 = vmatprep.subr.mxu0 %v3249
    %3565 = vmatpush1.msra.mxu0 %v3248
    %3566 = vmatprep.subr.mxu0 %v3247
    %3567 = vmatpush1.msra.mxu0 %v3246
    %3568 = vmatprep.subr.mxu0 %v3245
    %3569 = vmatpush1.msra.mxu0 %v3244
    %3570 = vmatprep.subr.mxu0 %v3243
    %3571 = vmatpush1.msra.mxu0 %v3242
    %3572 = vmatprep.subr.mxu0 %v3241
    %3573 = vmatpush1.msra.mxu0 %v3240
    %3574 = vmatprep.subr.mxu0 %v3239
    %3575 = vmatpush1.msra.mxu0 %v3238
    %3576 = vmatprep.subr.mxu0 0.0
    %3577 = vmatpush2.msra.mxu0 0.0
    %3578 = vmatprep.subr.mxu0 0.0
    %3579 = vmatpush2.msra.mxu0 0.0
    %3580 = vmatprep.subr.mxu0 0.0
    %3581 = vmatpush2.msra.mxu0 0.0
    %3582 = vmatprep.subr.mxu0 0.0
    %3583 = vmatpush2.msra.mxu0 0.0
    %3584 = vmatprep.subr.mxu0 0.0
    %3585 = vmatpush2.msra.mxu0 0.0
    %3586 = vmatprep.subr.mxu0 0.0
    %3587 = vmatpush2.msra.mxu0 0.0
    %3588 = vmatprep.subr.mxu0 0.0
    %3589 = vmatpush2.msra.mxu0 0.0
    %3590 = vmatprep.subr.mxu0 0.0
    %3591 = vmatpush2.msra.mxu0 0.0
    %3592 = vmatprep.subr.mxu0 0.0
    %3593 = vmatpush2.msra.mxu0 0.0
    %3594 = vmatprep.subr.mxu0 0.0
    %3595 = vmatpush2.msra.mxu0 0.0
    %3596 = vmatprep.subr.mxu0 0.0
    %3597 = vmatpush2.msra.mxu0 0.0
    %3598 = vmatprep.subr.mxu0 0.0
    %3599 = vmatpush2.msra.mxu0 0.0
    %3600 = vmatprep.subr.mxu0 0.0
    %3601 = vmatpush2.msra.mxu0 0.0
    %3602 = vmatprep.subr.mxu0 0.0
    %3603 = vmatpush2.msra.mxu0 0.0
    %3604 = vmatprep.subr.mxu0 0.0
    %3605 = vmatpush2.msra.mxu0 0.0
    %3606 = vmatprep.subr.mxu0 0.0
    %3607 = vmatpush2.msra.mxu0 0.0
    %3608 = vmatprep.mubr.f32.mxu0 0.0
    %3609 = vmatmul.mubr.f32.gmra.mxu0 %v3542
    %v3610 = vpop.f32.mrf.mxu0
    %v3611 = vadd.f32 0.0, %v3610
    %v3612 = vpop.f32.mrf.mxu0
    %v3613 = vadd.f32 0.0, %v3612
    %3614 = vdwg.mxu0
    %v3615 = vld [vmem:[%s3198] sm:$0xf]
    %v3616 = vld [vmem:[%s3219] sm:$0xf]
    %v3619 = vunpack.c.l.s4 1983009808
    %v3620 = vunpack.c.0.s8 %v3619
    %v3621 = vlaneseq
    %v3622 = vshrl.u32 %v3621, 7
    %v3623 = vsub.s32 %v3620, %v3622
    %v3624 = vrot.slane %v3615, %v3623
    %v3625 = vcombine.high %v3624, %v3624
    %v3630 = vunpack.c.l.s4 1983009808
    %v3631 = vunpack.c.0.s8 %v3630
    %v3632 = vlaneseq
    %v3633 = vshrl.u32 %v3632, 7
    %v3634 = vsub.s32 %v3631, %v3633
    %v3635 = vrot.slane %v3616, %v3634
    %v3636 = vcombine.high %v3635, %v3635
    %v3639 = vsel %vm3346, %v3624, %v3635
    %v3640 = vsel %vm3347, %v3625, %v3636
    %s3641 = scalar_lea.vmem [#allocation10], 4
    %v3642 = vld [vmem:[%s3641] sm:$0x3]
    %v3643 = vadd.f32 %v3639, %v3611
    %v3644 = vxor.u32 %v3643, 2147483648
    %v3645 = vmul.f32 %v3644, 1.442695
    %v3646 = vpow.pop %v3645
    %v3647 = vadd.f32 %v3646, 1.0
    %v3648 = vrcp.pop %v3647
    %v3649 = vmul.f32 1.0, %v3648
    %v3650 = vadd.f32 %v3613, %v3259
    %v3651 = vmul.f32 %v3649, %v3650
    %v3652 = vadd.f32 %v3640, %v3651
    %v3653 = vtanh.pop %v3652
    %v3654 = vsub.f32 1.0, %v3649
    %3656 = vrot.lane.b32.xlu0 %v3653, 64
    %v3657 = vpop.permute.xlu0 %3656
    %v3659 = vmul.f32 %v3654, %v3657
    %3660 = vrot.lane.b32.xlu0 %v3535, 64
    %v3661 = vpop.permute.xlu0 %3660
    %v3663 = vmul.f32 %v3649, %v3661
    %v3664 = vadd.f32 %v3659, %v3663
    %3666 = vrot.lane.b32.xlu0 %v3664, 64
    %v3667 = vpop.permute.xlu0 %3666
    %v3669 = vmul.f32 %v3642, %v3667
    %v3670 = vsub.f32 1.0, %v3642
    %v3671 = vmul.f32 %v3670, %v3535
    %v3672 = vadd.f32 %v3669, %v3671
    %v3673 = vmul.f32 %v3642, %v3672
    %s3674 = scalar_lea.vmem [#allocation6], 4
    %3675 = vst.msk [vmem:[%s3674] sm:$0x3] %vm681, %v3673
    %s3676 = scalar_lea.vmem [#allocation6], 10
    %3677 = vst.msk [vmem:[%s3676] sm:$0x3] %vm684, %v3673
    %v3679 = vsel %vm2486, %v3672, 0
    %3681 = vmatprep.subr.mxu0 0.0
    %3682 = vmatpush1.msra.mxu0 0.0
    %3683 = vmatprep.subr.mxu0 0.0
    %3684 = vmatpush1.msra.mxu0 0.0
    %3685 = vmatprep.subr.mxu0 0.0
    %3686 = vmatpush1.msra.mxu0 0.0
    %3687 = vmatprep.subr.mxu0 0.0
    %3688 = vmatpush1.msra.mxu0 0.0
    %3689 = vmatprep.subr.mxu0 0.0
    %3690 = vmatpush1.msra.mxu0 0.0
    %3691 = vmatprep.subr.mxu0 0.0
    %3692 = vmatpush1.msra.mxu0 0.0
    %3693 = vmatprep.subr.mxu0 0.0
    %3694 = vmatpush1.msra.mxu0 0.0
    %3695 = vmatprep.subr.mxu0 0.0
    %3696 = vmatpush1.msra.mxu0 0.0
    %3697 = vmatprep.subr.mxu0 %v3253
    %3698 = vmatpush1.msra.mxu0 %v3252
    %3699 = vmatprep.subr.mxu0 %v3251
    %3700 = vmatpush1.msra.mxu0 %v3250
    %3701 = vmatprep.subr.mxu0 %v3249
    %3702 = vmatpush1.msra.mxu0 %v3248
    %3703 = vmatprep.subr.mxu0 %v3247
    %3704 = vmatpush1.msra.mxu0 %v3246
    %3705 = vmatprep.subr.mxu0 %v3245
    %3706 = vmatpush1.msra.mxu0 %v3244
    %3707 = vmatprep.subr.mxu0 %v3243
    %3708 = vmatpush1.msra.mxu0 %v3242
    %3709 = vmatprep.subr.mxu0 %v3241
    %3710 = vmatpush1.msra.mxu0 %v3240
    %3711 = vmatprep.subr.mxu0 %v3239
    %3712 = vmatpush1.msra.mxu0 %v3238
    %3713 = vmatprep.subr.mxu0 0.0
    %3714 = vmatpush2.msra.mxu0 0.0
    %3715 = vmatprep.subr.mxu0 0.0
    %3716 = vmatpush2.msra.mxu0 0.0
    %3717 = vmatprep.subr.mxu0 0.0
    %3718 = vmatpush2.msra.mxu0 0.0
    %3719 = vmatprep.subr.mxu0 0.0
    %3720 = vmatpush2.msra.mxu0 0.0
    %3721 = vmatprep.subr.mxu0 0.0
    %3722 = vmatpush2.msra.mxu0 0.0
    %3723 = vmatprep.subr.mxu0 0.0
    %3724 = vmatpush2.msra.mxu0 0.0
    %3725 = vmatprep.subr.mxu0 0.0
    %3726 = vmatpush2.msra.mxu0 0.0
    %3727 = vmatprep.subr.mxu0 0.0
    %3728 = vmatpush2.msra.mxu0 0.0
    %3729 = vmatprep.subr.mxu0 0.0
    %3730 = vmatpush2.msra.mxu0 0.0
    %3731 = vmatprep.subr.mxu0 0.0
    %3732 = vmatpush2.msra.mxu0 0.0
    %3733 = vmatprep.subr.mxu0 0.0
    %3734 = vmatpush2.msra.mxu0 0.0
    %3735 = vmatprep.subr.mxu0 0.0
    %3736 = vmatpush2.msra.mxu0 0.0
    %3737 = vmatprep.subr.mxu0 0.0
    %3738 = vmatpush2.msra.mxu0 0.0
    %3739 = vmatprep.subr.mxu0 0.0
    %3740 = vmatpush2.msra.mxu0 0.0
    %3741 = vmatprep.subr.mxu0 0.0
    %3742 = vmatpush2.msra.mxu0 0.0
    %3743 = vmatprep.subr.mxu0 0.0
    %3744 = vmatpush2.msra.mxu0 0.0
    %3745 = vmatprep.mubr.f32.mxu0 0.0
    %3746 = vmatmul.mubr.f32.gmra.mxu0 %v3679
    %v3747 = vpop.f32.mrf.mxu0
    %v3748 = vadd.f32 0.0, %v3747
    %v3749 = vpop.f32.mrf.mxu0
    %v3750 = vadd.f32 0.0, %v3749
    %3751 = vdwg.mxu0
    %v3752 = vld [vmem:[%s3202] sm:$0xf]
    %v3753 = vld [vmem:[%s3215] sm:$0xf]
    %v3756 = vunpack.c.l.s4 1983009808
    %v3757 = vunpack.c.0.s8 %v3756
    %v3758 = vlaneseq
    %v3759 = vshrl.u32 %v3758, 7
    %v3760 = vsub.s32 %v3757, %v3759
    %v3761 = vrot.slane %v3752, %v3760
    %v3762 = vcombine.high %v3761, %v3761
    %v3767 = vunpack.c.l.s4 1983009808
    %v3768 = vunpack.c.0.s8 %v3767
    %v3769 = vlaneseq
    %v3770 = vshrl.u32 %v3769, 7
    %v3771 = vsub.s32 %v3768, %v3770
    %v3772 = vrot.slane %v3753, %v3771
    %v3773 = vcombine.high %v3772, %v3772
    %v3776 = vsel %vm3346, %v3761, %v3772
    %v3777 = vsel %vm3347, %v3762, %v3773
    %s3778 = scalar_lea.vmem [#allocation10], 6
    %v3779 = vld [vmem:[%s3778] sm:$0x3]
    %v3780 = vadd.f32 %v3776, %v3748
    %v3781 = vxor.u32 %v3780, 2147483648
    %v3782 = vmul.f32 %v3781, 1.442695
    %v3783 = vpow.pop %v3782
    %v3784 = vadd.f32 %v3783, 1.0
    %v3785 = vrcp.pop %v3784
    %v3786 = vmul.f32 1.0, %v3785
    %v3787 = vadd.f32 %v3750, %v3259
    %v3788 = vmul.f32 %v3786, %v3787
    %v3789 = vadd.f32 %v3777, %v3788
    %v3790 = vtanh.pop %v3789
    %v3791 = vsub.f32 1.0, %v3786
    %3793 = vrot.lane.b32.xlu0 %v3790, 64
    %v3794 = vpop.permute.xlu0 %3793
    %v3796 = vmul.f32 %v3791, %v3794
    %3797 = vrot.lane.b32.xlu0 %v3672, 64
    %v3798 = vpop.permute.xlu0 %3797
    %v3800 = vmul.f32 %v3786, %v3798
    %v3801 = vadd.f32 %v3796, %v3800
    %3803 = vrot.lane.b32.xlu0 %v3801, 64
    %v3804 = vpop.permute.xlu0 %3803
    %v3806 = vmul.f32 %v3779, %v3804
    %v3807 = vsub.f32 1.0, %v3779
    %v3808 = vmul.f32 %v3807, %v3672
    %v3809 = vadd.f32 %v3806, %v3808
    %v3810 = vmul.f32 %v3779, %v3809
    %s3811 = scalar_lea.vmem [#allocation6], 6
    %3812 = vst.msk [vmem:[%s3811] sm:$0x3] %vm681, %v3810
    %s3813 = scalar_lea.vmem [#allocation6], 8
    %3814 = vst.msk [vmem:[%s3813] sm:$0x3] %vm684, %v3810
    %v3816 = vsel %vm2486, %v3809, 0
    %3818 = vmatprep.subr.mxu0 0.0
    %3819 = vmatpush1.msra.mxu0 0.0
    %3820 = vmatprep.subr.mxu0 0.0
    %3821 = vmatpush1.msra.mxu0 0.0
    %3822 = vmatprep.subr.mxu0 0.0
    %3823 = vmatpush1.msra.mxu0 0.0
    %3824 = vmatprep.subr.mxu0 0.0
    %3825 = vmatpush1.msra.mxu0 0.0
    %3826 = vmatprep.subr.mxu0 0.0
    %3827 = vmatpush1.msra.mxu0 0.0
    %3828 = vmatprep.subr.mxu0 0.0
    %3829 = vmatpush1.msra.mxu0 0.0
    %3830 = vmatprep.subr.mxu0 0.0
    %3831 = vmatpush1.msra.mxu0 0.0
    %3832 = vmatprep.subr.mxu0 0.0
    %3833 = vmatpush1.msra.mxu0 0.0
    %3834 = vmatprep.subr.mxu0 %v3253
    %3835 = vmatpush1.msra.mxu0 %v3252
    %3836 = vmatprep.subr.mxu0 %v3251
    %3837 = vmatpush1.msra.mxu0 %v3250
    %3838 = vmatprep.subr.mxu0 %v3249
    %3839 = vmatpush1.msra.mxu0 %v3248
    %3840 = vmatprep.subr.mxu0 %v3247
    %3841 = vmatpush1.msra.mxu0 %v3246
    %3842 = vmatprep.subr.mxu0 %v3245
    %3843 = vmatpush1.msra.mxu0 %v3244
    %3844 = vmatprep.subr.mxu0 %v3243
    %3845 = vmatpush1.msra.mxu0 %v3242
    %3846 = vmatprep.subr.mxu0 %v3241
    %3847 = vmatpush1.msra.mxu0 %v3240
    %3848 = vmatprep.subr.mxu0 %v3239
    %3849 = vmatpush1.msra.mxu0 %v3238
    %3850 = vmatprep.subr.mxu0 0.0
    %3851 = vmatpush2.msra.mxu0 0.0
    %3852 = vmatprep.subr.mxu0 0.0
    %3853 = vmatpush2.msra.mxu0 0.0
    %3854 = vmatprep.subr.mxu0 0.0
    %3855 = vmatpush2.msra.mxu0 0.0
    %3856 = vmatprep.subr.mxu0 0.0
    %3857 = vmatpush2.msra.mxu0 0.0
    %3858 = vmatprep.subr.mxu0 0.0
    %3859 = vmatpush2.msra.mxu0 0.0
    %3860 = vmatprep.subr.mxu0 0.0
    %3861 = vmatpush2.msra.mxu0 0.0
    %3862 = vmatprep.subr.mxu0 0.0
    %3863 = vmatpush2.msra.mxu0 0.0
    %3864 = vmatprep.subr.mxu0 0.0
    %3865 = vmatpush2.msra.mxu0 0.0
    %3866 = vmatprep.subr.mxu0 0.0
    %3867 = vmatpush2.msra.mxu0 0.0
    %3868 = vmatprep.subr.mxu0 0.0
    %3869 = vmatpush2.msra.mxu0 0.0
    %3870 = vmatprep.subr.mxu0 0.0
    %3871 = vmatpush2.msra.mxu0 0.0
    %3872 = vmatprep.subr.mxu0 0.0
    %3873 = vmatpush2.msra.mxu0 0.0
    %3874 = vmatprep.subr.mxu0 0.0
    %3875 = vmatpush2.msra.mxu0 0.0
    %3876 = vmatprep.subr.mxu0 0.0
    %3877 = vmatpush2.msra.mxu0 0.0
    %3878 = vmatprep.subr.mxu0 0.0
    %3879 = vmatpush2.msra.mxu0 0.0
    %3880 = vmatprep.subr.mxu0 0.0
    %3881 = vmatpush2.msra.mxu0 0.0
    %3882 = vmatprep.mubr.f32.mxu0 0.0
    %3883 = vmatmul.mubr.f32.gmra.mxu0 %v3816
    %v3884 = vpop.f32.mrf.mxu0
    %v3885 = vadd.f32 0.0, %v3884
    %v3886 = vpop.f32.mrf.mxu0
    %v3887 = vadd.f32 0.0, %v3886
    %3888 = vdwg.mxu0
    %v3889 = vld [vmem:[%s3215] sm:$0xf]
    %v3890 = vld [vmem:[%s3202] sm:$0xf]
    %v3893 = vunpack.c.l.s4 1983009808
    %v3894 = vunpack.c.0.s8 %v3893
    %v3895 = vlaneseq
    %v3896 = vshrl.u32 %v3895, 7
    %v3897 = vsub.s32 %v3894, %v3896
    %v3898 = vrot.slane %v3889, %v3897
    %v3899 = vcombine.high %v3898, %v3898
    %v3904 = vunpack.c.l.s4 1983009808
    %v3905 = vunpack.c.0.s8 %v3904
    %v3906 = vlaneseq
    %v3907 = vshrl.u32 %v3906, 7
    %v3908 = vsub.s32 %v3905, %v3907
    %v3909 = vrot.slane %v3890, %v3908
    %v3910 = vcombine.high %v3909, %v3909
    %v3913 = vsel %vm3346, %v3898, %v3909
    %v3914 = vsel %vm3347, %v3899, %v3910
    %s3915 = scalar_lea.vmem [#allocation10], 8
    %v3916 = vld [vmem:[%s3915] sm:$0x3]
    %v3917 = vadd.f32 %v3913, %v3885
    %v3918 = vxor.u32 %v3917, 2147483648
    %v3919 = vmul.f32 %v3918, 1.442695
    %v3920 = vpow.pop %v3919
    %v3921 = vadd.f32 %v3920, 1.0
    %v3922 = vrcp.pop %v3921
    %v3923 = vmul.f32 1.0, %v3922
    %v3924 = vadd.f32 %v3887, %v3259
    %v3925 = vmul.f32 %v3923, %v3924
    %v3926 = vadd.f32 %v3914, %v3925
    %v3927 = vtanh.pop %v3926
    %v3928 = vsub.f32 1.0, %v3923
    %3930 = vrot.lane.b32.xlu0 %v3927, 64
    %v3931 = vpop.permute.xlu0 %3930
    %v3933 = vmul.f32 %v3928, %v3931
    %3934 = vrot.lane.b32.xlu0 %v3809, 64
    %v3935 = vpop.permute.xlu0 %3934
    %v3937 = vmul.f32 %v3923, %v3935
    %v3938 = vadd.f32 %v3933, %v3937
    %3940 = vrot.lane.b32.xlu0 %v3938, 64
    %v3941 = vpop.permute.xlu0 %3940
    %v3943 = vmul.f32 %v3916, %v3941
    %v3944 = vsub.f32 1.0, %v3916
    %v3945 = vmul.f32 %v3944, %v3809
    %v3946 = vadd.f32 %v3943, %v3945
    %v3947 = vmul.f32 %v3916, %v3946
    %3948 = vst.msk [vmem:[%s3813] sm:$0x3] %vm681, %v3947
    %3949 = vst.msk [vmem:[%s3811] sm:$0x3] %vm684, %v3947
    %v3951 = vsel %vm2486, %v3946, 0
    %3953 = vmatprep.subr.mxu0 0.0
    %3954 = vmatpush1.msra.mxu0 0.0
    %3955 = vmatprep.subr.mxu0 0.0
    %3956 = vmatpush1.msra.mxu0 0.0
    %3957 = vmatprep.subr.mxu0 0.0
    %3958 = vmatpush1.msra.mxu0 0.0
    %3959 = vmatprep.subr.mxu0 0.0
    %3960 = vmatpush1.msra.mxu0 0.0
    %3961 = vmatprep.subr.mxu0 0.0
    %3962 = vmatpush1.msra.mxu0 0.0
    %3963 = vmatprep.subr.mxu0 0.0
    %3964 = vmatpush1.msra.mxu0 0.0
    %3965 = vmatprep.subr.mxu0 0.0
    %3966 = vmatpush1.msra.mxu0 0.0
    %3967 = vmatprep.subr.mxu0 0.0
    %3968 = vmatpush1.msra.mxu0 0.0
    %3969 = vmatprep.subr.mxu0 %v3253
    %3970 = vmatpush1.msra.mxu0 %v3252
    %3971 = vmatprep.subr.mxu0 %v3251
    %3972 = vmatpush1.msra.mxu0 %v3250
    %3973 = vmatprep.subr.mxu0 %v3249
    %3974 = vmatpush1.msra.mxu0 %v3248
    %3975 = vmatprep.subr.mxu0 %v3247
    %3976 = vmatpush1.msra.mxu0 %v3246
    %3977 = vmatprep.subr.mxu0 %v3245
    %3978 = vmatpush1.msra.mxu0 %v3244
    %3979 = vmatprep.subr.mxu0 %v3243
    %3980 = vmatpush1.msra.mxu0 %v3242
    %3981 = vmatprep.subr.mxu0 %v3241
    %3982 = vmatpush1.msra.mxu0 %v3240
    %3983 = vmatprep.subr.mxu0 %v3239
    %3984 = vmatpush1.msra.mxu0 %v3238
    %3985 = vmatprep.subr.mxu0 0.0
    %3986 = vmatpush2.msra.mxu0 0.0
    %3987 = vmatprep.subr.mxu0 0.0
    %3988 = vmatpush2.msra.mxu0 0.0
    %3989 = vmatprep.subr.mxu0 0.0
    %3990 = vmatpush2.msra.mxu0 0.0
    %3991 = vmatprep.subr.mxu0 0.0
    %3992 = vmatpush2.msra.mxu0 0.0
    %3993 = vmatprep.subr.mxu0 0.0
    %3994 = vmatpush2.msra.mxu0 0.0
    %3995 = vmatprep.subr.mxu0 0.0
    %3996 = vmatpush2.msra.mxu0 0.0
    %3997 = vmatprep.subr.mxu0 0.0
    %3998 = vmatpush2.msra.mxu0 0.0
    %3999 = vmatprep.subr.mxu0 0.0
    %4000 = vmatpush2.msra.mxu0 0.0
    %4001 = vmatprep.subr.mxu0 0.0
    %4002 = vmatpush2.msra.mxu0 0.0
    %4003 = vmatprep.subr.mxu0 0.0
    %4004 = vmatpush2.msra.mxu0 0.0
    %4005 = vmatprep.subr.mxu0 0.0
    %4006 = vmatpush2.msra.mxu0 0.0
    %4007 = vmatprep.subr.mxu0 0.0
    %4008 = vmatpush2.msra.mxu0 0.0
    %4009 = vmatprep.subr.mxu0 0.0
    %4010 = vmatpush2.msra.mxu0 0.0
    %4011 = vmatprep.subr.mxu0 0.0
    %4012 = vmatpush2.msra.mxu0 0.0
    %4013 = vmatprep.subr.mxu0 0.0
    %4014 = vmatpush2.msra.mxu0 0.0
    %4015 = vmatprep.subr.mxu0 0.0
    %4016 = vmatpush2.msra.mxu0 0.0
    %4017 = vmatprep.mubr.f32.mxu0 0.0
    %4018 = vmatmul.mubr.f32.gmra.mxu0 %v3951
    %v4019 = vpop.f32.mrf.mxu0
    %v4020 = vadd.f32 0.0, %v4019
    %v4021 = vpop.f32.mrf.mxu0
    %v4022 = vadd.f32 0.0, %v4021
    %4023 = vdwg.mxu0
    %v4024 = vld [vmem:[%s3219] sm:$0xf]
    %v4025 = vld [vmem:[%s3198] sm:$0xf]
    %v4028 = vunpack.c.l.s4 1983009808
    %v4029 = vunpack.c.0.s8 %v4028
    %v4030 = vlaneseq
    %v4031 = vshrl.u32 %v4030, 7
    %v4032 = vsub.s32 %v4029, %v4031
    %v4033 = vrot.slane %v4024, %v4032
    %v4034 = vcombine.high %v4033, %v4033
    %v4039 = vunpack.c.l.s4 1983009808
    %v4040 = vunpack.c.0.s8 %v4039
    %v4041 = vlaneseq
    %v4042 = vshrl.u32 %v4041, 7
    %v4043 = vsub.s32 %v4040, %v4042
    %v4044 = vrot.slane %v4025, %v4043
    %v4045 = vcombine.high %v4044, %v4044
    %v4048 = vsel %vm3346, %v4033, %v4044
    %v4049 = vsel %vm3347, %v4034, %v4045
    %s4050 = scalar_lea.vmem [#allocation10], 10
    %v4051 = vld [vmem:[%s4050] sm:$0x3]
    %v4052 = vadd.f32 %v4048, %v4020
    %v4053 = vxor.u32 %v4052, 2147483648
    %v4054 = vmul.f32 %v4053, 1.442695
    %v4055 = vpow.pop %v4054
    %v4056 = vadd.f32 %v4055, 1.0
    %v4057 = vrcp.pop %v4056
    %v4058 = vmul.f32 1.0, %v4057
    %v4059 = vadd.f32 %v4022, %v3259
    %v4060 = vmul.f32 %v4058, %v4059
    %v4061 = vadd.f32 %v4049, %v4060
    %v4062 = vtanh.pop %v4061
    %v4063 = vsub.f32 1.0, %v4058
    %4065 = vrot.lane.b32.xlu0 %v4062, 64
    %v4066 = vpop.permute.xlu0 %4065
    %v4068 = vmul.f32 %v4063, %v4066
    %4069 = vrot.lane.b32.xlu0 %v3946, 64
    %v4070 = vpop.permute.xlu0 %4069
    %v4072 = vmul.f32 %v4058, %v4070
    %v4073 = vadd.f32 %v4068, %v4072
    %4075 = vrot.lane.b32.xlu0 %v4073, 64
    %v4076 = vpop.permute.xlu0 %4075
    %v4078 = vmul.f32 %v4051, %v4076
    %v4079 = vsub.f32 1.0, %v4051
    %v4080 = vmul.f32 %v4079, %v3946
    %v4081 = vadd.f32 %v4078, %v4080
    %v4082 = vmul.f32 %v4051, %v4081
    %4083 = vst.msk [vmem:[%s3676] sm:$0x3] %vm681, %v4082
    %4084 = vst.msk [vmem:[%s3674] sm:$0x3] %vm684, %v4082
    %v4086 = vsel %vm2486, %v4081, 0
    %4088 = vmatprep.subr.mxu0 0.0
    %4089 = vmatpush1.msra.mxu0 0.0
    %4090 = vmatprep.subr.mxu0 0.0
    %4091 = vmatpush1.msra.mxu0 0.0
    %4092 = vmatprep.subr.mxu0 0.0
    %4093 = vmatpush1.msra.mxu0 0.0
    %4094 = vmatprep.subr.mxu0 0.0
    %4095 = vmatpush1.msra.mxu0 0.0
    %4096 = vmatprep.subr.mxu0 0.0
    %4097 = vmatpush1.msra.mxu0 0.0
    %4098 = vmatprep.subr.mxu0 0.0
    %4099 = vmatpush1.msra.mxu0 0.0
    %4100 = vmatprep.subr.mxu0 0.0
    %4101 = vmatpush1.msra.mxu0 0.0
    %4102 = vmatprep.subr.mxu0 0.0
    %4103 = vmatpush1.msra.mxu0 0.0
    %4104 = vmatprep.subr.mxu0 %v3253
    %4105 = vmatpush1.msra.mxu0 %v3252
    %4106 = vmatprep.subr.mxu0 %v3251
    %4107 = vmatpush1.msra.mxu0 %v3250
    %4108 = vmatprep.subr.mxu0 %v3249
    %4109 = vmatpush1.msra.mxu0 %v3248
    %4110 = vmatprep.subr.mxu0 %v3247
    %4111 = vmatpush1.msra.mxu0 %v3246
    %4112 = vmatprep.subr.mxu0 %v3245
    %4113 = vmatpush1.msra.mxu0 %v3244
    %4114 = vmatprep.subr.mxu0 %v3243
    %4115 = vmatpush1.msra.mxu0 %v3242
    %4116 = vmatprep.subr.mxu0 %v3241
    %4117 = vmatpush1.msra.mxu0 %v3240
    %4118 = vmatprep.subr.mxu0 %v3239
    %4119 = vmatpush1.msra.mxu0 %v3238
    %4120 = vmatprep.subr.mxu0 0.0
    %4121 = vmatpush2.msra.mxu0 0.0
    %4122 = vmatprep.subr.mxu0 0.0
    %4123 = vmatpush2.msra.mxu0 0.0
    %4124 = vmatprep.subr.mxu0 0.0
    %4125 = vmatpush2.msra.mxu0 0.0
    %4126 = vmatprep.subr.mxu0 0.0
    %4127 = vmatpush2.msra.mxu0 0.0
    %4128 = vmatprep.subr.mxu0 0.0
    %4129 = vmatpush2.msra.mxu0 0.0
    %4130 = vmatprep.subr.mxu0 0.0
    %4131 = vmatpush2.msra.mxu0 0.0
    %4132 = vmatprep.subr.mxu0 0.0
    %4133 = vmatpush2.msra.mxu0 0.0
    %4134 = vmatprep.subr.mxu0 0.0
    %4135 = vmatpush2.msra.mxu0 0.0
    %4136 = vmatprep.subr.mxu0 0.0
    %4137 = vmatpush2.msra.mxu0 0.0
    %4138 = vmatprep.subr.mxu0 0.0
    %4139 = vmatpush2.msra.mxu0 0.0
    %4140 = vmatprep.subr.mxu0 0.0
    %4141 = vmatpush2.msra.mxu0 0.0
    %4142 = vmatprep.subr.mxu0 0.0
    %4143 = vmatpush2.msra.mxu0 0.0
    %4144 = vmatprep.subr.mxu0 0.0
    %4145 = vmatpush2.msra.mxu0 0.0
    %4146 = vmatprep.subr.mxu0 0.0
    %4147 = vmatpush2.msra.mxu0 0.0
    %4148 = vmatprep.subr.mxu0 0.0
    %4149 = vmatpush2.msra.mxu0 0.0
    %4150 = vmatprep.subr.mxu0 0.0
    %4151 = vmatpush2.msra.mxu0 0.0
    %4152 = vmatprep.mubr.f32.mxu0 0.0
    %4153 = vmatmul.mubr.f32.gmra.mxu0 %v4086
    %v4154 = vpop.f32.mrf.mxu0
    %v4155 = vadd.f32 0.0, %v4154
    %v4156 = vpop.f32.mrf.mxu0
    %v4157 = vadd.f32 0.0, %v4156
    %4158 = vdwg.mxu0
    %v4159 = vld [vmem:[%s3230] sm:$0xf]
    %v4160 = vld [vmem:[%s3187] sm:$0xf]
    %v4163 = vunpack.c.l.s4 1983009808
    %v4164 = vunpack.c.0.s8 %v4163
    %v4165 = vlaneseq
    %v4166 = vshrl.u32 %v4165, 7
    %v4167 = vsub.s32 %v4164, %v4166
    %v4168 = vrot.slane %v4159, %v4167
    %v4169 = vcombine.high %v4168, %v4168
    %v4174 = vunpack.c.l.s4 1983009808
    %v4175 = vunpack.c.0.s8 %v4174
    %v4176 = vlaneseq
    %v4177 = vshrl.u32 %v4176, 7
    %v4178 = vsub.s32 %v4175, %v4177
    %v4179 = vrot.slane %v4160, %v4178
    %v4180 = vcombine.high %v4179, %v4179
    %v4183 = vsel %vm3346, %v4168, %v4179
    %v4184 = vsel %vm3347, %v4169, %v4180
    %s4185 = scalar_lea.vmem [#allocation10], 12
    %v4186 = vld [vmem:[%s4185] sm:$0x3]
    %v4187 = vadd.f32 %v4183, %v4155
    %v4188 = vxor.u32 %v4187, 2147483648
    %v4189 = vmul.f32 %v4188, 1.442695
    %v4190 = vpow.pop %v4189
    %v4191 = vadd.f32 %v4190, 1.0
    %v4192 = vrcp.pop %v4191
    %v4193 = vmul.f32 1.0, %v4192
    %v4194 = vadd.f32 %v4157, %v3259
    %v4195 = vmul.f32 %v4193, %v4194
    %v4196 = vadd.f32 %v4184, %v4195
    %v4197 = vtanh.pop %v4196
    %v4198 = vsub.f32 1.0, %v4193
    %4200 = vrot.lane.b32.xlu0 %v4197, 64
    %v4201 = vpop.permute.xlu0 %4200
    %v4203 = vmul.f32 %v4198, %v4201
    %4204 = vrot.lane.b32.xlu0 %v4081, 64
    %v4205 = vpop.permute.xlu0 %4204
    %v4207 = vmul.f32 %v4193, %v4205
    %v4208 = vadd.f32 %v4203, %v4207
    %4210 = vrot.lane.b32.xlu0 %v4208, 64
    %v4211 = vpop.permute.xlu0 %4210
    %v4213 = vmul.f32 %v4186, %v4211
    %v4214 = vsub.f32 1.0, %v4186
    %v4215 = vmul.f32 %v4214, %v4081
    %v4216 = vadd.f32 %v4213, %v4215
    %v4217 = vmul.f32 %v4186, %v4216
    %4218 = vst.msk [vmem:[%s3539] sm:$0x3] %vm681, %v4217
    %4219 = vst.msk [vmem:[%s3537] sm:$0x3] %vm684, %v4217
    %v4221 = vsel %vm2486, %v4216, 0
    %4223 = vmatprep.subr.mxu0 0.0
    %4224 = vmatpush1.msra.mxu0 0.0
    %4225 = vmatprep.subr.mxu0 0.0
    %4226 = vmatpush1.msra.mxu0 0.0
    %4227 = vmatprep.subr.mxu0 0.0
    %4228 = vmatpush1.msra.mxu0 0.0
    %4229 = vmatprep.subr.mxu0 0.0
    %4230 = vmatpush1.msra.mxu0 0.0
    %4231 = vmatprep.subr.mxu0 0.0
    %4232 = vmatpush1.msra.mxu0 0.0
    %4233 = vmatprep.subr.mxu0 0.0
    %4234 = vmatpush1.msra.mxu0 0.0
    %4235 = vmatprep.subr.mxu0 0.0
    %4236 = vmatpush1.msra.mxu0 0.0
    %4237 = vmatprep.subr.mxu0 0.0
    %4238 = vmatpush1.msra.mxu0 0.0
    %4239 = vmatprep.subr.mxu0 %v3253
    %4240 = vmatpush1.msra.mxu0 %v3252
    %4241 = vmatprep.subr.mxu0 %v3251
    %4242 = vmatpush1.msra.mxu0 %v3250
    %4243 = vmatprep.subr.mxu0 %v3249
    %4244 = vmatpush1.msra.mxu0 %v3248
    %4245 = vmatprep.subr.mxu0 %v3247
    %4246 = vmatpush1.msra.mxu0 %v3246
    %4247 = vmatprep.subr.mxu0 %v3245
    %4248 = vmatpush1.msra.mxu0 %v3244
    %4249 = vmatprep.subr.mxu0 %v3243
    %4250 = vmatpush1.msra.mxu0 %v3242
    %4251 = vmatprep.subr.mxu0 %v3241
    %4252 = vmatpush1.msra.mxu0 %v3240
    %4253 = vmatprep.subr.mxu0 %v3239
    %4254 = vmatpush1.msra.mxu0 %v3238
    %4255 = vmatprep.subr.mxu0 0.0
    %4256 = vmatpush2.msra.mxu0 0.0
    %4257 = vmatprep.subr.mxu0 0.0
    %4258 = vmatpush2.msra.mxu0 0.0
    %4259 = vmatprep.subr.mxu0 0.0
    %4260 = vmatpush2.msra.mxu0 0.0
    %4261 = vmatprep.subr.mxu0 0.0
    %4262 = vmatpush2.msra.mxu0 0.0
    %4263 = vmatprep.subr.mxu0 0.0
    %4264 = vmatpush2.msra.mxu0 0.0
    %4265 = vmatprep.subr.mxu0 0.0
    %4266 = vmatpush2.msra.mxu0 0.0
    %4267 = vmatprep.subr.mxu0 0.0
    %4268 = vmatpush2.msra.mxu0 0.0
    %4269 = vmatprep.subr.mxu0 0.0
    %4270 = vmatpush2.msra.mxu0 0.0
    %4271 = vmatprep.subr.mxu0 0.0
    %4272 = vmatpush2.msra.mxu0 0.0
    %4273 = vmatprep.subr.mxu0 0.0
    %4274 = vmatpush2.msra.mxu0 0.0
    %4275 = vmatprep.subr.mxu0 0.0
    %4276 = vmatpush2.msra.mxu0 0.0
    %4277 = vmatprep.subr.mxu0 0.0
    %4278 = vmatpush2.msra.mxu0 0.0
    %4279 = vmatprep.subr.mxu0 0.0
    %4280 = vmatpush2.msra.mxu0 0.0
    %4281 = vmatprep.subr.mxu0 0.0
    %4282 = vmatpush2.msra.mxu0 0.0
    %4283 = vmatprep.subr.mxu0 0.0
    %4284 = vmatpush2.msra.mxu0 0.0
    %4285 = vmatprep.subr.mxu0 0.0
    %4286 = vmatpush2.msra.mxu0 0.0
    %4287 = vmatprep.mubr.f32.mxu0 0.0
    %4288 = vmatmul.mubr.f32.gmra.mxu0 %v4221
    %v4289 = vpop.f32.mrf.mxu0
    %v4290 = vadd.f32 0.0, %v4289
    %v4291 = vpop.f32.mrf.mxu0
    %v4292 = vadd.f32 0.0, %v4291
    %4293 = vdwg.mxu0
    %v4294 = vld [vmem:[%s3234] sm:$0xf]
    %v4295 = vld [vmem:[#allocation5] sm:$0xf]
    %v4298 = vunpack.c.l.s4 1983009808
    %v4299 = vunpack.c.0.s8 %v4298
    %v4300 = vlaneseq
    %v4301 = vshrl.u32 %v4300, 7
    %v4302 = vsub.s32 %v4299, %v4301
    %v4303 = vrot.slane %v4294, %v4302
    %v4304 = vcombine.high %v4303, %v4303
    %v4309 = vunpack.c.l.s4 1983009808
    %v4310 = vunpack.c.0.s8 %v4309
    %v4311 = vlaneseq
    %v4312 = vshrl.u32 %v4311, 7
    %v4313 = vsub.s32 %v4310, %v4312
    %v4314 = vrot.slane %v4295, %v4313
    %v4315 = vcombine.high %v4314, %v4314
    %v4318 = vsel %vm3346, %v4303, %v4314
    %v4319 = vsel %vm3347, %v4304, %v4315
    %s4320 = scalar_lea.vmem [#allocation10], 14
    %v4321 = vld [vmem:[%s4320] sm:$0x3]
    %v4322 = vadd.f32 %v4318, %v4290
    %v4323 = vxor.u32 %v4322, 2147483648
    %v4324 = vmul.f32 %v4323, 1.442695
    %v4325 = vpow.pop %v4324
    %v4326 = vadd.f32 %v4325, 1.0
    %v4327 = vrcp.pop %v4326
    %v4328 = vmul.f32 1.0, %v4327
    %v4329 = vadd.f32 %v4292, %v3259
    %v4330 = vmul.f32 %v4328, %v4329
    %v4331 = vadd.f32 %v4319, %v4330
    %v4332 = vtanh.pop %v4331
    %v4333 = vsub.f32 1.0, %v4328
    %4335 = vrot.lane.b32.xlu0 %v4332, 64
    %v4336 = vpop.permute.xlu0 %4335
    %v4338 = vmul.f32 %v4333, %v4336
    %4339 = vrot.lane.b32.xlu0 %v4216, 64
    %v4340 = vpop.permute.xlu0 %4339
    %v4342 = vmul.f32 %v4328, %v4340
    %v4343 = vadd.f32 %v4338, %v4342
    %4345 = vrot.lane.b32.xlu0 %v4343, 64
    %v4346 = vpop.permute.xlu0 %4345
    %v4348 = vmul.f32 %v4321, %v4346
    %v4349 = vsub.f32 1.0, %v4321
    %v4350 = vmul.f32 %v4349, %v4216
    %v4351 = vadd.f32 %v4348, %v4350
    %v4352 = vmul.f32 %v4321, %v4351
    %4353 = vst.msk [vmem:[%s3402] sm:$0x3] %vm681, %v4352
    %4354 = vst.msk [vmem:[#allocation6] sm:$0x3] %vm684, %v4352
    %v4355 = vld [vmem:[#allocation6] sm:$0x3]
    %v4356 = vld [vmem:[#allocation6 + $0x2] sm:$0x3]
    %v4357 = vld [vmem:[#allocation6 + $0x4] sm:$0x3]
    %v4358 = vld [vmem:[#allocation6 + $0x6] sm:$0x3]
    %v4359 = vld [vmem:[#allocation6 + $0x8] sm:$0x3]
    %v4360 = vld [vmem:[#allocation6 + $0xa] sm:$0x3]
    %v4361 = vld [vmem:[#allocation6 + $0xc] sm:$0x3]
    %v4362 = vld [vmem:[#allocation6 + $0xe] sm:$0x3]
    %v4363 = vld [vmem:[%s15] sm:$0x1]
    %v4365 = vlaneseq
    %v4366 = vshrl.u32 %v4365, 7
    %v4367 = vsub.s32 0, %v4366
    %v4368 = vrot.slane %v4363, %v4367
    %v4370 = vmul.f32 %v4355, %v4368
    %v4371 = vmul.f32 %v4356, %v4368
    %v4372 = vmul.f32 %v4357, %v4368
    %v4373 = vmul.f32 %v4358, %v4368
    %v4374 = vmul.f32 %v4359, %v4368
    %v4375 = vmul.f32 %v4360, %v4368
    %v4376 = vmul.f32 %v4361, %v4368
    %v4377 = vmul.f32 %v4362, %v4368
    %vm4378 = vcmask 517120
    %v4379 = vsel %vm4378, %v4370, 0.0
    %4380 = vadd.xlane.f32.xlu0 %v4379
    %v4381 = vpop.xlane.xlu0 %4380
    %v4382 = vsel %vm4378, %v4371, 0.0
    %4383 = vadd.xlane.f32.xlu0 %v4382
    %v4384 = vpop.xlane.xlu0 %4383
    %v4385 = vsel %vm4378, %v4372, 0.0
    %4386 = vadd.xlane.f32.xlu0 %v4385
    %v4387 = vpop.xlane.xlu0 %4386
    %v4388 = vsel %vm4378, %v4373, 0.0
    %4389 = vadd.xlane.f32.xlu0 %v4388
    %v4390 = vpop.xlane.xlu0 %4389
    %v4391 = vsel %vm4378, %v4374, 0.0
    %4392 = vadd.xlane.f32.xlu0 %v4391
    %v4393 = vpop.xlane.xlu0 %4392
    %v4394 = vsel %vm4378, %v4375, 0.0
    %4395 = vadd.xlane.f32.xlu0 %v4394
    %v4396 = vpop.xlane.xlu0 %4395
    %v4397 = vsel %vm4378, %v4376, 0.0
    %4398 = vadd.xlane.f32.xlu0 %v4397
    %v4399 = vpop.xlane.xlu0 %4398
    %v4400 = vsel %vm4378, %v4377, 0.0
    %4401 = vadd.xlane.f32.xlu0 %v4400
    %v4402 = vpop.xlane.xlu0 %4401
    %v4403 = vld [vmem:[#allocation10] sm:$0x3]
    %v4404 = vld [vmem:[#allocation10 + $0x2] sm:$0x3]
    %v4405 = vld [vmem:[#allocation10 + $0x4] sm:$0x3]
    %v4406 = vld [vmem:[#allocation10 + $0x6] sm:$0x3]
    %v4407 = vld [vmem:[#allocation10 + $0x8] sm:$0x3]
    %v4408 = vld [vmem:[#allocation10 + $0xa] sm:$0x3]
    %v4409 = vld [vmem:[#allocation10 + $0xc] sm:$0x3]
    %v4410 = vld [vmem:[#allocation10 + $0xe] sm:$0x3]
    %v4411 = vxor.u32 %v4381, 2147483648
    %v4412 = vxor.u32 %v4384, 2147483648
    %v4413 = vxor.u32 %v4387, 2147483648
    %v4414 = vxor.u32 %v4390, 2147483648
    %v4415 = vxor.u32 %v4393, 2147483648
    %v4416 = vxor.u32 %v4396, 2147483648
    %v4417 = vxor.u32 %v4399, 2147483648
    %v4418 = vxor.u32 %v4402, 2147483648
    %v4419 = vmul.f32 %v4411, 1.442695
    %v4420 = vpow.pop %v4419
    %v4421 = vmul.f32 %v4412, 1.442695
    %v4422 = vpow.pop %v4421
    %v4423 = vmul.f32 %v4413, 1.442695
    %v4424 = vpow.pop %v4423
    %v4425 = vmul.f32 %v4414, 1.442695
    %v4426 = vpow.pop %v4425
    %v4427 = vmul.f32 %v4415, 1.442695
    %v4428 = vpow.pop %v4427
    %v4429 = vmul.f32 %v4416, 1.442695
    %v4430 = vpow.pop %v4429
    %v4431 = vmul.f32 %v4417, 1.442695
    %v4432 = vpow.pop %v4431
    %v4433 = vmul.f32 %v4418, 1.442695
    %v4434 = vpow.pop %v4433
    %v4435 = vadd.f32 %v4420, 1.0
    %v4436 = vadd.f32 %v4422, 1.0
    %v4437 = vadd.f32 %v4424, 1.0
    %v4438 = vadd.f32 %v4426, 1.0
    %v4439 = vadd.f32 %v4428, 1.0
    %v4440 = vadd.f32 %v4430, 1.0
    %v4441 = vadd.f32 %v4432, 1.0
    %v4442 = vadd.f32 %v4434, 1.0
    %v4443 = vrcp.pop %v4435
    %v4444 = vmul.f32 1.0, %v4443
    %v4445 = vrcp.pop %v4436
    %v4446 = vmul.f32 1.0, %v4445
    %v4447 = vrcp.pop %v4437
    %v4448 = vmul.f32 1.0, %v4447
    %v4449 = vrcp.pop %v4438
    %v4450 = vmul.f32 1.0, %v4449
    %v4451 = vrcp.pop %v4439
    %v4452 = vmul.f32 1.0, %v4451
    %v4453 = vrcp.pop %v4440
    %v4454 = vmul.f32 1.0, %v4453
    %v4455 = vrcp.pop %v4441
    %v4456 = vmul.f32 1.0, %v4455
    %v4457 = vrcp.pop %v4442
    %v4458 = vmul.f32 1.0, %v4457
    %v4459 = vmul.f32 %v4444, %v4403
    %v4460 = vmul.f32 %v4446, %v4404
    %v4461 = vmul.f32 %v4448, %v4405
    %v4462 = vmul.f32 %v4450, %v4406
    %v4463 = vmul.f32 %v4452, %v4407
    %v4464 = vmul.f32 %v4454, %v4408
    %v4465 = vmul.f32 %v4456, %v4409
    %v4466 = vmul.f32 %v4458, %v4410
    %vm4467 = vcmask 1024
    %v4468 = vsel %vm4467, %v4403, 0.0
    %v4469 = vsel %vm4467, %v4404, 0.0
    %v4470 = vadd.f32 %v4468, %v4469
    %v4471 = vsel %vm4467, %v4405, 0.0
    %v4472 = vadd.f32 %v4470, %v4471
    %v4473 = vsel %vm4467, %v4406, 0.0
    %v4474 = vadd.f32 %v4472, %v4473
    %v4475 = vsel %vm4467, %v4407, 0.0
    %v4476 = vadd.f32 %v4474, %v4475
    %v4477 = vsel %vm4467, %v4408, 0.0
    %v4478 = vadd.f32 %v4476, %v4477
    %v4479 = vsel %vm4467, %v4409, 0.0
    %v4480 = vadd.f32 %v4478, %v4479
    %v4481 = vsel %vm4467, %v4410, 0.0
    %v4482 = vadd.f32 %v4480, %v4481
    %v4483 = vsel %vm4467, %v4459, 0.0
    %v4484 = vsel %vm4467, %v4460, 0.0
    %v4485 = vadd.f32 %v4483, %v4484
    %v4486 = vsel %vm4467, %v4461, 0.0
    %v4487 = vadd.f32 %v4485, %v4486
    %v4488 = vsel %vm4467, %v4462, 0.0
    %v4489 = vadd.f32 %v4487, %v4488
    %v4490 = vsel %vm4467, %v4463, 0.0
    %v4491 = vadd.f32 %v4489, %v4490
    %v4492 = vsel %vm4467, %v4464, 0.0
    %v4493 = vadd.f32 %v4491, %v4492
    %v4494 = vsel %vm4467, %v4465, 0.0
    %v4495 = vadd.f32 %v4493, %v4494
    %v4496 = vsel %vm4467, %v4466, 0.0
    %v4497 = vadd.f32 %v4495, %v4496
    %v4498 = vrcp.pop %v4482
    %v4499 = vmul.f32 %v4497, %v4498
    %v4500 = vld [vmem:[%s5] sm:$0x3]
    %v4501 = vlog2.pop %v4499
    %v4502 = vmul.f32 %v4501, 0.6931472
    %v4503 = vmax.f32 %v4502, -100.0
    %v4504 = vsub.f32 1.0, %v4499
    %v4505 = vlog2.pop %v4504
    %v4506 = vmul.f32 %v4505, 0.6931472
    %v4507 = vmax.f32 %v4506, -100.0
    %v4508 = vmul.f32 %v4500, %v4503
    %v4509 = vsub.f32 1.0, %v4500
    %v4510 = vmul.f32 %v4509, %v4507
    %v4511 = vadd.f32 %v4508, %v4510
    %v4512 = vsub.f32 0.0, %v4511
    %v4513 = vmul.f32 %v4499, %v4503
    %v4514 = vmul.f32 %v4504, %v4507
    %v4515 = vadd.f32 %v4513, %v4514
    %v4516 = vsub.f32 0.0, %v4515
    %v4517 = vsel %vm4467, %v4512, 0.0
    %v4518 = vrot.slane %v4517, 4
    %v4519 = vadd.f32 %v4517, %v4518
    %v4520 = vrot.slane %v4519, 2
    %v4521 = vadd.f32 %v4519, %v4520
    %v4522 = vrot.slane %v4521, 1
    %v4523 = vadd.f32 %v4521, %v4522
    %v4524 = vsel %vm4467, %v4516, 0.0
    %v4525 = vrot.slane %v4524, 4
    %v4526 = vadd.f32 %v4524, %v4525
    %v4527 = vrot.slane %v4526, 2
    %v4528 = vadd.f32 %v4526, %v4527
    %v4529 = vrot.slane %v4528, 1
    %v4530 = vadd.f32 %v4528, %v4529
    %v4531 = vmul.f32 %v4530, 0.01
    %v4532 = vadd.f32 %v4523, %v4531
    %v4533 = vmul.f32 %v4532, 0.5
    %vm4534 = vcmask 0
    %4535 = vst.msk [vmem:[#allocation15] sm:$0x1] %vm4534, %v4533
    // Predicated region
    $region86: #{tpu_custom_call.1} parent=1 // pred_check
      _
    $region87: #{tpu_custom_call.1} parent=1 // pred_check_branch
      %4537 = sbr.rel (0) target = $region89
    $region88: #{tpu_custom_call.1} parent=1 // pred_region
      %s4539 = ssub.s32 16, 16
      %4540 = vsyncadd [#allocation9], %s4539
      %s4542 = sshll.u32 [#allocation15], 4
      %s4543 = int_to_ptr.vmem [resolvable:$true] %s4542
      %4545 = dma.vmem_to_hbm [thread:$0]  %s4543, 16, %s17, [#allocation9]
    $region89: #{tpu_custom_call.1} parent=1 // pred_fallthru
      _
    // Predicated region
    $region90: #{tpu_custom_call.1} parent=1 // pred_check
      _
    $region91: #{tpu_custom_call.1} parent=1 // pred_check_branch
      %4547 = sbr.rel (0) target = $region93
    $region92: #{tpu_custom_call.1} parent=1 // pred_region
      %4548 = dma.done [#allocation9], 16
    $region93: #{tpu_custom_call.1} parent=1 // pred_fallthru
      _
    %4549 = vsyncpa [#allocation8], 1
    %4550 = vsyncpa [#allocation11], 1
    %4551 = vsyncpa [#allocation14], 1
    %4552 = vsyncpa [#allocation9], 1

</llo_original>
